<compile_context>
chip_gen: v7x
topology: tpu7x:2x2x1
jax: 0.10.0
libtpu: 0.0.40
codegen_flags: <defaults>
</compile_context>

<pallas_src>
import functools
import math

import jax
import jax.numpy as jnp
from jax import lax
from jax.experimental import pallas as pl
from jax.experimental.pallas import tpu as pltpu


def _const_index_map(ndim):
    zeros = (0,) * ndim
    return lambda g: zeros


# ----------------------------------------------------------------------------
# Fused kernel: all encoder layers + summary head, whole (B-1) batch per call.
# ----------------------------------------------------------------------------
def _fused_encoder_kernel(x_ref,
                          wq_ref, wk_ref, wv_ref, bq_ref, bk_ref, bv_ref,
                          wo_ref, bo_ref,
                          g1_ref, bn1_ref, w1_ref, b1_ref,
                          w2_ref, b2_ref, g2_ref, bn2_ref,
                          swv_ref, sbv_ref, swo_ref, sbo_ref,
                          o_ref, *, n_layers, n_heads, n_batch, seq_len):
    NS, D = x_ref.shape
    NB, S, H = n_batch, seq_len, n_heads
    hd = D // H
    scale = 1.0 / math.sqrt(hd)

    xf = x_ref[...]                                    # (NB*S, D) flat slab

    for l in range(n_layers):                          # static unroll, L small
        # ---- multi-head self-attention (per-head weights, no lane slices) ---
        attn_out = None
        for h in range(H):                             # static unroll, H small
            qh = jnp.dot(xf, wq_ref[l, h], preferred_element_type=jnp.float32) + bq_ref[l, h]
            kh = jnp.dot(xf, wk_ref[l, h], preferred_element_type=jnp.float32) + bk_ref[l, h]
            vh = jnp.dot(xf, wv_ref[l, h], preferred_element_type=jnp.float32) + bv_ref[l, h]
            # (NB*S, hd) -> (NB, S, hd): layout-preserving (splits sublane tiles)
            qh = qh.reshape(NB, S, hd)
            kh = kh.reshape(NB, S, hd)
            vh = vh.reshape(NB, S, hd)

            scores = jnp.einsum('bqd,bkd->bqk', qh, kh,
                                preferred_element_type=jnp.float32) * scale
            m = jnp.max(scores, axis=-1, keepdims=True)
            e = jnp.exp(scores - m)
            p = e / jnp.sum(e, axis=-1, keepdims=True)
            ctx = jnp.einsum('bqk,bkd->bqd', p, vh,
                             preferred_element_type=jnp.float32).reshape(NS, hd)
            # accumulate this head's contribution through its slice of W_o
            part = jnp.dot(ctx, wo_ref[l, h], preferred_element_type=jnp.float32)
            attn_out = part if attn_out is None else attn_out + part
        attn_out = attn_out + bo_ref[l]

        # ---- residual + LayerNorm1 (post-LN, eps=1e-5, biased variance) ----
        h1 = xf + attn_out
        mu = jnp.mean(h1, axis=-1, keepdims=True)
        var = jnp.mean((h1 - mu) ** 2, axis=-1, keepdims=True)
        h1 = (h1 - mu) * lax.rsqrt(var + 1e-5) * g1_ref[l] + bn1_ref[l]

        # ---- feed-forward (D -> 4D -> D, ReLU) ----
        ff = jnp.dot(h1, w1_ref[l], preferred_element_type=jnp.float32) + b1_ref[l]
        ff = jnp.maximum(ff, 0.0)
        ff = jnp.dot(ff, w2_ref[l], preferred_element_type=jnp.float32) + b2_ref[l]

        # ---- residual + LayerNorm2 ----
        h2 = h1 + ff
        mu2 = jnp.mean(h2, axis=-1, keepdims=True)
        var2 = jnp.mean((h2 - mu2) ** 2, axis=-1, keepdims=True)
        xf = (h2 - mu2) * lax.rsqrt(var2 + 1e-5) * g2_ref[l] + bn2_ref[l]

    # ---- SummaryWithAttention head ----
    # Softmax in the module runs over a size-1 axis (== 1.0 exactly), so the
    # head output is bit-exactly W_o( sum_{s<S-1} (W_v x_s + b_v) ).  W_q / W_k
    # only feed the dead softmax and are skipped.  The sequence sum is hoisted
    # before W_v (linear), so W_v acts on (NB, D) instead of (NB*S, D).
    x3 = xf.reshape(NB, S, D)
    seq_idx = lax.broadcasted_iota(jnp.int32, (NB, S, D), 1)
    vsum_in = jnp.sum(jnp.where(seq_idx < S - 1, x3, 0.0), axis=1)   # (NB, D)
    vp = jnp.dot(vsum_in, swv_ref[...], preferred_element_type=jnp.float32) \
         + (S - 1) * sbv_ref[...]
    out = jnp.dot(vp, swo_ref[...], preferred_element_type=jnp.float32) + sbo_ref[...]
    o_ref[...] = out.astype(o_ref.dtype)


def encoder_forward(x, layer_params, summary_params, n_heads):
    """Full Encoder forward: transformer stack + summary head, one pallas_call."""
    B, S, D = x.shape
    assert D % n_heads == 0
    L = len(layer_params)
    H = n_heads
    hd = D // H

    # The module only ever uses encoder outputs for samples 0..B-2, so drop the
    # last sample before the kernel (bit-identical, ~1/B less work & DMA).
    N = B - 1
    x = x[:N]
    x_flat = x.reshape(N * S, D)            # free XLA reshape; slab arrives flat

    # ---- stack + pre-split per-layer / per-head weights (XLA side, free) ----
    wqkv = jnp.stack([p["wqkv"] for p in layer_params])          # (L, D, 3D)
    bqkv = jnp.stack([p["bqkv"] for p in layer_params])          # (L, 1, 3D)

    def per_head_w(w_full):   # (L, D, D) -> (L, H, D, hd)
        return w_full.reshape(L, D, H, hd).transpose(0, 2, 1, 3)

    def per_head_b(b_full):   # (L, 1, D) -> (L, H, 1, hd)
        return b_full.reshape(L, 1, H, hd).transpose(0, 2, 1, 3)

    wq = per_head_w(wqkv[:, :, 0:D])
    wk = per_head_w(wqkv[:, :, D:2 * D])
    wv = per_head_w(wqkv[:, :, 2 * D:3 * D])
    bq = per_head_b(bqkv[:, :, 0:D])
    bk = per_head_b(bqkv[:, :, D:2 * D])
    bv = per_head_b(bqkv[:, :, 2 * D:3 * D])

    wo = jnp.stack([p["wo"] for p in layer_params]).reshape(L, H, hd, D)
    bo = jnp.stack([p["bo"] for p in layer_params])              # (L, 1, D)
    g1 = jnp.stack([p["ln1_g"] for p in layer_params])
    bn1 = jnp.stack([p["ln1_b"] for p in layer_params])
    w1 = jnp.stack([p["w1"] for p in layer_params])
    b1 = jnp.stack([p["b1"] for p in layer_params])
    w2 = jnp.stack([p["w2"] for p in layer_params])
    b2 = jnp.stack([p["b2"] for p in layer_params])
    g2 = jnp.stack([p["ln2_g"] for p in layer_params])
    bn2 = jnp.stack([p["ln2_b"] for p in layer_params])

    sum_w = [summary_params["wv"], summary_params["bv"],
             summary_params["wo"], summary_params["bo"]]

    weights = [wq, wk, wv, bq, bk, bv, wo, bo,
               g1, bn1, w1, b1, w2, b2, g2, bn2] + sum_w
    w_specs = [pl.BlockSpec(w.shape, _const_index_map(w.ndim)) for w in weights]

    kernel = functools.partial(_fused_encoder_kernel, n_layers=L, n_heads=H,
                               n_batch=N, seq_len=S)
    out = pl.pallas_call(
        kernel,
        out_shape=jax.ShapeDtypeStruct((N, D), jnp.float32),
        grid_spec=pltpu.PrefetchScalarGridSpec(
            num_scalar_prefetch=0,
            # Single grid step: single-TC v5e/v6e gain nothing from splitting
            # (N = B-1 is odd here anyway).  TODO(synk): core-parallel split on
            # v7x only if verified to land on both TensorCores.
            grid=(1,),
            in_specs=[pl.BlockSpec((N * S, D), lambda g: (0, 0))] + w_specs,
            out_specs=pl.BlockSpec((N, D), lambda g: (0, 0)),
        ),
        compiler_params=pltpu.CompilerParams(dimension_semantics=("arbitrary",)),
    )(x_flat, *weights)

    return out.reshape(N, 1, D)


# ----------------------------------------------------------------------------
# Pure-JAX reference (same PyTorch semantics, incl. the size-1-axis softmax)
# ----------------------------------------------------------------------------
def _layer_norm(x, g, b, eps=1e-5):
    mu = jnp.mean(x, axis=-1, keepdims=True)
    var = jnp.mean((x - mu) ** 2, axis=-1, keepdims=True)
    return (x - mu) * lax.rsqrt(var + eps) * g + b


def ref_encoder_layer(x, p, n_heads):
    B, S, D = x.shape
    hd = D // n_heads
    qkv = x @ p["wqkv"] + p["bqkv"]
    q, k, v = jnp.split(qkv, 3, axis=-1)
    sh = lambda t: t.reshape(B, S, n_heads, hd).transpose(0, 2, 1, 3)
    qh, kh, vh = sh(q), sh(k), sh(v)
    scores = jnp.einsum('bhsd,bhtd->bhst', qh, kh) / math.sqrt(hd)
    attn = jax.nn.softmax(scores, axis=-1)
    ctx = jnp.einsum('bhst,bhtd->bhsd', attn, vh).transpose(0, 2, 1, 3).reshape(B, S, D)
    h1 = _layer_norm(x + (ctx @ p["wo"] + p["bo"]), p["ln1_g"], p["ln1_b"])
    ff = jnp.maximum(h1 @ p["w1"] + p["b1"], 0.0) @ p["w2"] + p["b2"]
    return _layer_norm(h1 + ff, p["ln2_g"], p["ln2_b"])


def ref_summary(Q, K, V, p, n_heads):
    N, Sk, D = K.shape
    hd = D // n_heads
    Qp = (Q @ p["wq"] + p["bq"]).reshape(N, 1, n_heads, hd)
    Kp = (K @ p["wk"] + p["bk"]).reshape(N, Sk, n_heads, hd)
    Vp = (V @ p["wv"] + p["bv"]).reshape(N, Sk, n_heads, hd)
    Kt = jnp.swapaxes(Kp, -2, -3)
    Vt = jnp.swapaxes(Vp, -2, -3)
    scores = jnp.einsum('npqk,nqsk->nqsp', Qp, Kt) / math.sqrt(hd)
    aw = jax.nn.softmax(scores, axis=-1)
    wv = jnp.einsum('nqsp,nqsk->nqpk', aw, Vt)
    comb = jnp.swapaxes(wv, -2, -3).reshape(-1, 1, D)
    return comb @ p["wo"] + p["bo"]


# ----------------------------------------------------------------------------
# Deterministic parameter construction
# ----------------------------------------------------------------------------
def init_layer_params(key, D, scale=0.05):
    ks = jax.random.split(key, 8)
    nrm = lambda k, s: scale * jax.random.normal(k, s, jnp.float32)
    return dict(
        wqkv=nrm(ks[0], (D, 3 * D)), bqkv=nrm(ks[1], (1, 3 * D)),
        wo=nrm(ks[2], (D, D)), bo=nrm(ks[3], (1, D)),
        ln1_g=jnp.ones((1, D), jnp.float32), ln1_b=jnp.zeros((1, D), jnp.float32),
        w1=nrm(ks[4], (D, 4 * D)), b1=nrm(ks[5], (1, 4 * D)),
        w2=nrm(ks[6], (4 * D, D)), b2=nrm(ks[7], (1, D)),
        ln2_g=jnp.ones((1, D), jnp.float32), ln2_b=jnp.zeros((1, D), jnp.float32),
    )


def init_summary_params(key, D, scale=0.05):
    ks = jax.random.split(key, 8)
    nrm = lambda k, s: scale * jax.random.normal(k, s, jnp.float32)
    return dict(
        wq=nrm(ks[0], (D, D)), bq=nrm(ks[1], (1, D)),
        wk=nrm(ks[2], (D, D)), bk=nrm(ks[3], (1, D)),
        wv=nrm(ks[4], (D, D)), bv=nrm(ks[5], (1, D)),
        wo=nrm(ks[6], (D, D)), bo=nrm(ks[7], (1, D)),
    )


if __name__ == "__main__":
    D_MODEL = 32
    N_LAYERS = 2
    N_HEADS = 4
    N_HEADS_SUMMARY = 2
    B, S = 4, 8

    root = jax.random.PRNGKey(0)
    kx, ksum, *klayers = jax.random.split(root, 2 + N_LAYERS)
    layer_params = [init_layer_params(k, D_MODEL) for k in klayers]
    sum_params = init_summary_params(ksum, D_MODEL)

    x = 0.5 * jax.random.normal(kx, (B, S, D_MODEL), jnp.float32)

    # ---- fused Pallas forward (single pallas_call) ----
    summary = encoder_forward(x, layer_params, sum_params, N_HEADS)
    summary = jax.block_until_ready(summary)

    # ---- pure-JAX reference check (full module semantics, incl. dead softmax) ----
    ref = x
    for lp in layer_params:
        ref = ref_encoder_layer(ref, lp, N_HEADS)
    ref_out = ref_summary(ref[:-1, -1:, :], ref[:-1, :-1, :], ref[:-1, :-1, :],
                          sum_params, N_HEADS_SUMMARY)

    assert summary.shape == (B - 1, 1, D_MODEL), summary.shape
    assert jnp.allclose(summary, ref_out, atol=1e-4, rtol=1e-4), \
        float(jnp.max(jnp.abs(summary - ref_out)))
    print("KERNEL_OK")
</pallas_src>

<mosaic_0001>
module attributes {stable_mosaic.version = 11 : i64} {
  func.func @_fused_encoder_kernel(%arg0: i32, %arg1: memref<24x32xf32, #tpu.memory_space<vmem>>, %arg2: memref<2x4x32x8xf32, #tpu.memory_space<vmem>>, %arg3: memref<2x4x32x8xf32, #tpu.memory_space<vmem>>, %arg4: memref<2x4x32x8xf32, #tpu.memory_space<vmem>>, %arg5: memref<2x4x1x8xf32, #tpu.memory_space<vmem>>, %arg6: memref<2x4x1x8xf32, #tpu.memory_space<vmem>>, %arg7: memref<2x4x1x8xf32, #tpu.memory_space<vmem>>, %arg8: memref<2x4x8x32xf32, #tpu.memory_space<vmem>>, %arg9: memref<2x1x32xf32, #tpu.memory_space<vmem>>, %arg10: memref<2x1x32xf32, #tpu.memory_space<vmem>>, %arg11: memref<2x1x32xf32, #tpu.memory_space<vmem>>, %arg12: memref<2x32x128xf32, #tpu.memory_space<vmem>>, %arg13: memref<2x1x128xf32, #tpu.memory_space<vmem>>, %arg14: memref<2x128x32xf32, #tpu.memory_space<vmem>>, %arg15: memref<2x1x32xf32, #tpu.memory_space<vmem>>, %arg16: memref<2x1x32xf32, #tpu.memory_space<vmem>>, %arg17: memref<2x1x32xf32, #tpu.memory_space<vmem>>, %arg18: memref<32x32xf32, #tpu.memory_space<vmem>>, %arg19: memref<1x32xf32, #tpu.memory_space<vmem>>, %arg20: memref<32x32xf32, #tpu.memory_space<vmem>>, %arg21: memref<1x32xf32, #tpu.memory_space<vmem>>, %arg22: memref<3x32xf32, #tpu.memory_space<vmem>>) attributes {dimension_semantics = [#tpu.dimension_semantics<arbitrary>], iteration_bounds = array<i64: 1>, scalar_prefetch = 0 : i64, scratch_operands = 0 : i64, tpu.core_type = #tpu.core_type<tc>, window_params = [{pipeline_mode = #tpu.pipeline_mode<synchronous>, transform_indices = @transform_0, window_bounds = array<i64: 24, 32>}, {pipeline_mode = #tpu.pipeline_mode<synchronous>, transform_indices = @transform_1, window_bounds = array<i64: 2, 4, 32, 8>}, {pipeline_mode = #tpu.pipeline_mode<synchronous>, transform_indices = @transform_2, window_bounds = array<i64: 2, 4, 32, 8>}, {pipeline_mode = #tpu.pipeline_mode<synchronous>, transform_indices = @transform_3, window_bounds = array<i64: 2, 4, 32, 8>}, {pipeline_mode = #tpu.pipeline_mode<synchronous>, transform_indices = @transform_4, window_bounds = array<i64: 2, 4, 1, 8>}, {pipeline_mode = #tpu.pipeline_mode<synchronous>, transform_indices = @transform_5, window_bounds = array<i64: 2, 4, 1, 8>}, {pipeline_mode = #tpu.pipeline_mode<synchronous>, transform_indices = @transform_6, window_bounds = array<i64: 2, 4, 1, 8>}, {pipeline_mode = #tpu.pipeline_mode<synchronous>, transform_indices = @transform_7, window_bounds = array<i64: 2, 4, 8, 32>}, {pipeline_mode = #tpu.pipeline_mode<synchronous>, transform_indices = @transform_8, window_bounds = array<i64: 2, 1, 32>}, {pipeline_mode = #tpu.pipeline_mode<synchronous>, transform_indices = @transform_9, window_bounds = array<i64: 2, 1, 32>}, {pipeline_mode = #tpu.pipeline_mode<synchronous>, transform_indices = @transform_10, window_bounds = array<i64: 2, 1, 32>}, {pipeline_mode = #tpu.pipeline_mode<synchronous>, transform_indices = @transform_11, window_bounds = array<i64: 2, 32, 128>}, {pipeline_mode = #tpu.pipeline_mode<synchronous>, transform_indices = @transform_12, window_bounds = array<i64: 2, 1, 128>}, {pipeline_mode = #tpu.pipeline_mode<synchronous>, transform_indices = @transform_13, window_bounds = array<i64: 2, 128, 32>}, {pipeline_mode = #tpu.pipeline_mode<synchronous>, transform_indices = @transform_14, window_bounds = array<i64: 2, 1, 32>}, {pipeline_mode = #tpu.pipeline_mode<synchronous>, transform_indices = @transform_15, window_bounds = array<i64: 2, 1, 32>}, {pipeline_mode = #tpu.pipeline_mode<synchronous>, transform_indices = @transform_16, window_bounds = array<i64: 2, 1, 32>}, {pipeline_mode = #tpu.pipeline_mode<synchronous>, transform_indices = @transform_17, window_bounds = array<i64: 32, 32>}, {pipeline_mode = #tpu.pipeline_mode<synchronous>, transform_indices = @transform_18, window_bounds = array<i64: 1, 32>}, {pipeline_mode = #tpu.pipeline_mode<synchronous>, transform_indices = @transform_19, window_bounds = array<i64: 32, 32>}, {pipeline_mode = #tpu.pipeline_mode<synchronous>, transform_indices = @transform_20, window_bounds = array<i64: 1, 32>}, {pipeline_mode = #tpu.pipeline_mode<synchronous>, transform_indices = @transform_21, window_bounds = array<i64: 3, 32>}]} {
    %c0 = arith.constant 0 : index
    %c0_0 = arith.constant 0 : index
    %0 = vector.load %arg1[%c0, %c0_0] : memref<24x32xf32, #tpu.memory_space<vmem>>, vector<24x32xf32>
    %c0_1 = arith.constant 0 : index
    %c0_2 = arith.constant 0 : index
    %c0_3 = arith.constant 0 : index
    %c0_4 = arith.constant 0 : index
    %1 = vector.load %arg2[%c0_1, %c0_2, %c0_3, %c0_4] : memref<2x4x32x8xf32, #tpu.memory_space<vmem>>, vector<1x1x32x8xf32>
    %2 = vector.shape_cast %1 : vector<1x1x32x8xf32> to vector<32x8xf32>
    %cst = arith.constant dense<0.000000e+00> : vector<24x8xf32>
    %3 = tpu.matmul %0, %2, %cst {dimension_numbers = #tpu.dot_dimension_numbers<[1], [0], [0], [1], [0, 0, 1, 1], [], []>} : vector<24x32xf32>, vector<32x8xf32>, vector<24x8xf32> -> vector<24x8xf32>
    %c0_5 = arith.constant 0 : index
    %c0_6 = arith.constant 0 : index
    %c0_7 = arith.constant 0 : index
    %c0_8 = arith.constant 0 : index
    %4 = vector.load %arg5[%c0_5, %c0_6, %c0_7, %c0_8] : memref<2x4x1x8xf32, #tpu.memory_space<vmem>>, vector<1x1x1x8xf32>
    %5 = vector.shape_cast %4 : vector<1x1x1x8xf32> to vector<1x8xf32>
    %6 = vector.broadcast %5 : vector<1x8xf32> to vector<24x8xf32>
    %7 = arith.addf %3, %6 : vector<24x8xf32>
    %c0_9 = arith.constant 0 : index
    %c0_10 = arith.constant 0 : index
    %c0_11 = arith.constant 0 : index
    %c0_12 = arith.constant 0 : index
    %8 = vector.load %arg3[%c0_9, %c0_10, %c0_11, %c0_12] : memref<2x4x32x8xf32, #tpu.memory_space<vmem>>, vector<1x1x32x8xf32>
    %9 = vector.shape_cast %8 : vector<1x1x32x8xf32> to vector<32x8xf32>
    %cst_13 = arith.constant dense<0.000000e+00> : vector<24x8xf32>
    %10 = tpu.matmul %0, %9, %cst_13 {dimension_numbers = #tpu.dot_dimension_numbers<[1], [0], [0], [1], [0, 0, 1, 1], [], []>} : vector<24x32xf32>, vector<32x8xf32>, vector<24x8xf32> -> vector<24x8xf32>
    %c0_14 = arith.constant 0 : index
    %c0_15 = arith.constant 0 : index
    %c0_16 = arith.constant 0 : index
    %c0_17 = arith.constant 0 : index
    %11 = vector.load %arg6[%c0_14, %c0_15, %c0_16, %c0_17] : memref<2x4x1x8xf32, #tpu.memory_space<vmem>>, vector<1x1x1x8xf32>
    %12 = vector.shape_cast %11 : vector<1x1x1x8xf32> to vector<1x8xf32>
    %13 = vector.broadcast %12 : vector<1x8xf32> to vector<24x8xf32>
    %14 = arith.addf %10, %13 : vector<24x8xf32>
    %c0_18 = arith.constant 0 : index
    %c0_19 = arith.constant 0 : index
    %c0_20 = arith.constant 0 : index
    %c0_21 = arith.constant 0 : index
    %15 = vector.load %arg4[%c0_18, %c0_19, %c0_20, %c0_21] : memref<2x4x32x8xf32, #tpu.memory_space<vmem>>, vector<1x1x32x8xf32>
    %16 = vector.shape_cast %15 : vector<1x1x32x8xf32> to vector<32x8xf32>
    %cst_22 = arith.constant dense<0.000000e+00> : vector<24x8xf32>
    %17 = tpu.matmul %0, %16, %cst_22 {dimension_numbers = #tpu.dot_dimension_numbers<[1], [0], [0], [1], [0, 0, 1, 1], [], []>} : vector<24x32xf32>, vector<32x8xf32>, vector<24x8xf32> -> vector<24x8xf32>
    %c0_23 = arith.constant 0 : index
    %c0_24 = arith.constant 0 : index
    %c0_25 = arith.constant 0 : index
    %c0_26 = arith.constant 0 : index
    %18 = vector.load %arg7[%c0_23, %c0_24, %c0_25, %c0_26] : memref<2x4x1x8xf32, #tpu.memory_space<vmem>>, vector<1x1x1x8xf32>
    %19 = vector.shape_cast %18 : vector<1x1x1x8xf32> to vector<1x8xf32>
    %20 = vector.broadcast %19 : vector<1x8xf32> to vector<24x8xf32>
    %21 = arith.addf %17, %20 : vector<24x8xf32>
    %22 = vector.shape_cast %7 : vector<24x8xf32> to vector<3x8x8xf32>
    %23 = vector.shape_cast %14 : vector<24x8xf32> to vector<3x8x8xf32>
    %24 = vector.shape_cast %21 : vector<24x8xf32> to vector<3x8x8xf32>
    "tpu.trace_start"() <{level = 10 : i32, message = "bqd,bkd->bqk"}> : () -> ()
    %cst_27 = arith.constant dense<0.000000e+00> : vector<3x8x8xf32>
    %25 = tpu.matmul %22, %23, %cst_27 {dimension_numbers = #tpu.dot_dimension_numbers<[2], [2], [1], [1], [0, 0, 0, 1, 1, 1], [0], [0]>} : vector<3x8x8xf32>, vector<3x8x8xf32>, vector<3x8x8xf32> -> vector<3x8x8xf32>
    "tpu.trace_stop"() : () -> ()
    %cst_28 = arith.constant 0.353553385 : f32
    %26 = vector.broadcast %cst_28 : f32 to vector<3x8x8xf32>
    %27 = arith.mulf %25, %26 : vector<3x8x8xf32>
    %cst_29 = arith.constant dense<0xFF800000> : vector<3x8xf32>
    %28 = vector.multi_reduction <maximumf>, %27, %cst_29 [2] : vector<3x8x8xf32> to vector<3x8xf32>
    %29 = vector.shape_cast %28 : vector<3x8xf32> to vector<3x8x1xf32>
    %30 = vector.broadcast %29 : vector<3x8x1xf32> to vector<3x8x8xf32>
    %31 = arith.subf %27, %30 : vector<3x8x8xf32>
    %32 = math.exp %31 : vector<3x8x8xf32>
    %cst_30 = arith.constant dense<0.000000e+00> : vector<3x8xf32>
    %33 = vector.multi_reduction <add>, %32, %cst_30 [2] : vector<3x8x8xf32> to vector<3x8xf32>
    %34 = vector.shape_cast %33 : vector<3x8xf32> to vector<3x8x1xf32>
    %35 = vector.broadcast %34 : vector<3x8x1xf32> to vector<3x8x8xf32>
    %36 = arith.divf %32, %35 : vector<3x8x8xf32>
    "tpu.trace_start"() <{level = 10 : i32, message = "bqk,bkd->bqd"}> : () -> ()
    %cst_31 = arith.constant dense<0.000000e+00> : vector<3x8x8xf32>
    %37 = tpu.matmul %36, %24, %cst_31 {dimension_numbers = #tpu.dot_dimension_numbers<[2], [1], [1], [2], [0, 0, 0, 1, 1, 2], [0], [0]>} : vector<3x8x8xf32>, vector<3x8x8xf32>, vector<3x8x8xf32> -> vector<3x8x8xf32>
    "tpu.trace_stop"() : () -> ()
    %38 = vector.shape_cast %37 : vector<3x8x8xf32> to vector<24x8xf32>
    %c0_32 = arith.constant 0 : index
    %c0_33 = arith.constant 0 : index
    %c0_34 = arith.constant 0 : index
    %c0_35 = arith.constant 0 : index
    %39 = vector.load %arg8[%c0_32, %c0_33, %c0_34, %c0_35] : memref<2x4x8x32xf32, #tpu.memory_space<vmem>>, vector<1x1x8x32xf32>
    %40 = vector.shape_cast %39 : vector<1x1x8x32xf32> to vector<8x32xf32>
    %cst_36 = arith.constant dense<0.000000e+00> : vector<24x32xf32>
    %41 = tpu.matmul %38, %40, %cst_36 {dimension_numbers = #tpu.dot_dimension_numbers<[1], [0], [0], [1], [0, 0, 1, 1], [], []>} : vector<24x8xf32>, vector<8x32xf32>, vector<24x32xf32> -> vector<24x32xf32>
    %c0_37 = arith.constant 0 : index
    %c1 = arith.constant 1 : index
    %c0_38 = arith.constant 0 : index
    %c0_39 = arith.constant 0 : index
    %42 = vector.load %arg2[%c0_37, %c1, %c0_38, %c0_39] : memref<2x4x32x8xf32, #tpu.memory_space<vmem>>, vector<1x1x32x8xf32>
    %43 = vector.shape_cast %42 : vector<1x1x32x8xf32> to vector<32x8xf32>
    %cst_40 = arith.constant dense<0.000000e+00> : vector<24x8xf32>
    %44 = tpu.matmul %0, %43, %cst_40 {dimension_numbers = #tpu.dot_dimension_numbers<[1], [0], [0], [1], [0, 0, 1, 1], [], []>} : vector<24x32xf32>, vector<32x8xf32>, vector<24x8xf32> -> vector<24x8xf32>
    %c0_41 = arith.constant 0 : index
    %c1_42 = arith.constant 1 : index
    %c0_43 = arith.constant 0 : index
    %c0_44 = arith.constant 0 : index
    %45 = vector.load %arg5[%c0_41, %c1_42, %c0_43, %c0_44] : memref<2x4x1x8xf32, #tpu.memory_space<vmem>>, vector<1x1x1x8xf32>
    %46 = vector.shape_cast %45 : vector<1x1x1x8xf32> to vector<1x8xf32>
    %47 = vector.broadcast %46 : vector<1x8xf32> to vector<24x8xf32>
    %48 = arith.addf %44, %47 : vector<24x8xf32>
    %c0_45 = arith.constant 0 : index
    %c1_46 = arith.constant 1 : index
    %c0_47 = arith.constant 0 : index
    %c0_48 = arith.constant 0 : index
    %49 = vector.load %arg3[%c0_45, %c1_46, %c0_47, %c0_48] : memref<2x4x32x8xf32, #tpu.memory_space<vmem>>, vector<1x1x32x8xf32>
    %50 = vector.shape_cast %49 : vector<1x1x32x8xf32> to vector<32x8xf32>
    %cst_49 = arith.constant dense<0.000000e+00> : vector<24x8xf32>
    %51 = tpu.matmul %0, %50, %cst_49 {dimension_numbers = #tpu.dot_dimension_numbers<[1], [0], [0], [1], [0, 0, 1, 1], [], []>} : vector<24x32xf32>, vector<32x8xf32>, vector<24x8xf32> -> vector<24x8xf32>
    %c0_50 = arith.constant 0 : index
    %c1_51 = arith.constant 1 : index
    %c0_52 = arith.constant 0 : index
    %c0_53 = arith.constant 0 : index
    %52 = vector.load %arg6[%c0_50, %c1_51, %c0_52, %c0_53] : memref<2x4x1x8xf32, #tpu.memory_space<vmem>>, vector<1x1x1x8xf32>
    %53 = vector.shape_cast %52 : vector<1x1x1x8xf32> to vector<1x8xf32>
    %54 = vector.broadcast %53 : vector<1x8xf32> to vector<24x8xf32>
    %55 = arith.addf %51, %54 : vector<24x8xf32>
    %c0_54 = arith.constant 0 : index
    %c1_55 = arith.constant 1 : index
    %c0_56 = arith.constant 0 : index
    %c0_57 = arith.constant 0 : index
    %56 = vector.load %arg4[%c0_54, %c1_55, %c0_56, %c0_57] : memref<2x4x32x8xf32, #tpu.memory_space<vmem>>, vector<1x1x32x8xf32>
    %57 = vector.shape_cast %56 : vector<1x1x32x8xf32> to vector<32x8xf32>
    %cst_58 = arith.constant dense<0.000000e+00> : vector<24x8xf32>
    %58 = tpu.matmul %0, %57, %cst_58 {dimension_numbers = #tpu.dot_dimension_numbers<[1], [0], [0], [1], [0, 0, 1, 1], [], []>} : vector<24x32xf32>, vector<32x8xf32>, vector<24x8xf32> -> vector<24x8xf32>
    %c0_59 = arith.constant 0 : index
    %c1_60 = arith.constant 1 : index
    %c0_61 = arith.constant 0 : index
    %c0_62 = arith.constant 0 : index
    %59 = vector.load %arg7[%c0_59, %c1_60, %c0_61, %c0_62] : memref<2x4x1x8xf32, #tpu.memory_space<vmem>>, vector<1x1x1x8xf32>
    %60 = vector.shape_cast %59 : vector<1x1x1x8xf32> to vector<1x8xf32>
    %61 = vector.broadcast %60 : vector<1x8xf32> to vector<24x8xf32>
    %62 = arith.addf %58, %61 : vector<24x8xf32>
    %63 = vector.shape_cast %48 : vector<24x8xf32> to vector<3x8x8xf32>
    %64 = vector.shape_cast %55 : vector<24x8xf32> to vector<3x8x8xf32>
    %65 = vector.shape_cast %62 : vector<24x8xf32> to vector<3x8x8xf32>
    "tpu.trace_start"() <{level = 10 : i32, message = "bqd,bkd->bqk"}> : () -> ()
    %cst_63 = arith.constant dense<0.000000e+00> : vector<3x8x8xf32>
    %66 = tpu.matmul %63, %64, %cst_63 {dimension_numbers = #tpu.dot_dimension_numbers<[2], [2], [1], [1], [0, 0, 0, 1, 1, 1], [0], [0]>} : vector<3x8x8xf32>, vector<3x8x8xf32>, vector<3x8x8xf32> -> vector<3x8x8xf32>
    "tpu.trace_stop"() : () -> ()
    %cst_64 = arith.constant 0.353553385 : f32
    %67 = vector.broadcast %cst_64 : f32 to vector<3x8x8xf32>
    %68 = arith.mulf %66, %67 : vector<3x8x8xf32>
    %cst_65 = arith.constant dense<0xFF800000> : vector<3x8xf32>
    %69 = vector.multi_reduction <maximumf>, %68, %cst_65 [2] : vector<3x8x8xf32> to vector<3x8xf32>
    %70 = vector.shape_cast %69 : vector<3x8xf32> to vector<3x8x1xf32>
    %71 = vector.broadcast %70 : vector<3x8x1xf32> to vector<3x8x8xf32>
    %72 = arith.subf %68, %71 : vector<3x8x8xf32>
    %73 = math.exp %72 : vector<3x8x8xf32>
    %cst_66 = arith.constant dense<0.000000e+00> : vector<3x8xf32>
    %74 = vector.multi_reduction <add>, %73, %cst_66 [2] : vector<3x8x8xf32> to vector<3x8xf32>
    %75 = vector.shape_cast %74 : vector<3x8xf32> to vector<3x8x1xf32>
    %76 = vector.broadcast %75 : vector<3x8x1xf32> to vector<3x8x8xf32>
    %77 = arith.divf %73, %76 : vector<3x8x8xf32>
    "tpu.trace_start"() <{level = 10 : i32, message = "bqk,bkd->bqd"}> : () -> ()
    %cst_67 = arith.constant dense<0.000000e+00> : vector<3x8x8xf32>
    %78 = tpu.matmul %77, %65, %cst_67 {dimension_numbers = #tpu.dot_dimension_numbers<[2], [1], [1], [2], [0, 0, 0, 1, 1, 2], [0], [0]>} : vector<3x8x8xf32>, vector<3x8x8xf32>, vector<3x8x8xf32> -> vector<3x8x8xf32>
    "tpu.trace_stop"() : () -> ()
    %79 = vector.shape_cast %78 : vector<3x8x8xf32> to vector<24x8xf32>
    %c0_68 = arith.constant 0 : index
    %c1_69 = arith.constant 1 : index
    %c0_70 = arith.constant 0 : index
    %c0_71 = arith.constant 0 : index
    %80 = vector.load %arg8[%c0_68, %c1_69, %c0_70, %c0_71] : memref<2x4x8x32xf32, #tpu.memory_space<vmem>>, vector<1x1x8x32xf32>
    %81 = vector.shape_cast %80 : vector<1x1x8x32xf32> to vector<8x32xf32>
    %cst_72 = arith.constant dense<0.000000e+00> : vector<24x32xf32>
    %82 = tpu.matmul %79, %81, %cst_72 {dimension_numbers = #tpu.dot_dimension_numbers<[1], [0], [0], [1], [0, 0, 1, 1], [], []>} : vector<24x8xf32>, vector<8x32xf32>, vector<24x32xf32> -> vector<24x32xf32>
    %83 = arith.addf %41, %82 : vector<24x32xf32>
    %c0_73 = arith.constant 0 : index
    %c2 = arith.constant 2 : index
    %c0_74 = arith.constant 0 : index
    %c0_75 = arith.constant 0 : index
    %84 = vector.load %arg2[%c0_73, %c2, %c0_74, %c0_75] : memref<2x4x32x8xf32, #tpu.memory_space<vmem>>, vector<1x1x32x8xf32>
    %85 = vector.shape_cast %84 : vector<1x1x32x8xf32> to vector<32x8xf32>
    %cst_76 = arith.constant dense<0.000000e+00> : vector<24x8xf32>
    %86 = tpu.matmul %0, %85, %cst_76 {dimension_numbers = #tpu.dot_dimension_numbers<[1], [0], [0], [1], [0, 0, 1, 1], [], []>} : vector<24x32xf32>, vector<32x8xf32>, vector<24x8xf32> -> vector<24x8xf32>
    %c0_77 = arith.constant 0 : index
    %c2_78 = arith.constant 2 : index
    %c0_79 = arith.constant 0 : index
    %c0_80 = arith.constant 0 : index
    %87 = vector.load %arg5[%c0_77, %c2_78, %c0_79, %c0_80] : memref<2x4x1x8xf32, #tpu.memory_space<vmem>>, vector<1x1x1x8xf32>
    %88 = vector.shape_cast %87 : vector<1x1x1x8xf32> to vector<1x8xf32>
    %89 = vector.broadcast %88 : vector<1x8xf32> to vector<24x8xf32>
    %90 = arith.addf %86, %89 : vector<24x8xf32>
    %c0_81 = arith.constant 0 : index
    %c2_82 = arith.constant 2 : index
    %c0_83 = arith.constant 0 : index
    %c0_84 = arith.constant 0 : index
    %91 = vector.load %arg3[%c0_81, %c2_82, %c0_83, %c0_84] : memref<2x4x32x8xf32, #tpu.memory_space<vmem>>, vector<1x1x32x8xf32>
    %92 = vector.shape_cast %91 : vector<1x1x32x8xf32> to vector<32x8xf32>
    %cst_85 = arith.constant dense<0.000000e+00> : vector<24x8xf32>
    %93 = tpu.matmul %0, %92, %cst_85 {dimension_numbers = #tpu.dot_dimension_numbers<[1], [0], [0], [1], [0, 0, 1, 1], [], []>} : vector<24x32xf32>, vector<32x8xf32>, vector<24x8xf32> -> vector<24x8xf32>
    %c0_86 = arith.constant 0 : index
    %c2_87 = arith.constant 2 : index
    %c0_88 = arith.constant 0 : index
    %c0_89 = arith.constant 0 : index
    %94 = vector.load %arg6[%c0_86, %c2_87, %c0_88, %c0_89] : memref<2x4x1x8xf32, #tpu.memory_space<vmem>>, vector<1x1x1x8xf32>
    %95 = vector.shape_cast %94 : vector<1x1x1x8xf32> to vector<1x8xf32>
    %96 = vector.broadcast %95 : vector<1x8xf32> to vector<24x8xf32>
    %97 = arith.addf %93, %96 : vector<24x8xf32>
    %c0_90 = arith.constant 0 : index
    %c2_91 = arith.constant 2 : index
    %c0_92 = arith.constant 0 : index
    %c0_93 = arith.constant 0 : index
    %98 = vector.load %arg4[%c0_90, %c2_91, %c0_92, %c0_93] : memref<2x4x32x8xf32, #tpu.memory_space<vmem>>, vector<1x1x32x8xf32>
    %99 = vector.shape_cast %98 : vector<1x1x32x8xf32> to vector<32x8xf32>
    %cst_94 = arith.constant dense<0.000000e+00> : vector<24x8xf32>
    %100 = tpu.matmul %0, %99, %cst_94 {dimension_numbers = #tpu.dot_dimension_numbers<[1], [0], [0], [1], [0, 0, 1, 1], [], []>} : vector<24x32xf32>, vector<32x8xf32>, vector<24x8xf32> -> vector<24x8xf32>
    %c0_95 = arith.constant 0 : index
    %c2_96 = arith.constant 2 : index
    %c0_97 = arith.constant 0 : index
    %c0_98 = arith.constant 0 : index
    %101 = vector.load %arg7[%c0_95, %c2_96, %c0_97, %c0_98] : memref<2x4x1x8xf32, #tpu.memory_space<vmem>>, vector<1x1x1x8xf32>
    %102 = vector.shape_cast %101 : vector<1x1x1x8xf32> to vector<1x8xf32>
    %103 = vector.broadcast %102 : vector<1x8xf32> to vector<24x8xf32>
    %104 = arith.addf %100, %103 : vector<24x8xf32>
    %105 = vector.shape_cast %90 : vector<24x8xf32> to vector<3x8x8xf32>
    %106 = vector.shape_cast %97 : vector<24x8xf32> to vector<3x8x8xf32>
    %107 = vector.shape_cast %104 : vector<24x8xf32> to vector<3x8x8xf32>
    "tpu.trace_start"() <{level = 10 : i32, message = "bqd,bkd->bqk"}> : () -> ()
    %cst_99 = arith.constant dense<0.000000e+00> : vector<3x8x8xf32>
    %108 = tpu.matmul %105, %106, %cst_99 {dimension_numbers = #tpu.dot_dimension_numbers<[2], [2], [1], [1], [0, 0, 0, 1, 1, 1], [0], [0]>} : vector<3x8x8xf32>, vector<3x8x8xf32>, vector<3x8x8xf32> -> vector<3x8x8xf32>
    "tpu.trace_stop"() : () -> ()
    %cst_100 = arith.constant 0.353553385 : f32
    %109 = vector.broadcast %cst_100 : f32 to vector<3x8x8xf32>
    %110 = arith.mulf %108, %109 : vector<3x8x8xf32>
    %cst_101 = arith.constant dense<0xFF800000> : vector<3x8xf32>
    %111 = vector.multi_reduction <maximumf>, %110, %cst_101 [2] : vector<3x8x8xf32> to vector<3x8xf32>
    %112 = vector.shape_cast %111 : vector<3x8xf32> to vector<3x8x1xf32>
    %113 = vector.broadcast %112 : vector<3x8x1xf32> to vector<3x8x8xf32>
    %114 = arith.subf %110, %113 : vector<3x8x8xf32>
    %115 = math.exp %114 : vector<3x8x8xf32>
    %cst_102 = arith.constant dense<0.000000e+00> : vector<3x8xf32>
    %116 = vector.multi_reduction <add>, %115, %cst_102 [2] : vector<3x8x8xf32> to vector<3x8xf32>
    %117 = vector.shape_cast %116 : vector<3x8xf32> to vector<3x8x1xf32>
    %118 = vector.broadcast %117 : vector<3x8x1xf32> to vector<3x8x8xf32>
    %119 = arith.divf %115, %118 : vector<3x8x8xf32>
    "tpu.trace_start"() <{level = 10 : i32, message = "bqk,bkd->bqd"}> : () -> ()
    %cst_103 = arith.constant dense<0.000000e+00> : vector<3x8x8xf32>
    %120 = tpu.matmul %119, %107, %cst_103 {dimension_numbers = #tpu.dot_dimension_numbers<[2], [1], [1], [2], [0, 0, 0, 1, 1, 2], [0], [0]>} : vector<3x8x8xf32>, vector<3x8x8xf32>, vector<3x8x8xf32> -> vector<3x8x8xf32>
    "tpu.trace_stop"() : () -> ()
    %121 = vector.shape_cast %120 : vector<3x8x8xf32> to vector<24x8xf32>
    %c0_104 = arith.constant 0 : index
    %c2_105 = arith.constant 2 : index
    %c0_106 = arith.constant 0 : index
    %c0_107 = arith.constant 0 : index
    %122 = vector.load %arg8[%c0_104, %c2_105, %c0_106, %c0_107] : memref<2x4x8x32xf32, #tpu.memory_space<vmem>>, vector<1x1x8x32xf32>
    %123 = vector.shape_cast %122 : vector<1x1x8x32xf32> to vector<8x32xf32>
    %cst_108 = arith.constant dense<0.000000e+00> : vector<24x32xf32>
    %124 = tpu.matmul %121, %123, %cst_108 {dimension_numbers = #tpu.dot_dimension_numbers<[1], [0], [0], [1], [0, 0, 1, 1], [], []>} : vector<24x8xf32>, vector<8x32xf32>, vector<24x32xf32> -> vector<24x32xf32>
    %125 = arith.addf %83, %124 : vector<24x32xf32>
    %c0_109 = arith.constant 0 : index
    %c3 = arith.constant 3 : index
    %c0_110 = arith.constant 0 : index
    %c0_111 = arith.constant 0 : index
    %126 = vector.load %arg2[%c0_109, %c3, %c0_110, %c0_111] : memref<2x4x32x8xf32, #tpu.memory_space<vmem>>, vector<1x1x32x8xf32>
    %127 = vector.shape_cast %126 : vector<1x1x32x8xf32> to vector<32x8xf32>
    %cst_112 = arith.constant dense<0.000000e+00> : vector<24x8xf32>
    %128 = tpu.matmul %0, %127, %cst_112 {dimension_numbers = #tpu.dot_dimension_numbers<[1], [0], [0], [1], [0, 0, 1, 1], [], []>} : vector<24x32xf32>, vector<32x8xf32>, vector<24x8xf32> -> vector<24x8xf32>
    %c0_113 = arith.constant 0 : index
    %c3_114 = arith.constant 3 : index
    %c0_115 = arith.constant 0 : index
    %c0_116 = arith.constant 0 : index
    %129 = vector.load %arg5[%c0_113, %c3_114, %c0_115, %c0_116] : memref<2x4x1x8xf32, #tpu.memory_space<vmem>>, vector<1x1x1x8xf32>
    %130 = vector.shape_cast %129 : vector<1x1x1x8xf32> to vector<1x8xf32>
    %131 = vector.broadcast %130 : vector<1x8xf32> to vector<24x8xf32>
    %132 = arith.addf %128, %131 : vector<24x8xf32>
    %c0_117 = arith.constant 0 : index
    %c3_118 = arith.constant 3 : index
    %c0_119 = arith.constant 0 : index
    %c0_120 = arith.constant 0 : index
    %133 = vector.load %arg3[%c0_117, %c3_118, %c0_119, %c0_120] : memref<2x4x32x8xf32, #tpu.memory_space<vmem>>, vector<1x1x32x8xf32>
    %134 = vector.shape_cast %133 : vector<1x1x32x8xf32> to vector<32x8xf32>
    %cst_121 = arith.constant dense<0.000000e+00> : vector<24x8xf32>
    %135 = tpu.matmul %0, %134, %cst_121 {dimension_numbers = #tpu.dot_dimension_numbers<[1], [0], [0], [1], [0, 0, 1, 1], [], []>} : vector<24x32xf32>, vector<32x8xf32>, vector<24x8xf32> -> vector<24x8xf32>
    %c0_122 = arith.constant 0 : index
    %c3_123 = arith.constant 3 : index
    %c0_124 = arith.constant 0 : index
    %c0_125 = arith.constant 0 : index
    %136 = vector.load %arg6[%c0_122, %c3_123, %c0_124, %c0_125] : memref<2x4x1x8xf32, #tpu.memory_space<vmem>>, vector<1x1x1x8xf32>
    %137 = vector.shape_cast %136 : vector<1x1x1x8xf32> to vector<1x8xf32>
    %138 = vector.broadcast %137 : vector<1x8xf32> to vector<24x8xf32>
    %139 = arith.addf %135, %138 : vector<24x8xf32>
    %c0_126 = arith.constant 0 : index
    %c3_127 = arith.constant 3 : index
    %c0_128 = arith.constant 0 : index
    %c0_129 = arith.constant 0 : index
    %140 = vector.load %arg4[%c0_126, %c3_127, %c0_128, %c0_129] : memref<2x4x32x8xf32, #tpu.memory_space<vmem>>, vector<1x1x32x8xf32>
    %141 = vector.shape_cast %140 : vector<1x1x32x8xf32> to vector<32x8xf32>
    %cst_130 = arith.constant dense<0.000000e+00> : vector<24x8xf32>
    %142 = tpu.matmul %0, %141, %cst_130 {dimension_numbers = #tpu.dot_dimension_numbers<[1], [0], [0], [1], [0, 0, 1, 1], [], []>} : vector<24x32xf32>, vector<32x8xf32>, vector<24x8xf32> -> vector<24x8xf32>
    %c0_131 = arith.constant 0 : index
    %c3_132 = arith.constant 3 : index
    %c0_133 = arith.constant 0 : index
    %c0_134 = arith.constant 0 : index
    %143 = vector.load %arg7[%c0_131, %c3_132, %c0_133, %c0_134] : memref<2x4x1x8xf32, #tpu.memory_space<vmem>>, vector<1x1x1x8xf32>
    %144 = vector.shape_cast %143 : vector<1x1x1x8xf32> to vector<1x8xf32>
    %145 = vector.broadcast %144 : vector<1x8xf32> to vector<24x8xf32>
    %146 = arith.addf %142, %145 : vector<24x8xf32>
    %147 = vector.shape_cast %132 : vector<24x8xf32> to vector<3x8x8xf32>
    %148 = vector.shape_cast %139 : vector<24x8xf32> to vector<3x8x8xf32>
    %149 = vector.shape_cast %146 : vector<24x8xf32> to vector<3x8x8xf32>
    "tpu.trace_start"() <{level = 10 : i32, message = "bqd,bkd->bqk"}> : () -> ()
    %cst_135 = arith.constant dense<0.000000e+00> : vector<3x8x8xf32>
    %150 = tpu.matmul %147, %148, %cst_135 {dimension_numbers = #tpu.dot_dimension_numbers<[2], [2], [1], [1], [0, 0, 0, 1, 1, 1], [0], [0]>} : vector<3x8x8xf32>, vector<3x8x8xf32>, vector<3x8x8xf32> -> vector<3x8x8xf32>
    "tpu.trace_stop"() : () -> ()
    %cst_136 = arith.constant 0.353553385 : f32
    %151 = vector.broadcast %cst_136 : f32 to vector<3x8x8xf32>
    %152 = arith.mulf %150, %151 : vector<3x8x8xf32>
    %cst_137 = arith.constant dense<0xFF800000> : vector<3x8xf32>
    %153 = vector.multi_reduction <maximumf>, %152, %cst_137 [2] : vector<3x8x8xf32> to vector<3x8xf32>
    %154 = vector.shape_cast %153 : vector<3x8xf32> to vector<3x8x1xf32>
    %155 = vector.broadcast %154 : vector<3x8x1xf32> to vector<3x8x8xf32>
    %156 = arith.subf %152, %155 : vector<3x8x8xf32>
    %157 = math.exp %156 : vector<3x8x8xf32>
    %cst_138 = arith.constant dense<0.000000e+00> : vector<3x8xf32>
    %158 = vector.multi_reduction <add>, %157, %cst_138 [2] : vector<3x8x8xf32> to vector<3x8xf32>
    %159 = vector.shape_cast %158 : vector<3x8xf32> to vector<3x8x1xf32>
    %160 = vector.broadcast %159 : vector<3x8x1xf32> to vector<3x8x8xf32>
    %161 = arith.divf %157, %160 : vector<3x8x8xf32>
    "tpu.trace_start"() <{level = 10 : i32, message = "bqk,bkd->bqd"}> : () -> ()
    %cst_139 = arith.constant dense<0.000000e+00> : vector<3x8x8xf32>
    %162 = tpu.matmul %161, %149, %cst_139 {dimension_numbers = #tpu.dot_dimension_numbers<[2], [1], [1], [2], [0, 0, 0, 1, 1, 2], [0], [0]>} : vector<3x8x8xf32>, vector<3x8x8xf32>, vector<3x8x8xf32> -> vector<3x8x8xf32>
    "tpu.trace_stop"() : () -> ()
    %163 = vector.shape_cast %162 : vector<3x8x8xf32> to vector<24x8xf32>
    %c0_140 = arith.constant 0 : index
    %c3_141 = arith.constant 3 : index
    %c0_142 = arith.constant 0 : index
    %c0_143 = arith.constant 0 : index
    %164 = vector.load %arg8[%c0_140, %c3_141, %c0_142, %c0_143] : memref<2x4x8x32xf32, #tpu.memory_space<vmem>>, vector<1x1x8x32xf32>
    %165 = vector.shape_cast %164 : vector<1x1x8x32xf32> to vector<8x32xf32>
    %cst_144 = arith.constant dense<0.000000e+00> : vector<24x32xf32>
    %166 = tpu.matmul %163, %165, %cst_144 {dimension_numbers = #tpu.dot_dimension_numbers<[1], [0], [0], [1], [0, 0, 1, 1], [], []>} : vector<24x8xf32>, vector<8x32xf32>, vector<24x32xf32> -> vector<24x32xf32>
    %167 = arith.addf %125, %166 : vector<24x32xf32>
    %c0_145 = arith.constant 0 : index
    %c0_146 = arith.constant 0 : index
    %c0_147 = arith.constant 0 : index
    %168 = vector.load %arg9[%c0_145, %c0_146, %c0_147] : memref<2x1x32xf32, #tpu.memory_space<vmem>>, vector<1x1x32xf32>
    %169 = vector.shape_cast %168 : vector<1x1x32xf32> to vector<1x32xf32>
    %170 = vector.broadcast %169 : vector<1x32xf32> to vector<24x32xf32>
    %171 = arith.addf %167, %170 : vector<24x32xf32>
    %172 = arith.addf %0, %171 : vector<24x32xf32>
    %cst_148 = arith.constant dense<0.000000e+00> : vector<24xf32>
    %173 = vector.multi_reduction <add>, %172, %cst_148 [1] : vector<24x32xf32> to vector<24xf32>
    %174 = vector.shape_cast %173 : vector<24xf32> to vector<24x1xf32>
    %cst_149 = arith.constant 3.200000e+01 : f32
    %175 = vector.broadcast %cst_149 : f32 to vector<24x1xf32>
    %176 = arith.divf %174, %175 : vector<24x1xf32>
    %177 = vector.broadcast %176 : vector<24x1xf32> to vector<24x32xf32>
    %178 = arith.subf %172, %177 : vector<24x32xf32>
    %179 = arith.mulf %178, %178 : vector<24x32xf32>
    %cst_150 = arith.constant dense<0.000000e+00> : vector<24xf32>
    %180 = vector.multi_reduction <add>, %179, %cst_150 [1] : vector<24x32xf32> to vector<24xf32>
    %181 = vector.shape_cast %180 : vector<24xf32> to vector<24x1xf32>
    %cst_151 = arith.constant 3.200000e+01 : f32
    %182 = vector.broadcast %cst_151 : f32 to vector<24x1xf32>
    %183 = arith.divf %181, %182 : vector<24x1xf32>
    %184 = vector.broadcast %176 : vector<24x1xf32> to vector<24x32xf32>
    %185 = arith.subf %172, %184 : vector<24x32xf32>
    %cst_152 = arith.constant 9.99999974E-6 : f32
    %186 = vector.broadcast %cst_152 : f32 to vector<24x1xf32>
    %187 = arith.addf %183, %186 : vector<24x1xf32>
    %188 = math.rsqrt %187 : vector<24x1xf32>
    %189 = vector.broadcast %188 : vector<24x1xf32> to vector<24x32xf32>
    %190 = arith.mulf %185, %189 : vector<24x32xf32>
    %c0_153 = arith.constant 0 : index
    %c0_154 = arith.constant 0 : index
    %c0_155 = arith.constant 0 : index
    %191 = vector.load %arg10[%c0_153, %c0_154, %c0_155] : memref<2x1x32xf32, #tpu.memory_space<vmem>>, vector<1x1x32xf32>
    %192 = vector.shape_cast %191 : vector<1x1x32xf32> to vector<1x32xf32>
    %193 = vector.broadcast %192 : vector<1x32xf32> to vector<24x32xf32>
    %194 = arith.mulf %190, %193 : vector<24x32xf32>
    %c0_156 = arith.constant 0 : index
    %c0_157 = arith.constant 0 : index
    %c0_158 = arith.constant 0 : index
    %195 = vector.load %arg11[%c0_156, %c0_157, %c0_158] : memref<2x1x32xf32, #tpu.memory_space<vmem>>, vector<1x1x32xf32>
    %196 = vector.shape_cast %195 : vector<1x1x32xf32> to vector<1x32xf32>
    %197 = vector.broadcast %196 : vector<1x32xf32> to vector<24x32xf32>
    %198 = arith.addf %194, %197 : vector<24x32xf32>
    %c0_159 = arith.constant 0 : index
    %c0_160 = arith.constant 0 : index
    %c0_161 = arith.constant 0 : index
    %199 = vector.load %arg12[%c0_159, %c0_160, %c0_161] : memref<2x32x128xf32, #tpu.memory_space<vmem>>, vector<1x32x128xf32>
    %200 = vector.shape_cast %199 : vector<1x32x128xf32> to vector<32x128xf32>
    %cst_162 = arith.constant dense<0.000000e+00> : vector<24x128xf32>
    %201 = tpu.matmul %198, %200, %cst_162 {dimension_numbers = #tpu.dot_dimension_numbers<[1], [0], [0], [1], [0, 0, 1, 1], [], []>} : vector<24x32xf32>, vector<32x128xf32>, vector<24x128xf32> -> vector<24x128xf32>
    %c0_163 = arith.constant 0 : index
    %c0_164 = arith.constant 0 : index
    %c0_165 = arith.constant 0 : index
    %202 = vector.load %arg13[%c0_163, %c0_164, %c0_165] : memref<2x1x128xf32, #tpu.memory_space<vmem>>, vector<1x1x128xf32>
    %203 = vector.shape_cast %202 : vector<1x1x128xf32> to vector<1x128xf32>
    %204 = vector.broadcast %203 : vector<1x128xf32> to vector<24x128xf32>
    %205 = arith.addf %201, %204 : vector<24x128xf32>
    %cst_166 = arith.constant 0.000000e+00 : f32
    %206 = vector.broadcast %cst_166 : f32 to vector<24x128xf32>
    %207 = arith.maximumf %205, %206 : vector<24x128xf32>
    %c0_167 = arith.constant 0 : index
    %c0_168 = arith.constant 0 : index
    %c0_169 = arith.constant 0 : index
    %208 = vector.load %arg14[%c0_167, %c0_168, %c0_169] : memref<2x128x32xf32, #tpu.memory_space<vmem>>, vector<1x128x32xf32>
    %209 = vector.shape_cast %208 : vector<1x128x32xf32> to vector<128x32xf32>
    %cst_170 = arith.constant dense<0.000000e+00> : vector<24x32xf32>
    %210 = tpu.matmul %207, %209, %cst_170 {dimension_numbers = #tpu.dot_dimension_numbers<[1], [0], [0], [1], [0, 0, 1, 1], [], []>} : vector<24x128xf32>, vector<128x32xf32>, vector<24x32xf32> -> vector<24x32xf32>
    %c0_171 = arith.constant 0 : index
    %c0_172 = arith.constant 0 : index
    %c0_173 = arith.constant 0 : index
    %211 = vector.load %arg15[%c0_171, %c0_172, %c0_173] : memref<2x1x32xf32, #tpu.memory_space<vmem>>, vector<1x1x32xf32>
    %212 = vector.shape_cast %211 : vector<1x1x32xf32> to vector<1x32xf32>
    %213 = vector.broadcast %212 : vector<1x32xf32> to vector<24x32xf32>
    %214 = arith.addf %210, %213 : vector<24x32xf32>
    %215 = arith.addf %198, %214 : vector<24x32xf32>
    %cst_174 = arith.constant dense<0.000000e+00> : vector<24xf32>
    %216 = vector.multi_reduction <add>, %215, %cst_174 [1] : vector<24x32xf32> to vector<24xf32>
    %217 = vector.shape_cast %216 : vector<24xf32> to vector<24x1xf32>
    %cst_175 = arith.constant 3.200000e+01 : f32
    %218 = vector.broadcast %cst_175 : f32 to vector<24x1xf32>
    %219 = arith.divf %217, %218 : vector<24x1xf32>
    %220 = vector.broadcast %219 : vector<24x1xf32> to vector<24x32xf32>
    %221 = arith.subf %215, %220 : vector<24x32xf32>
    %222 = arith.mulf %221, %221 : vector<24x32xf32>
    %cst_176 = arith.constant dense<0.000000e+00> : vector<24xf32>
    %223 = vector.multi_reduction <add>, %222, %cst_176 [1] : vector<24x32xf32> to vector<24xf32>
    %224 = vector.shape_cast %223 : vector<24xf32> to vector<24x1xf32>
    %cst_177 = arith.constant 3.200000e+01 : f32
    %225 = vector.broadcast %cst_177 : f32 to vector<24x1xf32>
    %226 = arith.divf %224, %225 : vector<24x1xf32>
    %227 = vector.broadcast %219 : vector<24x1xf32> to vector<24x32xf32>
    %228 = arith.subf %215, %227 : vector<24x32xf32>
    %cst_178 = arith.constant 9.99999974E-6 : f32
    %229 = vector.broadcast %cst_178 : f32 to vector<24x1xf32>
    %230 = arith.addf %226, %229 : vector<24x1xf32>
    %231 = math.rsqrt %230 : vector<24x1xf32>
    %232 = vector.broadcast %231 : vector<24x1xf32> to vector<24x32xf32>
    %233 = arith.mulf %228, %232 : vector<24x32xf32>
    %c0_179 = arith.constant 0 : index
    %c0_180 = arith.constant 0 : index
    %c0_181 = arith.constant 0 : index
    %234 = vector.load %arg16[%c0_179, %c0_180, %c0_181] : memref<2x1x32xf32, #tpu.memory_space<vmem>>, vector<1x1x32xf32>
    %235 = vector.shape_cast %234 : vector<1x1x32xf32> to vector<1x32xf32>
    %236 = vector.broadcast %235 : vector<1x32xf32> to vector<24x32xf32>
    %237 = arith.mulf %233, %236 : vector<24x32xf32>
    %c0_182 = arith.constant 0 : index
    %c0_183 = arith.constant 0 : index
    %c0_184 = arith.constant 0 : index
    %238 = vector.load %arg17[%c0_182, %c0_183, %c0_184] : memref<2x1x32xf32, #tpu.memory_space<vmem>>, vector<1x1x32xf32>
    %239 = vector.shape_cast %238 : vector<1x1x32xf32> to vector<1x32xf32>
    %240 = vector.broadcast %239 : vector<1x32xf32> to vector<24x32xf32>
    %241 = arith.addf %237, %240 : vector<24x32xf32>
    %c1_185 = arith.constant 1 : index
    %c0_186 = arith.constant 0 : index
    %c0_187 = arith.constant 0 : index
    %c0_188 = arith.constant 0 : index
    %242 = vector.load %arg2[%c1_185, %c0_186, %c0_187, %c0_188] : memref<2x4x32x8xf32, #tpu.memory_space<vmem>>, vector<1x1x32x8xf32>
    %243 = vector.shape_cast %242 : vector<1x1x32x8xf32> to vector<32x8xf32>
    %cst_189 = arith.constant dense<0.000000e+00> : vector<24x8xf32>
    %244 = tpu.matmul %241, %243, %cst_189 {dimension_numbers = #tpu.dot_dimension_numbers<[1], [0], [0], [1], [0, 0, 1, 1], [], []>} : vector<24x32xf32>, vector<32x8xf32>, vector<24x8xf32> -> vector<24x8xf32>
    %c1_190 = arith.constant 1 : index
    %c0_191 = arith.constant 0 : index
    %c0_192 = arith.constant 0 : index
    %c0_193 = arith.constant 0 : index
    %245 = vector.load %arg5[%c1_190, %c0_191, %c0_192, %c0_193] : memref<2x4x1x8xf32, #tpu.memory_space<vmem>>, vector<1x1x1x8xf32>
    %246 = vector.shape_cast %245 : vector<1x1x1x8xf32> to vector<1x8xf32>
    %247 = vector.broadcast %246 : vector<1x8xf32> to vector<24x8xf32>
    %248 = arith.addf %244, %247 : vector<24x8xf32>
    %c1_194 = arith.constant 1 : index
    %c0_195 = arith.constant 0 : index
    %c0_196 = arith.constant 0 : index
    %c0_197 = arith.constant 0 : index
    %249 = vector.load %arg3[%c1_194, %c0_195, %c0_196, %c0_197] : memref<2x4x32x8xf32, #tpu.memory_space<vmem>>, vector<1x1x32x8xf32>
    %250 = vector.shape_cast %249 : vector<1x1x32x8xf32> to vector<32x8xf32>
    %cst_198 = arith.constant dense<0.000000e+00> : vector<24x8xf32>
    %251 = tpu.matmul %241, %250, %cst_198 {dimension_numbers = #tpu.dot_dimension_numbers<[1], [0], [0], [1], [0, 0, 1, 1], [], []>} : vector<24x32xf32>, vector<32x8xf32>, vector<24x8xf32> -> vector<24x8xf32>
    %c1_199 = arith.constant 1 : index
    %c0_200 = arith.constant 0 : index
    %c0_201 = arith.constant 0 : index
    %c0_202 = arith.constant 0 : index
    %252 = vector.load %arg6[%c1_199, %c0_200, %c0_201, %c0_202] : memref<2x4x1x8xf32, #tpu.memory_space<vmem>>, vector<1x1x1x8xf32>
    %253 = vector.shape_cast %252 : vector<1x1x1x8xf32> to vector<1x8xf32>
    %254 = vector.broadcast %253 : vector<1x8xf32> to vector<24x8xf32>
    %255 = arith.addf %251, %254 : vector<24x8xf32>
    %c1_203 = arith.constant 1 : index
    %c0_204 = arith.constant 0 : index
    %c0_205 = arith.constant 0 : index
    %c0_206 = arith.constant 0 : index
    %256 = vector.load %arg4[%c1_203, %c0_204, %c0_205, %c0_206] : memref<2x4x32x8xf32, #tpu.memory_space<vmem>>, vector<1x1x32x8xf32>
    %257 = vector.shape_cast %256 : vector<1x1x32x8xf32> to vector<32x8xf32>
    %cst_207 = arith.constant dense<0.000000e+00> : vector<24x8xf32>
    %258 = tpu.matmul %241, %257, %cst_207 {dimension_numbers = #tpu.dot_dimension_numbers<[1], [0], [0], [1], [0, 0, 1, 1], [], []>} : vector<24x32xf32>, vector<32x8xf32>, vector<24x8xf32> -> vector<24x8xf32>
    %c1_208 = arith.constant 1 : index
    %c0_209 = arith.constant 0 : index
    %c0_210 = arith.constant 0 : index
    %c0_211 = arith.constant 0 : index
    %259 = vector.load %arg7[%c1_208, %c0_209, %c0_210, %c0_211] : memref<2x4x1x8xf32, #tpu.memory_space<vmem>>, vector<1x1x1x8xf32>
    %260 = vector.shape_cast %259 : vector<1x1x1x8xf32> to vector<1x8xf32>
    %261 = vector.broadcast %260 : vector<1x8xf32> to vector<24x8xf32>
    %262 = arith.addf %258, %261 : vector<24x8xf32>
    %263 = vector.shape_cast %248 : vector<24x8xf32> to vector<3x8x8xf32>
    %264 = vector.shape_cast %255 : vector<24x8xf32> to vector<3x8x8xf32>
    %265 = vector.shape_cast %262 : vector<24x8xf32> to vector<3x8x8xf32>
    "tpu.trace_start"() <{level = 10 : i32, message = "bqd,bkd->bqk"}> : () -> ()
    %cst_212 = arith.constant dense<0.000000e+00> : vector<3x8x8xf32>
    %266 = tpu.matmul %263, %264, %cst_212 {dimension_numbers = #tpu.dot_dimension_numbers<[2], [2], [1], [1], [0, 0, 0, 1, 1, 1], [0], [0]>} : vector<3x8x8xf32>, vector<3x8x8xf32>, vector<3x8x8xf32> -> vector<3x8x8xf32>
    "tpu.trace_stop"() : () -> ()
    %cst_213 = arith.constant 0.353553385 : f32
    %267 = vector.broadcast %cst_213 : f32 to vector<3x8x8xf32>
    %268 = arith.mulf %266, %267 : vector<3x8x8xf32>
    %cst_214 = arith.constant dense<0xFF800000> : vector<3x8xf32>
    %269 = vector.multi_reduction <maximumf>, %268, %cst_214 [2] : vector<3x8x8xf32> to vector<3x8xf32>
    %270 = vector.shape_cast %269 : vector<3x8xf32> to vector<3x8x1xf32>
    %271 = vector.broadcast %270 : vector<3x8x1xf32> to vector<3x8x8xf32>
    %272 = arith.subf %268, %271 : vector<3x8x8xf32>
    %273 = math.exp %272 : vector<3x8x8xf32>
    %cst_215 = arith.constant dense<0.000000e+00> : vector<3x8xf32>
    %274 = vector.multi_reduction <add>, %273, %cst_215 [2] : vector<3x8x8xf32> to vector<3x8xf32>
    %275 = vector.shape_cast %274 : vector<3x8xf32> to vector<3x8x1xf32>
    %276 = vector.broadcast %275 : vector<3x8x1xf32> to vector<3x8x8xf32>
    %277 = arith.divf %273, %276 : vector<3x8x8xf32>
    "tpu.trace_start"() <{level = 10 : i32, message = "bqk,bkd->bqd"}> : () -> ()
    %cst_216 = arith.constant dense<0.000000e+00> : vector<3x8x8xf32>
    %278 = tpu.matmul %277, %265, %cst_216 {dimension_numbers = #tpu.dot_dimension_numbers<[2], [1], [1], [2], [0, 0, 0, 1, 1, 2], [0], [0]>} : vector<3x8x8xf32>, vector<3x8x8xf32>, vector<3x8x8xf32> -> vector<3x8x8xf32>
    "tpu.trace_stop"() : () -> ()
    %279 = vector.shape_cast %278 : vector<3x8x8xf32> to vector<24x8xf32>
    %c1_217 = arith.constant 1 : index
    %c0_218 = arith.constant 0 : index
    %c0_219 = arith.constant 0 : index
    %c0_220 = arith.constant 0 : index
    %280 = vector.load %arg8[%c1_217, %c0_218, %c0_219, %c0_220] : memref<2x4x8x32xf32, #tpu.memory_space<vmem>>, vector<1x1x8x32xf32>
    %281 = vector.shape_cast %280 : vector<1x1x8x32xf32> to vector<8x32xf32>
    %cst_221 = arith.constant dense<0.000000e+00> : vector<24x32xf32>
    %282 = tpu.matmul %279, %281, %cst_221 {dimension_numbers = #tpu.dot_dimension_numbers<[1], [0], [0], [1], [0, 0, 1, 1], [], []>} : vector<24x8xf32>, vector<8x32xf32>, vector<24x32xf32> -> vector<24x32xf32>
    %c1_222 = arith.constant 1 : index
    %c1_223 = arith.constant 1 : index
    %c0_224 = arith.constant 0 : index
    %c0_225 = arith.constant 0 : index
    %283 = vector.load %arg2[%c1_222, %c1_223, %c0_224, %c0_225] : memref<2x4x32x8xf32, #tpu.memory_space<vmem>>, vector<1x1x32x8xf32>
    %284 = vector.shape_cast %283 : vector<1x1x32x8xf32> to vector<32x8xf32>
    %cst_226 = arith.constant dense<0.000000e+00> : vector<24x8xf32>
    %285 = tpu.matmul %241, %284, %cst_226 {dimension_numbers = #tpu.dot_dimension_numbers<[1], [0], [0], [1], [0, 0, 1, 1], [], []>} : vector<24x32xf32>, vector<32x8xf32>, vector<24x8xf32> -> vector<24x8xf32>
    %c1_227 = arith.constant 1 : index
    %c1_228 = arith.constant 1 : index
    %c0_229 = arith.constant 0 : index
    %c0_230 = arith.constant 0 : index
    %286 = vector.load %arg5[%c1_227, %c1_228, %c0_229, %c0_230] : memref<2x4x1x8xf32, #tpu.memory_space<vmem>>, vector<1x1x1x8xf32>
    %287 = vector.shape_cast %286 : vector<1x1x1x8xf32> to vector<1x8xf32>
    %288 = vector.broadcast %287 : vector<1x8xf32> to vector<24x8xf32>
    %289 = arith.addf %285, %288 : vector<24x8xf32>
    %c1_231 = arith.constant 1 : index
    %c1_232 = arith.constant 1 : index
    %c0_233 = arith.constant 0 : index
    %c0_234 = arith.constant 0 : index
    %290 = vector.load %arg3[%c1_231, %c1_232, %c0_233, %c0_234] : memref<2x4x32x8xf32, #tpu.memory_space<vmem>>, vector<1x1x32x8xf32>
    %291 = vector.shape_cast %290 : vector<1x1x32x8xf32> to vector<32x8xf32>
    %cst_235 = arith.constant dense<0.000000e+00> : vector<24x8xf32>
    %292 = tpu.matmul %241, %291, %cst_235 {dimension_numbers = #tpu.dot_dimension_numbers<[1], [0], [0], [1], [0, 0, 1, 1], [], []>} : vector<24x32xf32>, vector<32x8xf32>, vector<24x8xf32> -> vector<24x8xf32>
    %c1_236 = arith.constant 1 : index
    %c1_237 = arith.constant 1 : index
    %c0_238 = arith.constant 0 : index
    %c0_239 = arith.constant 0 : index
    %293 = vector.load %arg6[%c1_236, %c1_237, %c0_238, %c0_239] : memref<2x4x1x8xf32, #tpu.memory_space<vmem>>, vector<1x1x1x8xf32>
    %294 = vector.shape_cast %293 : vector<1x1x1x8xf32> to vector<1x8xf32>
    %295 = vector.broadcast %294 : vector<1x8xf32> to vector<24x8xf32>
    %296 = arith.addf %292, %295 : vector<24x8xf32>
    %c1_240 = arith.constant 1 : index
    %c1_241 = arith.constant 1 : index
    %c0_242 = arith.constant 0 : index
    %c0_243 = arith.constant 0 : index
    %297 = vector.load %arg4[%c1_240, %c1_241, %c0_242, %c0_243] : memref<2x4x32x8xf32, #tpu.memory_space<vmem>>, vector<1x1x32x8xf32>
    %298 = vector.shape_cast %297 : vector<1x1x32x8xf32> to vector<32x8xf32>
    %cst_244 = arith.constant dense<0.000000e+00> : vector<24x8xf32>
    %299 = tpu.matmul %241, %298, %cst_244 {dimension_numbers = #tpu.dot_dimension_numbers<[1], [0], [0], [1], [0, 0, 1, 1], [], []>} : vector<24x32xf32>, vector<32x8xf32>, vector<24x8xf32> -> vector<24x8xf32>
    %c1_245 = arith.constant 1 : index
    %c1_246 = arith.constant 1 : index
    %c0_247 = arith.constant 0 : index
    %c0_248 = arith.constant 0 : index
    %300 = vector.load %arg7[%c1_245, %c1_246, %c0_247, %c0_248] : memref<2x4x1x8xf32, #tpu.memory_space<vmem>>, vector<1x1x1x8xf32>
    %301 = vector.shape_cast %300 : vector<1x1x1x8xf32> to vector<1x8xf32>
    %302 = vector.broadcast %301 : vector<1x8xf32> to vector<24x8xf32>
    %303 = arith.addf %299, %302 : vector<24x8xf32>
    %304 = vector.shape_cast %289 : vector<24x8xf32> to vector<3x8x8xf32>
    %305 = vector.shape_cast %296 : vector<24x8xf32> to vector<3x8x8xf32>
    %306 = vector.shape_cast %303 : vector<24x8xf32> to vector<3x8x8xf32>
    "tpu.trace_start"() <{level = 10 : i32, message = "bqd,bkd->bqk"}> : () -> ()
    %cst_249 = arith.constant dense<0.000000e+00> : vector<3x8x8xf32>
    %307 = tpu.matmul %304, %305, %cst_249 {dimension_numbers = #tpu.dot_dimension_numbers<[2], [2], [1], [1], [0, 0, 0, 1, 1, 1], [0], [0]>} : vector<3x8x8xf32>, vector<3x8x8xf32>, vector<3x8x8xf32> -> vector<3x8x8xf32>
    "tpu.trace_stop"() : () -> ()
    %cst_250 = arith.constant 0.353553385 : f32
    %308 = vector.broadcast %cst_250 : f32 to vector<3x8x8xf32>
    %309 = arith.mulf %307, %308 : vector<3x8x8xf32>
    %cst_251 = arith.constant dense<0xFF800000> : vector<3x8xf32>
    %310 = vector.multi_reduction <maximumf>, %309, %cst_251 [2] : vector<3x8x8xf32> to vector<3x8xf32>
    %311 = vector.shape_cast %310 : vector<3x8xf32> to vector<3x8x1xf32>
    %312 = vector.broadcast %311 : vector<3x8x1xf32> to vector<3x8x8xf32>
    %313 = arith.subf %309, %312 : vector<3x8x8xf32>
    %314 = math.exp %313 : vector<3x8x8xf32>
    %cst_252 = arith.constant dense<0.000000e+00> : vector<3x8xf32>
    %315 = vector.multi_reduction <add>, %314, %cst_252 [2] : vector<3x8x8xf32> to vector<3x8xf32>
    %316 = vector.shape_cast %315 : vector<3x8xf32> to vector<3x8x1xf32>
    %317 = vector.broadcast %316 : vector<3x8x1xf32> to vector<3x8x8xf32>
    %318 = arith.divf %314, %317 : vector<3x8x8xf32>
    "tpu.trace_start"() <{level = 10 : i32, message = "bqk,bkd->bqd"}> : () -> ()
    %cst_253 = arith.constant dense<0.000000e+00> : vector<3x8x8xf32>
    %319 = tpu.matmul %318, %306, %cst_253 {dimension_numbers = #tpu.dot_dimension_numbers<[2], [1], [1], [2], [0, 0, 0, 1, 1, 2], [0], [0]>} : vector<3x8x8xf32>, vector<3x8x8xf32>, vector<3x8x8xf32> -> vector<3x8x8xf32>
    "tpu.trace_stop"() : () -> ()
    %320 = vector.shape_cast %319 : vector<3x8x8xf32> to vector<24x8xf32>
    %c1_254 = arith.constant 1 : index
    %c1_255 = arith.constant 1 : index
    %c0_256 = arith.constant 0 : index
    %c0_257 = arith.constant 0 : index
    %321 = vector.load %arg8[%c1_254, %c1_255, %c0_256, %c0_257] : memref<2x4x8x32xf32, #tpu.memory_space<vmem>>, vector<1x1x8x32xf32>
    %322 = vector.shape_cast %321 : vector<1x1x8x32xf32> to vector<8x32xf32>
    %cst_258 = arith.constant dense<0.000000e+00> : vector<24x32xf32>
    %323 = tpu.matmul %320, %322, %cst_258 {dimension_numbers = #tpu.dot_dimension_numbers<[1], [0], [0], [1], [0, 0, 1, 1], [], []>} : vector<24x8xf32>, vector<8x32xf32>, vector<24x32xf32> -> vector<24x32xf32>
    %324 = arith.addf %282, %323 : vector<24x32xf32>
    %c1_259 = arith.constant 1 : index
    %c2_260 = arith.constant 2 : index
    %c0_261 = arith.constant 0 : index
    %c0_262 = arith.constant 0 : index
    %325 = vector.load %arg2[%c1_259, %c2_260, %c0_261, %c0_262] : memref<2x4x32x8xf32, #tpu.memory_space<vmem>>, vector<1x1x32x8xf32>
    %326 = vector.shape_cast %325 : vector<1x1x32x8xf32> to vector<32x8xf32>
    %cst_263 = arith.constant dense<0.000000e+00> : vector<24x8xf32>
    %327 = tpu.matmul %241, %326, %cst_263 {dimension_numbers = #tpu.dot_dimension_numbers<[1], [0], [0], [1], [0, 0, 1, 1], [], []>} : vector<24x32xf32>, vector<32x8xf32>, vector<24x8xf32> -> vector<24x8xf32>
    %c1_264 = arith.constant 1 : index
    %c2_265 = arith.constant 2 : index
    %c0_266 = arith.constant 0 : index
    %c0_267 = arith.constant 0 : index
    %328 = vector.load %arg5[%c1_264, %c2_265, %c0_266, %c0_267] : memref<2x4x1x8xf32, #tpu.memory_space<vmem>>, vector<1x1x1x8xf32>
    %329 = vector.shape_cast %328 : vector<1x1x1x8xf32> to vector<1x8xf32>
    %330 = vector.broadcast %329 : vector<1x8xf32> to vector<24x8xf32>
    %331 = arith.addf %327, %330 : vector<24x8xf32>
    %c1_268 = arith.constant 1 : index
    %c2_269 = arith.constant 2 : index
    %c0_270 = arith.constant 0 : index
    %c0_271 = arith.constant 0 : index
    %332 = vector.load %arg3[%c1_268, %c2_269, %c0_270, %c0_271] : memref<2x4x32x8xf32, #tpu.memory_space<vmem>>, vector<1x1x32x8xf32>
    %333 = vector.shape_cast %332 : vector<1x1x32x8xf32> to vector<32x8xf32>
    %cst_272 = arith.constant dense<0.000000e+00> : vector<24x8xf32>
    %334 = tpu.matmul %241, %333, %cst_272 {dimension_numbers = #tpu.dot_dimension_numbers<[1], [0], [0], [1], [0, 0, 1, 1], [], []>} : vector<24x32xf32>, vector<32x8xf32>, vector<24x8xf32> -> vector<24x8xf32>
    %c1_273 = arith.constant 1 : index
    %c2_274 = arith.constant 2 : index
    %c0_275 = arith.constant 0 : index
    %c0_276 = arith.constant 0 : index
    %335 = vector.load %arg6[%c1_273, %c2_274, %c0_275, %c0_276] : memref<2x4x1x8xf32, #tpu.memory_space<vmem>>, vector<1x1x1x8xf32>
    %336 = vector.shape_cast %335 : vector<1x1x1x8xf32> to vector<1x8xf32>
    %337 = vector.broadcast %336 : vector<1x8xf32> to vector<24x8xf32>
    %338 = arith.addf %334, %337 : vector<24x8xf32>
    %c1_277 = arith.constant 1 : index
    %c2_278 = arith.constant 2 : index
    %c0_279 = arith.constant 0 : index
    %c0_280 = arith.constant 0 : index
    %339 = vector.load %arg4[%c1_277, %c2_278, %c0_279, %c0_280] : memref<2x4x32x8xf32, #tpu.memory_space<vmem>>, vector<1x1x32x8xf32>
    %340 = vector.shape_cast %339 : vector<1x1x32x8xf32> to vector<32x8xf32>
    %cst_281 = arith.constant dense<0.000000e+00> : vector<24x8xf32>
    %341 = tpu.matmul %241, %340, %cst_281 {dimension_numbers = #tpu.dot_dimension_numbers<[1], [0], [0], [1], [0, 0, 1, 1], [], []>} : vector<24x32xf32>, vector<32x8xf32>, vector<24x8xf32> -> vector<24x8xf32>
    %c1_282 = arith.constant 1 : index
    %c2_283 = arith.constant 2 : index
    %c0_284 = arith.constant 0 : index
    %c0_285 = arith.constant 0 : index
    %342 = vector.load %arg7[%c1_282, %c2_283, %c0_284, %c0_285] : memref<2x4x1x8xf32, #tpu.memory_space<vmem>>, vector<1x1x1x8xf32>
    %343 = vector.shape_cast %342 : vector<1x1x1x8xf32> to vector<1x8xf32>
    %344 = vector.broadcast %343 : vector<1x8xf32> to vector<24x8xf32>
    %345 = arith.addf %341, %344 : vector<24x8xf32>
    %346 = vector.shape_cast %331 : vector<24x8xf32> to vector<3x8x8xf32>
    %347 = vector.shape_cast %338 : vector<24x8xf32> to vector<3x8x8xf32>
    %348 = vector.shape_cast %345 : vector<24x8xf32> to vector<3x8x8xf32>
    "tpu.trace_start"() <{level = 10 : i32, message = "bqd,bkd->bqk"}> : () -> ()
    %cst_286 = arith.constant dense<0.000000e+00> : vector<3x8x8xf32>
    %349 = tpu.matmul %346, %347, %cst_286 {dimension_numbers = #tpu.dot_dimension_numbers<[2], [2], [1], [1], [0, 0, 0, 1, 1, 1], [0], [0]>} : vector<3x8x8xf32>, vector<3x8x8xf32>, vector<3x8x8xf32> -> vector<3x8x8xf32>
    "tpu.trace_stop"() : () -> ()
    %cst_287 = arith.constant 0.353553385 : f32
    %350 = vector.broadcast %cst_287 : f32 to vector<3x8x8xf32>
    %351 = arith.mulf %349, %350 : vector<3x8x8xf32>
    %cst_288 = arith.constant dense<0xFF800000> : vector<3x8xf32>
    %352 = vector.multi_reduction <maximumf>, %351, %cst_288 [2] : vector<3x8x8xf32> to vector<3x8xf32>
    %353 = vector.shape_cast %352 : vector<3x8xf32> to vector<3x8x1xf32>
    %354 = vector.broadcast %353 : vector<3x8x1xf32> to vector<3x8x8xf32>
    %355 = arith.subf %351, %354 : vector<3x8x8xf32>
    %356 = math.exp %355 : vector<3x8x8xf32>
    %cst_289 = arith.constant dense<0.000000e+00> : vector<3x8xf32>
    %357 = vector.multi_reduction <add>, %356, %cst_289 [2] : vector<3x8x8xf32> to vector<3x8xf32>
    %358 = vector.shape_cast %357 : vector<3x8xf32> to vector<3x8x1xf32>
    %359 = vector.broadcast %358 : vector<3x8x1xf32> to vector<3x8x8xf32>
    %360 = arith.divf %356, %359 : vector<3x8x8xf32>
    "tpu.trace_start"() <{level = 10 : i32, message = "bqk,bkd->bqd"}> : () -> ()
    %cst_290 = arith.constant dense<0.000000e+00> : vector<3x8x8xf32>
    %361 = tpu.matmul %360, %348, %cst_290 {dimension_numbers = #tpu.dot_dimension_numbers<[2], [1], [1], [2], [0, 0, 0, 1, 1, 2], [0], [0]>} : vector<3x8x8xf32>, vector<3x8x8xf32>, vector<3x8x8xf32> -> vector<3x8x8xf32>
    "tpu.trace_stop"() : () -> ()
    %362 = vector.shape_cast %361 : vector<3x8x8xf32> to vector<24x8xf32>
    %c1_291 = arith.constant 1 : index
    %c2_292 = arith.constant 2 : index
    %c0_293 = arith.constant 0 : index
    %c0_294 = arith.constant 0 : index
    %363 = vector.load %arg8[%c1_291, %c2_292, %c0_293, %c0_294] : memref<2x4x8x32xf32, #tpu.memory_space<vmem>>, vector<1x1x8x32xf32>
    %364 = vector.shape_cast %363 : vector<1x1x8x32xf32> to vector<8x32xf32>
    %cst_295 = arith.constant dense<0.000000e+00> : vector<24x32xf32>
    %365 = tpu.matmul %362, %364, %cst_295 {dimension_numbers = #tpu.dot_dimension_numbers<[1], [0], [0], [1], [0, 0, 1, 1], [], []>} : vector<24x8xf32>, vector<8x32xf32>, vector<24x32xf32> -> vector<24x32xf32>
    %366 = arith.addf %324, %365 : vector<24x32xf32>
    %c1_296 = arith.constant 1 : index
    %c3_297 = arith.constant 3 : index
    %c0_298 = arith.constant 0 : index
    %c0_299 = arith.constant 0 : index
    %367 = vector.load %arg2[%c1_296, %c3_297, %c0_298, %c0_299] : memref<2x4x32x8xf32, #tpu.memory_space<vmem>>, vector<1x1x32x8xf32>
    %368 = vector.shape_cast %367 : vector<1x1x32x8xf32> to vector<32x8xf32>
    %cst_300 = arith.constant dense<0.000000e+00> : vector<24x8xf32>
    %369 = tpu.matmul %241, %368, %cst_300 {dimension_numbers = #tpu.dot_dimension_numbers<[1], [0], [0], [1], [0, 0, 1, 1], [], []>} : vector<24x32xf32>, vector<32x8xf32>, vector<24x8xf32> -> vector<24x8xf32>
    %c1_301 = arith.constant 1 : index
    %c3_302 = arith.constant 3 : index
    %c0_303 = arith.constant 0 : index
    %c0_304 = arith.constant 0 : index
    %370 = vector.load %arg5[%c1_301, %c3_302, %c0_303, %c0_304] : memref<2x4x1x8xf32, #tpu.memory_space<vmem>>, vector<1x1x1x8xf32>
    %371 = vector.shape_cast %370 : vector<1x1x1x8xf32> to vector<1x8xf32>
    %372 = vector.broadcast %371 : vector<1x8xf32> to vector<24x8xf32>
    %373 = arith.addf %369, %372 : vector<24x8xf32>
    %c1_305 = arith.constant 1 : index
    %c3_306 = arith.constant 3 : index
    %c0_307 = arith.constant 0 : index
    %c0_308 = arith.constant 0 : index
    %374 = vector.load %arg3[%c1_305, %c3_306, %c0_307, %c0_308] : memref<2x4x32x8xf32, #tpu.memory_space<vmem>>, vector<1x1x32x8xf32>
    %375 = vector.shape_cast %374 : vector<1x1x32x8xf32> to vector<32x8xf32>
    %cst_309 = arith.constant dense<0.000000e+00> : vector<24x8xf32>
    %376 = tpu.matmul %241, %375, %cst_309 {dimension_numbers = #tpu.dot_dimension_numbers<[1], [0], [0], [1], [0, 0, 1, 1], [], []>} : vector<24x32xf32>, vector<32x8xf32>, vector<24x8xf32> -> vector<24x8xf32>
    %c1_310 = arith.constant 1 : index
    %c3_311 = arith.constant 3 : index
    %c0_312 = arith.constant 0 : index
    %c0_313 = arith.constant 0 : index
    %377 = vector.load %arg6[%c1_310, %c3_311, %c0_312, %c0_313] : memref<2x4x1x8xf32, #tpu.memory_space<vmem>>, vector<1x1x1x8xf32>
    %378 = vector.shape_cast %377 : vector<1x1x1x8xf32> to vector<1x8xf32>
    %379 = vector.broadcast %378 : vector<1x8xf32> to vector<24x8xf32>
    %380 = arith.addf %376, %379 : vector<24x8xf32>
    %c1_314 = arith.constant 1 : index
    %c3_315 = arith.constant 3 : index
    %c0_316 = arith.constant 0 : index
    %c0_317 = arith.constant 0 : index
    %381 = vector.load %arg4[%c1_314, %c3_315, %c0_316, %c0_317] : memref<2x4x32x8xf32, #tpu.memory_space<vmem>>, vector<1x1x32x8xf32>
    %382 = vector.shape_cast %381 : vector<1x1x32x8xf32> to vector<32x8xf32>
    %cst_318 = arith.constant dense<0.000000e+00> : vector<24x8xf32>
    %383 = tpu.matmul %241, %382, %cst_318 {dimension_numbers = #tpu.dot_dimension_numbers<[1], [0], [0], [1], [0, 0, 1, 1], [], []>} : vector<24x32xf32>, vector<32x8xf32>, vector<24x8xf32> -> vector<24x8xf32>
    %c1_319 = arith.constant 1 : index
    %c3_320 = arith.constant 3 : index
    %c0_321 = arith.constant 0 : index
    %c0_322 = arith.constant 0 : index
    %384 = vector.load %arg7[%c1_319, %c3_320, %c0_321, %c0_322] : memref<2x4x1x8xf32, #tpu.memory_space<vmem>>, vector<1x1x1x8xf32>
    %385 = vector.shape_cast %384 : vector<1x1x1x8xf32> to vector<1x8xf32>
    %386 = vector.broadcast %385 : vector<1x8xf32> to vector<24x8xf32>
    %387 = arith.addf %383, %386 : vector<24x8xf32>
    %388 = vector.shape_cast %373 : vector<24x8xf32> to vector<3x8x8xf32>
    %389 = vector.shape_cast %380 : vector<24x8xf32> to vector<3x8x8xf32>
    %390 = vector.shape_cast %387 : vector<24x8xf32> to vector<3x8x8xf32>
    "tpu.trace_start"() <{level = 10 : i32, message = "bqd,bkd->bqk"}> : () -> ()
    %cst_323 = arith.constant dense<0.000000e+00> : vector<3x8x8xf32>
    %391 = tpu.matmul %388, %389, %cst_323 {dimension_numbers = #tpu.dot_dimension_numbers<[2], [2], [1], [1], [0, 0, 0, 1, 1, 1], [0], [0]>} : vector<3x8x8xf32>, vector<3x8x8xf32>, vector<3x8x8xf32> -> vector<3x8x8xf32>
    "tpu.trace_stop"() : () -> ()
    %cst_324 = arith.constant 0.353553385 : f32
    %392 = vector.broadcast %cst_324 : f32 to vector<3x8x8xf32>
    %393 = arith.mulf %391, %392 : vector<3x8x8xf32>
    %cst_325 = arith.constant dense<0xFF800000> : vector<3x8xf32>
    %394 = vector.multi_reduction <maximumf>, %393, %cst_325 [2] : vector<3x8x8xf32> to vector<3x8xf32>
    %395 = vector.shape_cast %394 : vector<3x8xf32> to vector<3x8x1xf32>
    %396 = vector.broadcast %395 : vector<3x8x1xf32> to vector<3x8x8xf32>
    %397 = arith.subf %393, %396 : vector<3x8x8xf32>
    %398 = math.exp %397 : vector<3x8x8xf32>
    %cst_326 = arith.constant dense<0.000000e+00> : vector<3x8xf32>
    %399 = vector.multi_reduction <add>, %398, %cst_326 [2] : vector<3x8x8xf32> to vector<3x8xf32>
    %400 = vector.shape_cast %399 : vector<3x8xf32> to vector<3x8x1xf32>
    %401 = vector.broadcast %400 : vector<3x8x1xf32> to vector<3x8x8xf32>
    %402 = arith.divf %398, %401 : vector<3x8x8xf32>
    "tpu.trace_start"() <{level = 10 : i32, message = "bqk,bkd->bqd"}> : () -> ()
    %cst_327 = arith.constant dense<0.000000e+00> : vector<3x8x8xf32>
    %403 = tpu.matmul %402, %390, %cst_327 {dimension_numbers = #tpu.dot_dimension_numbers<[2], [1], [1], [2], [0, 0, 0, 1, 1, 2], [0], [0]>} : vector<3x8x8xf32>, vector<3x8x8xf32>, vector<3x8x8xf32> -> vector<3x8x8xf32>
    "tpu.trace_stop"() : () -> ()
    %404 = vector.shape_cast %403 : vector<3x8x8xf32> to vector<24x8xf32>
    %c1_328 = arith.constant 1 : index
    %c3_329 = arith.constant 3 : index
    %c0_330 = arith.constant 0 : index
    %c0_331 = arith.constant 0 : index
    %405 = vector.load %arg8[%c1_328, %c3_329, %c0_330, %c0_331] : memref<2x4x8x32xf32, #tpu.memory_space<vmem>>, vector<1x1x8x32xf32>
    %406 = vector.shape_cast %405 : vector<1x1x8x32xf32> to vector<8x32xf32>
    %cst_332 = arith.constant dense<0.000000e+00> : vector<24x32xf32>
    %407 = tpu.matmul %404, %406, %cst_332 {dimension_numbers = #tpu.dot_dimension_numbers<[1], [0], [0], [1], [0, 0, 1, 1], [], []>} : vector<24x8xf32>, vector<8x32xf32>, vector<24x32xf32> -> vector<24x32xf32>
    %408 = arith.addf %366, %407 : vector<24x32xf32>
    %c1_333 = arith.constant 1 : index
    %c0_334 = arith.constant 0 : index
    %c0_335 = arith.constant 0 : index
    %409 = vector.load %arg9[%c1_333, %c0_334, %c0_335] : memref<2x1x32xf32, #tpu.memory_space<vmem>>, vector<1x1x32xf32>
    %410 = vector.shape_cast %409 : vector<1x1x32xf32> to vector<1x32xf32>
    %411 = vector.broadcast %410 : vector<1x32xf32> to vector<24x32xf32>
    %412 = arith.addf %408, %411 : vector<24x32xf32>
    %413 = arith.addf %241, %412 : vector<24x32xf32>
    %cst_336 = arith.constant dense<0.000000e+00> : vector<24xf32>
    %414 = vector.multi_reduction <add>, %413, %cst_336 [1] : vector<24x32xf32> to vector<24xf32>
    %415 = vector.shape_cast %414 : vector<24xf32> to vector<24x1xf32>
    %cst_337 = arith.constant 3.200000e+01 : f32
    %416 = vector.broadcast %cst_337 : f32 to vector<24x1xf32>
    %417 = arith.divf %415, %416 : vector<24x1xf32>
    %418 = vector.broadcast %417 : vector<24x1xf32> to vector<24x32xf32>
    %419 = arith.subf %413, %418 : vector<24x32xf32>
    %420 = arith.mulf %419, %419 : vector<24x32xf32>
    %cst_338 = arith.constant dense<0.000000e+00> : vector<24xf32>
    %421 = vector.multi_reduction <add>, %420, %cst_338 [1] : vector<24x32xf32> to vector<24xf32>
    %422 = vector.shape_cast %421 : vector<24xf32> to vector<24x1xf32>
    %cst_339 = arith.constant 3.200000e+01 : f32
    %423 = vector.broadcast %cst_339 : f32 to vector<24x1xf32>
    %424 = arith.divf %422, %423 : vector<24x1xf32>
    %425 = vector.broadcast %417 : vector<24x1xf32> to vector<24x32xf32>
    %426 = arith.subf %413, %425 : vector<24x32xf32>
    %cst_340 = arith.constant 9.99999974E-6 : f32
    %427 = vector.broadcast %cst_340 : f32 to vector<24x1xf32>
    %428 = arith.addf %424, %427 : vector<24x1xf32>
    %429 = math.rsqrt %428 : vector<24x1xf32>
    %430 = vector.broadcast %429 : vector<24x1xf32> to vector<24x32xf32>
    %431 = arith.mulf %426, %430 : vector<24x32xf32>
    %c1_341 = arith.constant 1 : index
    %c0_342 = arith.constant 0 : index
    %c0_343 = arith.constant 0 : index
    %432 = vector.load %arg10[%c1_341, %c0_342, %c0_343] : memref<2x1x32xf32, #tpu.memory_space<vmem>>, vector<1x1x32xf32>
    %433 = vector.shape_cast %432 : vector<1x1x32xf32> to vector<1x32xf32>
    %434 = vector.broadcast %433 : vector<1x32xf32> to vector<24x32xf32>
    %435 = arith.mulf %431, %434 : vector<24x32xf32>
    %c1_344 = arith.constant 1 : index
    %c0_345 = arith.constant 0 : index
    %c0_346 = arith.constant 0 : index
    %436 = vector.load %arg11[%c1_344, %c0_345, %c0_346] : memref<2x1x32xf32, #tpu.memory_space<vmem>>, vector<1x1x32xf32>
    %437 = vector.shape_cast %436 : vector<1x1x32xf32> to vector<1x32xf32>
    %438 = vector.broadcast %437 : vector<1x32xf32> to vector<24x32xf32>
    %439 = arith.addf %435, %438 : vector<24x32xf32>
    %c1_347 = arith.constant 1 : index
    %c0_348 = arith.constant 0 : index
    %c0_349 = arith.constant 0 : index
    %440 = vector.load %arg12[%c1_347, %c0_348, %c0_349] : memref<2x32x128xf32, #tpu.memory_space<vmem>>, vector<1x32x128xf32>
    %441 = vector.shape_cast %440 : vector<1x32x128xf32> to vector<32x128xf32>
    %cst_350 = arith.constant dense<0.000000e+00> : vector<24x128xf32>
    %442 = tpu.matmul %439, %441, %cst_350 {dimension_numbers = #tpu.dot_dimension_numbers<[1], [0], [0], [1], [0, 0, 1, 1], [], []>} : vector<24x32xf32>, vector<32x128xf32>, vector<24x128xf32> -> vector<24x128xf32>
    %c1_351 = arith.constant 1 : index
    %c0_352 = arith.constant 0 : index
    %c0_353 = arith.constant 0 : index
    %443 = vector.load %arg13[%c1_351, %c0_352, %c0_353] : memref<2x1x128xf32, #tpu.memory_space<vmem>>, vector<1x1x128xf32>
    %444 = vector.shape_cast %443 : vector<1x1x128xf32> to vector<1x128xf32>
    %445 = vector.broadcast %444 : vector<1x128xf32> to vector<24x128xf32>
    %446 = arith.addf %442, %445 : vector<24x128xf32>
    %cst_354 = arith.constant 0.000000e+00 : f32
    %447 = vector.broadcast %cst_354 : f32 to vector<24x128xf32>
    %448 = arith.maximumf %446, %447 : vector<24x128xf32>
    %c1_355 = arith.constant 1 : index
    %c0_356 = arith.constant 0 : index
    %c0_357 = arith.constant 0 : index
    %449 = vector.load %arg14[%c1_355, %c0_356, %c0_357] : memref<2x128x32xf32, #tpu.memory_space<vmem>>, vector<1x128x32xf32>
    %450 = vector.shape_cast %449 : vector<1x128x32xf32> to vector<128x32xf32>
    %cst_358 = arith.constant dense<0.000000e+00> : vector<24x32xf32>
    %451 = tpu.matmul %448, %450, %cst_358 {dimension_numbers = #tpu.dot_dimension_numbers<[1], [0], [0], [1], [0, 0, 1, 1], [], []>} : vector<24x128xf32>, vector<128x32xf32>, vector<24x32xf32> -> vector<24x32xf32>
    %c1_359 = arith.constant 1 : index
    %c0_360 = arith.constant 0 : index
    %c0_361 = arith.constant 0 : index
    %452 = vector.load %arg15[%c1_359, %c0_360, %c0_361] : memref<2x1x32xf32, #tpu.memory_space<vmem>>, vector<1x1x32xf32>
    %453 = vector.shape_cast %452 : vector<1x1x32xf32> to vector<1x32xf32>
    %454 = vector.broadcast %453 : vector<1x32xf32> to vector<24x32xf32>
    %455 = arith.addf %451, %454 : vector<24x32xf32>
    %456 = arith.addf %439, %455 : vector<24x32xf32>
    %cst_362 = arith.constant dense<0.000000e+00> : vector<24xf32>
    %457 = vector.multi_reduction <add>, %456, %cst_362 [1] : vector<24x32xf32> to vector<24xf32>
    %458 = vector.shape_cast %457 : vector<24xf32> to vector<24x1xf32>
    %cst_363 = arith.constant 3.200000e+01 : f32
    %459 = vector.broadcast %cst_363 : f32 to vector<24x1xf32>
    %460 = arith.divf %458, %459 : vector<24x1xf32>
    %461 = vector.broadcast %460 : vector<24x1xf32> to vector<24x32xf32>
    %462 = arith.subf %456, %461 : vector<24x32xf32>
    %463 = arith.mulf %462, %462 : vector<24x32xf32>
    %cst_364 = arith.constant dense<0.000000e+00> : vector<24xf32>
    %464 = vector.multi_reduction <add>, %463, %cst_364 [1] : vector<24x32xf32> to vector<24xf32>
    %465 = vector.shape_cast %464 : vector<24xf32> to vector<24x1xf32>
    %cst_365 = arith.constant 3.200000e+01 : f32
    %466 = vector.broadcast %cst_365 : f32 to vector<24x1xf32>
    %467 = arith.divf %465, %466 : vector<24x1xf32>
    %468 = vector.broadcast %460 : vector<24x1xf32> to vector<24x32xf32>
    %469 = arith.subf %456, %468 : vector<24x32xf32>
    %cst_366 = arith.constant 9.99999974E-6 : f32
    %470 = vector.broadcast %cst_366 : f32 to vector<24x1xf32>
    %471 = arith.addf %467, %470 : vector<24x1xf32>
    %472 = math.rsqrt %471 : vector<24x1xf32>
    %473 = vector.broadcast %472 : vector<24x1xf32> to vector<24x32xf32>
    %474 = arith.mulf %469, %473 : vector<24x32xf32>
    %c1_367 = arith.constant 1 : index
    %c0_368 = arith.constant 0 : index
    %c0_369 = arith.constant 0 : index
    %475 = vector.load %arg16[%c1_367, %c0_368, %c0_369] : memref<2x1x32xf32, #tpu.memory_space<vmem>>, vector<1x1x32xf32>
    %476 = vector.shape_cast %475 : vector<1x1x32xf32> to vector<1x32xf32>
    %477 = vector.broadcast %476 : vector<1x32xf32> to vector<24x32xf32>
    %478 = arith.mulf %474, %477 : vector<24x32xf32>
    %c1_370 = arith.constant 1 : index
    %c0_371 = arith.constant 0 : index
    %c0_372 = arith.constant 0 : index
    %479 = vector.load %arg17[%c1_370, %c0_371, %c0_372] : memref<2x1x32xf32, #tpu.memory_space<vmem>>, vector<1x1x32xf32>
    %480 = vector.shape_cast %479 : vector<1x1x32xf32> to vector<1x32xf32>
    %481 = vector.broadcast %480 : vector<1x32xf32> to vector<24x32xf32>
    %482 = arith.addf %478, %481 : vector<24x32xf32>
    %483 = vector.shape_cast %482 : vector<24x32xf32> to vector<3x8x32xf32>
    %484 = tpu.iota {dimensions = array<i32: 1>} : vector<3x8x32xi32>
    %c7_i32 = arith.constant 7 : i32
    %485 = vector.broadcast %c7_i32 : i32 to vector<3x8x32xi32>
    %486 = arith.cmpi slt, %484, %485 : vector<3x8x32xi32>
    %cst_373 = arith.constant 0.000000e+00 : f32
    %487 = vector.broadcast %cst_373 : f32 to vector<3x8x32xf32>
    %488 = arith.select %486, %483, %487 : vector<3x8x32xi1>, vector<3x8x32xf32>
    %cst_374 = arith.constant dense<0.000000e+00> : vector<3x32xf32>
    %489 = vector.multi_reduction <add>, %488, %cst_374 [1] : vector<3x8x32xf32> to vector<3x32xf32>
    %c0_375 = arith.constant 0 : index
    %c0_376 = arith.constant 0 : index
    %490 = vector.load %arg18[%c0_375, %c0_376] : memref<32x32xf32, #tpu.memory_space<vmem>>, vector<32x32xf32>
    %cst_377 = arith.constant dense<0.000000e+00> : vector<3x32xf32>
    %491 = tpu.matmul %489, %490, %cst_377 {dimension_numbers = #tpu.dot_dimension_numbers<[1], [0], [0], [1], [0, 0, 1, 1], [], []>} : vector<3x32xf32>, vector<32x32xf32>, vector<3x32xf32> -> vector<3x32xf32>
    %c0_378 = arith.constant 0 : index
    %c0_379 = arith.constant 0 : index
    %492 = vector.load %arg19[%c0_378, %c0_379] : memref<1x32xf32, #tpu.memory_space<vmem>>, vector<1x32xf32>
    %cst_380 = arith.constant 7.000000e+00 : f32
    %493 = vector.broadcast %cst_380 : f32 to vector<1x32xf32>
    %494 = arith.mulf %493, %492 : vector<1x32xf32>
    %495 = vector.broadcast %494 : vector<1x32xf32> to vector<3x32xf32>
    %496 = arith.addf %491, %495 : vector<3x32xf32>
    %c0_381 = arith.constant 0 : index
    %c0_382 = arith.constant 0 : index
    %497 = vector.load %arg20[%c0_381, %c0_382] : memref<32x32xf32, #tpu.memory_space<vmem>>, vector<32x32xf32>
    %cst_383 = arith.constant dense<0.000000e+00> : vector<3x32xf32>
    %498 = tpu.matmul %496, %497, %cst_383 {dimension_numbers = #tpu.dot_dimension_numbers<[1], [0], [0], [1], [0, 0, 1, 1], [], []>} : vector<3x32xf32>, vector<32x32xf32>, vector<3x32xf32> -> vector<3x32xf32>
    %c0_384 = arith.constant 0 : index
    %c0_385 = arith.constant 0 : index
    %499 = vector.load %arg21[%c0_384, %c0_385] : memref<1x32xf32, #tpu.memory_space<vmem>>, vector<1x32xf32>
    %500 = vector.broadcast %499 : vector<1x32xf32> to vector<3x32xf32>
    %501 = arith.addf %498, %500 : vector<3x32xf32>
    %c0_386 = arith.constant 0 : index
    %c0_387 = arith.constant 0 : index
    %502 = vector.load %arg22[%c0_386, %c0_387] : memref<3x32xf32, #tpu.memory_space<vmem>>, vector<3x32xf32>
    tpu.vector_store %arg22[%c0_386, %c0_387], %501 {strides = array<i32>} : memref<3x32xf32, #tpu.memory_space<vmem>>, vector<3x32xf32>,
    return
  }
  func.func @transform_0(%arg0: i32) -> (i32, i32) {
    %c0_i32 = arith.constant 0 : i32
    %c0_i32_0 = arith.constant 0 : i32
    %c0_i32_1 = arith.constant 0 : i32
    return %c0_i32, %c0_i32_0 : i32, i32
  }
  func.func @transform_1(%arg0: i32) -> (i32, i32, i32, i32) {
    %c0_i32 = arith.constant 0 : i32
    %c0_i32_0 = arith.constant 0 : i32
    %c0_i32_1 = arith.constant 0 : i32
    %c0_i32_2 = arith.constant 0 : i32
    %c0_i32_3 = arith.constant 0 : i32
    return %c0_i32, %c0_i32_0, %c0_i32_1, %c0_i32_2 : i32, i32, i32, i32
  }
  func.func @transform_2(%arg0: i32) -> (i32, i32, i32, i32) {
    %c0_i32 = arith.constant 0 : i32
    %c0_i32_0 = arith.constant 0 : i32
    %c0_i32_1 = arith.constant 0 : i32
    %c0_i32_2 = arith.constant 0 : i32
    %c0_i32_3 = arith.constant 0 : i32
    return %c0_i32, %c0_i32_0, %c0_i32_1, %c0_i32_2 : i32, i32, i32, i32
  }
  func.func @transform_3(%arg0: i32) -> (i32, i32, i32, i32) {
    %c0_i32 = arith.constant 0 : i32
    %c0_i32_0 = arith.constant 0 : i32
    %c0_i32_1 = arith.constant 0 : i32
    %c0_i32_2 = arith.constant 0 : i32
    %c0_i32_3 = arith.constant 0 : i32
    return %c0_i32, %c0_i32_0, %c0_i32_1, %c0_i32_2 : i32, i32, i32, i32
  }
  func.func @transform_4(%arg0: i32) -> (i32, i32, i32, i32) {
    %c0_i32 = arith.constant 0 : i32
    %c0_i32_0 = arith.constant 0 : i32
    %c0_i32_1 = arith.constant 0 : i32
    %c0_i32_2 = arith.constant 0 : i32
    %c0_i32_3 = arith.constant 0 : i32
    return %c0_i32, %c0_i32_0, %c0_i32_1, %c0_i32_2 : i32, i32, i32, i32
  }
  func.func @transform_5(%arg0: i32) -> (i32, i32, i32, i32) {
    %c0_i32 = arith.constant 0 : i32
    %c0_i32_0 = arith.constant 0 : i32
    %c0_i32_1 = arith.constant 0 : i32
    %c0_i32_2 = arith.constant 0 : i32
    %c0_i32_3 = arith.constant 0 : i32
    return %c0_i32, %c0_i32_0, %c0_i32_1, %c0_i32_2 : i32, i32, i32, i32
  }
  func.func @transform_6(%arg0: i32) -> (i32, i32, i32, i32) {
    %c0_i32 = arith.constant 0 : i32
    %c0_i32_0 = arith.constant 0 : i32
    %c0_i32_1 = arith.constant 0 : i32
    %c0_i32_2 = arith.constant 0 : i32
    %c0_i32_3 = arith.constant 0 : i32
    return %c0_i32, %c0_i32_0, %c0_i32_1, %c0_i32_2 : i32, i32, i32, i32
  }
  func.func @transform_7(%arg0: i32) -> (i32, i32, i32, i32) {
    %c0_i32 = arith.constant 0 : i32
    %c0_i32_0 = arith.constant 0 : i32
    %c0_i32_1 = arith.constant 0 : i32
    %c0_i32_2 = arith.constant 0 : i32
    %c0_i32_3 = arith.constant 0 : i32
    return %c0_i32, %c0_i32_0, %c0_i32_1, %c0_i32_2 : i32, i32, i32, i32
  }
  func.func @transform_8(%arg0: i32) -> (i32, i32, i32) {
    %c0_i32 = arith.constant 0 : i32
    %c0_i32_0 = arith.constant 0 : i32
    %c0_i32_1 = arith.constant 0 : i32
    %c0_i32_2 = arith.constant 0 : i32
    return %c0_i32, %c0_i32_0, %c0_i32_1 : i32, i32, i32
  }
  func.func @transform_9(%arg0: i32) -> (i32, i32, i32) {
    %c0_i32 = arith.constant 0 : i32
    %c0_i32_0 = arith.constant 0 : i32
    %c0_i32_1 = arith.constant 0 : i32
    %c0_i32_2 = arith.constant 0 : i32
    return %c0_i32, %c0_i32_0, %c0_i32_1 : i32, i32, i32
  }
  func.func @transform_10(%arg0: i32) -> (i32, i32, i32) {
    %c0_i32 = arith.constant 0 : i32
    %c0_i32_0 = arith.constant 0 : i32
    %c0_i32_1 = arith.constant 0 : i32
    %c0_i32_2 = arith.constant 0 : i32
    return %c0_i32, %c0_i32_0, %c0_i32_1 : i32, i32, i32
  }
  func.func @transform_11(%arg0: i32) -> (i32, i32, i32) {
    %c0_i32 = arith.constant 0 : i32
    %c0_i32_0 = arith.constant 0 : i32
    %c0_i32_1 = arith.constant 0 : i32
    %c0_i32_2 = arith.constant 0 : i32
    return %c0_i32, %c0_i32_0, %c0_i32_1 : i32, i32, i32
  }
  func.func @transform_12(%arg0: i32) -> (i32, i32, i32) {
    %c0_i32 = arith.constant 0 : i32
    %c0_i32_0 = arith.constant 0 : i32
    %c0_i32_1 = arith.constant 0 : i32
    %c0_i32_2 = arith.constant 0 : i32
    return %c0_i32, %c0_i32_0, %c0_i32_1 : i32, i32, i32
  }
  func.func @transform_13(%arg0: i32) -> (i32, i32, i32) {
    %c0_i32 = arith.constant 0 : i32
    %c0_i32_0 = arith.constant 0 : i32
    %c0_i32_1 = arith.constant 0 : i32
    %c0_i32_2 = arith.constant 0 : i32
    return %c0_i32, %c0_i32_0, %c0_i32_1 : i32, i32, i32
  }
  func.func @transform_14(%arg0: i32) -> (i32, i32, i32) {
    %c0_i32 = arith.constant 0 : i32
    %c0_i32_0 = arith.constant 0 : i32
    %c0_i32_1 = arith.constant 0 : i32
    %c0_i32_2 = arith.constant 0 : i32
    return %c0_i32, %c0_i32_0, %c0_i32_1 : i32, i32, i32
  }
  func.func @transform_15(%arg0: i32) -> (i32, i32, i32) {
    %c0_i32 = arith.constant 0 : i32
    %c0_i32_0 = arith.constant 0 : i32
    %c0_i32_1 = arith.constant 0 : i32
    %c0_i32_2 = arith.constant 0 : i32
    return %c0_i32, %c0_i32_0, %c0_i32_1 : i32, i32, i32
  }
  func.func @transform_16(%arg0: i32) -> (i32, i32, i32) {
    %c0_i32 = arith.constant 0 : i32
    %c0_i32_0 = arith.constant 0 : i32
    %c0_i32_1 = arith.constant 0 : i32
    %c0_i32_2 = arith.constant 0 : i32
    return %c0_i32, %c0_i32_0, %c0_i32_1 : i32, i32, i32
  }
  func.func @transform_17(%arg0: i32) -> (i32, i32) {
    %c0_i32 = arith.constant 0 : i32
    %c0_i32_0 = arith.constant 0 : i32
    %c0_i32_1 = arith.constant 0 : i32
    return %c0_i32, %c0_i32_0 : i32, i32
  }
  func.func @transform_18(%arg0: i32) -> (i32, i32) {
    %c0_i32 = arith.constant 0 : i32
    %c0_i32_0 = arith.constant 0 : i32
    %c0_i32_1 = arith.constant 0 : i32
    return %c0_i32, %c0_i32_0 : i32, i32
  }
  func.func @transform_19(%arg0: i32) -> (i32, i32) {
    %c0_i32 = arith.constant 0 : i32
    %c0_i32_0 = arith.constant 0 : i32
    %c0_i32_1 = arith.constant 0 : i32
    return %c0_i32, %c0_i32_0 : i32, i32
  }
  func.func @transform_20(%arg0: i32) -> (i32, i32) {
    %c0_i32 = arith.constant 0 : i32
    %c0_i32_0 = arith.constant 0 : i32
    %c0_i32_1 = arith.constant 0 : i32
    return %c0_i32, %c0_i32_0 : i32, i32
  }
  func.func @transform_21(%arg0: i32) -> (i32, i32) {
    %c0_i32 = arith.constant 0 : i32
    %c0_i32_0 = arith.constant 0 : i32
    %c0_i32_1 = arith.constant 0 : i32
    return %c0_i32, %c0_i32_0 : i32, i32
  }
}

</mosaic_0001>

<llo_original>
// kernel: tpu_custom_call.1
$region0: #{tpu_custom_call.1}
  #allocation0 [shape = 'u32[]', space=smem, size = 0x4, offset = 0x4, fixed_abs, tag = 'smem constant byte address 0x4 - core index']
  #allocation1 [shape = 'u32[144,128]{1,0:T(1,128)}', space=vmem, size = 0x12000, scoped, tag = 'internal scratch']
  %s0 = inlined_call_operand.vmem [shape: f32[24,32], index: 0, kind: input, shape index: {}]
  %s1 = inlined_call_operand.vmem [shape: f32[2,4,32,8], index: 1, kind: input, shape index: {}]
  %s2 = inlined_call_operand.vmem [shape: f32[2,4,32,8], index: 2, kind: input, shape index: {}]
  %s3 = inlined_call_operand.vmem [shape: f32[2,4,32,8], index: 3, kind: input, shape index: {}]
  %s4 = inlined_call_operand.vmem [shape: f32[2,4,1,8], index: 4, kind: input, shape index: {}]
  %s5 = inlined_call_operand.vmem [shape: f32[2,4,1,8], index: 5, kind: input, shape index: {}]
  %s6 = inlined_call_operand.vmem [shape: f32[2,4,1,8], index: 6, kind: input, shape index: {}]
  %s7 = inlined_call_operand.vmem [shape: f32[2,4,8,32], index: 7, kind: input, shape index: {}]
  %s8 = inlined_call_operand.vmem [shape: f32[2,1,32], index: 8, kind: input, shape index: {}]
  %s9 = inlined_call_operand.vmem [shape: f32[2,1,32], index: 9, kind: input, shape index: {}]
  %s10 = inlined_call_operand.vmem [shape: f32[2,1,32], index: 10, kind: input, shape index: {}]
  %s11 = inlined_call_operand.vmem [shape: f32[2,32,128], index: 11, kind: input, shape index: {}]
  %s12 = inlined_call_operand.vmem [shape: f32[2,1,128], index: 12, kind: input, shape index: {}]
  %s13 = inlined_call_operand.vmem [shape: f32[2,128,32], index: 13, kind: input, shape index: {}]
  %s14 = inlined_call_operand.vmem [shape: f32[2,1,32], index: 14, kind: input, shape index: {}]
  %s15 = inlined_call_operand.vmem [shape: f32[2,1,32], index: 15, kind: input, shape index: {}]
  %s16 = inlined_call_operand.vmem [shape: f32[2,1,32], index: 16, kind: input, shape index: {}]
  %s17 = inlined_call_operand.vmem [shape: f32[32,32], index: 17, kind: input, shape index: {}]
  %s18 = inlined_call_operand.vmem [shape: f32[1,32], index: 18, kind: input, shape index: {}]
  %s19 = inlined_call_operand.vmem [shape: f32[32,32], index: 19, kind: input, shape index: {}]
  %s20 = inlined_call_operand.vmem [shape: f32[1,32], index: 20, kind: input, shape index: {}]
  %s21 = inlined_call_operand.hbm [shape: f32[3,32], index: 21, kind: output, shape index: {}]
  %s22 = sld [smem:[#allocation0]]
  $region94: #{tpu_custom_call.1} parent=0
    _
  %s24 = ssub.s32 1, %s22
  %s25 = scalar_select 0, %s24, %s22
  $region1: #{tpu_custom_call.1} parent=0
    #allocation2 [shape = 'u8[2048]{0}', space=vmem, size = 0x800, scoped, tag = 'output window, operand 0, single buffered']
    #allocation3 [shape = 's32[1]{0}', space=sflag, size = 0x4, scoped, tag = 'scoped memory for tpu_custom_call.1']
    %26 = vsyncpa [#allocation3], 0
    // Predicated region
    $region2: #{tpu_custom_call.1} parent=1 // pred_check
      _
    $region3: #{tpu_custom_call.1} parent=1 // pred_check_branch
      %28 = sbr.rel (0) target = $region5
    $region4: #{tpu_custom_call.1} parent=1 // pred_region
      _
    $region5: #{tpu_custom_call.1} parent=1 // pred_fallthru
      _
    // Predicated region
    $region6: #{tpu_custom_call.1} parent=1 // pred_check
      _
    $region7: #{tpu_custom_call.1} parent=1 // pred_check_branch
      %30 = sbr.rel (0) target = $region9
    $region8: #{tpu_custom_call.1} parent=1 // pred_region
      _
    $region9: #{tpu_custom_call.1} parent=1 // pred_fallthru
      _
    // Predicated region
    $region10: #{tpu_custom_call.1} parent=1 // pred_check
      _
    $region11: #{tpu_custom_call.1} parent=1 // pred_check_branch
      %32 = sbr.rel (0) target = $region13
    $region12: #{tpu_custom_call.1} parent=1 // pred_region
      _
    $region13: #{tpu_custom_call.1} parent=1 // pred_fallthru
      _
    // Predicated region
    $region14: #{tpu_custom_call.1} parent=1 // pred_check
      _
    $region15: #{tpu_custom_call.1} parent=1 // pred_check_branch
      %34 = sbr.rel (0) target = $region17
    $region16: #{tpu_custom_call.1} parent=1 // pred_region
      _
    $region17: #{tpu_custom_call.1} parent=1 // pred_fallthru
      _
    // Predicated region
    $region18: #{tpu_custom_call.1} parent=1 // pred_check
      _
    $region19: #{tpu_custom_call.1} parent=1 // pred_check_branch
      %36 = sbr.rel (0) target = $region21
    $region20: #{tpu_custom_call.1} parent=1 // pred_region
      _
    $region21: #{tpu_custom_call.1} parent=1 // pred_fallthru
      _
    // Predicated region
    $region22: #{tpu_custom_call.1} parent=1 // pred_check
      _
    $region23: #{tpu_custom_call.1} parent=1 // pred_check_branch
      %38 = sbr.rel (0) target = $region25
    $region24: #{tpu_custom_call.1} parent=1 // pred_region
      _
    $region25: #{tpu_custom_call.1} parent=1 // pred_fallthru
      _
    // Predicated region
    $region26: #{tpu_custom_call.1} parent=1 // pred_check
      _
    $region27: #{tpu_custom_call.1} parent=1 // pred_check_branch
      %40 = sbr.rel (0) target = $region29
    $region28: #{tpu_custom_call.1} parent=1 // pred_region
      _
    $region29: #{tpu_custom_call.1} parent=1 // pred_fallthru
      _
    // Predicated region
    $region30: #{tpu_custom_call.1} parent=1 // pred_check
      _
    $region31: #{tpu_custom_call.1} parent=1 // pred_check_branch
      %42 = sbr.rel (0) target = $region33
    $region32: #{tpu_custom_call.1} parent=1 // pred_region
      _
    $region33: #{tpu_custom_call.1} parent=1 // pred_fallthru
      _
    // Predicated region
    $region34: #{tpu_custom_call.1} parent=1 // pred_check
      _
    $region35: #{tpu_custom_call.1} parent=1 // pred_check_branch
      %44 = sbr.rel (0) target = $region37
    $region36: #{tpu_custom_call.1} parent=1 // pred_region
      _
    $region37: #{tpu_custom_call.1} parent=1 // pred_fallthru
      _
    // Predicated region
    $region38: #{tpu_custom_call.1} parent=1 // pred_check
      _
    $region39: #{tpu_custom_call.1} parent=1 // pred_check_branch
      %46 = sbr.rel (0) target = $region41
    $region40: #{tpu_custom_call.1} parent=1 // pred_region
      _
    $region41: #{tpu_custom_call.1} parent=1 // pred_fallthru
      _
    // Predicated region
    $region42: #{tpu_custom_call.1} parent=1 // pred_check
      _
    $region43: #{tpu_custom_call.1} parent=1 // pred_check_branch
      %48 = sbr.rel (0) target = $region45
    $region44: #{tpu_custom_call.1} parent=1 // pred_region
      _
    $region45: #{tpu_custom_call.1} parent=1 // pred_fallthru
      _
    // Predicated region
    $region46: #{tpu_custom_call.1} parent=1 // pred_check
      _
    $region47: #{tpu_custom_call.1} parent=1 // pred_check_branch
      %50 = sbr.rel (0) target = $region49
    $region48: #{tpu_custom_call.1} parent=1 // pred_region
      _
    $region49: #{tpu_custom_call.1} parent=1 // pred_fallthru
      _
    // Predicated region
    $region50: #{tpu_custom_call.1} parent=1 // pred_check
      _
    $region51: #{tpu_custom_call.1} parent=1 // pred_check_branch
      %52 = sbr.rel (0) target = $region53
    $region52: #{tpu_custom_call.1} parent=1 // pred_region
      _
    $region53: #{tpu_custom_call.1} parent=1 // pred_fallthru
      _
    // Predicated region
    $region54: #{tpu_custom_call.1} parent=1 // pred_check
      _
    $region55: #{tpu_custom_call.1} parent=1 // pred_check_branch
      %54 = sbr.rel (0) target = $region57
    $region56: #{tpu_custom_call.1} parent=1 // pred_region
      _
    $region57: #{tpu_custom_call.1} parent=1 // pred_fallthru
      _
    // Predicated region
    $region58: #{tpu_custom_call.1} parent=1 // pred_check
      _
    $region59: #{tpu_custom_call.1} parent=1 // pred_check_branch
      %56 = sbr.rel (0) target = $region61
    $region60: #{tpu_custom_call.1} parent=1 // pred_region
      _
    $region61: #{tpu_custom_call.1} parent=1 // pred_fallthru
      _
    // Predicated region
    $region62: #{tpu_custom_call.1} parent=1 // pred_check
      _
    $region63: #{tpu_custom_call.1} parent=1 // pred_check_branch
      %58 = sbr.rel (0) target = $region65
    $region64: #{tpu_custom_call.1} parent=1 // pred_region
      _
    $region65: #{tpu_custom_call.1} parent=1 // pred_fallthru
      _
    // Predicated region
    $region66: #{tpu_custom_call.1} parent=1 // pred_check
      _
    $region67: #{tpu_custom_call.1} parent=1 // pred_check_branch
      %60 = sbr.rel (0) target = $region69
    $region68: #{tpu_custom_call.1} parent=1 // pred_region
      _
    $region69: #{tpu_custom_call.1} parent=1 // pred_fallthru
      _
    // Predicated region
    $region70: #{tpu_custom_call.1} parent=1 // pred_check
      _
    $region71: #{tpu_custom_call.1} parent=1 // pred_check_branch
      %62 = sbr.rel (0) target = $region73
    $region72: #{tpu_custom_call.1} parent=1 // pred_region
      _
    $region73: #{tpu_custom_call.1} parent=1 // pred_fallthru
      _
    // Predicated region
    $region74: #{tpu_custom_call.1} parent=1 // pred_check
      _
    $region75: #{tpu_custom_call.1} parent=1 // pred_check_branch
      %64 = sbr.rel (0) target = $region77
    $region76: #{tpu_custom_call.1} parent=1 // pred_region
      _
    $region77: #{tpu_custom_call.1} parent=1 // pred_fallthru
      _
    // Predicated region
    $region78: #{tpu_custom_call.1} parent=1 // pred_check
      _
    $region79: #{tpu_custom_call.1} parent=1 // pred_check_branch
      %66 = sbr.rel (0) target = $region81
    $region80: #{tpu_custom_call.1} parent=1 // pred_region
      _
    $region81: #{tpu_custom_call.1} parent=1 // pred_fallthru
      _
    // Predicated region
    $region82: #{tpu_custom_call.1} parent=1 // pred_check
      _
    $region83: #{tpu_custom_call.1} parent=1 // pred_check_branch
      %68 = sbr.rel (0) target = $region85
    $region84: #{tpu_custom_call.1} parent=1 // pred_region
      _
    $region85: #{tpu_custom_call.1} parent=1 // pred_fallthru
      _
    %v69 = vld [vmem:[%s0] sm:$0xff]
    %v70 = vld [vmem:[%s0 + $0x8] sm:$0xff]
    %v71 = vld [vmem:[%s0 + $0x10] sm:$0xff]
    %v72 = vld [vmem:[%s1] sm:$0xff]
    %v73 = vld [vmem:[%s1 + $0x8] sm:$0xff]
    %v74 = vld [vmem:[%s1 + $0x10] sm:$0xff]
    %v75 = vld [vmem:[%s1 + $0x18] sm:$0xff]
    %v76 = vld [vmem:[%s4] sm:$0x1]
    %v78 = vlaneseq
    %v79 = vshrl.u32 %v78, 7
    %v80 = vsub.s32 0, %v79
    %v81 = vrot.slane %v76, %v80
    %vm83 = vcmask 261120
    %v85 = vsel %vm83, %v69, 0
    %v88 = vsel %vm83, %v70, 0
    %v91 = vsel %vm83, %v71, 0
    %93 = vmatprep.subr.mxu0 0.0
    %94 = vmatpush1.msra.mxu0 %v72
    %95 = vmatprep.subr.mxu0 0.0
    %96 = vmatpush1.msra.mxu0 %v73
    %97 = vmatprep.subr.mxu0 0.0
    %98 = vmatpush1.msra.mxu0 %v74
    %99 = vmatprep.subr.mxu0 0.0
    %100 = vmatpush1.msra.mxu0 %v75
    %101 = vmatprep.subr.mxu0 0.0
    %102 = vmatpush1.msra.mxu0 0.0
    %103 = vmatprep.subr.mxu0 0.0
    %104 = vmatpush1.msra.mxu0 0.0
    %105 = vmatprep.subr.mxu0 0.0
    %106 = vmatpush1.msra.mxu0 0.0
    %107 = vmatprep.subr.mxu0 0.0
    %108 = vmatpush1.msra.mxu0 0.0
    %109 = vmatprep.subr.mxu0 0.0
    %110 = vmatpush1.msra.mxu0 0.0
    %111 = vmatprep.subr.mxu0 0.0
    %112 = vmatpush1.msra.mxu0 0.0
    %113 = vmatprep.subr.mxu0 0.0
    %114 = vmatpush1.msra.mxu0 0.0
    %115 = vmatprep.subr.mxu0 0.0
    %116 = vmatpush1.msra.mxu0 0.0
    %117 = vmatprep.subr.mxu0 0.0
    %118 = vmatpush1.msra.mxu0 0.0
    %119 = vmatprep.subr.mxu0 0.0
    %120 = vmatpush1.msra.mxu0 0.0
    %121 = vmatprep.subr.mxu0 0.0
    %122 = vmatpush1.msra.mxu0 0.0
    %123 = vmatprep.subr.mxu0 0.0
    %124 = vmatpush1.msra.mxu0 0.0
    %125 = vmatprep.subr.mxu0 0.0
    %126 = vmatpush1.msra.mxu0 0.0
    %127 = vmatprep.subr.mxu0 0.0
    %128 = vmatpush1.msra.mxu0 0.0
    %129 = vmatprep.subr.mxu0 0.0
    %130 = vmatpush1.msra.mxu0 0.0
    %131 = vmatprep.subr.mxu0 0.0
    %132 = vmatpush1.msra.mxu0 0.0
    %133 = vmatprep.subr.mxu0 0.0
    %134 = vmatpush1.msra.mxu0 0.0
    %135 = vmatprep.subr.mxu0 0.0
    %136 = vmatpush1.msra.mxu0 0.0
    %137 = vmatprep.subr.mxu0 0.0
    %138 = vmatpush1.msra.mxu0 0.0
    %139 = vmatprep.subr.mxu0 0.0
    %140 = vmatpush1.msra.mxu0 0.0
    %141 = vmatprep.subr.mxu0 0.0
    %142 = vmatpush1.msra.mxu0 0.0
    %143 = vmatprep.subr.mxu0 0.0
    %144 = vmatpush1.msra.mxu0 0.0
    %145 = vmatprep.subr.mxu0 0.0
    %146 = vmatpush1.msra.mxu0 0.0
    %147 = vmatprep.subr.mxu0 0.0
    %148 = vmatpush1.msra.mxu0 0.0
    %149 = vmatprep.subr.mxu0 0.0
    %150 = vmatpush1.msra.mxu0 0.0
    %151 = vmatprep.subr.mxu0 0.0
    %152 = vmatpush1.msra.mxu0 0.0
    %153 = vmatprep.subr.mxu0 0.0
    %154 = vmatpush1.msra.mxu0 0.0
    %155 = vmatprep.subr.mxu0 0.0
    %156 = vmatpush1.msra.mxu0 0.0
    %157 = vmatprep.mubr.f32.mxu0 0.0
    %158 = vmatmul.mubr.f32.gmra.mrb[0].mxu0 %v85
    %v159 = vpop.f32.mrb[0].mxu0
    %v160 = vadd.f32 %v81, %v159
    %v161 = vpop.f32.mrb[0].mxu0
    %162 = vmatprep.mubr.f32.mxu0 0.0
    %163 = vmatmul.mubr.f32.gmra.mrb[0].mxu0 %v88
    %v164 = vpop.f32.mrb[0].mxu0
    %v165 = vadd.f32 %v81, %v164
    %v166 = vpop.f32.mrb[0].mxu0
    %167 = vmatprep.mubr.f32.mxu0 0.0
    %168 = vmatmul.mubr.f32.gmra.mrb[0].mxu0 %v91
    %v169 = vpop.f32.mrb[0].mxu0
    %v170 = vadd.f32 %v81, %v169
    %v171 = vpop.f32.mrb[0].mxu0
    %172 = vdwg.mxu0
    %v173 = vld [vmem:[%s2] sm:$0xff]
    %v174 = vld [vmem:[%s2 + $0x8] sm:$0xff]
    %v175 = vld [vmem:[%s2 + $0x10] sm:$0xff]
    %v176 = vld [vmem:[%s2 + $0x18] sm:$0xff]
    %v177 = vld [vmem:[%s5] sm:$0x1]
    %v179 = vlaneseq
    %v180 = vshrl.u32 %v179, 7
    %v181 = vsub.s32 0, %v180
    %v182 = vrot.slane %v177, %v181
    %184 = vmatprep.subr.mxu0 0.0
    %185 = vmatpush1.msra.mxu0 %v173
    %186 = vmatprep.subr.mxu0 0.0
    %187 = vmatpush1.msra.mxu0 %v174
    %188 = vmatprep.subr.mxu0 0.0
    %189 = vmatpush1.msra.mxu0 %v175
    %190 = vmatprep.subr.mxu0 0.0
    %191 = vmatpush1.msra.mxu0 %v176
    %192 = vmatprep.subr.mxu0 0.0
    %193 = vmatpush1.msra.mxu0 0.0
    %194 = vmatprep.subr.mxu0 0.0
    %195 = vmatpush1.msra.mxu0 0.0
    %196 = vmatprep.subr.mxu0 0.0
    %197 = vmatpush1.msra.mxu0 0.0
    %198 = vmatprep.subr.mxu0 0.0
    %199 = vmatpush1.msra.mxu0 0.0
    %200 = vmatprep.subr.mxu0 0.0
    %201 = vmatpush1.msra.mxu0 0.0
    %202 = vmatprep.subr.mxu0 0.0
    %203 = vmatpush1.msra.mxu0 0.0
    %204 = vmatprep.subr.mxu0 0.0
    %205 = vmatpush1.msra.mxu0 0.0
    %206 = vmatprep.subr.mxu0 0.0
    %207 = vmatpush1.msra.mxu0 0.0
    %208 = vmatprep.subr.mxu0 0.0
    %209 = vmatpush1.msra.mxu0 0.0
    %210 = vmatprep.subr.mxu0 0.0
    %211 = vmatpush1.msra.mxu0 0.0
    %212 = vmatprep.subr.mxu0 0.0
    %213 = vmatpush1.msra.mxu0 0.0
    %214 = vmatprep.subr.mxu0 0.0
    %215 = vmatpush1.msra.mxu0 0.0
    %216 = vmatprep.subr.mxu0 0.0
    %217 = vmatpush1.msra.mxu0 0.0
    %218 = vmatprep.subr.mxu0 0.0
    %219 = vmatpush1.msra.mxu0 0.0
    %220 = vmatprep.subr.mxu0 0.0
    %221 = vmatpush1.msra.mxu0 0.0
    %222 = vmatprep.subr.mxu0 0.0
    %223 = vmatpush1.msra.mxu0 0.0
    %224 = vmatprep.subr.mxu0 0.0
    %225 = vmatpush1.msra.mxu0 0.0
    %226 = vmatprep.subr.mxu0 0.0
    %227 = vmatpush1.msra.mxu0 0.0
    %228 = vmatprep.subr.mxu0 0.0
    %229 = vmatpush1.msra.mxu0 0.0
    %230 = vmatprep.subr.mxu0 0.0
    %231 = vmatpush1.msra.mxu0 0.0
    %232 = vmatprep.subr.mxu0 0.0
    %233 = vmatpush1.msra.mxu0 0.0
    %234 = vmatprep.subr.mxu0 0.0
    %235 = vmatpush1.msra.mxu0 0.0
    %236 = vmatprep.subr.mxu0 0.0
    %237 = vmatpush1.msra.mxu0 0.0
    %238 = vmatprep.subr.mxu0 0.0
    %239 = vmatpush1.msra.mxu0 0.0
    %240 = vmatprep.subr.mxu0 0.0
    %241 = vmatpush1.msra.mxu0 0.0
    %242 = vmatprep.subr.mxu0 0.0
    %243 = vmatpush1.msra.mxu0 0.0
    %244 = vmatprep.subr.mxu0 0.0
    %245 = vmatpush1.msra.mxu0 0.0
    %246 = vmatprep.subr.mxu0 0.0
    %247 = vmatpush1.msra.mxu0 0.0
    %248 = vmatprep.mubr.f32.mxu0 0.0
    %249 = vmatmul.mubr.f32.gmra.mrb[0].mxu0 %v85
    %v250 = vpop.f32.mrb[0].mxu0
    %v251 = vadd.f32 %v182, %v250
    %v252 = vpop.f32.mrb[0].mxu0
    %253 = vmatprep.mubr.f32.mxu0 0.0
    %254 = vmatmul.mubr.f32.gmra.mrb[0].mxu0 %v88
    %v255 = vpop.f32.mrb[0].mxu0
    %v256 = vadd.f32 %v182, %v255
    %v257 = vpop.f32.mrb[0].mxu0
    %258 = vmatprep.mubr.f32.mxu0 0.0
    %259 = vmatmul.mubr.f32.gmra.mrb[0].mxu0 %v91
    %v260 = vpop.f32.mrb[0].mxu0
    %v261 = vadd.f32 %v182, %v260
    %v262 = vpop.f32.mrb[0].mxu0
    %263 = vdwg.mxu0
    %v264 = vld [vmem:[%s3] sm:$0xff]
    %v265 = vld [vmem:[%s3 + $0x8] sm:$0xff]
    %v266 = vld [vmem:[%s3 + $0x10] sm:$0xff]
    %v267 = vld [vmem:[%s3 + $0x18] sm:$0xff]
    %v268 = vld [vmem:[%s6] sm:$0x1]
    %v270 = vlaneseq
    %v271 = vshrl.u32 %v270, 7
    %v272 = vsub.s32 0, %v271
    %v273 = vrot.slane %v268, %v272
    %275 = vmatprep.subr.mxu0 0.0
    %276 = vmatpush1.msra.mxu0 %v264
    %277 = vmatprep.subr.mxu0 0.0
    %278 = vmatpush1.msra.mxu0 %v265
    %279 = vmatprep.subr.mxu0 0.0
    %280 = vmatpush1.msra.mxu0 %v266
    %281 = vmatprep.subr.mxu0 0.0
    %282 = vmatpush1.msra.mxu0 %v267
    %283 = vmatprep.subr.mxu0 0.0
    %284 = vmatpush1.msra.mxu0 0.0
    %285 = vmatprep.subr.mxu0 0.0
    %286 = vmatpush1.msra.mxu0 0.0
    %287 = vmatprep.subr.mxu0 0.0
    %288 = vmatpush1.msra.mxu0 0.0
    %289 = vmatprep.subr.mxu0 0.0
    %290 = vmatpush1.msra.mxu0 0.0
    %291 = vmatprep.subr.mxu0 0.0
    %292 = vmatpush1.msra.mxu0 0.0
    %293 = vmatprep.subr.mxu0 0.0
    %294 = vmatpush1.msra.mxu0 0.0
    %295 = vmatprep.subr.mxu0 0.0
    %296 = vmatpush1.msra.mxu0 0.0
    %297 = vmatprep.subr.mxu0 0.0
    %298 = vmatpush1.msra.mxu0 0.0
    %299 = vmatprep.subr.mxu0 0.0
    %300 = vmatpush1.msra.mxu0 0.0
    %301 = vmatprep.subr.mxu0 0.0
    %302 = vmatpush1.msra.mxu0 0.0
    %303 = vmatprep.subr.mxu0 0.0
    %304 = vmatpush1.msra.mxu0 0.0
    %305 = vmatprep.subr.mxu0 0.0
    %306 = vmatpush1.msra.mxu0 0.0
    %307 = vmatprep.subr.mxu0 0.0
    %308 = vmatpush1.msra.mxu0 0.0
    %309 = vmatprep.subr.mxu0 0.0
    %310 = vmatpush1.msra.mxu0 0.0
    %311 = vmatprep.subr.mxu0 0.0
    %312 = vmatpush1.msra.mxu0 0.0
    %313 = vmatprep.subr.mxu0 0.0
    %314 = vmatpush1.msra.mxu0 0.0
    %315 = vmatprep.subr.mxu0 0.0
    %316 = vmatpush1.msra.mxu0 0.0
    %317 = vmatprep.subr.mxu0 0.0
    %318 = vmatpush1.msra.mxu0 0.0
    %319 = vmatprep.subr.mxu0 0.0
    %320 = vmatpush1.msra.mxu0 0.0
    %321 = vmatprep.subr.mxu0 0.0
    %322 = vmatpush1.msra.mxu0 0.0
    %323 = vmatprep.subr.mxu0 0.0
    %324 = vmatpush1.msra.mxu0 0.0
    %325 = vmatprep.subr.mxu0 0.0
    %326 = vmatpush1.msra.mxu0 0.0
    %327 = vmatprep.subr.mxu0 0.0
    %328 = vmatpush1.msra.mxu0 0.0
    %329 = vmatprep.subr.mxu0 0.0
    %330 = vmatpush1.msra.mxu0 0.0
    %331 = vmatprep.subr.mxu0 0.0
    %332 = vmatpush1.msra.mxu0 0.0
    %333 = vmatprep.subr.mxu0 0.0
    %334 = vmatpush1.msra.mxu0 0.0
    %335 = vmatprep.subr.mxu0 0.0
    %336 = vmatpush1.msra.mxu0 0.0
    %337 = vmatprep.subr.mxu0 0.0
    %338 = vmatpush1.msra.mxu0 0.0
    %339 = vmatprep.mubr.f32.mxu0 0.0
    %340 = vmatmul.mubr.f32.gmra.mrb[0].mxu0 %v85
    %v341 = vpop.f32.mrb[0].mxu0
    %v342 = vadd.f32 %v273, %v341
    %v343 = vpop.f32.mrb[0].mxu0
    %344 = vmatprep.mubr.f32.mxu0 0.0
    %345 = vmatmul.mubr.f32.gmra.mrb[0].mxu0 %v88
    %v346 = vpop.f32.mrb[0].mxu0
    %v347 = vadd.f32 %v273, %v346
    %v348 = vpop.f32.mrb[0].mxu0
    %349 = vmatprep.mubr.f32.mxu0 0.0
    %350 = vmatmul.mubr.f32.gmra.mrb[0].mxu0 %v91
    %v351 = vpop.f32.mrb[0].mxu0
    %v352 = vadd.f32 %v273, %v351
    %v353 = vpop.f32.mrb[0].mxu0
    %354 = vdwg.mxu0
    %vm355 = vcmask 64512
    %v357 = vsel %vm355, %v160, 0
    %v360 = vsel %vm355, %v251, 0
    %362 = vmatprep.subr.mxu0 0.0
    %363 = vmatpush1.xpose.msra.mxu0 %v360
    %364 = vmatprep.subr.mxu0 0.0
    %365 = vmatpush1.xpose.msra.mxu0 0.0
    %366 = vmatprep.subr.mxu0 0.0
    %367 = vmatpush1.xpose.msra.mxu0 0.0
    %368 = vmatprep.subr.mxu0 0.0
    %369 = vmatpush1.xpose.msra.mxu0 0.0
    %370 = vmatprep.subr.mxu0 0.0
    %371 = vmatpush1.xpose.msra.mxu0 0.0
    %372 = vmatprep.subr.mxu0 0.0
    %373 = vmatpush1.xpose.msra.mxu0 0.0
    %374 = vmatprep.subr.mxu0 0.0
    %375 = vmatpush1.xpose.msra.mxu0 0.0
    %376 = vmatprep.subr.mxu0 0.0
    %377 = vmatpush1.xpose.msra.mxu0 0.0
    %378 = vmatprep.subr.mxu0 0.0
    %379 = vmatpush1.xpose.msra.mxu0 0.0
    %380 = vmatprep.subr.mxu0 0.0
    %381 = vmatpush1.xpose.msra.mxu0 0.0
    %382 = vmatprep.subr.mxu0 0.0
    %383 = vmatpush1.xpose.msra.mxu0 0.0
    %384 = vmatprep.subr.mxu0 0.0
    %385 = vmatpush1.xpose.msra.mxu0 0.0
    %386 = vmatprep.subr.mxu0 0.0
    %387 = vmatpush1.xpose.msra.mxu0 0.0
    %388 = vmatprep.subr.mxu0 0.0
    %389 = vmatpush1.xpose.msra.mxu0 0.0
    %390 = vmatprep.subr.mxu0 0.0
    %391 = vmatpush1.xpose.msra.mxu0 0.0
    %392 = vmatprep.subr.mxu0 0.0
    %393 = vmatpush1.xpose.msra.mxu0 0.0
    %394 = vmatprep.subr.mxu0 0.0
    %395 = vmatpush1.xpose.msra.mxu0 0.0
    %396 = vmatprep.subr.mxu0 0.0
    %397 = vmatpush1.xpose.msra.mxu0 0.0
    %398 = vmatprep.subr.mxu0 0.0
    %399 = vmatpush1.xpose.msra.mxu0 0.0
    %400 = vmatprep.subr.mxu0 0.0
    %401 = vmatpush1.xpose.msra.mxu0 0.0
    %402 = vmatprep.subr.mxu0 0.0
    %403 = vmatpush1.xpose.msra.mxu0 0.0
    %404 = vmatprep.subr.mxu0 0.0
    %405 = vmatpush1.xpose.msra.mxu0 0.0
    %406 = vmatprep.subr.mxu0 0.0
    %407 = vmatpush1.xpose.msra.mxu0 0.0
    %408 = vmatprep.subr.mxu0 0.0
    %409 = vmatpush1.xpose.msra.mxu0 0.0
    %410 = vmatprep.subr.mxu0 0.0
    %411 = vmatpush1.xpose.msra.mxu0 0.0
    %412 = vmatprep.subr.mxu0 0.0
    %413 = vmatpush1.xpose.msra.mxu0 0.0
    %414 = vmatprep.subr.mxu0 0.0
    %415 = vmatpush1.xpose.msra.mxu0 0.0
    %416 = vmatprep.subr.mxu0 0.0
    %417 = vmatpush1.xpose.msra.mxu0 0.0
    %418 = vmatprep.subr.mxu0 0.0
    %419 = vmatpush1.xpose.msra.mxu0 0.0
    %420 = vmatprep.subr.mxu0 0.0
    %421 = vmatpush1.xpose.msra.mxu0 0.0
    %422 = vmatprep.subr.mxu0 0.0
    %423 = vmatpush1.xpose.msra.mxu0 0.0
    %424 = vmatprep.subr.mxu0 0.0
    %425 = vmatpush1.xpose.msra.mxu0 0.0
    %426 = vmatprep.mubr.f32.mxu0 0.0
    %427 = vmatmul.mubr.f32.gmra.mrb[0].mxu0 %v357
    %v428 = vpop.f32.mrb[0].mxu0
    %v429 = vadd.f32 0.0, %v428
    %v430 = vpop.f32.mrb[0].mxu0
    %431 = vdwg.mxu0
    %v433 = vsel %vm355, %v165, 0
    %v436 = vsel %vm355, %v256, 0
    %438 = vmatprep.subr.mxu0 0.0
    %439 = vmatpush1.xpose.msra.mxu0 %v436
    %440 = vmatprep.subr.mxu0 0.0
    %441 = vmatpush1.xpose.msra.mxu0 0.0
    %442 = vmatprep.subr.mxu0 0.0
    %443 = vmatpush1.xpose.msra.mxu0 0.0
    %444 = vmatprep.subr.mxu0 0.0
    %445 = vmatpush1.xpose.msra.mxu0 0.0
    %446 = vmatprep.subr.mxu0 0.0
    %447 = vmatpush1.xpose.msra.mxu0 0.0
    %448 = vmatprep.subr.mxu0 0.0
    %449 = vmatpush1.xpose.msra.mxu0 0.0
    %450 = vmatprep.subr.mxu0 0.0
    %451 = vmatpush1.xpose.msra.mxu0 0.0
    %452 = vmatprep.subr.mxu0 0.0
    %453 = vmatpush1.xpose.msra.mxu0 0.0
    %454 = vmatprep.subr.mxu0 0.0
    %455 = vmatpush1.xpose.msra.mxu0 0.0
    %456 = vmatprep.subr.mxu0 0.0
    %457 = vmatpush1.xpose.msra.mxu0 0.0
    %458 = vmatprep.subr.mxu0 0.0
    %459 = vmatpush1.xpose.msra.mxu0 0.0
    %460 = vmatprep.subr.mxu0 0.0
    %461 = vmatpush1.xpose.msra.mxu0 0.0
    %462 = vmatprep.subr.mxu0 0.0
    %463 = vmatpush1.xpose.msra.mxu0 0.0
    %464 = vmatprep.subr.mxu0 0.0
    %465 = vmatpush1.xpose.msra.mxu0 0.0
    %466 = vmatprep.subr.mxu0 0.0
    %467 = vmatpush1.xpose.msra.mxu0 0.0
    %468 = vmatprep.subr.mxu0 0.0
    %469 = vmatpush1.xpose.msra.mxu0 0.0
    %470 = vmatprep.subr.mxu0 0.0
    %471 = vmatpush1.xpose.msra.mxu0 0.0
    %472 = vmatprep.subr.mxu0 0.0
    %473 = vmatpush1.xpose.msra.mxu0 0.0
    %474 = vmatprep.subr.mxu0 0.0
    %475 = vmatpush1.xpose.msra.mxu0 0.0
    %476 = vmatprep.subr.mxu0 0.0
    %477 = vmatpush1.xpose.msra.mxu0 0.0
    %478 = vmatprep.subr.mxu0 0.0
    %479 = vmatpush1.xpose.msra.mxu0 0.0
    %480 = vmatprep.subr.mxu0 0.0
    %481 = vmatpush1.xpose.msra.mxu0 0.0
    %482 = vmatprep.subr.mxu0 0.0
    %483 = vmatpush1.xpose.msra.mxu0 0.0
    %484 = vmatprep.subr.mxu0 0.0
    %485 = vmatpush1.xpose.msra.mxu0 0.0
    %486 = vmatprep.subr.mxu0 0.0
    %487 = vmatpush1.xpose.msra.mxu0 0.0
    %488 = vmatprep.subr.mxu0 0.0
    %489 = vmatpush1.xpose.msra.mxu0 0.0
    %490 = vmatprep.subr.mxu0 0.0
    %491 = vmatpush1.xpose.msra.mxu0 0.0
    %492 = vmatprep.subr.mxu0 0.0
    %493 = vmatpush1.xpose.msra.mxu0 0.0
    %494 = vmatprep.subr.mxu0 0.0
    %495 = vmatpush1.xpose.msra.mxu0 0.0
    %496 = vmatprep.subr.mxu0 0.0
    %497 = vmatpush1.xpose.msra.mxu0 0.0
    %498 = vmatprep.subr.mxu0 0.0
    %499 = vmatpush1.xpose.msra.mxu0 0.0
    %500 = vmatprep.subr.mxu0 0.0
    %501 = vmatpush1.xpose.msra.mxu0 0.0
    %502 = vmatprep.mubr.f32.mxu0 0.0
    %503 = vmatmul.mubr.f32.gmra.mrb[0].mxu0 %v433
    %v504 = vpop.f32.mrb[0].mxu0
    %v505 = vadd.f32 0.0, %v504
    %v506 = vpop.f32.mrb[0].mxu0
    %507 = vdwg.mxu0
    %v509 = vsel %vm355, %v170, 0
    %v512 = vsel %vm355, %v261, 0
    %514 = vmatprep.subr.mxu0 0.0
    %515 = vmatpush1.xpose.msra.mxu0 %v512
    %516 = vmatprep.subr.mxu0 0.0
    %517 = vmatpush1.xpose.msra.mxu0 0.0
    %518 = vmatprep.subr.mxu0 0.0
    %519 = vmatpush1.xpose.msra.mxu0 0.0
    %520 = vmatprep.subr.mxu0 0.0
    %521 = vmatpush1.xpose.msra.mxu0 0.0
    %522 = vmatprep.subr.mxu0 0.0
    %523 = vmatpush1.xpose.msra.mxu0 0.0
    %524 = vmatprep.subr.mxu0 0.0
    %525 = vmatpush1.xpose.msra.mxu0 0.0
    %526 = vmatprep.subr.mxu0 0.0
    %527 = vmatpush1.xpose.msra.mxu0 0.0
    %528 = vmatprep.subr.mxu0 0.0
    %529 = vmatpush1.xpose.msra.mxu0 0.0
    %530 = vmatprep.subr.mxu0 0.0
    %531 = vmatpush1.xpose.msra.mxu0 0.0
    %532 = vmatprep.subr.mxu0 0.0
    %533 = vmatpush1.xpose.msra.mxu0 0.0
    %534 = vmatprep.subr.mxu0 0.0
    %535 = vmatpush1.xpose.msra.mxu0 0.0
    %536 = vmatprep.subr.mxu0 0.0
    %537 = vmatpush1.xpose.msra.mxu0 0.0
    %538 = vmatprep.subr.mxu0 0.0
    %539 = vmatpush1.xpose.msra.mxu0 0.0
    %540 = vmatprep.subr.mxu0 0.0
    %541 = vmatpush1.xpose.msra.mxu0 0.0
    %542 = vmatprep.subr.mxu0 0.0
    %543 = vmatpush1.xpose.msra.mxu0 0.0
    %544 = vmatprep.subr.mxu0 0.0
    %545 = vmatpush1.xpose.msra.mxu0 0.0
    %546 = vmatprep.subr.mxu0 0.0
    %547 = vmatpush1.xpose.msra.mxu0 0.0
    %548 = vmatprep.subr.mxu0 0.0
    %549 = vmatpush1.xpose.msra.mxu0 0.0
    %550 = vmatprep.subr.mxu0 0.0
    %551 = vmatpush1.xpose.msra.mxu0 0.0
    %552 = vmatprep.subr.mxu0 0.0
    %553 = vmatpush1.xpose.msra.mxu0 0.0
    %554 = vmatprep.subr.mxu0 0.0
    %555 = vmatpush1.xpose.msra.mxu0 0.0
    %556 = vmatprep.subr.mxu0 0.0
    %557 = vmatpush1.xpose.msra.mxu0 0.0
    %558 = vmatprep.subr.mxu0 0.0
    %559 = vmatpush1.xpose.msra.mxu0 0.0
    %560 = vmatprep.subr.mxu0 0.0
    %561 = vmatpush1.xpose.msra.mxu0 0.0
    %562 = vmatprep.subr.mxu0 0.0
    %563 = vmatpush1.xpose.msra.mxu0 0.0
    %564 = vmatprep.subr.mxu0 0.0
    %565 = vmatpush1.xpose.msra.mxu0 0.0
    %566 = vmatprep.subr.mxu0 0.0
    %567 = vmatpush1.xpose.msra.mxu0 0.0
    %568 = vmatprep.subr.mxu0 0.0
    %569 = vmatpush1.xpose.msra.mxu0 0.0
    %570 = vmatprep.subr.mxu0 0.0
    %571 = vmatpush1.xpose.msra.mxu0 0.0
    %572 = vmatprep.subr.mxu0 0.0
    %573 = vmatpush1.xpose.msra.mxu0 0.0
    %574 = vmatprep.subr.mxu0 0.0
    %575 = vmatpush1.xpose.msra.mxu0 0.0
    %576 = vmatprep.subr.mxu0 0.0
    %577 = vmatpush1.xpose.msra.mxu0 0.0
    %578 = vmatprep.mubr.f32.mxu0 0.0
    %579 = vmatmul.mubr.f32.gmra.mrb[0].mxu0 %v509
    %v580 = vpop.f32.mrb[0].mxu0
    %v581 = vadd.f32 0.0, %v580
    %v582 = vpop.f32.mrb[0].mxu0
    %583 = vdwg.mxu0
    %v584 = vmul.f32 %v429, 0.35355338
    %v585 = vmul.f32 %v505, 0.35355338
    %v586 = vmul.f32 %v581, 0.35355338
    %v587 = vsel %vm355, %v584, -inf
    %588 = vmax.xlane.f32.xlu0 %v587
    %v589 = vpop.xlane.xlu0 %588
    %v590 = vsel %vm355, %v585, -inf
    %591 = vmax.xlane.f32.xlu0 %v590
    %v592 = vpop.xlane.xlu0 %591
    %v593 = vsel %vm355, %v586, -inf
    %594 = vmax.xlane.f32.xlu0 %v593
    %v595 = vpop.xlane.xlu0 %594
    %v596 = vsub.f32 %v584, %v589
    %v597 = vsub.f32 %v585, %v592
    %v598 = vsub.f32 %v586, %v595
    %v599 = vmul.f32 %v596, 1.442695
    %v600 = vpow.pop %v599
    %v601 = vmul.f32 %v597, 1.442695
    %v602 = vpow.pop %v601
    %v603 = vmul.f32 %v598, 1.442695
    %v604 = vpow.pop %v603
    %v605 = vsel %vm355, %v600, 0.0
    %606 = vadd.xlane.f32.xlu0 %v605
    %v607 = vpop.xlane.xlu0 %606
    %v608 = vsel %vm355, %v602, 0.0
    %609 = vadd.xlane.f32.xlu0 %v608
    %v610 = vpop.xlane.xlu0 %609
    %v611 = vsel %vm355, %v604, 0.0
    %612 = vadd.xlane.f32.xlu0 %v611
    %v613 = vpop.xlane.xlu0 %612
    %v614 = vrcp.pop %v607
    %v615 = vmul.f32 %v600, %v614
    %v616 = vrcp.pop %v610
    %v617 = vmul.f32 %v602, %v616
    %v618 = vrcp.pop %v613
    %v619 = vmul.f32 %v604, %v618
    %v621 = vsel %vm355, %v615, 0
    %623 = vmatprep.subr.mxu0 0.0
    %624 = vmatpush1.msra.mxu0 %v342
    %625 = vmatprep.subr.mxu0 0.0
    %626 = vmatpush1.msra.mxu0 0.0
    %627 = vmatprep.subr.mxu0 0.0
    %628 = vmatpush1.msra.mxu0 0.0
    %629 = vmatprep.subr.mxu0 0.0
    %630 = vmatpush1.msra.mxu0 0.0
    %631 = vmatprep.subr.mxu0 0.0
    %632 = vmatpush1.msra.mxu0 0.0
    %633 = vmatprep.subr.mxu0 0.0
    %634 = vmatpush1.msra.mxu0 0.0
    %635 = vmatprep.subr.mxu0 0.0
    %636 = vmatpush1.msra.mxu0 0.0
    %637 = vmatprep.subr.mxu0 0.0
    %638 = vmatpush1.msra.mxu0 0.0
    %639 = vmatprep.subr.mxu0 0.0
    %640 = vmatpush1.msra.mxu0 0.0
    %641 = vmatprep.subr.mxu0 0.0
    %642 = vmatpush1.msra.mxu0 0.0
    %643 = vmatprep.subr.mxu0 0.0
    %644 = vmatpush1.msra.mxu0 0.0
    %645 = vmatprep.subr.mxu0 0.0
    %646 = vmatpush1.msra.mxu0 0.0
    %647 = vmatprep.subr.mxu0 0.0
    %648 = vmatpush1.msra.mxu0 0.0
    %649 = vmatprep.subr.mxu0 0.0
    %650 = vmatpush1.msra.mxu0 0.0
    %651 = vmatprep.subr.mxu0 0.0
    %652 = vmatpush1.msra.mxu0 0.0
    %653 = vmatprep.subr.mxu0 0.0
    %654 = vmatpush1.msra.mxu0 0.0
    %655 = vmatprep.subr.mxu0 0.0
    %656 = vmatpush1.msra.mxu0 0.0
    %657 = vmatprep.subr.mxu0 0.0
    %658 = vmatpush1.msra.mxu0 0.0
    %659 = vmatprep.subr.mxu0 0.0
    %660 = vmatpush1.msra.mxu0 0.0
    %661 = vmatprep.subr.mxu0 0.0
    %662 = vmatpush1.msra.mxu0 0.0
    %663 = vmatprep.subr.mxu0 0.0
    %664 = vmatpush1.msra.mxu0 0.0
    %665 = vmatprep.subr.mxu0 0.0
    %666 = vmatpush1.msra.mxu0 0.0
    %667 = vmatprep.subr.mxu0 0.0
    %668 = vmatpush1.msra.mxu0 0.0
    %669 = vmatprep.subr.mxu0 0.0
    %670 = vmatpush1.msra.mxu0 0.0
    %671 = vmatprep.subr.mxu0 0.0
    %672 = vmatpush1.msra.mxu0 0.0
    %673 = vmatprep.subr.mxu0 0.0
    %674 = vmatpush1.msra.mxu0 0.0
    %675 = vmatprep.subr.mxu0 0.0
    %676 = vmatpush1.msra.mxu0 0.0
    %677 = vmatprep.subr.mxu0 0.0
    %678 = vmatpush1.msra.mxu0 0.0
    %679 = vmatprep.subr.mxu0 0.0
    %680 = vmatpush1.msra.mxu0 0.0
    %681 = vmatprep.subr.mxu0 0.0
    %682 = vmatpush1.msra.mxu0 0.0
    %683 = vmatprep.subr.mxu0 0.0
    %684 = vmatpush1.msra.mxu0 0.0
    %685 = vmatprep.subr.mxu0 0.0
    %686 = vmatpush1.msra.mxu0 0.0
    %687 = vmatprep.mubr.f32.mxu0 0.0
    %688 = vmatmul.mubr.f32.gmra.mrb[0].mxu0 %v621
    %v689 = vpop.f32.mrb[0].mxu0
    %v690 = vadd.f32 0.0, %v689
    %v691 = vpop.f32.mrb[0].mxu0
    %692 = vdwg.mxu0
    %v694 = vsel %vm355, %v617, 0
    %696 = vmatprep.subr.mxu0 0.0
    %697 = vmatpush1.msra.mxu0 %v347
    %698 = vmatprep.subr.mxu0 0.0
    %699 = vmatpush1.msra.mxu0 0.0
    %700 = vmatprep.subr.mxu0 0.0
    %701 = vmatpush1.msra.mxu0 0.0
    %702 = vmatprep.subr.mxu0 0.0
    %703 = vmatpush1.msra.mxu0 0.0
    %704 = vmatprep.subr.mxu0 0.0
    %705 = vmatpush1.msra.mxu0 0.0
    %706 = vmatprep.subr.mxu0 0.0
    %707 = vmatpush1.msra.mxu0 0.0
    %708 = vmatprep.subr.mxu0 0.0
    %709 = vmatpush1.msra.mxu0 0.0
    %710 = vmatprep.subr.mxu0 0.0
    %711 = vmatpush1.msra.mxu0 0.0
    %712 = vmatprep.subr.mxu0 0.0
    %713 = vmatpush1.msra.mxu0 0.0
    %714 = vmatprep.subr.mxu0 0.0
    %715 = vmatpush1.msra.mxu0 0.0
    %716 = vmatprep.subr.mxu0 0.0
    %717 = vmatpush1.msra.mxu0 0.0
    %718 = vmatprep.subr.mxu0 0.0
    %719 = vmatpush1.msra.mxu0 0.0
    %720 = vmatprep.subr.mxu0 0.0
    %721 = vmatpush1.msra.mxu0 0.0
    %722 = vmatprep.subr.mxu0 0.0
    %723 = vmatpush1.msra.mxu0 0.0
    %724 = vmatprep.subr.mxu0 0.0
    %725 = vmatpush1.msra.mxu0 0.0
    %726 = vmatprep.subr.mxu0 0.0
    %727 = vmatpush1.msra.mxu0 0.0
    %728 = vmatprep.subr.mxu0 0.0
    %729 = vmatpush1.msra.mxu0 0.0
    %730 = vmatprep.subr.mxu0 0.0
    %731 = vmatpush1.msra.mxu0 0.0
    %732 = vmatprep.subr.mxu0 0.0
    %733 = vmatpush1.msra.mxu0 0.0
    %734 = vmatprep.subr.mxu0 0.0
    %735 = vmatpush1.msra.mxu0 0.0
    %736 = vmatprep.subr.mxu0 0.0
    %737 = vmatpush1.msra.mxu0 0.0
    %738 = vmatprep.subr.mxu0 0.0
    %739 = vmatpush1.msra.mxu0 0.0
    %740 = vmatprep.subr.mxu0 0.0
    %741 = vmatpush1.msra.mxu0 0.0
    %742 = vmatprep.subr.mxu0 0.0
    %743 = vmatpush1.msra.mxu0 0.0
    %744 = vmatprep.subr.mxu0 0.0
    %745 = vmatpush1.msra.mxu0 0.0
    %746 = vmatprep.subr.mxu0 0.0
    %747 = vmatpush1.msra.mxu0 0.0
    %748 = vmatprep.subr.mxu0 0.0
    %749 = vmatpush1.msra.mxu0 0.0
    %750 = vmatprep.subr.mxu0 0.0
    %751 = vmatpush1.msra.mxu0 0.0
    %752 = vmatprep.subr.mxu0 0.0
    %753 = vmatpush1.msra.mxu0 0.0
    %754 = vmatprep.subr.mxu0 0.0
    %755 = vmatpush1.msra.mxu0 0.0
    %756 = vmatprep.subr.mxu0 0.0
    %757 = vmatpush1.msra.mxu0 0.0
    %758 = vmatprep.subr.mxu0 0.0
    %759 = vmatpush1.msra.mxu0 0.0
    %760 = vmatprep.mubr.f32.mxu0 0.0
    %761 = vmatmul.mubr.f32.gmra.mrb[0].mxu0 %v694
    %v762 = vpop.f32.mrb[0].mxu0
    %v763 = vadd.f32 0.0, %v762
    %v764 = vpop.f32.mrb[0].mxu0
    %765 = vdwg.mxu0
    %v767 = vsel %vm355, %v619, 0
    %769 = vmatprep.subr.mxu0 0.0
    %770 = vmatpush1.msra.mxu0 %v352
    %771 = vmatprep.subr.mxu0 0.0
    %772 = vmatpush1.msra.mxu0 0.0
    %773 = vmatprep.subr.mxu0 0.0
    %774 = vmatpush1.msra.mxu0 0.0
    %775 = vmatprep.subr.mxu0 0.0
    %776 = vmatpush1.msra.mxu0 0.0
    %777 = vmatprep.subr.mxu0 0.0
    %778 = vmatpush1.msra.mxu0 0.0
    %779 = vmatprep.subr.mxu0 0.0
    %780 = vmatpush1.msra.mxu0 0.0
    %781 = vmatprep.subr.mxu0 0.0
    %782 = vmatpush1.msra.mxu0 0.0
    %783 = vmatprep.subr.mxu0 0.0
    %784 = vmatpush1.msra.mxu0 0.0
    %785 = vmatprep.subr.mxu0 0.0
    %786 = vmatpush1.msra.mxu0 0.0
    %787 = vmatprep.subr.mxu0 0.0
    %788 = vmatpush1.msra.mxu0 0.0
    %789 = vmatprep.subr.mxu0 0.0
    %790 = vmatpush1.msra.mxu0 0.0
    %791 = vmatprep.subr.mxu0 0.0
    %792 = vmatpush1.msra.mxu0 0.0
    %793 = vmatprep.subr.mxu0 0.0
    %794 = vmatpush1.msra.mxu0 0.0
    %795 = vmatprep.subr.mxu0 0.0
    %796 = vmatpush1.msra.mxu0 0.0
    %797 = vmatprep.subr.mxu0 0.0
    %798 = vmatpush1.msra.mxu0 0.0
    %799 = vmatprep.subr.mxu0 0.0
    %800 = vmatpush1.msra.mxu0 0.0
    %801 = vmatprep.subr.mxu0 0.0
    %802 = vmatpush1.msra.mxu0 0.0
    %803 = vmatprep.subr.mxu0 0.0
    %804 = vmatpush1.msra.mxu0 0.0
    %805 = vmatprep.subr.mxu0 0.0
    %806 = vmatpush1.msra.mxu0 0.0
    %807 = vmatprep.subr.mxu0 0.0
    %808 = vmatpush1.msra.mxu0 0.0
    %809 = vmatprep.subr.mxu0 0.0
    %810 = vmatpush1.msra.mxu0 0.0
    %811 = vmatprep.subr.mxu0 0.0
    %812 = vmatpush1.msra.mxu0 0.0
    %813 = vmatprep.subr.mxu0 0.0
    %814 = vmatpush1.msra.mxu0 0.0
    %815 = vmatprep.subr.mxu0 0.0
    %816 = vmatpush1.msra.mxu0 0.0
    %817 = vmatprep.subr.mxu0 0.0
    %818 = vmatpush1.msra.mxu0 0.0
    %819 = vmatprep.subr.mxu0 0.0
    %820 = vmatpush1.msra.mxu0 0.0
    %821 = vmatprep.subr.mxu0 0.0
    %822 = vmatpush1.msra.mxu0 0.0
    %823 = vmatprep.subr.mxu0 0.0
    %824 = vmatpush1.msra.mxu0 0.0
    %825 = vmatprep.subr.mxu0 0.0
    %826 = vmatpush1.msra.mxu0 0.0
    %827 = vmatprep.subr.mxu0 0.0
    %828 = vmatpush1.msra.mxu0 0.0
    %829 = vmatprep.subr.mxu0 0.0
    %830 = vmatpush1.msra.mxu0 0.0
    %831 = vmatprep.subr.mxu0 0.0
    %832 = vmatpush1.msra.mxu0 0.0
    %833 = vmatprep.mubr.f32.mxu0 0.0
    %834 = vmatmul.mubr.f32.gmra.mrb[0].mxu0 %v767
    %v835 = vpop.f32.mrb[0].mxu0
    %v836 = vadd.f32 0.0, %v835
    %v837 = vpop.f32.mrb[0].mxu0
    %838 = vdwg.mxu0
    %v839 = vld [vmem:[%s7] sm:$0xff]
    %s840 = scalar_lea.vmem %s1, 32
    %v841 = vld [vmem:[%s840] sm:$0xff]
    %v842 = vld [vmem:[%s840 + $0x8] sm:$0xff]
    %v843 = vld [vmem:[%s840 + $0x10] sm:$0xff]
    %v844 = vld [vmem:[%s840 + $0x18] sm:$0xff]
    %s845 = scalar_lea.vmem %s4, 1
    %v846 = vld [vmem:[%s845] sm:$0x1]
    %v848 = vlaneseq
    %v849 = vshrl.u32 %v848, 7
    %v850 = vsub.s32 0, %v849
    %v851 = vrot.slane %v846, %v850
    %853 = vmatprep.subr.mxu0 0.0
    %854 = vmatpush1.msra.mxu0 %v841
    %855 = vmatprep.subr.mxu0 0.0
    %856 = vmatpush1.msra.mxu0 %v842
    %857 = vmatprep.subr.mxu0 0.0
    %858 = vmatpush1.msra.mxu0 %v843
    %859 = vmatprep.subr.mxu0 0.0
    %860 = vmatpush1.msra.mxu0 %v844
    %861 = vmatprep.subr.mxu0 0.0
    %862 = vmatpush1.msra.mxu0 0.0
    %863 = vmatprep.subr.mxu0 0.0
    %864 = vmatpush1.msra.mxu0 0.0
    %865 = vmatprep.subr.mxu0 0.0
    %866 = vmatpush1.msra.mxu0 0.0
    %867 = vmatprep.subr.mxu0 0.0
    %868 = vmatpush1.msra.mxu0 0.0
    %869 = vmatprep.subr.mxu0 0.0
    %870 = vmatpush1.msra.mxu0 0.0
    %871 = vmatprep.subr.mxu0 0.0
    %872 = vmatpush1.msra.mxu0 0.0
    %873 = vmatprep.subr.mxu0 0.0
    %874 = vmatpush1.msra.mxu0 0.0
    %875 = vmatprep.subr.mxu0 0.0
    %876 = vmatpush1.msra.mxu0 0.0
    %877 = vmatprep.subr.mxu0 0.0
    %878 = vmatpush1.msra.mxu0 0.0
    %879 = vmatprep.subr.mxu0 0.0
    %880 = vmatpush1.msra.mxu0 0.0
    %881 = vmatprep.subr.mxu0 0.0
    %882 = vmatpush1.msra.mxu0 0.0
    %883 = vmatprep.subr.mxu0 0.0
    %884 = vmatpush1.msra.mxu0 0.0
    %885 = vmatprep.subr.mxu0 0.0
    %886 = vmatpush1.msra.mxu0 0.0
    %887 = vmatprep.subr.mxu0 0.0
    %888 = vmatpush1.msra.mxu0 0.0
    %889 = vmatprep.subr.mxu0 0.0
    %890 = vmatpush1.msra.mxu0 0.0
    %891 = vmatprep.subr.mxu0 0.0
    %892 = vmatpush1.msra.mxu0 0.0
    %893 = vmatprep.subr.mxu0 0.0
    %894 = vmatpush1.msra.mxu0 0.0
    %895 = vmatprep.subr.mxu0 0.0
    %896 = vmatpush1.msra.mxu0 0.0
    %897 = vmatprep.subr.mxu0 0.0
    %898 = vmatpush1.msra.mxu0 0.0
    %899 = vmatprep.subr.mxu0 0.0
    %900 = vmatpush1.msra.mxu0 0.0
    %901 = vmatprep.subr.mxu0 0.0
    %902 = vmatpush1.msra.mxu0 0.0
    %903 = vmatprep.subr.mxu0 0.0
    %904 = vmatpush1.msra.mxu0 0.0
    %905 = vmatprep.subr.mxu0 0.0
    %906 = vmatpush1.msra.mxu0 0.0
    %907 = vmatprep.subr.mxu0 0.0
    %908 = vmatpush1.msra.mxu0 0.0
    %909 = vmatprep.subr.mxu0 0.0
    %910 = vmatpush1.msra.mxu0 0.0
    %911 = vmatprep.subr.mxu0 0.0
    %912 = vmatpush1.msra.mxu0 0.0
    %913 = vmatprep.subr.mxu0 0.0
    %914 = vmatpush1.msra.mxu0 0.0
    %915 = vmatprep.subr.mxu0 0.0
    %916 = vmatpush1.msra.mxu0 0.0
    %917 = vmatprep.mubr.f32.mxu0 0.0
    %918 = vmatmul.mubr.f32.gmra.mrb[0].mxu0 %v85
    %v919 = vpop.f32.mrb[0].mxu0
    %v920 = vadd.f32 %v851, %v919
    %v921 = vpop.f32.mrb[0].mxu0
    %922 = vmatprep.mubr.f32.mxu0 0.0
    %923 = vmatmul.mubr.f32.gmra.mrb[0].mxu0 %v88
    %v924 = vpop.f32.mrb[0].mxu0
    %v925 = vadd.f32 %v851, %v924
    %v926 = vpop.f32.mrb[0].mxu0
    %927 = vmatprep.mubr.f32.mxu0 0.0
    %928 = vmatmul.mubr.f32.gmra.mrb[0].mxu0 %v91
    %v929 = vpop.f32.mrb[0].mxu0
    %v930 = vadd.f32 %v851, %v929
    %v931 = vpop.f32.mrb[0].mxu0
    %932 = vdwg.mxu0
    %s933 = scalar_lea.vmem %s2, 32
    %v934 = vld [vmem:[%s933] sm:$0xff]
    %v935 = vld [vmem:[%s933 + $0x8] sm:$0xff]
    %v936 = vld [vmem:[%s933 + $0x10] sm:$0xff]
    %v937 = vld [vmem:[%s933 + $0x18] sm:$0xff]
    %s938 = scalar_lea.vmem %s5, 1
    %v939 = vld [vmem:[%s938] sm:$0x1]
    %v941 = vlaneseq
    %v942 = vshrl.u32 %v941, 7
    %v943 = vsub.s32 0, %v942
    %v944 = vrot.slane %v939, %v943
    %946 = vmatprep.subr.mxu0 0.0
    %947 = vmatpush1.msra.mxu0 %v934
    %948 = vmatprep.subr.mxu0 0.0
    %949 = vmatpush1.msra.mxu0 %v935
    %950 = vmatprep.subr.mxu0 0.0
    %951 = vmatpush1.msra.mxu0 %v936
    %952 = vmatprep.subr.mxu0 0.0
    %953 = vmatpush1.msra.mxu0 %v937
    %954 = vmatprep.subr.mxu0 0.0
    %955 = vmatpush1.msra.mxu0 0.0
    %956 = vmatprep.subr.mxu0 0.0
    %957 = vmatpush1.msra.mxu0 0.0
    %958 = vmatprep.subr.mxu0 0.0
    %959 = vmatpush1.msra.mxu0 0.0
    %960 = vmatprep.subr.mxu0 0.0
    %961 = vmatpush1.msra.mxu0 0.0
    %962 = vmatprep.subr.mxu0 0.0
    %963 = vmatpush1.msra.mxu0 0.0
    %964 = vmatprep.subr.mxu0 0.0
    %965 = vmatpush1.msra.mxu0 0.0
    %966 = vmatprep.subr.mxu0 0.0
    %967 = vmatpush1.msra.mxu0 0.0
    %968 = vmatprep.subr.mxu0 0.0
    %969 = vmatpush1.msra.mxu0 0.0
    %970 = vmatprep.subr.mxu0 0.0
    %971 = vmatpush1.msra.mxu0 0.0
    %972 = vmatprep.subr.mxu0 0.0
    %973 = vmatpush1.msra.mxu0 0.0
    %974 = vmatprep.subr.mxu0 0.0
    %975 = vmatpush1.msra.mxu0 0.0
    %976 = vmatprep.subr.mxu0 0.0
    %977 = vmatpush1.msra.mxu0 0.0
    %978 = vmatprep.subr.mxu0 0.0
    %979 = vmatpush1.msra.mxu0 0.0
    %980 = vmatprep.subr.mxu0 0.0
    %981 = vmatpush1.msra.mxu0 0.0
    %982 = vmatprep.subr.mxu0 0.0
    %983 = vmatpush1.msra.mxu0 0.0
    %984 = vmatprep.subr.mxu0 0.0
    %985 = vmatpush1.msra.mxu0 0.0
    %986 = vmatprep.subr.mxu0 0.0
    %987 = vmatpush1.msra.mxu0 0.0
    %988 = vmatprep.subr.mxu0 0.0
    %989 = vmatpush1.msra.mxu0 0.0
    %990 = vmatprep.subr.mxu0 0.0
    %991 = vmatpush1.msra.mxu0 0.0
    %992 = vmatprep.subr.mxu0 0.0
    %993 = vmatpush1.msra.mxu0 0.0
    %994 = vmatprep.subr.mxu0 0.0
    %995 = vmatpush1.msra.mxu0 0.0
    %996 = vmatprep.subr.mxu0 0.0
    %997 = vmatpush1.msra.mxu0 0.0
    %998 = vmatprep.subr.mxu0 0.0
    %999 = vmatpush1.msra.mxu0 0.0
    %1000 = vmatprep.subr.mxu0 0.0
    %1001 = vmatpush1.msra.mxu0 0.0
    %1002 = vmatprep.subr.mxu0 0.0
    %1003 = vmatpush1.msra.mxu0 0.0
    %1004 = vmatprep.subr.mxu0 0.0
    %1005 = vmatpush1.msra.mxu0 0.0
    %1006 = vmatprep.subr.mxu0 0.0
    %1007 = vmatpush1.msra.mxu0 0.0
    %1008 = vmatprep.subr.mxu0 0.0
    %1009 = vmatpush1.msra.mxu0 0.0
    %1010 = vmatprep.mubr.f32.mxu0 0.0
    %1011 = vmatmul.mubr.f32.gmra.mrb[0].mxu0 %v85
    %v1012 = vpop.f32.mrb[0].mxu0
    %v1013 = vadd.f32 %v944, %v1012
    %v1014 = vpop.f32.mrb[0].mxu0
    %1015 = vmatprep.mubr.f32.mxu0 0.0
    %1016 = vmatmul.mubr.f32.gmra.mrb[0].mxu0 %v88
    %v1017 = vpop.f32.mrb[0].mxu0
    %v1018 = vadd.f32 %v944, %v1017
    %v1019 = vpop.f32.mrb[0].mxu0
    %1020 = vmatprep.mubr.f32.mxu0 0.0
    %1021 = vmatmul.mubr.f32.gmra.mrb[0].mxu0 %v91
    %v1022 = vpop.f32.mrb[0].mxu0
    %v1023 = vadd.f32 %v944, %v1022
    %v1024 = vpop.f32.mrb[0].mxu0
    %1025 = vdwg.mxu0
    %s1026 = scalar_lea.vmem %s3, 32
    %v1027 = vld [vmem:[%s1026] sm:$0xff]
    %v1028 = vld [vmem:[%s1026 + $0x8] sm:$0xff]
    %v1029 = vld [vmem:[%s1026 + $0x10] sm:$0xff]
    %v1030 = vld [vmem:[%s1026 + $0x18] sm:$0xff]
    %s1031 = scalar_lea.vmem %s6, 1
    %v1032 = vld [vmem:[%s1031] sm:$0x1]
    %v1034 = vlaneseq
    %v1035 = vshrl.u32 %v1034, 7
    %v1036 = vsub.s32 0, %v1035
    %v1037 = vrot.slane %v1032, %v1036
    %1039 = vmatprep.subr.mxu0 0.0
    %1040 = vmatpush1.msra.mxu0 %v1027
    %1041 = vmatprep.subr.mxu0 0.0
    %1042 = vmatpush1.msra.mxu0 %v1028
    %1043 = vmatprep.subr.mxu0 0.0
    %1044 = vmatpush1.msra.mxu0 %v1029
    %1045 = vmatprep.subr.mxu0 0.0
    %1046 = vmatpush1.msra.mxu0 %v1030
    %1047 = vmatprep.subr.mxu0 0.0
    %1048 = vmatpush1.msra.mxu0 0.0
    %1049 = vmatprep.subr.mxu0 0.0
    %1050 = vmatpush1.msra.mxu0 0.0
    %1051 = vmatprep.subr.mxu0 0.0
    %1052 = vmatpush1.msra.mxu0 0.0
    %1053 = vmatprep.subr.mxu0 0.0
    %1054 = vmatpush1.msra.mxu0 0.0
    %1055 = vmatprep.subr.mxu0 0.0
    %1056 = vmatpush1.msra.mxu0 0.0
    %1057 = vmatprep.subr.mxu0 0.0
    %1058 = vmatpush1.msra.mxu0 0.0
    %1059 = vmatprep.subr.mxu0 0.0
    %1060 = vmatpush1.msra.mxu0 0.0
    %1061 = vmatprep.subr.mxu0 0.0
    %1062 = vmatpush1.msra.mxu0 0.0
    %1063 = vmatprep.subr.mxu0 0.0
    %1064 = vmatpush1.msra.mxu0 0.0
    %1065 = vmatprep.subr.mxu0 0.0
    %1066 = vmatpush1.msra.mxu0 0.0
    %1067 = vmatprep.subr.mxu0 0.0
    %1068 = vmatpush1.msra.mxu0 0.0
    %1069 = vmatprep.subr.mxu0 0.0
    %1070 = vmatpush1.msra.mxu0 0.0
    %1071 = vmatprep.subr.mxu0 0.0
    %1072 = vmatpush1.msra.mxu0 0.0
    %1073 = vmatprep.subr.mxu0 0.0
    %1074 = vmatpush1.msra.mxu0 0.0
    %1075 = vmatprep.subr.mxu0 0.0
    %1076 = vmatpush1.msra.mxu0 0.0
    %1077 = vmatprep.subr.mxu0 0.0
    %1078 = vmatpush1.msra.mxu0 0.0
    %1079 = vmatprep.subr.mxu0 0.0
    %1080 = vmatpush1.msra.mxu0 0.0
    %1081 = vmatprep.subr.mxu0 0.0
    %1082 = vmatpush1.msra.mxu0 0.0
    %1083 = vmatprep.subr.mxu0 0.0
    %1084 = vmatpush1.msra.mxu0 0.0
    %1085 = vmatprep.subr.mxu0 0.0
    %1086 = vmatpush1.msra.mxu0 0.0
    %1087 = vmatprep.subr.mxu0 0.0
    %1088 = vmatpush1.msra.mxu0 0.0
    %1089 = vmatprep.subr.mxu0 0.0
    %1090 = vmatpush1.msra.mxu0 0.0
    %1091 = vmatprep.subr.mxu0 0.0
    %1092 = vmatpush1.msra.mxu0 0.0
    %1093 = vmatprep.subr.mxu0 0.0
    %1094 = vmatpush1.msra.mxu0 0.0
    %1095 = vmatprep.subr.mxu0 0.0
    %1096 = vmatpush1.msra.mxu0 0.0
    %1097 = vmatprep.subr.mxu0 0.0
    %1098 = vmatpush1.msra.mxu0 0.0
    %1099 = vmatprep.subr.mxu0 0.0
    %1100 = vmatpush1.msra.mxu0 0.0
    %1101 = vmatprep.subr.mxu0 0.0
    %1102 = vmatpush1.msra.mxu0 0.0
    %1103 = vmatprep.mubr.f32.mxu0 0.0
    %1104 = vmatmul.mubr.f32.gmra.mrb[0].mxu0 %v85
    %v1105 = vpop.f32.mrb[0].mxu0
    %v1106 = vadd.f32 %v1037, %v1105
    %v1107 = vpop.f32.mrb[0].mxu0
    %1108 = vmatprep.mubr.f32.mxu0 0.0
    %1109 = vmatmul.mubr.f32.gmra.mrb[0].mxu0 %v88
    %v1110 = vpop.f32.mrb[0].mxu0
    %v1111 = vadd.f32 %v1037, %v1110
    %v1112 = vpop.f32.mrb[0].mxu0
    %1113 = vmatprep.mubr.f32.mxu0 0.0
    %1114 = vmatmul.mubr.f32.gmra.mrb[0].mxu0 %v91
    %v1115 = vpop.f32.mrb[0].mxu0
    %v1116 = vadd.f32 %v1037, %v1115
    %v1117 = vpop.f32.mrb[0].mxu0
    %1118 = vdwg.mxu0
    %v1120 = vsel %vm355, %v920, 0
    %v1123 = vsel %vm355, %v1013, 0
    %1125 = vmatprep.subr.mxu0 0.0
    %1126 = vmatpush1.xpose.msra.mxu0 %v1123
    %1127 = vmatprep.subr.mxu0 0.0
    %1128 = vmatpush1.xpose.msra.mxu0 0.0
    %1129 = vmatprep.subr.mxu0 0.0
    %1130 = vmatpush1.xpose.msra.mxu0 0.0
    %1131 = vmatprep.subr.mxu0 0.0
    %1132 = vmatpush1.xpose.msra.mxu0 0.0
    %1133 = vmatprep.subr.mxu0 0.0
    %1134 = vmatpush1.xpose.msra.mxu0 0.0
    %1135 = vmatprep.subr.mxu0 0.0
    %1136 = vmatpush1.xpose.msra.mxu0 0.0
    %1137 = vmatprep.subr.mxu0 0.0
    %1138 = vmatpush1.xpose.msra.mxu0 0.0
    %1139 = vmatprep.subr.mxu0 0.0
    %1140 = vmatpush1.xpose.msra.mxu0 0.0
    %1141 = vmatprep.subr.mxu0 0.0
    %1142 = vmatpush1.xpose.msra.mxu0 0.0
    %1143 = vmatprep.subr.mxu0 0.0
    %1144 = vmatpush1.xpose.msra.mxu0 0.0
    %1145 = vmatprep.subr.mxu0 0.0
    %1146 = vmatpush1.xpose.msra.mxu0 0.0
    %1147 = vmatprep.subr.mxu0 0.0
    %1148 = vmatpush1.xpose.msra.mxu0 0.0
    %1149 = vmatprep.subr.mxu0 0.0
    %1150 = vmatpush1.xpose.msra.mxu0 0.0
    %1151 = vmatprep.subr.mxu0 0.0
    %1152 = vmatpush1.xpose.msra.mxu0 0.0
    %1153 = vmatprep.subr.mxu0 0.0
    %1154 = vmatpush1.xpose.msra.mxu0 0.0
    %1155 = vmatprep.subr.mxu0 0.0
    %1156 = vmatpush1.xpose.msra.mxu0 0.0
    %1157 = vmatprep.subr.mxu0 0.0
    %1158 = vmatpush1.xpose.msra.mxu0 0.0
    %1159 = vmatprep.subr.mxu0 0.0
    %1160 = vmatpush1.xpose.msra.mxu0 0.0
    %1161 = vmatprep.subr.mxu0 0.0
    %1162 = vmatpush1.xpose.msra.mxu0 0.0
    %1163 = vmatprep.subr.mxu0 0.0
    %1164 = vmatpush1.xpose.msra.mxu0 0.0
    %1165 = vmatprep.subr.mxu0 0.0
    %1166 = vmatpush1.xpose.msra.mxu0 0.0
    %1167 = vmatprep.subr.mxu0 0.0
    %1168 = vmatpush1.xpose.msra.mxu0 0.0
    %1169 = vmatprep.subr.mxu0 0.0
    %1170 = vmatpush1.xpose.msra.mxu0 0.0
    %1171 = vmatprep.subr.mxu0 0.0
    %1172 = vmatpush1.xpose.msra.mxu0 0.0
    %1173 = vmatprep.subr.mxu0 0.0
    %1174 = vmatpush1.xpose.msra.mxu0 0.0
    %1175 = vmatprep.subr.mxu0 0.0
    %1176 = vmatpush1.xpose.msra.mxu0 0.0
    %1177 = vmatprep.subr.mxu0 0.0
    %1178 = vmatpush1.xpose.msra.mxu0 0.0
    %1179 = vmatprep.subr.mxu0 0.0
    %1180 = vmatpush1.xpose.msra.mxu0 0.0
    %1181 = vmatprep.subr.mxu0 0.0
    %1182 = vmatpush1.xpose.msra.mxu0 0.0
    %1183 = vmatprep.subr.mxu0 0.0
    %1184 = vmatpush1.xpose.msra.mxu0 0.0
    %1185 = vmatprep.subr.mxu0 0.0
    %1186 = vmatpush1.xpose.msra.mxu0 0.0
    %1187 = vmatprep.subr.mxu0 0.0
    %1188 = vmatpush1.xpose.msra.mxu0 0.0
    %1189 = vmatprep.mubr.f32.mxu0 0.0
    %1190 = vmatmul.mubr.f32.gmra.mrb[0].mxu0 %v1120
    %v1191 = vpop.f32.mrb[0].mxu0
    %v1192 = vadd.f32 0.0, %v1191
    %v1193 = vpop.f32.mrb[0].mxu0
    %1194 = vdwg.mxu0
    %v1196 = vsel %vm355, %v925, 0
    %v1199 = vsel %vm355, %v1018, 0
    %1201 = vmatprep.subr.mxu0 0.0
    %1202 = vmatpush1.xpose.msra.mxu0 %v1199
    %1203 = vmatprep.subr.mxu0 0.0
    %1204 = vmatpush1.xpose.msra.mxu0 0.0
    %1205 = vmatprep.subr.mxu0 0.0
    %1206 = vmatpush1.xpose.msra.mxu0 0.0
    %1207 = vmatprep.subr.mxu0 0.0
    %1208 = vmatpush1.xpose.msra.mxu0 0.0
    %1209 = vmatprep.subr.mxu0 0.0
    %1210 = vmatpush1.xpose.msra.mxu0 0.0
    %1211 = vmatprep.subr.mxu0 0.0
    %1212 = vmatpush1.xpose.msra.mxu0 0.0
    %1213 = vmatprep.subr.mxu0 0.0
    %1214 = vmatpush1.xpose.msra.mxu0 0.0
    %1215 = vmatprep.subr.mxu0 0.0
    %1216 = vmatpush1.xpose.msra.mxu0 0.0
    %1217 = vmatprep.subr.mxu0 0.0
    %1218 = vmatpush1.xpose.msra.mxu0 0.0
    %1219 = vmatprep.subr.mxu0 0.0
    %1220 = vmatpush1.xpose.msra.mxu0 0.0
    %1221 = vmatprep.subr.mxu0 0.0
    %1222 = vmatpush1.xpose.msra.mxu0 0.0
    %1223 = vmatprep.subr.mxu0 0.0
    %1224 = vmatpush1.xpose.msra.mxu0 0.0
    %1225 = vmatprep.subr.mxu0 0.0
    %1226 = vmatpush1.xpose.msra.mxu0 0.0
    %1227 = vmatprep.subr.mxu0 0.0
    %1228 = vmatpush1.xpose.msra.mxu0 0.0
    %1229 = vmatprep.subr.mxu0 0.0
    %1230 = vmatpush1.xpose.msra.mxu0 0.0
    %1231 = vmatprep.subr.mxu0 0.0
    %1232 = vmatpush1.xpose.msra.mxu0 0.0
    %1233 = vmatprep.subr.mxu0 0.0
    %1234 = vmatpush1.xpose.msra.mxu0 0.0
    %1235 = vmatprep.subr.mxu0 0.0
    %1236 = vmatpush1.xpose.msra.mxu0 0.0
    %1237 = vmatprep.subr.mxu0 0.0
    %1238 = vmatpush1.xpose.msra.mxu0 0.0
    %1239 = vmatprep.subr.mxu0 0.0
    %1240 = vmatpush1.xpose.msra.mxu0 0.0
    %1241 = vmatprep.subr.mxu0 0.0
    %1242 = vmatpush1.xpose.msra.mxu0 0.0
    %1243 = vmatprep.subr.mxu0 0.0
    %1244 = vmatpush1.xpose.msra.mxu0 0.0
    %1245 = vmatprep.subr.mxu0 0.0
    %1246 = vmatpush1.xpose.msra.mxu0 0.0
    %1247 = vmatprep.subr.mxu0 0.0
    %1248 = vmatpush1.xpose.msra.mxu0 0.0
    %1249 = vmatprep.subr.mxu0 0.0
    %1250 = vmatpush1.xpose.msra.mxu0 0.0
    %1251 = vmatprep.subr.mxu0 0.0
    %1252 = vmatpush1.xpose.msra.mxu0 0.0
    %1253 = vmatprep.subr.mxu0 0.0
    %1254 = vmatpush1.xpose.msra.mxu0 0.0
    %1255 = vmatprep.subr.mxu0 0.0
    %1256 = vmatpush1.xpose.msra.mxu0 0.0
    %1257 = vmatprep.subr.mxu0 0.0
    %1258 = vmatpush1.xpose.msra.mxu0 0.0
    %1259 = vmatprep.subr.mxu0 0.0
    %1260 = vmatpush1.xpose.msra.mxu0 0.0
    %1261 = vmatprep.subr.mxu0 0.0
    %1262 = vmatpush1.xpose.msra.mxu0 0.0
    %1263 = vmatprep.subr.mxu0 0.0
    %1264 = vmatpush1.xpose.msra.mxu0 0.0
    %1265 = vmatprep.mubr.f32.mxu0 0.0
    %1266 = vmatmul.mubr.f32.gmra.mrb[0].mxu0 %v1196
    %v1267 = vpop.f32.mrb[0].mxu0
    %v1268 = vadd.f32 0.0, %v1267
    %v1269 = vpop.f32.mrb[0].mxu0
    %1270 = vdwg.mxu0
    %v1272 = vsel %vm355, %v930, 0
    %v1275 = vsel %vm355, %v1023, 0
    %1277 = vmatprep.subr.mxu0 0.0
    %1278 = vmatpush1.xpose.msra.mxu0 %v1275
    %1279 = vmatprep.subr.mxu0 0.0
    %1280 = vmatpush1.xpose.msra.mxu0 0.0
    %1281 = vmatprep.subr.mxu0 0.0
    %1282 = vmatpush1.xpose.msra.mxu0 0.0
    %1283 = vmatprep.subr.mxu0 0.0
    %1284 = vmatpush1.xpose.msra.mxu0 0.0
    %1285 = vmatprep.subr.mxu0 0.0
    %1286 = vmatpush1.xpose.msra.mxu0 0.0
    %1287 = vmatprep.subr.mxu0 0.0
    %1288 = vmatpush1.xpose.msra.mxu0 0.0
    %1289 = vmatprep.subr.mxu0 0.0
    %1290 = vmatpush1.xpose.msra.mxu0 0.0
    %1291 = vmatprep.subr.mxu0 0.0
    %1292 = vmatpush1.xpose.msra.mxu0 0.0
    %1293 = vmatprep.subr.mxu0 0.0
    %1294 = vmatpush1.xpose.msra.mxu0 0.0
    %1295 = vmatprep.subr.mxu0 0.0
    %1296 = vmatpush1.xpose.msra.mxu0 0.0
    %1297 = vmatprep.subr.mxu0 0.0
    %1298 = vmatpush1.xpose.msra.mxu0 0.0
    %1299 = vmatprep.subr.mxu0 0.0
    %1300 = vmatpush1.xpose.msra.mxu0 0.0
    %1301 = vmatprep.subr.mxu0 0.0
    %1302 = vmatpush1.xpose.msra.mxu0 0.0
    %1303 = vmatprep.subr.mxu0 0.0
    %1304 = vmatpush1.xpose.msra.mxu0 0.0
    %1305 = vmatprep.subr.mxu0 0.0
    %1306 = vmatpush1.xpose.msra.mxu0 0.0
    %1307 = vmatprep.subr.mxu0 0.0
    %1308 = vmatpush1.xpose.msra.mxu0 0.0
    %1309 = vmatprep.subr.mxu0 0.0
    %1310 = vmatpush1.xpose.msra.mxu0 0.0
    %1311 = vmatprep.subr.mxu0 0.0
    %1312 = vmatpush1.xpose.msra.mxu0 0.0
    %1313 = vmatprep.subr.mxu0 0.0
    %1314 = vmatpush1.xpose.msra.mxu0 0.0
    %1315 = vmatprep.subr.mxu0 0.0
    %1316 = vmatpush1.xpose.msra.mxu0 0.0
    %1317 = vmatprep.subr.mxu0 0.0
    %1318 = vmatpush1.xpose.msra.mxu0 0.0
    %1319 = vmatprep.subr.mxu0 0.0
    %1320 = vmatpush1.xpose.msra.mxu0 0.0
    %1321 = vmatprep.subr.mxu0 0.0
    %1322 = vmatpush1.xpose.msra.mxu0 0.0
    %1323 = vmatprep.subr.mxu0 0.0
    %1324 = vmatpush1.xpose.msra.mxu0 0.0
    %1325 = vmatprep.subr.mxu0 0.0
    %1326 = vmatpush1.xpose.msra.mxu0 0.0
    %1327 = vmatprep.subr.mxu0 0.0
    %1328 = vmatpush1.xpose.msra.mxu0 0.0
    %1329 = vmatprep.subr.mxu0 0.0
    %1330 = vmatpush1.xpose.msra.mxu0 0.0
    %1331 = vmatprep.subr.mxu0 0.0
    %1332 = vmatpush1.xpose.msra.mxu0 0.0
    %1333 = vmatprep.subr.mxu0 0.0
    %1334 = vmatpush1.xpose.msra.mxu0 0.0
    %1335 = vmatprep.subr.mxu0 0.0
    %1336 = vmatpush1.xpose.msra.mxu0 0.0
    %1337 = vmatprep.subr.mxu0 0.0
    %1338 = vmatpush1.xpose.msra.mxu0 0.0
    %1339 = vmatprep.subr.mxu0 0.0
    %1340 = vmatpush1.xpose.msra.mxu0 0.0
    %1341 = vmatprep.mubr.f32.mxu0 0.0
    %1342 = vmatmul.mubr.f32.gmra.mrb[0].mxu0 %v1272
    %v1343 = vpop.f32.mrb[0].mxu0
    %v1344 = vadd.f32 0.0, %v1343
    %v1345 = vpop.f32.mrb[0].mxu0
    %1346 = vdwg.mxu0
    %v1347 = vmul.f32 %v1192, 0.35355338
    %v1348 = vmul.f32 %v1268, 0.35355338
    %v1349 = vmul.f32 %v1344, 0.35355338
    %v1350 = vsel %vm355, %v1347, -inf
    %1351 = vmax.xlane.f32.xlu0 %v1350
    %v1352 = vpop.xlane.xlu0 %1351
    %v1353 = vsel %vm355, %v1348, -inf
    %1354 = vmax.xlane.f32.xlu0 %v1353
    %v1355 = vpop.xlane.xlu0 %1354
    %v1356 = vsel %vm355, %v1349, -inf
    %1357 = vmax.xlane.f32.xlu0 %v1356
    %v1358 = vpop.xlane.xlu0 %1357
    %v1359 = vsub.f32 %v1347, %v1352
    %v1360 = vsub.f32 %v1348, %v1355
    %v1361 = vsub.f32 %v1349, %v1358
    %v1362 = vmul.f32 %v1359, 1.442695
    %v1363 = vpow.pop %v1362
    %v1364 = vmul.f32 %v1360, 1.442695
    %v1365 = vpow.pop %v1364
    %v1366 = vmul.f32 %v1361, 1.442695
    %v1367 = vpow.pop %v1366
    %v1368 = vsel %vm355, %v1363, 0.0
    %1369 = vadd.xlane.f32.xlu0 %v1368
    %v1370 = vpop.xlane.xlu0 %1369
    %v1371 = vsel %vm355, %v1365, 0.0
    %1372 = vadd.xlane.f32.xlu0 %v1371
    %v1373 = vpop.xlane.xlu0 %1372
    %v1374 = vsel %vm355, %v1367, 0.0
    %1375 = vadd.xlane.f32.xlu0 %v1374
    %v1376 = vpop.xlane.xlu0 %1375
    %v1377 = vrcp.pop %v1370
    %v1378 = vmul.f32 %v1363, %v1377
    %v1379 = vrcp.pop %v1373
    %v1380 = vmul.f32 %v1365, %v1379
    %v1381 = vrcp.pop %v1376
    %v1382 = vmul.f32 %v1367, %v1381
    %v1384 = vsel %vm355, %v1378, 0
    %1386 = vmatprep.subr.mxu0 0.0
    %1387 = vmatpush1.msra.mxu0 %v1106
    %1388 = vmatprep.subr.mxu0 0.0
    %1389 = vmatpush1.msra.mxu0 0.0
    %1390 = vmatprep.subr.mxu0 0.0
    %1391 = vmatpush1.msra.mxu0 0.0
    %1392 = vmatprep.subr.mxu0 0.0
    %1393 = vmatpush1.msra.mxu0 0.0
    %1394 = vmatprep.subr.mxu0 0.0
    %1395 = vmatpush1.msra.mxu0 0.0
    %1396 = vmatprep.subr.mxu0 0.0
    %1397 = vmatpush1.msra.mxu0 0.0
    %1398 = vmatprep.subr.mxu0 0.0
    %1399 = vmatpush1.msra.mxu0 0.0
    %1400 = vmatprep.subr.mxu0 0.0
    %1401 = vmatpush1.msra.mxu0 0.0
    %1402 = vmatprep.subr.mxu0 0.0
    %1403 = vmatpush1.msra.mxu0 0.0
    %1404 = vmatprep.subr.mxu0 0.0
    %1405 = vmatpush1.msra.mxu0 0.0
    %1406 = vmatprep.subr.mxu0 0.0
    %1407 = vmatpush1.msra.mxu0 0.0
    %1408 = vmatprep.subr.mxu0 0.0
    %1409 = vmatpush1.msra.mxu0 0.0
    %1410 = vmatprep.subr.mxu0 0.0
    %1411 = vmatpush1.msra.mxu0 0.0
    %1412 = vmatprep.subr.mxu0 0.0
    %1413 = vmatpush1.msra.mxu0 0.0
    %1414 = vmatprep.subr.mxu0 0.0
    %1415 = vmatpush1.msra.mxu0 0.0
    %1416 = vmatprep.subr.mxu0 0.0
    %1417 = vmatpush1.msra.mxu0 0.0
    %1418 = vmatprep.subr.mxu0 0.0
    %1419 = vmatpush1.msra.mxu0 0.0
    %1420 = vmatprep.subr.mxu0 0.0
    %1421 = vmatpush1.msra.mxu0 0.0
    %1422 = vmatprep.subr.mxu0 0.0
    %1423 = vmatpush1.msra.mxu0 0.0
    %1424 = vmatprep.subr.mxu0 0.0
    %1425 = vmatpush1.msra.mxu0 0.0
    %1426 = vmatprep.subr.mxu0 0.0
    %1427 = vmatpush1.msra.mxu0 0.0
    %1428 = vmatprep.subr.mxu0 0.0
    %1429 = vmatpush1.msra.mxu0 0.0
    %1430 = vmatprep.subr.mxu0 0.0
    %1431 = vmatpush1.msra.mxu0 0.0
    %1432 = vmatprep.subr.mxu0 0.0
    %1433 = vmatpush1.msra.mxu0 0.0
    %1434 = vmatprep.subr.mxu0 0.0
    %1435 = vmatpush1.msra.mxu0 0.0
    %1436 = vmatprep.subr.mxu0 0.0
    %1437 = vmatpush1.msra.mxu0 0.0
    %1438 = vmatprep.subr.mxu0 0.0
    %1439 = vmatpush1.msra.mxu0 0.0
    %1440 = vmatprep.subr.mxu0 0.0
    %1441 = vmatpush1.msra.mxu0 0.0
    %1442 = vmatprep.subr.mxu0 0.0
    %1443 = vmatpush1.msra.mxu0 0.0
    %1444 = vmatprep.subr.mxu0 0.0
    %1445 = vmatpush1.msra.mxu0 0.0
    %1446 = vmatprep.subr.mxu0 0.0
    %1447 = vmatpush1.msra.mxu0 0.0
    %1448 = vmatprep.subr.mxu0 0.0
    %1449 = vmatpush1.msra.mxu0 0.0
    %1450 = vmatprep.mubr.f32.mxu0 0.0
    %1451 = vmatmul.mubr.f32.gmra.mrb[0].mxu0 %v1384
    %v1452 = vpop.f32.mrb[0].mxu0
    %v1453 = vadd.f32 0.0, %v1452
    %v1454 = vpop.f32.mrb[0].mxu0
    %1455 = vdwg.mxu0
    %v1457 = vsel %vm355, %v1380, 0
    %1459 = vmatprep.subr.mxu0 0.0
    %1460 = vmatpush1.msra.mxu0 %v1111
    %1461 = vmatprep.subr.mxu0 0.0
    %1462 = vmatpush1.msra.mxu0 0.0
    %1463 = vmatprep.subr.mxu0 0.0
    %1464 = vmatpush1.msra.mxu0 0.0
    %1465 = vmatprep.subr.mxu0 0.0
    %1466 = vmatpush1.msra.mxu0 0.0
    %1467 = vmatprep.subr.mxu0 0.0
    %1468 = vmatpush1.msra.mxu0 0.0
    %1469 = vmatprep.subr.mxu0 0.0
    %1470 = vmatpush1.msra.mxu0 0.0
    %1471 = vmatprep.subr.mxu0 0.0
    %1472 = vmatpush1.msra.mxu0 0.0
    %1473 = vmatprep.subr.mxu0 0.0
    %1474 = vmatpush1.msra.mxu0 0.0
    %1475 = vmatprep.subr.mxu0 0.0
    %1476 = vmatpush1.msra.mxu0 0.0
    %1477 = vmatprep.subr.mxu0 0.0
    %1478 = vmatpush1.msra.mxu0 0.0
    %1479 = vmatprep.subr.mxu0 0.0
    %1480 = vmatpush1.msra.mxu0 0.0
    %1481 = vmatprep.subr.mxu0 0.0
    %1482 = vmatpush1.msra.mxu0 0.0
    %1483 = vmatprep.subr.mxu0 0.0
    %1484 = vmatpush1.msra.mxu0 0.0
    %1485 = vmatprep.subr.mxu0 0.0
    %1486 = vmatpush1.msra.mxu0 0.0
    %1487 = vmatprep.subr.mxu0 0.0
    %1488 = vmatpush1.msra.mxu0 0.0
    %1489 = vmatprep.subr.mxu0 0.0
    %1490 = vmatpush1.msra.mxu0 0.0
    %1491 = vmatprep.subr.mxu0 0.0
    %1492 = vmatpush1.msra.mxu0 0.0
    %1493 = vmatprep.subr.mxu0 0.0
    %1494 = vmatpush1.msra.mxu0 0.0
    %1495 = vmatprep.subr.mxu0 0.0
    %1496 = vmatpush1.msra.mxu0 0.0
    %1497 = vmatprep.subr.mxu0 0.0
    %1498 = vmatpush1.msra.mxu0 0.0
    %1499 = vmatprep.subr.mxu0 0.0
    %1500 = vmatpush1.msra.mxu0 0.0
    %1501 = vmatprep.subr.mxu0 0.0
    %1502 = vmatpush1.msra.mxu0 0.0
    %1503 = vmatprep.subr.mxu0 0.0
    %1504 = vmatpush1.msra.mxu0 0.0
    %1505 = vmatprep.subr.mxu0 0.0
    %1506 = vmatpush1.msra.mxu0 0.0
    %1507 = vmatprep.subr.mxu0 0.0
    %1508 = vmatpush1.msra.mxu0 0.0
    %1509 = vmatprep.subr.mxu0 0.0
    %1510 = vmatpush1.msra.mxu0 0.0
    %1511 = vmatprep.subr.mxu0 0.0
    %1512 = vmatpush1.msra.mxu0 0.0
    %1513 = vmatprep.subr.mxu0 0.0
    %1514 = vmatpush1.msra.mxu0 0.0
    %1515 = vmatprep.subr.mxu0 0.0
    %1516 = vmatpush1.msra.mxu0 0.0
    %1517 = vmatprep.subr.mxu0 0.0
    %1518 = vmatpush1.msra.mxu0 0.0
    %1519 = vmatprep.subr.mxu0 0.0
    %1520 = vmatpush1.msra.mxu0 0.0
    %1521 = vmatprep.subr.mxu0 0.0
    %1522 = vmatpush1.msra.mxu0 0.0
    %1523 = vmatprep.mubr.f32.mxu0 0.0
    %1524 = vmatmul.mubr.f32.gmra.mrb[0].mxu0 %v1457
    %v1525 = vpop.f32.mrb[0].mxu0
    %v1526 = vadd.f32 0.0, %v1525
    %v1527 = vpop.f32.mrb[0].mxu0
    %1528 = vdwg.mxu0
    %v1530 = vsel %vm355, %v1382, 0
    %1532 = vmatprep.subr.mxu0 0.0
    %1533 = vmatpush1.msra.mxu0 %v1116
    %1534 = vmatprep.subr.mxu0 0.0
    %1535 = vmatpush1.msra.mxu0 0.0
    %1536 = vmatprep.subr.mxu0 0.0
    %1537 = vmatpush1.msra.mxu0 0.0
    %1538 = vmatprep.subr.mxu0 0.0
    %1539 = vmatpush1.msra.mxu0 0.0
    %1540 = vmatprep.subr.mxu0 0.0
    %1541 = vmatpush1.msra.mxu0 0.0
    %1542 = vmatprep.subr.mxu0 0.0
    %1543 = vmatpush1.msra.mxu0 0.0
    %1544 = vmatprep.subr.mxu0 0.0
    %1545 = vmatpush1.msra.mxu0 0.0
    %1546 = vmatprep.subr.mxu0 0.0
    %1547 = vmatpush1.msra.mxu0 0.0
    %1548 = vmatprep.subr.mxu0 0.0
    %1549 = vmatpush1.msra.mxu0 0.0
    %1550 = vmatprep.subr.mxu0 0.0
    %1551 = vmatpush1.msra.mxu0 0.0
    %1552 = vmatprep.subr.mxu0 0.0
    %1553 = vmatpush1.msra.mxu0 0.0
    %1554 = vmatprep.subr.mxu0 0.0
    %1555 = vmatpush1.msra.mxu0 0.0
    %1556 = vmatprep.subr.mxu0 0.0
    %1557 = vmatpush1.msra.mxu0 0.0
    %1558 = vmatprep.subr.mxu0 0.0
    %1559 = vmatpush1.msra.mxu0 0.0
    %1560 = vmatprep.subr.mxu0 0.0
    %1561 = vmatpush1.msra.mxu0 0.0
    %1562 = vmatprep.subr.mxu0 0.0
    %1563 = vmatpush1.msra.mxu0 0.0
    %1564 = vmatprep.subr.mxu0 0.0
    %1565 = vmatpush1.msra.mxu0 0.0
    %1566 = vmatprep.subr.mxu0 0.0
    %1567 = vmatpush1.msra.mxu0 0.0
    %1568 = vmatprep.subr.mxu0 0.0
    %1569 = vmatpush1.msra.mxu0 0.0
    %1570 = vmatprep.subr.mxu0 0.0
    %1571 = vmatpush1.msra.mxu0 0.0
    %1572 = vmatprep.subr.mxu0 0.0
    %1573 = vmatpush1.msra.mxu0 0.0
    %1574 = vmatprep.subr.mxu0 0.0
    %1575 = vmatpush1.msra.mxu0 0.0
    %1576 = vmatprep.subr.mxu0 0.0
    %1577 = vmatpush1.msra.mxu0 0.0
    %1578 = vmatprep.subr.mxu0 0.0
    %1579 = vmatpush1.msra.mxu0 0.0
    %1580 = vmatprep.subr.mxu0 0.0
    %1581 = vmatpush1.msra.mxu0 0.0
    %1582 = vmatprep.subr.mxu0 0.0
    %1583 = vmatpush1.msra.mxu0 0.0
    %1584 = vmatprep.subr.mxu0 0.0
    %1585 = vmatpush1.msra.mxu0 0.0
    %1586 = vmatprep.subr.mxu0 0.0
    %1587 = vmatpush1.msra.mxu0 0.0
    %1588 = vmatprep.subr.mxu0 0.0
    %1589 = vmatpush1.msra.mxu0 0.0
    %1590 = vmatprep.subr.mxu0 0.0
    %1591 = vmatpush1.msra.mxu0 0.0
    %1592 = vmatprep.subr.mxu0 0.0
    %1593 = vmatpush1.msra.mxu0 0.0
    %1594 = vmatprep.subr.mxu0 0.0
    %1595 = vmatpush1.msra.mxu0 0.0
    %1596 = vmatprep.mubr.f32.mxu0 0.0
    %1597 = vmatmul.mubr.f32.gmra.mrb[0].mxu0 %v1530
    %v1598 = vpop.f32.mrb[0].mxu0
    %v1599 = vadd.f32 0.0, %v1598
    %v1600 = vpop.f32.mrb[0].mxu0
    %1601 = vdwg.mxu0
    %s1602 = scalar_lea.vmem %s7, 8
    %v1603 = vld [vmem:[%s1602] sm:$0xff]
    %v1605 = vsel %vm355, %v1453, 0
    %v1608 = vsel %vm355, %v1526, 0
    %v1611 = vsel %vm355, %v1599, 0
    %1613 = vmatprep.subr.mxu0 0.0
    %1614 = vmatpush1.msra.mxu0 %v1603
    %1615 = vmatprep.subr.mxu0 0.0
    %1616 = vmatpush1.msra.mxu0 0.0
    %1617 = vmatprep.subr.mxu0 0.0
    %1618 = vmatpush1.msra.mxu0 0.0
    %1619 = vmatprep.subr.mxu0 0.0
    %1620 = vmatpush1.msra.mxu0 0.0
    %1621 = vmatprep.subr.mxu0 0.0
    %1622 = vmatpush1.msra.mxu0 0.0
    %1623 = vmatprep.subr.mxu0 0.0
    %1624 = vmatpush1.msra.mxu0 0.0
    %1625 = vmatprep.subr.mxu0 0.0
    %1626 = vmatpush1.msra.mxu0 0.0
    %1627 = vmatprep.subr.mxu0 0.0
    %1628 = vmatpush1.msra.mxu0 0.0
    %1629 = vmatprep.subr.mxu0 0.0
    %1630 = vmatpush1.msra.mxu0 0.0
    %1631 = vmatprep.subr.mxu0 0.0
    %1632 = vmatpush1.msra.mxu0 0.0
    %1633 = vmatprep.subr.mxu0 0.0
    %1634 = vmatpush1.msra.mxu0 0.0
    %1635 = vmatprep.subr.mxu0 0.0
    %1636 = vmatpush1.msra.mxu0 0.0
    %1637 = vmatprep.subr.mxu0 0.0
    %1638 = vmatpush1.msra.mxu0 0.0
    %1639 = vmatprep.subr.mxu0 0.0
    %1640 = vmatpush1.msra.mxu0 0.0
    %1641 = vmatprep.subr.mxu0 0.0
    %1642 = vmatpush1.msra.mxu0 0.0
    %1643 = vmatprep.subr.mxu0 0.0
    %1644 = vmatpush1.msra.mxu0 0.0
    %1645 = vmatprep.subr.mxu0 0.0
    %1646 = vmatpush1.msra.mxu0 0.0
    %1647 = vmatprep.subr.mxu0 0.0
    %1648 = vmatpush1.msra.mxu0 0.0
    %1649 = vmatprep.subr.mxu0 0.0
    %1650 = vmatpush1.msra.mxu0 0.0
    %1651 = vmatprep.subr.mxu0 0.0
    %1652 = vmatpush1.msra.mxu0 0.0
    %1653 = vmatprep.subr.mxu0 0.0
    %1654 = vmatpush1.msra.mxu0 0.0
    %1655 = vmatprep.subr.mxu0 0.0
    %1656 = vmatpush1.msra.mxu0 0.0
    %1657 = vmatprep.subr.mxu0 0.0
    %1658 = vmatpush1.msra.mxu0 0.0
    %1659 = vmatprep.subr.mxu0 0.0
    %1660 = vmatpush1.msra.mxu0 0.0
    %1661 = vmatprep.subr.mxu0 0.0
    %1662 = vmatpush1.msra.mxu0 0.0
    %1663 = vmatprep.subr.mxu0 0.0
    %1664 = vmatpush1.msra.mxu0 0.0
    %1665 = vmatprep.subr.mxu0 0.0
    %1666 = vmatpush1.msra.mxu0 0.0
    %1667 = vmatprep.subr.mxu0 0.0
    %1668 = vmatpush1.msra.mxu0 0.0
    %1669 = vmatprep.subr.mxu0 0.0
    %1670 = vmatpush1.msra.mxu0 0.0
    %1671 = vmatprep.subr.mxu0 0.0
    %1672 = vmatpush1.msra.mxu0 0.0
    %1673 = vmatprep.subr.mxu0 0.0
    %1674 = vmatpush1.msra.mxu0 0.0
    %1675 = vmatprep.subr.mxu0 0.0
    %1676 = vmatpush1.msra.mxu0 0.0
    %1677 = vmatprep.mubr.f32.mxu0 0.0
    %1678 = vmatmul.mubr.f32.gmra.mrb[0].mxu0 %v1605
    %v1679 = vpop.f32.mrb[0].mxu0
    %v1680 = vadd.f32 0.0, %v1679
    %v1681 = vpop.f32.mrb[0].mxu0
    %1682 = vmatprep.mubr.f32.mxu0 0.0
    %1683 = vmatmul.mubr.f32.gmra.mrb[0].mxu0 %v1608
    %v1684 = vpop.f32.mrb[0].mxu0
    %v1685 = vadd.f32 0.0, %v1684
    %v1686 = vpop.f32.mrb[0].mxu0
    %1687 = vmatprep.mubr.f32.mxu0 0.0
    %1688 = vmatmul.mubr.f32.gmra.mrb[0].mxu0 %v1611
    %v1689 = vpop.f32.mrb[0].mxu0
    %v1690 = vadd.f32 0.0, %v1689
    %v1691 = vpop.f32.mrb[0].mxu0
    %1692 = vdwg.mxu0
    %v1694 = vsel %vm355, %v690, 0
    %v1697 = vsel %vm355, %v763, 0
    %v1700 = vsel %vm355, %v836, 0
    %1702 = vmatprep.subr.mxu0 0.0
    %1703 = vmatpush1.msra.mxu0 %v839
    %1704 = vmatprep.subr.mxu0 0.0
    %1705 = vmatpush1.msra.mxu0 0.0
    %1706 = vmatprep.subr.mxu0 0.0
    %1707 = vmatpush1.msra.mxu0 0.0
    %1708 = vmatprep.subr.mxu0 0.0
    %1709 = vmatpush1.msra.mxu0 0.0
    %1710 = vmatprep.subr.mxu0 0.0
    %1711 = vmatpush1.msra.mxu0 0.0
    %1712 = vmatprep.subr.mxu0 0.0
    %1713 = vmatpush1.msra.mxu0 0.0
    %1714 = vmatprep.subr.mxu0 0.0
    %1715 = vmatpush1.msra.mxu0 0.0
    %1716 = vmatprep.subr.mxu0 0.0
    %1717 = vmatpush1.msra.mxu0 0.0
    %1718 = vmatprep.subr.mxu0 0.0
    %1719 = vmatpush1.msra.mxu0 0.0
    %1720 = vmatprep.subr.mxu0 0.0
    %1721 = vmatpush1.msra.mxu0 0.0
    %1722 = vmatprep.subr.mxu0 0.0
    %1723 = vmatpush1.msra.mxu0 0.0
    %1724 = vmatprep.subr.mxu0 0.0
    %1725 = vmatpush1.msra.mxu0 0.0
    %1726 = vmatprep.subr.mxu0 0.0
    %1727 = vmatpush1.msra.mxu0 0.0
    %1728 = vmatprep.subr.mxu0 0.0
    %1729 = vmatpush1.msra.mxu0 0.0
    %1730 = vmatprep.subr.mxu0 0.0
    %1731 = vmatpush1.msra.mxu0 0.0
    %1732 = vmatprep.subr.mxu0 0.0
    %1733 = vmatpush1.msra.mxu0 0.0
    %1734 = vmatprep.subr.mxu0 0.0
    %1735 = vmatpush1.msra.mxu0 0.0
    %1736 = vmatprep.subr.mxu0 0.0
    %1737 = vmatpush1.msra.mxu0 0.0
    %1738 = vmatprep.subr.mxu0 0.0
    %1739 = vmatpush1.msra.mxu0 0.0
    %1740 = vmatprep.subr.mxu0 0.0
    %1741 = vmatpush1.msra.mxu0 0.0
    %1742 = vmatprep.subr.mxu0 0.0
    %1743 = vmatpush1.msra.mxu0 0.0
    %1744 = vmatprep.subr.mxu0 0.0
    %1745 = vmatpush1.msra.mxu0 0.0
    %1746 = vmatprep.subr.mxu0 0.0
    %1747 = vmatpush1.msra.mxu0 0.0
    %1748 = vmatprep.subr.mxu0 0.0
    %1749 = vmatpush1.msra.mxu0 0.0
    %1750 = vmatprep.subr.mxu0 0.0
    %1751 = vmatpush1.msra.mxu0 0.0
    %1752 = vmatprep.subr.mxu0 0.0
    %1753 = vmatpush1.msra.mxu0 0.0
    %1754 = vmatprep.subr.mxu0 0.0
    %1755 = vmatpush1.msra.mxu0 0.0
    %1756 = vmatprep.subr.mxu0 0.0
    %1757 = vmatpush1.msra.mxu0 0.0
    %1758 = vmatprep.subr.mxu0 0.0
    %1759 = vmatpush1.msra.mxu0 0.0
    %1760 = vmatprep.subr.mxu0 0.0
    %1761 = vmatpush1.msra.mxu0 0.0
    %1762 = vmatprep.subr.mxu0 0.0
    %1763 = vmatpush1.msra.mxu0 0.0
    %1764 = vmatprep.subr.mxu0 0.0
    %1765 = vmatpush1.msra.mxu0 0.0
    %1766 = vmatprep.mubr.f32.mxu0 0.0
    %1767 = vmatmul.mubr.f32.gmra.mrb[0].mxu0 %v1694
    %v1768 = vpop.f32.mrb[0].mxu0
    %v1769 = vadd.f32 %v1680, %v1768
    %v1770 = vpop.f32.mrb[0].mxu0
    %1771 = vmatprep.mubr.f32.mxu0 0.0
    %1772 = vmatmul.mubr.f32.gmra.mrb[0].mxu0 %v1697
    %v1773 = vpop.f32.mrb[0].mxu0
    %v1774 = vadd.f32 %v1685, %v1773
    %v1775 = vpop.f32.mrb[0].mxu0
    %1776 = vmatprep.mubr.f32.mxu0 0.0
    %1777 = vmatmul.mubr.f32.gmra.mrb[0].mxu0 %v1700
    %v1778 = vpop.f32.mrb[0].mxu0
    %v1779 = vadd.f32 %v1690, %v1778
    %v1780 = vpop.f32.mrb[0].mxu0
    %1781 = vdwg.mxu0
    %s1782 = scalar_lea.vmem %s1, 64
    %v1783 = vld [vmem:[%s1782] sm:$0xff]
    %v1784 = vld [vmem:[%s1782 + $0x8] sm:$0xff]
    %v1785 = vld [vmem:[%s1782 + $0x10] sm:$0xff]
    %v1786 = vld [vmem:[%s1782 + $0x18] sm:$0xff]
    %s1787 = scalar_lea.vmem %s4, 2
    %v1788 = vld [vmem:[%s1787] sm:$0x1]
    %v1790 = vlaneseq
    %v1791 = vshrl.u32 %v1790, 7
    %v1792 = vsub.s32 0, %v1791
    %v1793 = vrot.slane %v1788, %v1792
    %1795 = vmatprep.subr.mxu0 0.0
    %1796 = vmatpush1.msra.mxu0 %v1783
    %1797 = vmatprep.subr.mxu0 0.0
    %1798 = vmatpush1.msra.mxu0 %v1784
    %1799 = vmatprep.subr.mxu0 0.0
    %1800 = vmatpush1.msra.mxu0 %v1785
    %1801 = vmatprep.subr.mxu0 0.0
    %1802 = vmatpush1.msra.mxu0 %v1786
    %1803 = vmatprep.subr.mxu0 0.0
    %1804 = vmatpush1.msra.mxu0 0.0
    %1805 = vmatprep.subr.mxu0 0.0
    %1806 = vmatpush1.msra.mxu0 0.0
    %1807 = vmatprep.subr.mxu0 0.0
    %1808 = vmatpush1.msra.mxu0 0.0
    %1809 = vmatprep.subr.mxu0 0.0
    %1810 = vmatpush1.msra.mxu0 0.0
    %1811 = vmatprep.subr.mxu0 0.0
    %1812 = vmatpush1.msra.mxu0 0.0
    %1813 = vmatprep.subr.mxu0 0.0
    %1814 = vmatpush1.msra.mxu0 0.0
    %1815 = vmatprep.subr.mxu0 0.0
    %1816 = vmatpush1.msra.mxu0 0.0
    %1817 = vmatprep.subr.mxu0 0.0
    %1818 = vmatpush1.msra.mxu0 0.0
    %1819 = vmatprep.subr.mxu0 0.0
    %1820 = vmatpush1.msra.mxu0 0.0
    %1821 = vmatprep.subr.mxu0 0.0
    %1822 = vmatpush1.msra.mxu0 0.0
    %1823 = vmatprep.subr.mxu0 0.0
    %1824 = vmatpush1.msra.mxu0 0.0
    %1825 = vmatprep.subr.mxu0 0.0
    %1826 = vmatpush1.msra.mxu0 0.0
    %1827 = vmatprep.subr.mxu0 0.0
    %1828 = vmatpush1.msra.mxu0 0.0
    %1829 = vmatprep.subr.mxu0 0.0
    %1830 = vmatpush1.msra.mxu0 0.0
    %1831 = vmatprep.subr.mxu0 0.0
    %1832 = vmatpush1.msra.mxu0 0.0
    %1833 = vmatprep.subr.mxu0 0.0
    %1834 = vmatpush1.msra.mxu0 0.0
    %1835 = vmatprep.subr.mxu0 0.0
    %1836 = vmatpush1.msra.mxu0 0.0
    %1837 = vmatprep.subr.mxu0 0.0
    %1838 = vmatpush1.msra.mxu0 0.0
    %1839 = vmatprep.subr.mxu0 0.0
    %1840 = vmatpush1.msra.mxu0 0.0
    %1841 = vmatprep.subr.mxu0 0.0
    %1842 = vmatpush1.msra.mxu0 0.0
    %1843 = vmatprep.subr.mxu0 0.0
    %1844 = vmatpush1.msra.mxu0 0.0
    %1845 = vmatprep.subr.mxu0 0.0
    %1846 = vmatpush1.msra.mxu0 0.0
    %1847 = vmatprep.subr.mxu0 0.0
    %1848 = vmatpush1.msra.mxu0 0.0
    %1849 = vmatprep.subr.mxu0 0.0
    %1850 = vmatpush1.msra.mxu0 0.0
    %1851 = vmatprep.subr.mxu0 0.0
    %1852 = vmatpush1.msra.mxu0 0.0
    %1853 = vmatprep.subr.mxu0 0.0
    %1854 = vmatpush1.msra.mxu0 0.0
    %1855 = vmatprep.subr.mxu0 0.0
    %1856 = vmatpush1.msra.mxu0 0.0
    %1857 = vmatprep.subr.mxu0 0.0
    %1858 = vmatpush1.msra.mxu0 0.0
    %1859 = vmatprep.mubr.f32.mxu0 0.0
    %1860 = vmatmul.mubr.f32.gmra.mrb[0].mxu0 %v85
    %v1861 = vpop.f32.mrb[0].mxu0
    %v1862 = vadd.f32 %v1793, %v1861
    %v1863 = vpop.f32.mrb[0].mxu0
    %1864 = vmatprep.mubr.f32.mxu0 0.0
    %1865 = vmatmul.mubr.f32.gmra.mrb[0].mxu0 %v88
    %v1866 = vpop.f32.mrb[0].mxu0
    %v1867 = vadd.f32 %v1793, %v1866
    %v1868 = vpop.f32.mrb[0].mxu0
    %1869 = vmatprep.mubr.f32.mxu0 0.0
    %1870 = vmatmul.mubr.f32.gmra.mrb[0].mxu0 %v91
    %v1871 = vpop.f32.mrb[0].mxu0
    %v1872 = vadd.f32 %v1793, %v1871
    %v1873 = vpop.f32.mrb[0].mxu0
    %1874 = vdwg.mxu0
    %s1875 = scalar_lea.vmem %s2, 64
    %v1876 = vld [vmem:[%s1875] sm:$0xff]
    %v1877 = vld [vmem:[%s1875 + $0x8] sm:$0xff]
    %v1878 = vld [vmem:[%s1875 + $0x10] sm:$0xff]
    %v1879 = vld [vmem:[%s1875 + $0x18] sm:$0xff]
    %s1880 = scalar_lea.vmem %s5, 2
    %v1881 = vld [vmem:[%s1880] sm:$0x1]
    %v1883 = vlaneseq
    %v1884 = vshrl.u32 %v1883, 7
    %v1885 = vsub.s32 0, %v1884
    %v1886 = vrot.slane %v1881, %v1885
    %1888 = vmatprep.subr.mxu0 0.0
    %1889 = vmatpush1.msra.mxu0 %v1876
    %1890 = vmatprep.subr.mxu0 0.0
    %1891 = vmatpush1.msra.mxu0 %v1877
    %1892 = vmatprep.subr.mxu0 0.0
    %1893 = vmatpush1.msra.mxu0 %v1878
    %1894 = vmatprep.subr.mxu0 0.0
    %1895 = vmatpush1.msra.mxu0 %v1879
    %1896 = vmatprep.subr.mxu0 0.0
    %1897 = vmatpush1.msra.mxu0 0.0
    %1898 = vmatprep.subr.mxu0 0.0
    %1899 = vmatpush1.msra.mxu0 0.0
    %1900 = vmatprep.subr.mxu0 0.0
    %1901 = vmatpush1.msra.mxu0 0.0
    %1902 = vmatprep.subr.mxu0 0.0
    %1903 = vmatpush1.msra.mxu0 0.0
    %1904 = vmatprep.subr.mxu0 0.0
    %1905 = vmatpush1.msra.mxu0 0.0
    %1906 = vmatprep.subr.mxu0 0.0
    %1907 = vmatpush1.msra.mxu0 0.0
    %1908 = vmatprep.subr.mxu0 0.0
    %1909 = vmatpush1.msra.mxu0 0.0
    %1910 = vmatprep.subr.mxu0 0.0
    %1911 = vmatpush1.msra.mxu0 0.0
    %1912 = vmatprep.subr.mxu0 0.0
    %1913 = vmatpush1.msra.mxu0 0.0
    %1914 = vmatprep.subr.mxu0 0.0
    %1915 = vmatpush1.msra.mxu0 0.0
    %1916 = vmatprep.subr.mxu0 0.0
    %1917 = vmatpush1.msra.mxu0 0.0
    %1918 = vmatprep.subr.mxu0 0.0
    %1919 = vmatpush1.msra.mxu0 0.0
    %1920 = vmatprep.subr.mxu0 0.0
    %1921 = vmatpush1.msra.mxu0 0.0
    %1922 = vmatprep.subr.mxu0 0.0
    %1923 = vmatpush1.msra.mxu0 0.0
    %1924 = vmatprep.subr.mxu0 0.0
    %1925 = vmatpush1.msra.mxu0 0.0
    %1926 = vmatprep.subr.mxu0 0.0
    %1927 = vmatpush1.msra.mxu0 0.0
    %1928 = vmatprep.subr.mxu0 0.0
    %1929 = vmatpush1.msra.mxu0 0.0
    %1930 = vmatprep.subr.mxu0 0.0
    %1931 = vmatpush1.msra.mxu0 0.0
    %1932 = vmatprep.subr.mxu0 0.0
    %1933 = vmatpush1.msra.mxu0 0.0
    %1934 = vmatprep.subr.mxu0 0.0
    %1935 = vmatpush1.msra.mxu0 0.0
    %1936 = vmatprep.subr.mxu0 0.0
    %1937 = vmatpush1.msra.mxu0 0.0
    %1938 = vmatprep.subr.mxu0 0.0
    %1939 = vmatpush1.msra.mxu0 0.0
    %1940 = vmatprep.subr.mxu0 0.0
    %1941 = vmatpush1.msra.mxu0 0.0
    %1942 = vmatprep.subr.mxu0 0.0
    %1943 = vmatpush1.msra.mxu0 0.0
    %1944 = vmatprep.subr.mxu0 0.0
    %1945 = vmatpush1.msra.mxu0 0.0
    %1946 = vmatprep.subr.mxu0 0.0
    %1947 = vmatpush1.msra.mxu0 0.0
    %1948 = vmatprep.subr.mxu0 0.0
    %1949 = vmatpush1.msra.mxu0 0.0
    %1950 = vmatprep.subr.mxu0 0.0
    %1951 = vmatpush1.msra.mxu0 0.0
    %1952 = vmatprep.mubr.f32.mxu0 0.0
    %1953 = vmatmul.mubr.f32.gmra.mrb[0].mxu0 %v85
    %v1954 = vpop.f32.mrb[0].mxu0
    %v1955 = vadd.f32 %v1886, %v1954
    %v1956 = vpop.f32.mrb[0].mxu0
    %1957 = vmatprep.mubr.f32.mxu0 0.0
    %1958 = vmatmul.mubr.f32.gmra.mrb[0].mxu0 %v88
    %v1959 = vpop.f32.mrb[0].mxu0
    %v1960 = vadd.f32 %v1886, %v1959
    %v1961 = vpop.f32.mrb[0].mxu0
    %1962 = vmatprep.mubr.f32.mxu0 0.0
    %1963 = vmatmul.mubr.f32.gmra.mrb[0].mxu0 %v91
    %v1964 = vpop.f32.mrb[0].mxu0
    %v1965 = vadd.f32 %v1886, %v1964
    %v1966 = vpop.f32.mrb[0].mxu0
    %1967 = vdwg.mxu0
    %s1968 = scalar_lea.vmem %s3, 64
    %v1969 = vld [vmem:[%s1968] sm:$0xff]
    %v1970 = vld [vmem:[%s1968 + $0x8] sm:$0xff]
    %v1971 = vld [vmem:[%s1968 + $0x10] sm:$0xff]
    %v1972 = vld [vmem:[%s1968 + $0x18] sm:$0xff]
    %s1973 = scalar_lea.vmem %s6, 2
    %v1974 = vld [vmem:[%s1973] sm:$0x1]
    %v1976 = vlaneseq
    %v1977 = vshrl.u32 %v1976, 7
    %v1978 = vsub.s32 0, %v1977
    %v1979 = vrot.slane %v1974, %v1978
    %1981 = vmatprep.subr.mxu0 0.0
    %1982 = vmatpush1.msra.mxu0 %v1969
    %1983 = vmatprep.subr.mxu0 0.0
    %1984 = vmatpush1.msra.mxu0 %v1970
    %1985 = vmatprep.subr.mxu0 0.0
    %1986 = vmatpush1.msra.mxu0 %v1971
    %1987 = vmatprep.subr.mxu0 0.0
    %1988 = vmatpush1.msra.mxu0 %v1972
    %1989 = vmatprep.subr.mxu0 0.0
    %1990 = vmatpush1.msra.mxu0 0.0
    %1991 = vmatprep.subr.mxu0 0.0
    %1992 = vmatpush1.msra.mxu0 0.0
    %1993 = vmatprep.subr.mxu0 0.0
    %1994 = vmatpush1.msra.mxu0 0.0
    %1995 = vmatprep.subr.mxu0 0.0
    %1996 = vmatpush1.msra.mxu0 0.0
    %1997 = vmatprep.subr.mxu0 0.0
    %1998 = vmatpush1.msra.mxu0 0.0
    %1999 = vmatprep.subr.mxu0 0.0
    %2000 = vmatpush1.msra.mxu0 0.0
    %2001 = vmatprep.subr.mxu0 0.0
    %2002 = vmatpush1.msra.mxu0 0.0
    %2003 = vmatprep.subr.mxu0 0.0
    %2004 = vmatpush1.msra.mxu0 0.0
    %2005 = vmatprep.subr.mxu0 0.0
    %2006 = vmatpush1.msra.mxu0 0.0
    %2007 = vmatprep.subr.mxu0 0.0
    %2008 = vmatpush1.msra.mxu0 0.0
    %2009 = vmatprep.subr.mxu0 0.0
    %2010 = vmatpush1.msra.mxu0 0.0
    %2011 = vmatprep.subr.mxu0 0.0
    %2012 = vmatpush1.msra.mxu0 0.0
    %2013 = vmatprep.subr.mxu0 0.0
    %2014 = vmatpush1.msra.mxu0 0.0
    %2015 = vmatprep.subr.mxu0 0.0
    %2016 = vmatpush1.msra.mxu0 0.0
    %2017 = vmatprep.subr.mxu0 0.0
    %2018 = vmatpush1.msra.mxu0 0.0
    %2019 = vmatprep.subr.mxu0 0.0
    %2020 = vmatpush1.msra.mxu0 0.0
    %2021 = vmatprep.subr.mxu0 0.0
    %2022 = vmatpush1.msra.mxu0 0.0
    %2023 = vmatprep.subr.mxu0 0.0
    %2024 = vmatpush1.msra.mxu0 0.0
    %2025 = vmatprep.subr.mxu0 0.0
    %2026 = vmatpush1.msra.mxu0 0.0
    %2027 = vmatprep.subr.mxu0 0.0
    %2028 = vmatpush1.msra.mxu0 0.0
    %2029 = vmatprep.subr.mxu0 0.0
    %2030 = vmatpush1.msra.mxu0 0.0
    %2031 = vmatprep.subr.mxu0 0.0
    %2032 = vmatpush1.msra.mxu0 0.0
    %2033 = vmatprep.subr.mxu0 0.0
    %2034 = vmatpush1.msra.mxu0 0.0
    %2035 = vmatprep.subr.mxu0 0.0
    %2036 = vmatpush1.msra.mxu0 0.0
    %2037 = vmatprep.subr.mxu0 0.0
    %2038 = vmatpush1.msra.mxu0 0.0
    %2039 = vmatprep.subr.mxu0 0.0
    %2040 = vmatpush1.msra.mxu0 0.0
    %2041 = vmatprep.subr.mxu0 0.0
    %2042 = vmatpush1.msra.mxu0 0.0
    %2043 = vmatprep.subr.mxu0 0.0
    %2044 = vmatpush1.msra.mxu0 0.0
    %2045 = vmatprep.mubr.f32.mxu0 0.0
    %2046 = vmatmul.mubr.f32.gmra.mrb[0].mxu0 %v85
    %v2047 = vpop.f32.mrb[0].mxu0
    %v2048 = vadd.f32 %v1979, %v2047
    %v2049 = vpop.f32.mrb[0].mxu0
    %2050 = vmatprep.mubr.f32.mxu0 0.0
    %2051 = vmatmul.mubr.f32.gmra.mrb[0].mxu0 %v88
    %v2052 = vpop.f32.mrb[0].mxu0
    %v2053 = vadd.f32 %v1979, %v2052
    %v2054 = vpop.f32.mrb[0].mxu0
    %2055 = vmatprep.mubr.f32.mxu0 0.0
    %2056 = vmatmul.mubr.f32.gmra.mrb[0].mxu0 %v91
    %v2057 = vpop.f32.mrb[0].mxu0
    %v2058 = vadd.f32 %v1979, %v2057
    %v2059 = vpop.f32.mrb[0].mxu0
    %2060 = vdwg.mxu0
    %v2062 = vsel %vm355, %v1862, 0
    %v2065 = vsel %vm355, %v1955, 0
    %2067 = vmatprep.subr.mxu0 0.0
    %2068 = vmatpush1.xpose.msra.mxu0 %v2065
    %2069 = vmatprep.subr.mxu0 0.0
    %2070 = vmatpush1.xpose.msra.mxu0 0.0
    %2071 = vmatprep.subr.mxu0 0.0
    %2072 = vmatpush1.xpose.msra.mxu0 0.0
    %2073 = vmatprep.subr.mxu0 0.0
    %2074 = vmatpush1.xpose.msra.mxu0 0.0
    %2075 = vmatprep.subr.mxu0 0.0
    %2076 = vmatpush1.xpose.msra.mxu0 0.0
    %2077 = vmatprep.subr.mxu0 0.0
    %2078 = vmatpush1.xpose.msra.mxu0 0.0
    %2079 = vmatprep.subr.mxu0 0.0
    %2080 = vmatpush1.xpose.msra.mxu0 0.0
    %2081 = vmatprep.subr.mxu0 0.0
    %2082 = vmatpush1.xpose.msra.mxu0 0.0
    %2083 = vmatprep.subr.mxu0 0.0
    %2084 = vmatpush1.xpose.msra.mxu0 0.0
    %2085 = vmatprep.subr.mxu0 0.0
    %2086 = vmatpush1.xpose.msra.mxu0 0.0
    %2087 = vmatprep.subr.mxu0 0.0
    %2088 = vmatpush1.xpose.msra.mxu0 0.0
    %2089 = vmatprep.subr.mxu0 0.0
    %2090 = vmatpush1.xpose.msra.mxu0 0.0
    %2091 = vmatprep.subr.mxu0 0.0
    %2092 = vmatpush1.xpose.msra.mxu0 0.0
    %2093 = vmatprep.subr.mxu0 0.0
    %2094 = vmatpush1.xpose.msra.mxu0 0.0
    %2095 = vmatprep.subr.mxu0 0.0
    %2096 = vmatpush1.xpose.msra.mxu0 0.0
    %2097 = vmatprep.subr.mxu0 0.0
    %2098 = vmatpush1.xpose.msra.mxu0 0.0
    %2099 = vmatprep.subr.mxu0 0.0
    %2100 = vmatpush1.xpose.msra.mxu0 0.0
    %2101 = vmatprep.subr.mxu0 0.0
    %2102 = vmatpush1.xpose.msra.mxu0 0.0
    %2103 = vmatprep.subr.mxu0 0.0
    %2104 = vmatpush1.xpose.msra.mxu0 0.0
    %2105 = vmatprep.subr.mxu0 0.0
    %2106 = vmatpush1.xpose.msra.mxu0 0.0
    %2107 = vmatprep.subr.mxu0 0.0
    %2108 = vmatpush1.xpose.msra.mxu0 0.0
    %2109 = vmatprep.subr.mxu0 0.0
    %2110 = vmatpush1.xpose.msra.mxu0 0.0
    %2111 = vmatprep.subr.mxu0 0.0
    %2112 = vmatpush1.xpose.msra.mxu0 0.0
    %2113 = vmatprep.subr.mxu0 0.0
    %2114 = vmatpush1.xpose.msra.mxu0 0.0
    %2115 = vmatprep.subr.mxu0 0.0
    %2116 = vmatpush1.xpose.msra.mxu0 0.0
    %2117 = vmatprep.subr.mxu0 0.0
    %2118 = vmatpush1.xpose.msra.mxu0 0.0
    %2119 = vmatprep.subr.mxu0 0.0
    %2120 = vmatpush1.xpose.msra.mxu0 0.0
    %2121 = vmatprep.subr.mxu0 0.0
    %2122 = vmatpush1.xpose.msra.mxu0 0.0
    %2123 = vmatprep.subr.mxu0 0.0
    %2124 = vmatpush1.xpose.msra.mxu0 0.0
    %2125 = vmatprep.subr.mxu0 0.0
    %2126 = vmatpush1.xpose.msra.mxu0 0.0
    %2127 = vmatprep.subr.mxu0 0.0
    %2128 = vmatpush1.xpose.msra.mxu0 0.0
    %2129 = vmatprep.subr.mxu0 0.0
    %2130 = vmatpush1.xpose.msra.mxu0 0.0
    %2131 = vmatprep.mubr.f32.mxu0 0.0
    %2132 = vmatmul.mubr.f32.gmra.mrb[0].mxu0 %v2062
    %v2133 = vpop.f32.mrb[0].mxu0
    %v2134 = vadd.f32 0.0, %v2133
    %v2135 = vpop.f32.mrb[0].mxu0
    %2136 = vdwg.mxu0
    %v2138 = vsel %vm355, %v1867, 0
    %v2141 = vsel %vm355, %v1960, 0
    %2143 = vmatprep.subr.mxu0 0.0
    %2144 = vmatpush1.xpose.msra.mxu0 %v2141
    %2145 = vmatprep.subr.mxu0 0.0
    %2146 = vmatpush1.xpose.msra.mxu0 0.0
    %2147 = vmatprep.subr.mxu0 0.0
    %2148 = vmatpush1.xpose.msra.mxu0 0.0
    %2149 = vmatprep.subr.mxu0 0.0
    %2150 = vmatpush1.xpose.msra.mxu0 0.0
    %2151 = vmatprep.subr.mxu0 0.0
    %2152 = vmatpush1.xpose.msra.mxu0 0.0
    %2153 = vmatprep.subr.mxu0 0.0
    %2154 = vmatpush1.xpose.msra.mxu0 0.0
    %2155 = vmatprep.subr.mxu0 0.0
    %2156 = vmatpush1.xpose.msra.mxu0 0.0
    %2157 = vmatprep.subr.mxu0 0.0
    %2158 = vmatpush1.xpose.msra.mxu0 0.0
    %2159 = vmatprep.subr.mxu0 0.0
    %2160 = vmatpush1.xpose.msra.mxu0 0.0
    %2161 = vmatprep.subr.mxu0 0.0
    %2162 = vmatpush1.xpose.msra.mxu0 0.0
    %2163 = vmatprep.subr.mxu0 0.0
    %2164 = vmatpush1.xpose.msra.mxu0 0.0
    %2165 = vmatprep.subr.mxu0 0.0
    %2166 = vmatpush1.xpose.msra.mxu0 0.0
    %2167 = vmatprep.subr.mxu0 0.0
    %2168 = vmatpush1.xpose.msra.mxu0 0.0
    %2169 = vmatprep.subr.mxu0 0.0
    %2170 = vmatpush1.xpose.msra.mxu0 0.0
    %2171 = vmatprep.subr.mxu0 0.0
    %2172 = vmatpush1.xpose.msra.mxu0 0.0
    %2173 = vmatprep.subr.mxu0 0.0
    %2174 = vmatpush1.xpose.msra.mxu0 0.0
    %2175 = vmatprep.subr.mxu0 0.0
    %2176 = vmatpush1.xpose.msra.mxu0 0.0
    %2177 = vmatprep.subr.mxu0 0.0
    %2178 = vmatpush1.xpose.msra.mxu0 0.0
    %2179 = vmatprep.subr.mxu0 0.0
    %2180 = vmatpush1.xpose.msra.mxu0 0.0
    %2181 = vmatprep.subr.mxu0 0.0
    %2182 = vmatpush1.xpose.msra.mxu0 0.0
    %2183 = vmatprep.subr.mxu0 0.0
    %2184 = vmatpush1.xpose.msra.mxu0 0.0
    %2185 = vmatprep.subr.mxu0 0.0
    %2186 = vmatpush1.xpose.msra.mxu0 0.0
    %2187 = vmatprep.subr.mxu0 0.0
    %2188 = vmatpush1.xpose.msra.mxu0 0.0
    %2189 = vmatprep.subr.mxu0 0.0
    %2190 = vmatpush1.xpose.msra.mxu0 0.0
    %2191 = vmatprep.subr.mxu0 0.0
    %2192 = vmatpush1.xpose.msra.mxu0 0.0
    %2193 = vmatprep.subr.mxu0 0.0
    %2194 = vmatpush1.xpose.msra.mxu0 0.0
    %2195 = vmatprep.subr.mxu0 0.0
    %2196 = vmatpush1.xpose.msra.mxu0 0.0
    %2197 = vmatprep.subr.mxu0 0.0
    %2198 = vmatpush1.xpose.msra.mxu0 0.0
    %2199 = vmatprep.subr.mxu0 0.0
    %2200 = vmatpush1.xpose.msra.mxu0 0.0
    %2201 = vmatprep.subr.mxu0 0.0
    %2202 = vmatpush1.xpose.msra.mxu0 0.0
    %2203 = vmatprep.subr.mxu0 0.0
    %2204 = vmatpush1.xpose.msra.mxu0 0.0
    %2205 = vmatprep.subr.mxu0 0.0
    %2206 = vmatpush1.xpose.msra.mxu0 0.0
    %2207 = vmatprep.mubr.f32.mxu0 0.0
    %2208 = vmatmul.mubr.f32.gmra.mrb[0].mxu0 %v2138
    %v2209 = vpop.f32.mrb[0].mxu0
    %v2210 = vadd.f32 0.0, %v2209
    %v2211 = vpop.f32.mrb[0].mxu0
    %2212 = vdwg.mxu0
    %v2214 = vsel %vm355, %v1872, 0
    %v2217 = vsel %vm355, %v1965, 0
    %2219 = vmatprep.subr.mxu0 0.0
    %2220 = vmatpush1.xpose.msra.mxu0 %v2217
    %2221 = vmatprep.subr.mxu0 0.0
    %2222 = vmatpush1.xpose.msra.mxu0 0.0
    %2223 = vmatprep.subr.mxu0 0.0
    %2224 = vmatpush1.xpose.msra.mxu0 0.0
    %2225 = vmatprep.subr.mxu0 0.0
    %2226 = vmatpush1.xpose.msra.mxu0 0.0
    %2227 = vmatprep.subr.mxu0 0.0
    %2228 = vmatpush1.xpose.msra.mxu0 0.0
    %2229 = vmatprep.subr.mxu0 0.0
    %2230 = vmatpush1.xpose.msra.mxu0 0.0
    %2231 = vmatprep.subr.mxu0 0.0
    %2232 = vmatpush1.xpose.msra.mxu0 0.0
    %2233 = vmatprep.subr.mxu0 0.0
    %2234 = vmatpush1.xpose.msra.mxu0 0.0
    %2235 = vmatprep.subr.mxu0 0.0
    %2236 = vmatpush1.xpose.msra.mxu0 0.0
    %2237 = vmatprep.subr.mxu0 0.0
    %2238 = vmatpush1.xpose.msra.mxu0 0.0
    %2239 = vmatprep.subr.mxu0 0.0
    %2240 = vmatpush1.xpose.msra.mxu0 0.0
    %2241 = vmatprep.subr.mxu0 0.0
    %2242 = vmatpush1.xpose.msra.mxu0 0.0
    %2243 = vmatprep.subr.mxu0 0.0
    %2244 = vmatpush1.xpose.msra.mxu0 0.0
    %2245 = vmatprep.subr.mxu0 0.0
    %2246 = vmatpush1.xpose.msra.mxu0 0.0
    %2247 = vmatprep.subr.mxu0 0.0
    %2248 = vmatpush1.xpose.msra.mxu0 0.0
    %2249 = vmatprep.subr.mxu0 0.0
    %2250 = vmatpush1.xpose.msra.mxu0 0.0
    %2251 = vmatprep.subr.mxu0 0.0
    %2252 = vmatpush1.xpose.msra.mxu0 0.0
    %2253 = vmatprep.subr.mxu0 0.0
    %2254 = vmatpush1.xpose.msra.mxu0 0.0
    %2255 = vmatprep.subr.mxu0 0.0
    %2256 = vmatpush1.xpose.msra.mxu0 0.0
    %2257 = vmatprep.subr.mxu0 0.0
    %2258 = vmatpush1.xpose.msra.mxu0 0.0
    %2259 = vmatprep.subr.mxu0 0.0
    %2260 = vmatpush1.xpose.msra.mxu0 0.0
    %2261 = vmatprep.subr.mxu0 0.0
    %2262 = vmatpush1.xpose.msra.mxu0 0.0
    %2263 = vmatprep.subr.mxu0 0.0
    %2264 = vmatpush1.xpose.msra.mxu0 0.0
    %2265 = vmatprep.subr.mxu0 0.0
    %2266 = vmatpush1.xpose.msra.mxu0 0.0
    %2267 = vmatprep.subr.mxu0 0.0
    %2268 = vmatpush1.xpose.msra.mxu0 0.0
    %2269 = vmatprep.subr.mxu0 0.0
    %2270 = vmatpush1.xpose.msra.mxu0 0.0
    %2271 = vmatprep.subr.mxu0 0.0
    %2272 = vmatpush1.xpose.msra.mxu0 0.0
    %2273 = vmatprep.subr.mxu0 0.0
    %2274 = vmatpush1.xpose.msra.mxu0 0.0
    %2275 = vmatprep.subr.mxu0 0.0
    %2276 = vmatpush1.xpose.msra.mxu0 0.0
    %2277 = vmatprep.subr.mxu0 0.0
    %2278 = vmatpush1.xpose.msra.mxu0 0.0
    %2279 = vmatprep.subr.mxu0 0.0
    %2280 = vmatpush1.xpose.msra.mxu0 0.0
    %2281 = vmatprep.subr.mxu0 0.0
    %2282 = vmatpush1.xpose.msra.mxu0 0.0
    %2283 = vmatprep.mubr.f32.mxu0 0.0
    %2284 = vmatmul.mubr.f32.gmra.mrb[0].mxu0 %v2214
    %v2285 = vpop.f32.mrb[0].mxu0
    %v2286 = vadd.f32 0.0, %v2285
    %v2287 = vpop.f32.mrb[0].mxu0
    %2288 = vdwg.mxu0
    %v2289 = vmul.f32 %v2134, 0.35355338
    %v2290 = vmul.f32 %v2210, 0.35355338
    %v2291 = vmul.f32 %v2286, 0.35355338
    %v2292 = vsel %vm355, %v2289, -inf
    %2293 = vmax.xlane.f32.xlu0 %v2292
    %v2294 = vpop.xlane.xlu0 %2293
    %v2295 = vsel %vm355, %v2290, -inf
    %2296 = vmax.xlane.f32.xlu0 %v2295
    %v2297 = vpop.xlane.xlu0 %2296
    %v2298 = vsel %vm355, %v2291, -inf
    %2299 = vmax.xlane.f32.xlu0 %v2298
    %v2300 = vpop.xlane.xlu0 %2299
    %v2301 = vsub.f32 %v2289, %v2294
    %v2302 = vsub.f32 %v2290, %v2297
    %v2303 = vsub.f32 %v2291, %v2300
    %v2304 = vmul.f32 %v2301, 1.442695
    %v2305 = vpow.pop %v2304
    %v2306 = vmul.f32 %v2302, 1.442695
    %v2307 = vpow.pop %v2306
    %v2308 = vmul.f32 %v2303, 1.442695
    %v2309 = vpow.pop %v2308
    %v2310 = vsel %vm355, %v2305, 0.0
    %2311 = vadd.xlane.f32.xlu0 %v2310
    %v2312 = vpop.xlane.xlu0 %2311
    %v2313 = vsel %vm355, %v2307, 0.0
    %2314 = vadd.xlane.f32.xlu0 %v2313
    %v2315 = vpop.xlane.xlu0 %2314
    %v2316 = vsel %vm355, %v2309, 0.0
    %2317 = vadd.xlane.f32.xlu0 %v2316
    %v2318 = vpop.xlane.xlu0 %2317
    %v2319 = vrcp.pop %v2312
    %v2320 = vmul.f32 %v2305, %v2319
    %v2321 = vrcp.pop %v2315
    %v2322 = vmul.f32 %v2307, %v2321
    %v2323 = vrcp.pop %v2318
    %v2324 = vmul.f32 %v2309, %v2323
    %v2326 = vsel %vm355, %v2320, 0
    %2328 = vmatprep.subr.mxu0 0.0
    %2329 = vmatpush1.msra.mxu0 %v2048
    %2330 = vmatprep.subr.mxu0 0.0
    %2331 = vmatpush1.msra.mxu0 0.0
    %2332 = vmatprep.subr.mxu0 0.0
    %2333 = vmatpush1.msra.mxu0 0.0
    %2334 = vmatprep.subr.mxu0 0.0
    %2335 = vmatpush1.msra.mxu0 0.0
    %2336 = vmatprep.subr.mxu0 0.0
    %2337 = vmatpush1.msra.mxu0 0.0
    %2338 = vmatprep.subr.mxu0 0.0
    %2339 = vmatpush1.msra.mxu0 0.0
    %2340 = vmatprep.subr.mxu0 0.0
    %2341 = vmatpush1.msra.mxu0 0.0
    %2342 = vmatprep.subr.mxu0 0.0
    %2343 = vmatpush1.msra.mxu0 0.0
    %2344 = vmatprep.subr.mxu0 0.0
    %2345 = vmatpush1.msra.mxu0 0.0
    %2346 = vmatprep.subr.mxu0 0.0
    %2347 = vmatpush1.msra.mxu0 0.0
    %2348 = vmatprep.subr.mxu0 0.0
    %2349 = vmatpush1.msra.mxu0 0.0
    %2350 = vmatprep.subr.mxu0 0.0
    %2351 = vmatpush1.msra.mxu0 0.0
    %2352 = vmatprep.subr.mxu0 0.0
    %2353 = vmatpush1.msra.mxu0 0.0
    %2354 = vmatprep.subr.mxu0 0.0
    %2355 = vmatpush1.msra.mxu0 0.0
    %2356 = vmatprep.subr.mxu0 0.0
    %2357 = vmatpush1.msra.mxu0 0.0
    %2358 = vmatprep.subr.mxu0 0.0
    %2359 = vmatpush1.msra.mxu0 0.0
    %2360 = vmatprep.subr.mxu0 0.0
    %2361 = vmatpush1.msra.mxu0 0.0
    %2362 = vmatprep.subr.mxu0 0.0
    %2363 = vmatpush1.msra.mxu0 0.0
    %2364 = vmatprep.subr.mxu0 0.0
    %2365 = vmatpush1.msra.mxu0 0.0
    %2366 = vmatprep.subr.mxu0 0.0
    %2367 = vmatpush1.msra.mxu0 0.0
    %2368 = vmatprep.subr.mxu0 0.0
    %2369 = vmatpush1.msra.mxu0 0.0
    %2370 = vmatprep.subr.mxu0 0.0
    %2371 = vmatpush1.msra.mxu0 0.0
    %2372 = vmatprep.subr.mxu0 0.0
    %2373 = vmatpush1.msra.mxu0 0.0
    %2374 = vmatprep.subr.mxu0 0.0
    %2375 = vmatpush1.msra.mxu0 0.0
    %2376 = vmatprep.subr.mxu0 0.0
    %2377 = vmatpush1.msra.mxu0 0.0
    %2378 = vmatprep.subr.mxu0 0.0
    %2379 = vmatpush1.msra.mxu0 0.0
    %2380 = vmatprep.subr.mxu0 0.0
    %2381 = vmatpush1.msra.mxu0 0.0
    %2382 = vmatprep.subr.mxu0 0.0
    %2383 = vmatpush1.msra.mxu0 0.0
    %2384 = vmatprep.subr.mxu0 0.0
    %2385 = vmatpush1.msra.mxu0 0.0
    %2386 = vmatprep.subr.mxu0 0.0
    %2387 = vmatpush1.msra.mxu0 0.0
    %2388 = vmatprep.subr.mxu0 0.0
    %2389 = vmatpush1.msra.mxu0 0.0
    %2390 = vmatprep.subr.mxu0 0.0
    %2391 = vmatpush1.msra.mxu0 0.0
    %2392 = vmatprep.mubr.f32.mxu0 0.0
    %2393 = vmatmul.mubr.f32.gmra.mrb[0].mxu0 %v2326
    %v2394 = vpop.f32.mrb[0].mxu0
    %v2395 = vadd.f32 0.0, %v2394
    %v2396 = vpop.f32.mrb[0].mxu0
    %2397 = vdwg.mxu0
    %v2399 = vsel %vm355, %v2322, 0
    %2401 = vmatprep.subr.mxu0 0.0
    %2402 = vmatpush1.msra.mxu0 %v2053
    %2403 = vmatprep.subr.mxu0 0.0
    %2404 = vmatpush1.msra.mxu0 0.0
    %2405 = vmatprep.subr.mxu0 0.0
    %2406 = vmatpush1.msra.mxu0 0.0
    %2407 = vmatprep.subr.mxu0 0.0
    %2408 = vmatpush1.msra.mxu0 0.0
    %2409 = vmatprep.subr.mxu0 0.0
    %2410 = vmatpush1.msra.mxu0 0.0
    %2411 = vmatprep.subr.mxu0 0.0
    %2412 = vmatpush1.msra.mxu0 0.0
    %2413 = vmatprep.subr.mxu0 0.0
    %2414 = vmatpush1.msra.mxu0 0.0
    %2415 = vmatprep.subr.mxu0 0.0
    %2416 = vmatpush1.msra.mxu0 0.0
    %2417 = vmatprep.subr.mxu0 0.0
    %2418 = vmatpush1.msra.mxu0 0.0
    %2419 = vmatprep.subr.mxu0 0.0
    %2420 = vmatpush1.msra.mxu0 0.0
    %2421 = vmatprep.subr.mxu0 0.0
    %2422 = vmatpush1.msra.mxu0 0.0
    %2423 = vmatprep.subr.mxu0 0.0
    %2424 = vmatpush1.msra.mxu0 0.0
    %2425 = vmatprep.subr.mxu0 0.0
    %2426 = vmatpush1.msra.mxu0 0.0
    %2427 = vmatprep.subr.mxu0 0.0
    %2428 = vmatpush1.msra.mxu0 0.0
    %2429 = vmatprep.subr.mxu0 0.0
    %2430 = vmatpush1.msra.mxu0 0.0
    %2431 = vmatprep.subr.mxu0 0.0
    %2432 = vmatpush1.msra.mxu0 0.0
    %2433 = vmatprep.subr.mxu0 0.0
    %2434 = vmatpush1.msra.mxu0 0.0
    %2435 = vmatprep.subr.mxu0 0.0
    %2436 = vmatpush1.msra.mxu0 0.0
    %2437 = vmatprep.subr.mxu0 0.0
    %2438 = vmatpush1.msra.mxu0 0.0
    %2439 = vmatprep.subr.mxu0 0.0
    %2440 = vmatpush1.msra.mxu0 0.0
    %2441 = vmatprep.subr.mxu0 0.0
    %2442 = vmatpush1.msra.mxu0 0.0
    %2443 = vmatprep.subr.mxu0 0.0
    %2444 = vmatpush1.msra.mxu0 0.0
    %2445 = vmatprep.subr.mxu0 0.0
    %2446 = vmatpush1.msra.mxu0 0.0
    %2447 = vmatprep.subr.mxu0 0.0
    %2448 = vmatpush1.msra.mxu0 0.0
    %2449 = vmatprep.subr.mxu0 0.0
    %2450 = vmatpush1.msra.mxu0 0.0
    %2451 = vmatprep.subr.mxu0 0.0
    %2452 = vmatpush1.msra.mxu0 0.0
    %2453 = vmatprep.subr.mxu0 0.0
    %2454 = vmatpush1.msra.mxu0 0.0
    %2455 = vmatprep.subr.mxu0 0.0
    %2456 = vmatpush1.msra.mxu0 0.0
    %2457 = vmatprep.subr.mxu0 0.0
    %2458 = vmatpush1.msra.mxu0 0.0
    %2459 = vmatprep.subr.mxu0 0.0
    %2460 = vmatpush1.msra.mxu0 0.0
    %2461 = vmatprep.subr.mxu0 0.0
    %2462 = vmatpush1.msra.mxu0 0.0
    %2463 = vmatprep.subr.mxu0 0.0
    %2464 = vmatpush1.msra.mxu0 0.0
    %2465 = vmatprep.mubr.f32.mxu0 0.0
    %2466 = vmatmul.mubr.f32.gmra.mrb[0].mxu0 %v2399
    %v2467 = vpop.f32.mrb[0].mxu0
    %v2468 = vadd.f32 0.0, %v2467
    %v2469 = vpop.f32.mrb[0].mxu0
    %2470 = vdwg.mxu0
    %v2472 = vsel %vm355, %v2324, 0
    %2474 = vmatprep.subr.mxu0 0.0
    %2475 = vmatpush1.msra.mxu0 %v2058
    %2476 = vmatprep.subr.mxu0 0.0
    %2477 = vmatpush1.msra.mxu0 0.0
    %2478 = vmatprep.subr.mxu0 0.0
    %2479 = vmatpush1.msra.mxu0 0.0
    %2480 = vmatprep.subr.mxu0 0.0
    %2481 = vmatpush1.msra.mxu0 0.0
    %2482 = vmatprep.subr.mxu0 0.0
    %2483 = vmatpush1.msra.mxu0 0.0
    %2484 = vmatprep.subr.mxu0 0.0
    %2485 = vmatpush1.msra.mxu0 0.0
    %2486 = vmatprep.subr.mxu0 0.0
    %2487 = vmatpush1.msra.mxu0 0.0
    %2488 = vmatprep.subr.mxu0 0.0
    %2489 = vmatpush1.msra.mxu0 0.0
    %2490 = vmatprep.subr.mxu0 0.0
    %2491 = vmatpush1.msra.mxu0 0.0
    %2492 = vmatprep.subr.mxu0 0.0
    %2493 = vmatpush1.msra.mxu0 0.0
    %2494 = vmatprep.subr.mxu0 0.0
    %2495 = vmatpush1.msra.mxu0 0.0
    %2496 = vmatprep.subr.mxu0 0.0
    %2497 = vmatpush1.msra.mxu0 0.0
    %2498 = vmatprep.subr.mxu0 0.0
    %2499 = vmatpush1.msra.mxu0 0.0
    %2500 = vmatprep.subr.mxu0 0.0
    %2501 = vmatpush1.msra.mxu0 0.0
    %2502 = vmatprep.subr.mxu0 0.0
    %2503 = vmatpush1.msra.mxu0 0.0
    %2504 = vmatprep.subr.mxu0 0.0
    %2505 = vmatpush1.msra.mxu0 0.0
    %2506 = vmatprep.subr.mxu0 0.0
    %2507 = vmatpush1.msra.mxu0 0.0
    %2508 = vmatprep.subr.mxu0 0.0
    %2509 = vmatpush1.msra.mxu0 0.0
    %2510 = vmatprep.subr.mxu0 0.0
    %2511 = vmatpush1.msra.mxu0 0.0
    %2512 = vmatprep.subr.mxu0 0.0
    %2513 = vmatpush1.msra.mxu0 0.0
    %2514 = vmatprep.subr.mxu0 0.0
    %2515 = vmatpush1.msra.mxu0 0.0
    %2516 = vmatprep.subr.mxu0 0.0
    %2517 = vmatpush1.msra.mxu0 0.0
    %2518 = vmatprep.subr.mxu0 0.0
    %2519 = vmatpush1.msra.mxu0 0.0
    %2520 = vmatprep.subr.mxu0 0.0
    %2521 = vmatpush1.msra.mxu0 0.0
    %2522 = vmatprep.subr.mxu0 0.0
    %2523 = vmatpush1.msra.mxu0 0.0
    %2524 = vmatprep.subr.mxu0 0.0
    %2525 = vmatpush1.msra.mxu0 0.0
    %2526 = vmatprep.subr.mxu0 0.0
    %2527 = vmatpush1.msra.mxu0 0.0
    %2528 = vmatprep.subr.mxu0 0.0
    %2529 = vmatpush1.msra.mxu0 0.0
    %2530 = vmatprep.subr.mxu0 0.0
    %2531 = vmatpush1.msra.mxu0 0.0
    %2532 = vmatprep.subr.mxu0 0.0
    %2533 = vmatpush1.msra.mxu0 0.0
    %2534 = vmatprep.subr.mxu0 0.0
    %2535 = vmatpush1.msra.mxu0 0.0
    %2536 = vmatprep.subr.mxu0 0.0
    %2537 = vmatpush1.msra.mxu0 0.0
    %2538 = vmatprep.mubr.f32.mxu0 0.0
    %2539 = vmatmul.mubr.f32.gmra.mrb[0].mxu0 %v2472
    %v2540 = vpop.f32.mrb[0].mxu0
    %v2541 = vadd.f32 0.0, %v2540
    %v2542 = vpop.f32.mrb[0].mxu0
    %2543 = vdwg.mxu0
    %s2544 = scalar_lea.vmem %s7, 16
    %v2545 = vld [vmem:[%s2544] sm:$0xff]
    %v2547 = vsel %vm355, %v2395, 0
    %v2550 = vsel %vm355, %v2468, 0
    %v2553 = vsel %vm355, %v2541, 0
    %2555 = vmatprep.subr.mxu0 0.0
    %2556 = vmatpush1.msra.mxu0 %v2545
    %2557 = vmatprep.subr.mxu0 0.0
    %2558 = vmatpush1.msra.mxu0 0.0
    %2559 = vmatprep.subr.mxu0 0.0
    %2560 = vmatpush1.msra.mxu0 0.0
    %2561 = vmatprep.subr.mxu0 0.0
    %2562 = vmatpush1.msra.mxu0 0.0
    %2563 = vmatprep.subr.mxu0 0.0
    %2564 = vmatpush1.msra.mxu0 0.0
    %2565 = vmatprep.subr.mxu0 0.0
    %2566 = vmatpush1.msra.mxu0 0.0
    %2567 = vmatprep.subr.mxu0 0.0
    %2568 = vmatpush1.msra.mxu0 0.0
    %2569 = vmatprep.subr.mxu0 0.0
    %2570 = vmatpush1.msra.mxu0 0.0
    %2571 = vmatprep.subr.mxu0 0.0
    %2572 = vmatpush1.msra.mxu0 0.0
    %2573 = vmatprep.subr.mxu0 0.0
    %2574 = vmatpush1.msra.mxu0 0.0
    %2575 = vmatprep.subr.mxu0 0.0
    %2576 = vmatpush1.msra.mxu0 0.0
    %2577 = vmatprep.subr.mxu0 0.0
    %2578 = vmatpush1.msra.mxu0 0.0
    %2579 = vmatprep.subr.mxu0 0.0
    %2580 = vmatpush1.msra.mxu0 0.0
    %2581 = vmatprep.subr.mxu0 0.0
    %2582 = vmatpush1.msra.mxu0 0.0
    %2583 = vmatprep.subr.mxu0 0.0
    %2584 = vmatpush1.msra.mxu0 0.0
    %2585 = vmatprep.subr.mxu0 0.0
    %2586 = vmatpush1.msra.mxu0 0.0
    %2587 = vmatprep.subr.mxu0 0.0
    %2588 = vmatpush1.msra.mxu0 0.0
    %2589 = vmatprep.subr.mxu0 0.0
    %2590 = vmatpush1.msra.mxu0 0.0
    %2591 = vmatprep.subr.mxu0 0.0
    %2592 = vmatpush1.msra.mxu0 0.0
    %2593 = vmatprep.subr.mxu0 0.0
    %2594 = vmatpush1.msra.mxu0 0.0
    %2595 = vmatprep.subr.mxu0 0.0
    %2596 = vmatpush1.msra.mxu0 0.0
    %2597 = vmatprep.subr.mxu0 0.0
    %2598 = vmatpush1.msra.mxu0 0.0
    %2599 = vmatprep.subr.mxu0 0.0
    %2600 = vmatpush1.msra.mxu0 0.0
    %2601 = vmatprep.subr.mxu0 0.0
    %2602 = vmatpush1.msra.mxu0 0.0
    %2603 = vmatprep.subr.mxu0 0.0
    %2604 = vmatpush1.msra.mxu0 0.0
    %2605 = vmatprep.subr.mxu0 0.0
    %2606 = vmatpush1.msra.mxu0 0.0
    %2607 = vmatprep.subr.mxu0 0.0
    %2608 = vmatpush1.msra.mxu0 0.0
    %2609 = vmatprep.subr.mxu0 0.0
    %2610 = vmatpush1.msra.mxu0 0.0
    %2611 = vmatprep.subr.mxu0 0.0
    %2612 = vmatpush1.msra.mxu0 0.0
    %2613 = vmatprep.subr.mxu0 0.0
    %2614 = vmatpush1.msra.mxu0 0.0
    %2615 = vmatprep.subr.mxu0 0.0
    %2616 = vmatpush1.msra.mxu0 0.0
    %2617 = vmatprep.subr.mxu0 0.0
    %2618 = vmatpush1.msra.mxu0 0.0
    %2619 = vmatprep.mubr.f32.mxu0 0.0
    %2620 = vmatmul.mubr.f32.gmra.mrb[0].mxu0 %v2547
    %v2621 = vpop.f32.mrb[0].mxu0
    %v2622 = vadd.f32 0.0, %v2621
    %v2623 = vpop.f32.mrb[0].mxu0
    %2624 = vmatprep.mubr.f32.mxu0 0.0
    %2625 = vmatmul.mubr.f32.gmra.mrb[0].mxu0 %v2550
    %v2626 = vpop.f32.mrb[0].mxu0
    %v2627 = vadd.f32 0.0, %v2626
    %v2628 = vpop.f32.mrb[0].mxu0
    %2629 = vmatprep.mubr.f32.mxu0 0.0
    %2630 = vmatmul.mubr.f32.gmra.mrb[0].mxu0 %v2553
    %v2631 = vpop.f32.mrb[0].mxu0
    %v2632 = vadd.f32 0.0, %v2631
    %v2633 = vpop.f32.mrb[0].mxu0
    %2634 = vdwg.mxu0
    %v2635 = vadd.f32 %v1769, %v2622
    %v2636 = vadd.f32 %v1774, %v2627
    %v2637 = vadd.f32 %v1779, %v2632
    %s2638 = scalar_lea.vmem %s1, 96
    %v2639 = vld [vmem:[%s2638] sm:$0xff]
    %v2640 = vld [vmem:[%s2638 + $0x8] sm:$0xff]
    %v2641 = vld [vmem:[%s2638 + $0x10] sm:$0xff]
    %v2642 = vld [vmem:[%s2638 + $0x18] sm:$0xff]
    %s2643 = scalar_lea.vmem %s4, 3
    %v2644 = vld [vmem:[%s2643] sm:$0x1]
    %v2646 = vlaneseq
    %v2647 = vshrl.u32 %v2646, 7
    %v2648 = vsub.s32 0, %v2647
    %v2649 = vrot.slane %v2644, %v2648
    %2651 = vmatprep.subr.mxu0 0.0
    %2652 = vmatpush1.msra.mxu0 %v2639
    %2653 = vmatprep.subr.mxu0 0.0
    %2654 = vmatpush1.msra.mxu0 %v2640
    %2655 = vmatprep.subr.mxu0 0.0
    %2656 = vmatpush1.msra.mxu0 %v2641
    %2657 = vmatprep.subr.mxu0 0.0
    %2658 = vmatpush1.msra.mxu0 %v2642
    %2659 = vmatprep.subr.mxu0 0.0
    %2660 = vmatpush1.msra.mxu0 0.0
    %2661 = vmatprep.subr.mxu0 0.0
    %2662 = vmatpush1.msra.mxu0 0.0
    %2663 = vmatprep.subr.mxu0 0.0
    %2664 = vmatpush1.msra.mxu0 0.0
    %2665 = vmatprep.subr.mxu0 0.0
    %2666 = vmatpush1.msra.mxu0 0.0
    %2667 = vmatprep.subr.mxu0 0.0
    %2668 = vmatpush1.msra.mxu0 0.0
    %2669 = vmatprep.subr.mxu0 0.0
    %2670 = vmatpush1.msra.mxu0 0.0
    %2671 = vmatprep.subr.mxu0 0.0
    %2672 = vmatpush1.msra.mxu0 0.0
    %2673 = vmatprep.subr.mxu0 0.0
    %2674 = vmatpush1.msra.mxu0 0.0
    %2675 = vmatprep.subr.mxu0 0.0
    %2676 = vmatpush1.msra.mxu0 0.0
    %2677 = vmatprep.subr.mxu0 0.0
    %2678 = vmatpush1.msra.mxu0 0.0
    %2679 = vmatprep.subr.mxu0 0.0
    %2680 = vmatpush1.msra.mxu0 0.0
    %2681 = vmatprep.subr.mxu0 0.0
    %2682 = vmatpush1.msra.mxu0 0.0
    %2683 = vmatprep.subr.mxu0 0.0
    %2684 = vmatpush1.msra.mxu0 0.0
    %2685 = vmatprep.subr.mxu0 0.0
    %2686 = vmatpush1.msra.mxu0 0.0
    %2687 = vmatprep.subr.mxu0 0.0
    %2688 = vmatpush1.msra.mxu0 0.0
    %2689 = vmatprep.subr.mxu0 0.0
    %2690 = vmatpush1.msra.mxu0 0.0
    %2691 = vmatprep.subr.mxu0 0.0
    %2692 = vmatpush1.msra.mxu0 0.0
    %2693 = vmatprep.subr.mxu0 0.0
    %2694 = vmatpush1.msra.mxu0 0.0
    %2695 = vmatprep.subr.mxu0 0.0
    %2696 = vmatpush1.msra.mxu0 0.0
    %2697 = vmatprep.subr.mxu0 0.0
    %2698 = vmatpush1.msra.mxu0 0.0
    %2699 = vmatprep.subr.mxu0 0.0
    %2700 = vmatpush1.msra.mxu0 0.0
    %2701 = vmatprep.subr.mxu0 0.0
    %2702 = vmatpush1.msra.mxu0 0.0
    %2703 = vmatprep.subr.mxu0 0.0
    %2704 = vmatpush1.msra.mxu0 0.0
    %2705 = vmatprep.subr.mxu0 0.0
    %2706 = vmatpush1.msra.mxu0 0.0
    %2707 = vmatprep.subr.mxu0 0.0
    %2708 = vmatpush1.msra.mxu0 0.0
    %2709 = vmatprep.subr.mxu0 0.0
    %2710 = vmatpush1.msra.mxu0 0.0
    %2711 = vmatprep.subr.mxu0 0.0
    %2712 = vmatpush1.msra.mxu0 0.0
    %2713 = vmatprep.subr.mxu0 0.0
    %2714 = vmatpush1.msra.mxu0 0.0
    %2715 = vmatprep.mubr.f32.mxu0 0.0
    %2716 = vmatmul.mubr.f32.gmra.mrb[0].mxu0 %v85
    %v2717 = vpop.f32.mrb[0].mxu0
    %v2718 = vadd.f32 %v2649, %v2717
    %v2719 = vpop.f32.mrb[0].mxu0
    %2720 = vmatprep.mubr.f32.mxu0 0.0
    %2721 = vmatmul.mubr.f32.gmra.mrb[0].mxu0 %v88
    %v2722 = vpop.f32.mrb[0].mxu0
    %v2723 = vadd.f32 %v2649, %v2722
    %v2724 = vpop.f32.mrb[0].mxu0
    %2725 = vmatprep.mubr.f32.mxu0 0.0
    %2726 = vmatmul.mubr.f32.gmra.mrb[0].mxu0 %v91
    %v2727 = vpop.f32.mrb[0].mxu0
    %v2728 = vadd.f32 %v2649, %v2727
    %v2729 = vpop.f32.mrb[0].mxu0
    %2730 = vdwg.mxu0
    %s2731 = scalar_lea.vmem %s2, 96
    %v2732 = vld [vmem:[%s2731] sm:$0xff]
    %v2733 = vld [vmem:[%s2731 + $0x8] sm:$0xff]
    %v2734 = vld [vmem:[%s2731 + $0x10] sm:$0xff]
    %v2735 = vld [vmem:[%s2731 + $0x18] sm:$0xff]
    %s2736 = scalar_lea.vmem %s5, 3
    %v2737 = vld [vmem:[%s2736] sm:$0x1]
    %v2739 = vlaneseq
    %v2740 = vshrl.u32 %v2739, 7
    %v2741 = vsub.s32 0, %v2740
    %v2742 = vrot.slane %v2737, %v2741
    %2744 = vmatprep.subr.mxu0 0.0
    %2745 = vmatpush1.msra.mxu0 %v2732
    %2746 = vmatprep.subr.mxu0 0.0
    %2747 = vmatpush1.msra.mxu0 %v2733
    %2748 = vmatprep.subr.mxu0 0.0
    %2749 = vmatpush1.msra.mxu0 %v2734
    %2750 = vmatprep.subr.mxu0 0.0
    %2751 = vmatpush1.msra.mxu0 %v2735
    %2752 = vmatprep.subr.mxu0 0.0
    %2753 = vmatpush1.msra.mxu0 0.0
    %2754 = vmatprep.subr.mxu0 0.0
    %2755 = vmatpush1.msra.mxu0 0.0
    %2756 = vmatprep.subr.mxu0 0.0
    %2757 = vmatpush1.msra.mxu0 0.0
    %2758 = vmatprep.subr.mxu0 0.0
    %2759 = vmatpush1.msra.mxu0 0.0
    %2760 = vmatprep.subr.mxu0 0.0
    %2761 = vmatpush1.msra.mxu0 0.0
    %2762 = vmatprep.subr.mxu0 0.0
    %2763 = vmatpush1.msra.mxu0 0.0
    %2764 = vmatprep.subr.mxu0 0.0
    %2765 = vmatpush1.msra.mxu0 0.0
    %2766 = vmatprep.subr.mxu0 0.0
    %2767 = vmatpush1.msra.mxu0 0.0
    %2768 = vmatprep.subr.mxu0 0.0
    %2769 = vmatpush1.msra.mxu0 0.0
    %2770 = vmatprep.subr.mxu0 0.0
    %2771 = vmatpush1.msra.mxu0 0.0
    %2772 = vmatprep.subr.mxu0 0.0
    %2773 = vmatpush1.msra.mxu0 0.0
    %2774 = vmatprep.subr.mxu0 0.0
    %2775 = vmatpush1.msra.mxu0 0.0
    %2776 = vmatprep.subr.mxu0 0.0
    %2777 = vmatpush1.msra.mxu0 0.0
    %2778 = vmatprep.subr.mxu0 0.0
    %2779 = vmatpush1.msra.mxu0 0.0
    %2780 = vmatprep.subr.mxu0 0.0
    %2781 = vmatpush1.msra.mxu0 0.0
    %2782 = vmatprep.subr.mxu0 0.0
    %2783 = vmatpush1.msra.mxu0 0.0
    %2784 = vmatprep.subr.mxu0 0.0
    %2785 = vmatpush1.msra.mxu0 0.0
    %2786 = vmatprep.subr.mxu0 0.0
    %2787 = vmatpush1.msra.mxu0 0.0
    %2788 = vmatprep.subr.mxu0 0.0
    %2789 = vmatpush1.msra.mxu0 0.0
    %2790 = vmatprep.subr.mxu0 0.0
    %2791 = vmatpush1.msra.mxu0 0.0
    %2792 = vmatprep.subr.mxu0 0.0
    %2793 = vmatpush1.msra.mxu0 0.0
    %2794 = vmatprep.subr.mxu0 0.0
    %2795 = vmatpush1.msra.mxu0 0.0
    %2796 = vmatprep.subr.mxu0 0.0
    %2797 = vmatpush1.msra.mxu0 0.0
    %2798 = vmatprep.subr.mxu0 0.0
    %2799 = vmatpush1.msra.mxu0 0.0
    %2800 = vmatprep.subr.mxu0 0.0
    %2801 = vmatpush1.msra.mxu0 0.0
    %2802 = vmatprep.subr.mxu0 0.0
    %2803 = vmatpush1.msra.mxu0 0.0
    %2804 = vmatprep.subr.mxu0 0.0
    %2805 = vmatpush1.msra.mxu0 0.0
    %2806 = vmatprep.subr.mxu0 0.0
    %2807 = vmatpush1.msra.mxu0 0.0
    %2808 = vmatprep.mubr.f32.mxu0 0.0
    %2809 = vmatmul.mubr.f32.gmra.mrb[0].mxu0 %v85
    %v2810 = vpop.f32.mrb[0].mxu0
    %v2811 = vadd.f32 %v2742, %v2810
    %v2812 = vpop.f32.mrb[0].mxu0
    %2813 = vmatprep.mubr.f32.mxu0 0.0
    %2814 = vmatmul.mubr.f32.gmra.mrb[0].mxu0 %v88
    %v2815 = vpop.f32.mrb[0].mxu0
    %v2816 = vadd.f32 %v2742, %v2815
    %v2817 = vpop.f32.mrb[0].mxu0
    %2818 = vmatprep.mubr.f32.mxu0 0.0
    %2819 = vmatmul.mubr.f32.gmra.mrb[0].mxu0 %v91
    %v2820 = vpop.f32.mrb[0].mxu0
    %v2821 = vadd.f32 %v2742, %v2820
    %v2822 = vpop.f32.mrb[0].mxu0
    %2823 = vdwg.mxu0
    %s2824 = scalar_lea.vmem %s3, 96
    %v2825 = vld [vmem:[%s2824] sm:$0xff]
    %v2826 = vld [vmem:[%s2824 + $0x8] sm:$0xff]
    %v2827 = vld [vmem:[%s2824 + $0x10] sm:$0xff]
    %v2828 = vld [vmem:[%s2824 + $0x18] sm:$0xff]
    %s2829 = scalar_lea.vmem %s6, 3
    %v2830 = vld [vmem:[%s2829] sm:$0x1]
    %v2832 = vlaneseq
    %v2833 = vshrl.u32 %v2832, 7
    %v2834 = vsub.s32 0, %v2833
    %v2835 = vrot.slane %v2830, %v2834
    %2837 = vmatprep.subr.mxu0 0.0
    %2838 = vmatpush1.msra.mxu0 %v2825
    %2839 = vmatprep.subr.mxu0 0.0
    %2840 = vmatpush1.msra.mxu0 %v2826
    %2841 = vmatprep.subr.mxu0 0.0
    %2842 = vmatpush1.msra.mxu0 %v2827
    %2843 = vmatprep.subr.mxu0 0.0
    %2844 = vmatpush1.msra.mxu0 %v2828
    %2845 = vmatprep.subr.mxu0 0.0
    %2846 = vmatpush1.msra.mxu0 0.0
    %2847 = vmatprep.subr.mxu0 0.0
    %2848 = vmatpush1.msra.mxu0 0.0
    %2849 = vmatprep.subr.mxu0 0.0
    %2850 = vmatpush1.msra.mxu0 0.0
    %2851 = vmatprep.subr.mxu0 0.0
    %2852 = vmatpush1.msra.mxu0 0.0
    %2853 = vmatprep.subr.mxu0 0.0
    %2854 = vmatpush1.msra.mxu0 0.0
    %2855 = vmatprep.subr.mxu0 0.0
    %2856 = vmatpush1.msra.mxu0 0.0
    %2857 = vmatprep.subr.mxu0 0.0
    %2858 = vmatpush1.msra.mxu0 0.0
    %2859 = vmatprep.subr.mxu0 0.0
    %2860 = vmatpush1.msra.mxu0 0.0
    %2861 = vmatprep.subr.mxu0 0.0
    %2862 = vmatpush1.msra.mxu0 0.0
    %2863 = vmatprep.subr.mxu0 0.0
    %2864 = vmatpush1.msra.mxu0 0.0
    %2865 = vmatprep.subr.mxu0 0.0
    %2866 = vmatpush1.msra.mxu0 0.0
    %2867 = vmatprep.subr.mxu0 0.0
    %2868 = vmatpush1.msra.mxu0 0.0
    %2869 = vmatprep.subr.mxu0 0.0
    %2870 = vmatpush1.msra.mxu0 0.0
    %2871 = vmatprep.subr.mxu0 0.0
    %2872 = vmatpush1.msra.mxu0 0.0
    %2873 = vmatprep.subr.mxu0 0.0
    %2874 = vmatpush1.msra.mxu0 0.0
    %2875 = vmatprep.subr.mxu0 0.0
    %2876 = vmatpush1.msra.mxu0 0.0
    %2877 = vmatprep.subr.mxu0 0.0
    %2878 = vmatpush1.msra.mxu0 0.0
    %2879 = vmatprep.subr.mxu0 0.0
    %2880 = vmatpush1.msra.mxu0 0.0
    %2881 = vmatprep.subr.mxu0 0.0
    %2882 = vmatpush1.msra.mxu0 0.0
    %2883 = vmatprep.subr.mxu0 0.0
    %2884 = vmatpush1.msra.mxu0 0.0
    %2885 = vmatprep.subr.mxu0 0.0
    %2886 = vmatpush1.msra.mxu0 0.0
    %2887 = vmatprep.subr.mxu0 0.0
    %2888 = vmatpush1.msra.mxu0 0.0
    %2889 = vmatprep.subr.mxu0 0.0
    %2890 = vmatpush1.msra.mxu0 0.0
    %2891 = vmatprep.subr.mxu0 0.0
    %2892 = vmatpush1.msra.mxu0 0.0
    %2893 = vmatprep.subr.mxu0 0.0
    %2894 = vmatpush1.msra.mxu0 0.0
    %2895 = vmatprep.subr.mxu0 0.0
    %2896 = vmatpush1.msra.mxu0 0.0
    %2897 = vmatprep.subr.mxu0 0.0
    %2898 = vmatpush1.msra.mxu0 0.0
    %2899 = vmatprep.subr.mxu0 0.0
    %2900 = vmatpush1.msra.mxu0 0.0
    %2901 = vmatprep.mubr.f32.mxu0 0.0
    %2902 = vmatmul.mubr.f32.gmra.mrb[0].mxu0 %v85
    %v2903 = vpop.f32.mrb[0].mxu0
    %v2904 = vadd.f32 %v2835, %v2903
    %v2905 = vpop.f32.mrb[0].mxu0
    %2906 = vmatprep.mubr.f32.mxu0 0.0
    %2907 = vmatmul.mubr.f32.gmra.mrb[0].mxu0 %v88
    %v2908 = vpop.f32.mrb[0].mxu0
    %v2909 = vadd.f32 %v2835, %v2908
    %v2910 = vpop.f32.mrb[0].mxu0
    %2911 = vmatprep.mubr.f32.mxu0 0.0
    %2912 = vmatmul.mubr.f32.gmra.mrb[0].mxu0 %v91
    %v2913 = vpop.f32.mrb[0].mxu0
    %v2914 = vadd.f32 %v2835, %v2913
    %v2915 = vpop.f32.mrb[0].mxu0
    %2916 = vdwg.mxu0
    %v2918 = vsel %vm355, %v2718, 0
    %v2921 = vsel %vm355, %v2811, 0
    %2923 = vmatprep.subr.mxu0 0.0
    %2924 = vmatpush1.xpose.msra.mxu0 %v2921
    %2925 = vmatprep.subr.mxu0 0.0
    %2926 = vmatpush1.xpose.msra.mxu0 0.0
    %2927 = vmatprep.subr.mxu0 0.0
    %2928 = vmatpush1.xpose.msra.mxu0 0.0
    %2929 = vmatprep.subr.mxu0 0.0
    %2930 = vmatpush1.xpose.msra.mxu0 0.0
    %2931 = vmatprep.subr.mxu0 0.0
    %2932 = vmatpush1.xpose.msra.mxu0 0.0
    %2933 = vmatprep.subr.mxu0 0.0
    %2934 = vmatpush1.xpose.msra.mxu0 0.0
    %2935 = vmatprep.subr.mxu0 0.0
    %2936 = vmatpush1.xpose.msra.mxu0 0.0
    %2937 = vmatprep.subr.mxu0 0.0
    %2938 = vmatpush1.xpose.msra.mxu0 0.0
    %2939 = vmatprep.subr.mxu0 0.0
    %2940 = vmatpush1.xpose.msra.mxu0 0.0
    %2941 = vmatprep.subr.mxu0 0.0
    %2942 = vmatpush1.xpose.msra.mxu0 0.0
    %2943 = vmatprep.subr.mxu0 0.0
    %2944 = vmatpush1.xpose.msra.mxu0 0.0
    %2945 = vmatprep.subr.mxu0 0.0
    %2946 = vmatpush1.xpose.msra.mxu0 0.0
    %2947 = vmatprep.subr.mxu0 0.0
    %2948 = vmatpush1.xpose.msra.mxu0 0.0
    %2949 = vmatprep.subr.mxu0 0.0
    %2950 = vmatpush1.xpose.msra.mxu0 0.0
    %2951 = vmatprep.subr.mxu0 0.0
    %2952 = vmatpush1.xpose.msra.mxu0 0.0
    %2953 = vmatprep.subr.mxu0 0.0
    %2954 = vmatpush1.xpose.msra.mxu0 0.0
    %2955 = vmatprep.subr.mxu0 0.0
    %2956 = vmatpush1.xpose.msra.mxu0 0.0
    %2957 = vmatprep.subr.mxu0 0.0
    %2958 = vmatpush1.xpose.msra.mxu0 0.0
    %2959 = vmatprep.subr.mxu0 0.0
    %2960 = vmatpush1.xpose.msra.mxu0 0.0
    %2961 = vmatprep.subr.mxu0 0.0
    %2962 = vmatpush1.xpose.msra.mxu0 0.0
    %2963 = vmatprep.subr.mxu0 0.0
    %2964 = vmatpush1.xpose.msra.mxu0 0.0
    %2965 = vmatprep.subr.mxu0 0.0
    %2966 = vmatpush1.xpose.msra.mxu0 0.0
    %2967 = vmatprep.subr.mxu0 0.0
    %2968 = vmatpush1.xpose.msra.mxu0 0.0
    %2969 = vmatprep.subr.mxu0 0.0
    %2970 = vmatpush1.xpose.msra.mxu0 0.0
    %2971 = vmatprep.subr.mxu0 0.0
    %2972 = vmatpush1.xpose.msra.mxu0 0.0
    %2973 = vmatprep.subr.mxu0 0.0
    %2974 = vmatpush1.xpose.msra.mxu0 0.0
    %2975 = vmatprep.subr.mxu0 0.0
    %2976 = vmatpush1.xpose.msra.mxu0 0.0
    %2977 = vmatprep.subr.mxu0 0.0
    %2978 = vmatpush1.xpose.msra.mxu0 0.0
    %2979 = vmatprep.subr.mxu0 0.0
    %2980 = vmatpush1.xpose.msra.mxu0 0.0
    %2981 = vmatprep.subr.mxu0 0.0
    %2982 = vmatpush1.xpose.msra.mxu0 0.0
    %2983 = vmatprep.subr.mxu0 0.0
    %2984 = vmatpush1.xpose.msra.mxu0 0.0
    %2985 = vmatprep.subr.mxu0 0.0
    %2986 = vmatpush1.xpose.msra.mxu0 0.0
    %2987 = vmatprep.mubr.f32.mxu0 0.0
    %2988 = vmatmul.mubr.f32.gmra.mrb[0].mxu0 %v2918
    %v2989 = vpop.f32.mrb[0].mxu0
    %v2990 = vadd.f32 0.0, %v2989
    %v2991 = vpop.f32.mrb[0].mxu0
    %2992 = vdwg.mxu0
    %v2994 = vsel %vm355, %v2723, 0
    %v2997 = vsel %vm355, %v2816, 0
    %2999 = vmatprep.subr.mxu0 0.0
    %3000 = vmatpush1.xpose.msra.mxu0 %v2997
    %3001 = vmatprep.subr.mxu0 0.0
    %3002 = vmatpush1.xpose.msra.mxu0 0.0
    %3003 = vmatprep.subr.mxu0 0.0
    %3004 = vmatpush1.xpose.msra.mxu0 0.0
    %3005 = vmatprep.subr.mxu0 0.0
    %3006 = vmatpush1.xpose.msra.mxu0 0.0
    %3007 = vmatprep.subr.mxu0 0.0
    %3008 = vmatpush1.xpose.msra.mxu0 0.0
    %3009 = vmatprep.subr.mxu0 0.0
    %3010 = vmatpush1.xpose.msra.mxu0 0.0
    %3011 = vmatprep.subr.mxu0 0.0
    %3012 = vmatpush1.xpose.msra.mxu0 0.0
    %3013 = vmatprep.subr.mxu0 0.0
    %3014 = vmatpush1.xpose.msra.mxu0 0.0
    %3015 = vmatprep.subr.mxu0 0.0
    %3016 = vmatpush1.xpose.msra.mxu0 0.0
    %3017 = vmatprep.subr.mxu0 0.0
    %3018 = vmatpush1.xpose.msra.mxu0 0.0
    %3019 = vmatprep.subr.mxu0 0.0
    %3020 = vmatpush1.xpose.msra.mxu0 0.0
    %3021 = vmatprep.subr.mxu0 0.0
    %3022 = vmatpush1.xpose.msra.mxu0 0.0
    %3023 = vmatprep.subr.mxu0 0.0
    %3024 = vmatpush1.xpose.msra.mxu0 0.0
    %3025 = vmatprep.subr.mxu0 0.0
    %3026 = vmatpush1.xpose.msra.mxu0 0.0
    %3027 = vmatprep.subr.mxu0 0.0
    %3028 = vmatpush1.xpose.msra.mxu0 0.0
    %3029 = vmatprep.subr.mxu0 0.0
    %3030 = vmatpush1.xpose.msra.mxu0 0.0
    %3031 = vmatprep.subr.mxu0 0.0
    %3032 = vmatpush1.xpose.msra.mxu0 0.0
    %3033 = vmatprep.subr.mxu0 0.0
    %3034 = vmatpush1.xpose.msra.mxu0 0.0
    %3035 = vmatprep.subr.mxu0 0.0
    %3036 = vmatpush1.xpose.msra.mxu0 0.0
    %3037 = vmatprep.subr.mxu0 0.0
    %3038 = vmatpush1.xpose.msra.mxu0 0.0
    %3039 = vmatprep.subr.mxu0 0.0
    %3040 = vmatpush1.xpose.msra.mxu0 0.0
    %3041 = vmatprep.subr.mxu0 0.0
    %3042 = vmatpush1.xpose.msra.mxu0 0.0
    %3043 = vmatprep.subr.mxu0 0.0
    %3044 = vmatpush1.xpose.msra.mxu0 0.0
    %3045 = vmatprep.subr.mxu0 0.0
    %3046 = vmatpush1.xpose.msra.mxu0 0.0
    %3047 = vmatprep.subr.mxu0 0.0
    %3048 = vmatpush1.xpose.msra.mxu0 0.0
    %3049 = vmatprep.subr.mxu0 0.0
    %3050 = vmatpush1.xpose.msra.mxu0 0.0
    %3051 = vmatprep.subr.mxu0 0.0
    %3052 = vmatpush1.xpose.msra.mxu0 0.0
    %3053 = vmatprep.subr.mxu0 0.0
    %3054 = vmatpush1.xpose.msra.mxu0 0.0
    %3055 = vmatprep.subr.mxu0 0.0
    %3056 = vmatpush1.xpose.msra.mxu0 0.0
    %3057 = vmatprep.subr.mxu0 0.0
    %3058 = vmatpush1.xpose.msra.mxu0 0.0
    %3059 = vmatprep.subr.mxu0 0.0
    %3060 = vmatpush1.xpose.msra.mxu0 0.0
    %3061 = vmatprep.subr.mxu0 0.0
    %3062 = vmatpush1.xpose.msra.mxu0 0.0
    %3063 = vmatprep.mubr.f32.mxu0 0.0
    %3064 = vmatmul.mubr.f32.gmra.mrb[0].mxu0 %v2994
    %v3065 = vpop.f32.mrb[0].mxu0
    %v3066 = vadd.f32 0.0, %v3065
    %v3067 = vpop.f32.mrb[0].mxu0
    %3068 = vdwg.mxu0
    %v3070 = vsel %vm355, %v2728, 0
    %v3073 = vsel %vm355, %v2821, 0
    %3075 = vmatprep.subr.mxu0 0.0
    %3076 = vmatpush1.xpose.msra.mxu0 %v3073
    %3077 = vmatprep.subr.mxu0 0.0
    %3078 = vmatpush1.xpose.msra.mxu0 0.0
    %3079 = vmatprep.subr.mxu0 0.0
    %3080 = vmatpush1.xpose.msra.mxu0 0.0
    %3081 = vmatprep.subr.mxu0 0.0
    %3082 = vmatpush1.xpose.msra.mxu0 0.0
    %3083 = vmatprep.subr.mxu0 0.0
    %3084 = vmatpush1.xpose.msra.mxu0 0.0
    %3085 = vmatprep.subr.mxu0 0.0
    %3086 = vmatpush1.xpose.msra.mxu0 0.0
    %3087 = vmatprep.subr.mxu0 0.0
    %3088 = vmatpush1.xpose.msra.mxu0 0.0
    %3089 = vmatprep.subr.mxu0 0.0
    %3090 = vmatpush1.xpose.msra.mxu0 0.0
    %3091 = vmatprep.subr.mxu0 0.0
    %3092 = vmatpush1.xpose.msra.mxu0 0.0
    %3093 = vmatprep.subr.mxu0 0.0
    %3094 = vmatpush1.xpose.msra.mxu0 0.0
    %3095 = vmatprep.subr.mxu0 0.0
    %3096 = vmatpush1.xpose.msra.mxu0 0.0
    %3097 = vmatprep.subr.mxu0 0.0
    %3098 = vmatpush1.xpose.msra.mxu0 0.0
    %3099 = vmatprep.subr.mxu0 0.0
    %3100 = vmatpush1.xpose.msra.mxu0 0.0
    %3101 = vmatprep.subr.mxu0 0.0
    %3102 = vmatpush1.xpose.msra.mxu0 0.0
    %3103 = vmatprep.subr.mxu0 0.0
    %3104 = vmatpush1.xpose.msra.mxu0 0.0
    %3105 = vmatprep.subr.mxu0 0.0
    %3106 = vmatpush1.xpose.msra.mxu0 0.0
    %3107 = vmatprep.subr.mxu0 0.0
    %3108 = vmatpush1.xpose.msra.mxu0 0.0
    %3109 = vmatprep.subr.mxu0 0.0
    %3110 = vmatpush1.xpose.msra.mxu0 0.0
    %3111 = vmatprep.subr.mxu0 0.0
    %3112 = vmatpush1.xpose.msra.mxu0 0.0
    %3113 = vmatprep.subr.mxu0 0.0
    %3114 = vmatpush1.xpose.msra.mxu0 0.0
    %3115 = vmatprep.subr.mxu0 0.0
    %3116 = vmatpush1.xpose.msra.mxu0 0.0
    %3117 = vmatprep.subr.mxu0 0.0
    %3118 = vmatpush1.xpose.msra.mxu0 0.0
    %3119 = vmatprep.subr.mxu0 0.0
    %3120 = vmatpush1.xpose.msra.mxu0 0.0
    %3121 = vmatprep.subr.mxu0 0.0
    %3122 = vmatpush1.xpose.msra.mxu0 0.0
    %3123 = vmatprep.subr.mxu0 0.0
    %3124 = vmatpush1.xpose.msra.mxu0 0.0
    %3125 = vmatprep.subr.mxu0 0.0
    %3126 = vmatpush1.xpose.msra.mxu0 0.0
    %3127 = vmatprep.subr.mxu0 0.0
    %3128 = vmatpush1.xpose.msra.mxu0 0.0
    %3129 = vmatprep.subr.mxu0 0.0
    %3130 = vmatpush1.xpose.msra.mxu0 0.0
    %3131 = vmatprep.subr.mxu0 0.0
    %3132 = vmatpush1.xpose.msra.mxu0 0.0
    %3133 = vmatprep.subr.mxu0 0.0
    %3134 = vmatpush1.xpose.msra.mxu0 0.0
    %3135 = vmatprep.subr.mxu0 0.0
    %3136 = vmatpush1.xpose.msra.mxu0 0.0
    %3137 = vmatprep.subr.mxu0 0.0
    %3138 = vmatpush1.xpose.msra.mxu0 0.0
    %3139 = vmatprep.mubr.f32.mxu0 0.0
    %3140 = vmatmul.mubr.f32.gmra.mrb[0].mxu0 %v3070
    %v3141 = vpop.f32.mrb[0].mxu0
    %v3142 = vadd.f32 0.0, %v3141
    %v3143 = vpop.f32.mrb[0].mxu0
    %3144 = vdwg.mxu0
    %v3145 = vmul.f32 %v2990, 0.35355338
    %v3146 = vmul.f32 %v3066, 0.35355338
    %v3147 = vmul.f32 %v3142, 0.35355338
    %v3148 = vsel %vm355, %v3145, -inf
    %3149 = vmax.xlane.f32.xlu0 %v3148
    %v3150 = vpop.xlane.xlu0 %3149
    %v3151 = vsel %vm355, %v3146, -inf
    %3152 = vmax.xlane.f32.xlu0 %v3151
    %v3153 = vpop.xlane.xlu0 %3152
    %v3154 = vsel %vm355, %v3147, -inf
    %3155 = vmax.xlane.f32.xlu0 %v3154
    %v3156 = vpop.xlane.xlu0 %3155
    %v3157 = vsub.f32 %v3145, %v3150
    %v3158 = vsub.f32 %v3146, %v3153
    %v3159 = vsub.f32 %v3147, %v3156
    %v3160 = vmul.f32 %v3157, 1.442695
    %v3161 = vpow.pop %v3160
    %v3162 = vmul.f32 %v3158, 1.442695
    %v3163 = vpow.pop %v3162
    %v3164 = vmul.f32 %v3159, 1.442695
    %v3165 = vpow.pop %v3164
    %v3166 = vsel %vm355, %v3161, 0.0
    %3167 = vadd.xlane.f32.xlu0 %v3166
    %v3168 = vpop.xlane.xlu0 %3167
    %v3169 = vsel %vm355, %v3163, 0.0
    %3170 = vadd.xlane.f32.xlu0 %v3169
    %v3171 = vpop.xlane.xlu0 %3170
    %v3172 = vsel %vm355, %v3165, 0.0
    %3173 = vadd.xlane.f32.xlu0 %v3172
    %v3174 = vpop.xlane.xlu0 %3173
    %v3175 = vrcp.pop %v3168
    %v3176 = vmul.f32 %v3161, %v3175
    %v3177 = vrcp.pop %v3171
    %v3178 = vmul.f32 %v3163, %v3177
    %v3179 = vrcp.pop %v3174
    %v3180 = vmul.f32 %v3165, %v3179
    %v3182 = vsel %vm355, %v3176, 0
    %3184 = vmatprep.subr.mxu0 0.0
    %3185 = vmatpush1.msra.mxu0 %v2904
    %3186 = vmatprep.subr.mxu0 0.0
    %3187 = vmatpush1.msra.mxu0 0.0
    %3188 = vmatprep.subr.mxu0 0.0
    %3189 = vmatpush1.msra.mxu0 0.0
    %3190 = vmatprep.subr.mxu0 0.0
    %3191 = vmatpush1.msra.mxu0 0.0
    %3192 = vmatprep.subr.mxu0 0.0
    %3193 = vmatpush1.msra.mxu0 0.0
    %3194 = vmatprep.subr.mxu0 0.0
    %3195 = vmatpush1.msra.mxu0 0.0
    %3196 = vmatprep.subr.mxu0 0.0
    %3197 = vmatpush1.msra.mxu0 0.0
    %3198 = vmatprep.subr.mxu0 0.0
    %3199 = vmatpush1.msra.mxu0 0.0
    %3200 = vmatprep.subr.mxu0 0.0
    %3201 = vmatpush1.msra.mxu0 0.0
    %3202 = vmatprep.subr.mxu0 0.0
    %3203 = vmatpush1.msra.mxu0 0.0
    %3204 = vmatprep.subr.mxu0 0.0
    %3205 = vmatpush1.msra.mxu0 0.0
    %3206 = vmatprep.subr.mxu0 0.0
    %3207 = vmatpush1.msra.mxu0 0.0
    %3208 = vmatprep.subr.mxu0 0.0
    %3209 = vmatpush1.msra.mxu0 0.0
    %3210 = vmatprep.subr.mxu0 0.0
    %3211 = vmatpush1.msra.mxu0 0.0
    %3212 = vmatprep.subr.mxu0 0.0
    %3213 = vmatpush1.msra.mxu0 0.0
    %3214 = vmatprep.subr.mxu0 0.0
    %3215 = vmatpush1.msra.mxu0 0.0
    %3216 = vmatprep.subr.mxu0 0.0
    %3217 = vmatpush1.msra.mxu0 0.0
    %3218 = vmatprep.subr.mxu0 0.0
    %3219 = vmatpush1.msra.mxu0 0.0
    %3220 = vmatprep.subr.mxu0 0.0
    %3221 = vmatpush1.msra.mxu0 0.0
    %3222 = vmatprep.subr.mxu0 0.0
    %3223 = vmatpush1.msra.mxu0 0.0
    %3224 = vmatprep.subr.mxu0 0.0
    %3225 = vmatpush1.msra.mxu0 0.0
    %3226 = vmatprep.subr.mxu0 0.0
    %3227 = vmatpush1.msra.mxu0 0.0
    %3228 = vmatprep.subr.mxu0 0.0
    %3229 = vmatpush1.msra.mxu0 0.0
    %3230 = vmatprep.subr.mxu0 0.0
    %3231 = vmatpush1.msra.mxu0 0.0
    %3232 = vmatprep.subr.mxu0 0.0
    %3233 = vmatpush1.msra.mxu0 0.0
    %3234 = vmatprep.subr.mxu0 0.0
    %3235 = vmatpush1.msra.mxu0 0.0
    %3236 = vmatprep.subr.mxu0 0.0
    %3237 = vmatpush1.msra.mxu0 0.0
    %3238 = vmatprep.subr.mxu0 0.0
    %3239 = vmatpush1.msra.mxu0 0.0
    %3240 = vmatprep.subr.mxu0 0.0
    %3241 = vmatpush1.msra.mxu0 0.0
    %3242 = vmatprep.subr.mxu0 0.0
    %3243 = vmatpush1.msra.mxu0 0.0
    %3244 = vmatprep.subr.mxu0 0.0
    %3245 = vmatpush1.msra.mxu0 0.0
    %3246 = vmatprep.subr.mxu0 0.0
    %3247 = vmatpush1.msra.mxu0 0.0
    %3248 = vmatprep.mubr.f32.mxu0 0.0
    %3249 = vmatmul.mubr.f32.gmra.mrb[0].mxu0 %v3182
    %v3250 = vpop.f32.mrb[0].mxu0
    %v3251 = vadd.f32 0.0, %v3250
    %v3252 = vpop.f32.mrb[0].mxu0
    %3253 = vdwg.mxu0
    %v3255 = vsel %vm355, %v3178, 0
    %3257 = vmatprep.subr.mxu0 0.0
    %3258 = vmatpush1.msra.mxu0 %v2909
    %3259 = vmatprep.subr.mxu0 0.0
    %3260 = vmatpush1.msra.mxu0 0.0
    %3261 = vmatprep.subr.mxu0 0.0
    %3262 = vmatpush1.msra.mxu0 0.0
    %3263 = vmatprep.subr.mxu0 0.0
    %3264 = vmatpush1.msra.mxu0 0.0
    %3265 = vmatprep.subr.mxu0 0.0
    %3266 = vmatpush1.msra.mxu0 0.0
    %3267 = vmatprep.subr.mxu0 0.0
    %3268 = vmatpush1.msra.mxu0 0.0
    %3269 = vmatprep.subr.mxu0 0.0
    %3270 = vmatpush1.msra.mxu0 0.0
    %3271 = vmatprep.subr.mxu0 0.0
    %3272 = vmatpush1.msra.mxu0 0.0
    %3273 = vmatprep.subr.mxu0 0.0
    %3274 = vmatpush1.msra.mxu0 0.0
    %3275 = vmatprep.subr.mxu0 0.0
    %3276 = vmatpush1.msra.mxu0 0.0
    %3277 = vmatprep.subr.mxu0 0.0
    %3278 = vmatpush1.msra.mxu0 0.0
    %3279 = vmatprep.subr.mxu0 0.0
    %3280 = vmatpush1.msra.mxu0 0.0
    %3281 = vmatprep.subr.mxu0 0.0
    %3282 = vmatpush1.msra.mxu0 0.0
    %3283 = vmatprep.subr.mxu0 0.0
    %3284 = vmatpush1.msra.mxu0 0.0
    %3285 = vmatprep.subr.mxu0 0.0
    %3286 = vmatpush1.msra.mxu0 0.0
    %3287 = vmatprep.subr.mxu0 0.0
    %3288 = vmatpush1.msra.mxu0 0.0
    %3289 = vmatprep.subr.mxu0 0.0
    %3290 = vmatpush1.msra.mxu0 0.0
    %3291 = vmatprep.subr.mxu0 0.0
    %3292 = vmatpush1.msra.mxu0 0.0
    %3293 = vmatprep.subr.mxu0 0.0
    %3294 = vmatpush1.msra.mxu0 0.0
    %3295 = vmatprep.subr.mxu0 0.0
    %3296 = vmatpush1.msra.mxu0 0.0
    %3297 = vmatprep.subr.mxu0 0.0
    %3298 = vmatpush1.msra.mxu0 0.0
    %3299 = vmatprep.subr.mxu0 0.0
    %3300 = vmatpush1.msra.mxu0 0.0
    %3301 = vmatprep.subr.mxu0 0.0
    %3302 = vmatpush1.msra.mxu0 0.0
    %3303 = vmatprep.subr.mxu0 0.0
    %3304 = vmatpush1.msra.mxu0 0.0
    %3305 = vmatprep.subr.mxu0 0.0
    %3306 = vmatpush1.msra.mxu0 0.0
    %3307 = vmatprep.subr.mxu0 0.0
    %3308 = vmatpush1.msra.mxu0 0.0
    %3309 = vmatprep.subr.mxu0 0.0
    %3310 = vmatpush1.msra.mxu0 0.0
    %3311 = vmatprep.subr.mxu0 0.0
    %3312 = vmatpush1.msra.mxu0 0.0
    %3313 = vmatprep.subr.mxu0 0.0
    %3314 = vmatpush1.msra.mxu0 0.0
    %3315 = vmatprep.subr.mxu0 0.0
    %3316 = vmatpush1.msra.mxu0 0.0
    %3317 = vmatprep.subr.mxu0 0.0
    %3318 = vmatpush1.msra.mxu0 0.0
    %3319 = vmatprep.subr.mxu0 0.0
    %3320 = vmatpush1.msra.mxu0 0.0
    %3321 = vmatprep.mubr.f32.mxu0 0.0
    %3322 = vmatmul.mubr.f32.gmra.mrb[0].mxu0 %v3255
    %v3323 = vpop.f32.mrb[0].mxu0
    %v3324 = vadd.f32 0.0, %v3323
    %v3325 = vpop.f32.mrb[0].mxu0
    %3326 = vdwg.mxu0
    %v3328 = vsel %vm355, %v3180, 0
    %3330 = vmatprep.subr.mxu0 0.0
    %3331 = vmatpush1.msra.mxu0 %v2914
    %3332 = vmatprep.subr.mxu0 0.0
    %3333 = vmatpush1.msra.mxu0 0.0
    %3334 = vmatprep.subr.mxu0 0.0
    %3335 = vmatpush1.msra.mxu0 0.0
    %3336 = vmatprep.subr.mxu0 0.0
    %3337 = vmatpush1.msra.mxu0 0.0
    %3338 = vmatprep.subr.mxu0 0.0
    %3339 = vmatpush1.msra.mxu0 0.0
    %3340 = vmatprep.subr.mxu0 0.0
    %3341 = vmatpush1.msra.mxu0 0.0
    %3342 = vmatprep.subr.mxu0 0.0
    %3343 = vmatpush1.msra.mxu0 0.0
    %3344 = vmatprep.subr.mxu0 0.0
    %3345 = vmatpush1.msra.mxu0 0.0
    %3346 = vmatprep.subr.mxu0 0.0
    %3347 = vmatpush1.msra.mxu0 0.0
    %3348 = vmatprep.subr.mxu0 0.0
    %3349 = vmatpush1.msra.mxu0 0.0
    %3350 = vmatprep.subr.mxu0 0.0
    %3351 = vmatpush1.msra.mxu0 0.0
    %3352 = vmatprep.subr.mxu0 0.0
    %3353 = vmatpush1.msra.mxu0 0.0
    %3354 = vmatprep.subr.mxu0 0.0
    %3355 = vmatpush1.msra.mxu0 0.0
    %3356 = vmatprep.subr.mxu0 0.0
    %3357 = vmatpush1.msra.mxu0 0.0
    %3358 = vmatprep.subr.mxu0 0.0
    %3359 = vmatpush1.msra.mxu0 0.0
    %3360 = vmatprep.subr.mxu0 0.0
    %3361 = vmatpush1.msra.mxu0 0.0
    %3362 = vmatprep.subr.mxu0 0.0
    %3363 = vmatpush1.msra.mxu0 0.0
    %3364 = vmatprep.subr.mxu0 0.0
    %3365 = vmatpush1.msra.mxu0 0.0
    %3366 = vmatprep.subr.mxu0 0.0
    %3367 = vmatpush1.msra.mxu0 0.0
    %3368 = vmatprep.subr.mxu0 0.0
    %3369 = vmatpush1.msra.mxu0 0.0
    %3370 = vmatprep.subr.mxu0 0.0
    %3371 = vmatpush1.msra.mxu0 0.0
    %3372 = vmatprep.subr.mxu0 0.0
    %3373 = vmatpush1.msra.mxu0 0.0
    %3374 = vmatprep.subr.mxu0 0.0
    %3375 = vmatpush1.msra.mxu0 0.0
    %3376 = vmatprep.subr.mxu0 0.0
    %3377 = vmatpush1.msra.mxu0 0.0
    %3378 = vmatprep.subr.mxu0 0.0
    %3379 = vmatpush1.msra.mxu0 0.0
    %3380 = vmatprep.subr.mxu0 0.0
    %3381 = vmatpush1.msra.mxu0 0.0
    %3382 = vmatprep.subr.mxu0 0.0
    %3383 = vmatpush1.msra.mxu0 0.0
    %3384 = vmatprep.subr.mxu0 0.0
    %3385 = vmatpush1.msra.mxu0 0.0
    %3386 = vmatprep.subr.mxu0 0.0
    %3387 = vmatpush1.msra.mxu0 0.0
    %3388 = vmatprep.subr.mxu0 0.0
    %3389 = vmatpush1.msra.mxu0 0.0
    %3390 = vmatprep.subr.mxu0 0.0
    %3391 = vmatpush1.msra.mxu0 0.0
    %3392 = vmatprep.subr.mxu0 0.0
    %3393 = vmatpush1.msra.mxu0 0.0
    %3394 = vmatprep.mubr.f32.mxu0 0.0
    %3395 = vmatmul.mubr.f32.gmra.mrb[0].mxu0 %v3328
    %v3396 = vpop.f32.mrb[0].mxu0
    %v3397 = vadd.f32 0.0, %v3396
    %v3398 = vpop.f32.mrb[0].mxu0
    %3399 = vdwg.mxu0
    %s3400 = scalar_lea.vmem %s7, 24
    %v3401 = vld [vmem:[%s3400] sm:$0xff]
    %v3403 = vsel %vm355, %v3251, 0
    %v3406 = vsel %vm355, %v3324, 0
    %v3409 = vsel %vm355, %v3397, 0
    %3411 = vmatprep.subr.mxu0 0.0
    %3412 = vmatpush1.msra.mxu0 %v3401
    %3413 = vmatprep.subr.mxu0 0.0
    %3414 = vmatpush1.msra.mxu0 0.0
    %3415 = vmatprep.subr.mxu0 0.0
    %3416 = vmatpush1.msra.mxu0 0.0
    %3417 = vmatprep.subr.mxu0 0.0
    %3418 = vmatpush1.msra.mxu0 0.0
    %3419 = vmatprep.subr.mxu0 0.0
    %3420 = vmatpush1.msra.mxu0 0.0
    %3421 = vmatprep.subr.mxu0 0.0
    %3422 = vmatpush1.msra.mxu0 0.0
    %3423 = vmatprep.subr.mxu0 0.0
    %3424 = vmatpush1.msra.mxu0 0.0
    %3425 = vmatprep.subr.mxu0 0.0
    %3426 = vmatpush1.msra.mxu0 0.0
    %3427 = vmatprep.subr.mxu0 0.0
    %3428 = vmatpush1.msra.mxu0 0.0
    %3429 = vmatprep.subr.mxu0 0.0
    %3430 = vmatpush1.msra.mxu0 0.0
    %3431 = vmatprep.subr.mxu0 0.0
    %3432 = vmatpush1.msra.mxu0 0.0
    %3433 = vmatprep.subr.mxu0 0.0
    %3434 = vmatpush1.msra.mxu0 0.0
    %3435 = vmatprep.subr.mxu0 0.0
    %3436 = vmatpush1.msra.mxu0 0.0
    %3437 = vmatprep.subr.mxu0 0.0
    %3438 = vmatpush1.msra.mxu0 0.0
    %3439 = vmatprep.subr.mxu0 0.0
    %3440 = vmatpush1.msra.mxu0 0.0
    %3441 = vmatprep.subr.mxu0 0.0
    %3442 = vmatpush1.msra.mxu0 0.0
    %3443 = vmatprep.subr.mxu0 0.0
    %3444 = vmatpush1.msra.mxu0 0.0
    %3445 = vmatprep.subr.mxu0 0.0
    %3446 = vmatpush1.msra.mxu0 0.0
    %3447 = vmatprep.subr.mxu0 0.0
    %3448 = vmatpush1.msra.mxu0 0.0
    %3449 = vmatprep.subr.mxu0 0.0
    %3450 = vmatpush1.msra.mxu0 0.0
    %3451 = vmatprep.subr.mxu0 0.0
    %3452 = vmatpush1.msra.mxu0 0.0
    %3453 = vmatprep.subr.mxu0 0.0
    %3454 = vmatpush1.msra.mxu0 0.0
    %3455 = vmatprep.subr.mxu0 0.0
    %3456 = vmatpush1.msra.mxu0 0.0
    %3457 = vmatprep.subr.mxu0 0.0
    %3458 = vmatpush1.msra.mxu0 0.0
    %3459 = vmatprep.subr.mxu0 0.0
    %3460 = vmatpush1.msra.mxu0 0.0
    %3461 = vmatprep.subr.mxu0 0.0
    %3462 = vmatpush1.msra.mxu0 0.0
    %3463 = vmatprep.subr.mxu0 0.0
    %3464 = vmatpush1.msra.mxu0 0.0
    %3465 = vmatprep.subr.mxu0 0.0
    %3466 = vmatpush1.msra.mxu0 0.0
    %3467 = vmatprep.subr.mxu0 0.0
    %3468 = vmatpush1.msra.mxu0 0.0
    %3469 = vmatprep.subr.mxu0 0.0
    %3470 = vmatpush1.msra.mxu0 0.0
    %3471 = vmatprep.subr.mxu0 0.0
    %3472 = vmatpush1.msra.mxu0 0.0
    %3473 = vmatprep.subr.mxu0 0.0
    %3474 = vmatpush1.msra.mxu0 0.0
    %3475 = vmatprep.mubr.f32.mxu0 0.0
    %3476 = vmatmul.mubr.f32.gmra.mrb[0].mxu0 %v3403
    %v3477 = vpop.f32.mrb[0].mxu0
    %v3478 = vadd.f32 0.0, %v3477
    %v3479 = vpop.f32.mrb[0].mxu0
    %3480 = vmatprep.mubr.f32.mxu0 0.0
    %3481 = vmatmul.mubr.f32.gmra.mrb[0].mxu0 %v3406
    %v3482 = vpop.f32.mrb[0].mxu0
    %v3483 = vadd.f32 0.0, %v3482
    %v3484 = vpop.f32.mrb[0].mxu0
    %3485 = vmatprep.mubr.f32.mxu0 0.0
    %3486 = vmatmul.mubr.f32.gmra.mrb[0].mxu0 %v3409
    %v3487 = vpop.f32.mrb[0].mxu0
    %v3488 = vadd.f32 0.0, %v3487
    %v3489 = vpop.f32.mrb[0].mxu0
    %3490 = vdwg.mxu0
    %v3491 = vadd.f32 %v2635, %v3478
    %v3492 = vadd.f32 %v2636, %v3483
    %v3493 = vadd.f32 %v2637, %v3488
    %v3494 = vld [vmem:[%s8] sm:$0x1]
    %v3496 = vlaneseq
    %v3497 = vshrl.u32 %v3496, 7
    %v3498 = vsub.s32 0, %v3497
    %v3499 = vrot.slane %v3494, %v3498
    %v3501 = vadd.f32 %v3491, %v3499
    %v3502 = vadd.f32 %v3492, %v3499
    %v3503 = vadd.f32 %v3493, %v3499
    %v3504 = vadd.f32 %v69, %v3501
    %v3505 = vadd.f32 %v70, %v3502
    %v3506 = vadd.f32 %v71, %v3503
    %v3507 = vsel %vm83, %v3504, 0.0
    %3508 = vadd.xlane.f32.xlu0 %v3507
    %v3509 = vpop.xlane.xlu0 %3508
    %v3510 = vsel %vm83, %v3505, 0.0
    %3511 = vadd.xlane.f32.xlu0 %v3510
    %v3512 = vpop.xlane.xlu0 %3511
    %v3513 = vsel %vm83, %v3506, 0.0
    %3514 = vadd.xlane.f32.xlu0 %v3513
    %v3515 = vpop.xlane.xlu0 %3514
    %v3516 = vrcp.pop 32.0
    %v3517 = vmul.f32 %v3509, %v3516
    %v3518 = vmul.f32 %v3512, %v3516
    %v3519 = vmul.f32 %v3515, %v3516
    %v3520 = vsub.f32 %v3504, %v3517
    %v3521 = vsub.f32 %v3505, %v3518
    %v3522 = vsub.f32 %v3506, %v3519
    %v3523 = vmul.f32 %v3520, %v3520
    %v3524 = vmul.f32 %v3521, %v3521
    %v3525 = vmul.f32 %v3522, %v3522
    %v3526 = vsel %vm83, %v3523, 0.0
    %3527 = vadd.xlane.f32.xlu0 %v3526
    %v3528 = vpop.xlane.xlu0 %3527
    %v3529 = vsel %vm83, %v3524, 0.0
    %3530 = vadd.xlane.f32.xlu0 %v3529
    %v3531 = vpop.xlane.xlu0 %3530
    %v3532 = vsel %vm83, %v3525, 0.0
    %3533 = vadd.xlane.f32.xlu0 %v3532
    %v3534 = vpop.xlane.xlu0 %3533
    %v3535 = vmul.f32 %v3528, %v3516
    %v3536 = vmul.f32 %v3531, %v3516
    %v3537 = vmul.f32 %v3534, %v3516
    %v3538 = vadd.f32 %v3535, 1e-05
    %v3539 = vadd.f32 %v3536, 1e-05
    %v3540 = vadd.f32 %v3537, 1e-05
    %v3541 = vrsqrt.pop %v3538
    %v3542 = vrsqrt.pop %v3539
    %v3543 = vrsqrt.pop %v3540
    %v3544 = vmul.f32 %v3520, %v3541
    %v3545 = vmul.f32 %v3521, %v3542
    %v3546 = vmul.f32 %v3522, %v3543
    %v3547 = vld [vmem:[%s9] sm:$0x1]
    %v3549 = vlaneseq
    %v3550 = vshrl.u32 %v3549, 7
    %v3551 = vsub.s32 0, %v3550
    %v3552 = vrot.slane %v3547, %v3551
    %v3554 = vmul.f32 %v3544, %v3552
    %v3555 = vmul.f32 %v3545, %v3552
    %v3556 = vmul.f32 %v3546, %v3552
    %v3557 = vld [vmem:[%s10] sm:$0x1]
    %v3559 = vlaneseq
    %v3560 = vshrl.u32 %v3559, 7
    %v3561 = vsub.s32 0, %v3560
    %v3562 = vrot.slane %v3557, %v3561
    %v3564 = vadd.f32 %v3554, %v3562
    %v3565 = vadd.f32 %v3555, %v3562
    %v3566 = vadd.f32 %v3556, %v3562
    %v3567 = vld [vmem:[%s11] sm:$0xff]
    %v3568 = vld [vmem:[%s11 + $0x8] sm:$0xff]
    %v3569 = vld [vmem:[%s11 + $0x10] sm:$0xff]
    %v3570 = vld [vmem:[%s11 + $0x18] sm:$0xff]
    %v3571 = vld [vmem:[%s12] sm:$0x1]
    %v3573 = vlaneseq
    %v3574 = vshrl.u32 %v3573, 7
    %v3575 = vsub.s32 0, %v3574
    %v3576 = vrot.slane %v3571, %v3575
    %v3579 = vsel %vm83, %v3564, 0
    %v3582 = vsel %vm83, %v3565, 0
    %v3585 = vsel %vm83, %v3566, 0
    %3587 = vmatprep.subr.mxu0 0.0
    %3588 = vmatpush1.msra.mxu0 %v3567
    %3589 = vmatprep.subr.mxu0 0.0
    %3590 = vmatpush1.msra.mxu0 %v3568
    %3591 = vmatprep.subr.mxu0 0.0
    %3592 = vmatpush1.msra.mxu0 %v3569
    %3593 = vmatprep.subr.mxu0 0.0
    %3594 = vmatpush1.msra.mxu0 %v3570
    %3595 = vmatprep.subr.mxu0 0.0
    %3596 = vmatpush1.msra.mxu0 0.0
    %3597 = vmatprep.subr.mxu0 0.0
    %3598 = vmatpush1.msra.mxu0 0.0
    %3599 = vmatprep.subr.mxu0 0.0
    %3600 = vmatpush1.msra.mxu0 0.0
    %3601 = vmatprep.subr.mxu0 0.0
    %3602 = vmatpush1.msra.mxu0 0.0
    %3603 = vmatprep.subr.mxu0 0.0
    %3604 = vmatpush1.msra.mxu0 0.0
    %3605 = vmatprep.subr.mxu0 0.0
    %3606 = vmatpush1.msra.mxu0 0.0
    %3607 = vmatprep.subr.mxu0 0.0
    %3608 = vmatpush1.msra.mxu0 0.0
    %3609 = vmatprep.subr.mxu0 0.0
    %3610 = vmatpush1.msra.mxu0 0.0
    %3611 = vmatprep.subr.mxu0 0.0
    %3612 = vmatpush1.msra.mxu0 0.0
    %3613 = vmatprep.subr.mxu0 0.0
    %3614 = vmatpush1.msra.mxu0 0.0
    %3615 = vmatprep.subr.mxu0 0.0
    %3616 = vmatpush1.msra.mxu0 0.0
    %3617 = vmatprep.subr.mxu0 0.0
    %3618 = vmatpush1.msra.mxu0 0.0
    %3619 = vmatprep.subr.mxu0 0.0
    %3620 = vmatpush1.msra.mxu0 0.0
    %3621 = vmatprep.subr.mxu0 0.0
    %3622 = vmatpush1.msra.mxu0 0.0
    %3623 = vmatprep.subr.mxu0 0.0
    %3624 = vmatpush1.msra.mxu0 0.0
    %3625 = vmatprep.subr.mxu0 0.0
    %3626 = vmatpush1.msra.mxu0 0.0
    %3627 = vmatprep.subr.mxu0 0.0
    %3628 = vmatpush1.msra.mxu0 0.0
    %3629 = vmatprep.subr.mxu0 0.0
    %3630 = vmatpush1.msra.mxu0 0.0
    %3631 = vmatprep.subr.mxu0 0.0
    %3632 = vmatpush1.msra.mxu0 0.0
    %3633 = vmatprep.subr.mxu0 0.0
    %3634 = vmatpush1.msra.mxu0 0.0
    %3635 = vmatprep.subr.mxu0 0.0
    %3636 = vmatpush1.msra.mxu0 0.0
    %3637 = vmatprep.subr.mxu0 0.0
    %3638 = vmatpush1.msra.mxu0 0.0
    %3639 = vmatprep.subr.mxu0 0.0
    %3640 = vmatpush1.msra.mxu0 0.0
    %3641 = vmatprep.subr.mxu0 0.0
    %3642 = vmatpush1.msra.mxu0 0.0
    %3643 = vmatprep.subr.mxu0 0.0
    %3644 = vmatpush1.msra.mxu0 0.0
    %3645 = vmatprep.subr.mxu0 0.0
    %3646 = vmatpush1.msra.mxu0 0.0
    %3647 = vmatprep.subr.mxu0 0.0
    %3648 = vmatpush1.msra.mxu0 0.0
    %3649 = vmatprep.subr.mxu0 0.0
    %3650 = vmatpush1.msra.mxu0 0.0
    %3651 = vmatprep.mubr.f32.mxu0 0.0
    %3652 = vmatmul.mubr.f32.gmra.mrb[0].mxu0 %v3579
    %v3653 = vpop.f32.mrb[0].mxu0
    %v3654 = vadd.f32 %v3576, %v3653
    %v3655 = vpop.f32.mrb[0].mxu0
    %3656 = vmatprep.mubr.f32.mxu0 0.0
    %3657 = vmatmul.mubr.f32.gmra.mrb[0].mxu0 %v3582
    %v3658 = vpop.f32.mrb[0].mxu0
    %v3659 = vadd.f32 %v3576, %v3658
    %v3660 = vpop.f32.mrb[0].mxu0
    %3661 = vmatprep.mubr.f32.mxu0 0.0
    %3662 = vmatmul.mubr.f32.gmra.mrb[0].mxu0 %v3585
    %v3663 = vpop.f32.mrb[0].mxu0
    %v3664 = vadd.f32 %v3576, %v3663
    %v3665 = vpop.f32.mrb[0].mxu0
    %3666 = vdwg.mxu0
    %v3667 = vmax.f32 %v3654, 0.0
    %v3668 = vmax.f32 %v3659, 0.0
    %v3669 = vmax.f32 %v3664, 0.0
    %v3670 = vld [vmem:[%s13] sm:$0xff]
    %v3671 = vld [vmem:[%s13 + $0x8] sm:$0xff]
    %v3672 = vld [vmem:[%s13 + $0x10] sm:$0xff]
    %v3673 = vld [vmem:[%s13 + $0x18] sm:$0xff]
    %v3674 = vld [vmem:[%s13 + $0x20] sm:$0xff]
    %v3675 = vld [vmem:[%s13 + $0x28] sm:$0xff]
    %v3676 = vld [vmem:[%s13 + $0x30] sm:$0xff]
    %v3677 = vld [vmem:[%s13 + $0x38] sm:$0xff]
    %v3678 = vld [vmem:[%s13 + $0x40] sm:$0xff]
    %v3679 = vld [vmem:[%s13 + $0x48] sm:$0xff]
    %v3680 = vld [vmem:[%s13 + $0x50] sm:$0xff]
    %v3681 = vld [vmem:[%s13 + $0x58] sm:$0xff]
    %v3682 = vld [vmem:[%s13 + $0x60] sm:$0xff]
    %v3683 = vld [vmem:[%s13 + $0x68] sm:$0xff]
    %v3684 = vld [vmem:[%s13 + $0x70] sm:$0xff]
    %v3685 = vld [vmem:[%s13 + $0x78] sm:$0xff]
    %v3686 = vld [vmem:[%s14] sm:$0x1]
    %v3688 = vlaneseq
    %v3689 = vshrl.u32 %v3688, 7
    %v3690 = vsub.s32 0, %v3689
    %v3691 = vrot.slane %v3686, %v3690
    %3693 = vmatprep.subr.mxu0 0.0
    %3694 = vmatpush1.msra.mxu0 %v3670
    %3695 = vmatprep.subr.mxu0 0.0
    %3696 = vmatpush1.msra.mxu0 %v3671
    %3697 = vmatprep.subr.mxu0 0.0
    %3698 = vmatpush1.msra.mxu0 %v3672
    %3699 = vmatprep.subr.mxu0 0.0
    %3700 = vmatpush1.msra.mxu0 %v3673
    %3701 = vmatprep.subr.mxu0 0.0
    %3702 = vmatpush1.msra.mxu0 %v3674
    %3703 = vmatprep.subr.mxu0 0.0
    %3704 = vmatpush1.msra.mxu0 %v3675
    %3705 = vmatprep.subr.mxu0 0.0
    %3706 = vmatpush1.msra.mxu0 %v3676
    %3707 = vmatprep.subr.mxu0 0.0
    %3708 = vmatpush1.msra.mxu0 %v3677
    %3709 = vmatprep.subr.mxu0 0.0
    %3710 = vmatpush1.msra.mxu0 %v3678
    %3711 = vmatprep.subr.mxu0 0.0
    %3712 = vmatpush1.msra.mxu0 %v3679
    %3713 = vmatprep.subr.mxu0 0.0
    %3714 = vmatpush1.msra.mxu0 %v3680
    %3715 = vmatprep.subr.mxu0 0.0
    %3716 = vmatpush1.msra.mxu0 %v3681
    %3717 = vmatprep.subr.mxu0 0.0
    %3718 = vmatpush1.msra.mxu0 %v3682
    %3719 = vmatprep.subr.mxu0 0.0
    %3720 = vmatpush1.msra.mxu0 %v3683
    %3721 = vmatprep.subr.mxu0 0.0
    %3722 = vmatpush1.msra.mxu0 %v3684
    %3723 = vmatprep.subr.mxu0 0.0
    %3724 = vmatpush1.msra.mxu0 %v3685
    %3725 = vmatprep.subr.mxu0 0.0
    %3726 = vmatpush1.msra.mxu0 0.0
    %3727 = vmatprep.subr.mxu0 0.0
    %3728 = vmatpush1.msra.mxu0 0.0
    %3729 = vmatprep.subr.mxu0 0.0
    %3730 = vmatpush1.msra.mxu0 0.0
    %3731 = vmatprep.subr.mxu0 0.0
    %3732 = vmatpush1.msra.mxu0 0.0
    %3733 = vmatprep.subr.mxu0 0.0
    %3734 = vmatpush1.msra.mxu0 0.0
    %3735 = vmatprep.subr.mxu0 0.0
    %3736 = vmatpush1.msra.mxu0 0.0
    %3737 = vmatprep.subr.mxu0 0.0
    %3738 = vmatpush1.msra.mxu0 0.0
    %3739 = vmatprep.subr.mxu0 0.0
    %3740 = vmatpush1.msra.mxu0 0.0
    %3741 = vmatprep.subr.mxu0 0.0
    %3742 = vmatpush1.msra.mxu0 0.0
    %3743 = vmatprep.subr.mxu0 0.0
    %3744 = vmatpush1.msra.mxu0 0.0
    %3745 = vmatprep.subr.mxu0 0.0
    %3746 = vmatpush1.msra.mxu0 0.0
    %3747 = vmatprep.subr.mxu0 0.0
    %3748 = vmatpush1.msra.mxu0 0.0
    %3749 = vmatprep.subr.mxu0 0.0
    %3750 = vmatpush1.msra.mxu0 0.0
    %3751 = vmatprep.subr.mxu0 0.0
    %3752 = vmatpush1.msra.mxu0 0.0
    %3753 = vmatprep.subr.mxu0 0.0
    %3754 = vmatpush1.msra.mxu0 0.0
    %3755 = vmatprep.subr.mxu0 0.0
    %3756 = vmatpush1.msra.mxu0 0.0
    %3757 = vmatprep.mubr.f32.mxu0 0.0
    %3758 = vmatmul.mubr.f32.gmra.mrb[0].mxu0 %v3667
    %v3759 = vpop.f32.mrb[0].mxu0
    %v3760 = vadd.f32 %v3691, %v3759
    %v3761 = vpop.f32.mrb[0].mxu0
    %3762 = vmatprep.mubr.f32.mxu0 0.0
    %3763 = vmatmul.mubr.f32.gmra.mrb[0].mxu0 %v3668
    %v3764 = vpop.f32.mrb[0].mxu0
    %v3765 = vadd.f32 %v3691, %v3764
    %v3766 = vpop.f32.mrb[0].mxu0
    %3767 = vmatprep.mubr.f32.mxu0 0.0
    %3768 = vmatmul.mubr.f32.gmra.mrb[0].mxu0 %v3669
    %v3769 = vpop.f32.mrb[0].mxu0
    %v3770 = vadd.f32 %v3691, %v3769
    %v3771 = vpop.f32.mrb[0].mxu0
    %3772 = vdwg.mxu0
    %v3773 = vadd.f32 %v3564, %v3760
    %v3774 = vadd.f32 %v3565, %v3765
    %v3775 = vadd.f32 %v3566, %v3770
    %v3776 = vsel %vm83, %v3773, 0.0
    %3777 = vadd.xlane.f32.xlu0 %v3776
    %v3778 = vpop.xlane.xlu0 %3777
    %v3779 = vsel %vm83, %v3774, 0.0
    %3780 = vadd.xlane.f32.xlu0 %v3779
    %v3781 = vpop.xlane.xlu0 %3780
    %v3782 = vsel %vm83, %v3775, 0.0
    %3783 = vadd.xlane.f32.xlu0 %v3782
    %v3784 = vpop.xlane.xlu0 %3783
    %v3785 = vmul.f32 %v3778, %v3516
    %v3786 = vmul.f32 %v3781, %v3516
    %v3787 = vmul.f32 %v3784, %v3516
    %v3788 = vsub.f32 %v3773, %v3785
    %v3789 = vsub.f32 %v3774, %v3786
    %v3790 = vsub.f32 %v3775, %v3787
    %v3791 = vmul.f32 %v3788, %v3788
    %v3792 = vmul.f32 %v3789, %v3789
    %v3793 = vmul.f32 %v3790, %v3790
    %v3794 = vsel %vm83, %v3791, 0.0
    %3795 = vadd.xlane.f32.xlu0 %v3794
    %v3796 = vpop.xlane.xlu0 %3795
    %v3797 = vsel %vm83, %v3792, 0.0
    %3798 = vadd.xlane.f32.xlu0 %v3797
    %v3799 = vpop.xlane.xlu0 %3798
    %v3800 = vsel %vm83, %v3793, 0.0
    %3801 = vadd.xlane.f32.xlu0 %v3800
    %v3802 = vpop.xlane.xlu0 %3801
    %v3803 = vmul.f32 %v3796, %v3516
    %v3804 = vmul.f32 %v3799, %v3516
    %v3805 = vmul.f32 %v3802, %v3516
    %v3806 = vadd.f32 %v3803, 1e-05
    %v3807 = vadd.f32 %v3804, 1e-05
    %v3808 = vadd.f32 %v3805, 1e-05
    %v3809 = vrsqrt.pop %v3806
    %v3810 = vrsqrt.pop %v3807
    %v3811 = vrsqrt.pop %v3808
    %v3812 = vmul.f32 %v3788, %v3809
    %v3813 = vmul.f32 %v3789, %v3810
    %v3814 = vmul.f32 %v3790, %v3811
    %v3815 = vld [vmem:[%s15] sm:$0x1]
    %v3817 = vlaneseq
    %v3818 = vshrl.u32 %v3817, 7
    %v3819 = vsub.s32 0, %v3818
    %v3820 = vrot.slane %v3815, %v3819
    %v3822 = vmul.f32 %v3812, %v3820
    %v3823 = vmul.f32 %v3813, %v3820
    %v3824 = vmul.f32 %v3814, %v3820
    %v3825 = vld [vmem:[%s16] sm:$0x1]
    %v3827 = vlaneseq
    %v3828 = vshrl.u32 %v3827, 7
    %v3829 = vsub.s32 0, %v3828
    %v3830 = vrot.slane %v3825, %v3829
    %v3832 = vadd.f32 %v3822, %v3830
    %v3833 = vadd.f32 %v3823, %v3830
    %v3834 = vadd.f32 %v3824, %v3830
    %s3835 = scalar_lea.vmem %s1, 128
    %v3836 = vld [vmem:[%s3835] sm:$0xff]
    %v3837 = vld [vmem:[%s3835 + $0x8] sm:$0xff]
    %v3838 = vld [vmem:[%s3835 + $0x10] sm:$0xff]
    %v3839 = vld [vmem:[%s3835 + $0x18] sm:$0xff]
    %s3840 = scalar_lea.vmem %s4, 4
    %v3841 = vld [vmem:[%s3840] sm:$0x1]
    %v3843 = vlaneseq
    %v3844 = vshrl.u32 %v3843, 7
    %v3845 = vsub.s32 0, %v3844
    %v3846 = vrot.slane %v3841, %v3845
    %v3849 = vsel %vm83, %v3832, 0
    %v3852 = vsel %vm83, %v3833, 0
    %v3855 = vsel %vm83, %v3834, 0
    %3857 = vmatprep.subr.mxu0 0.0
    %3858 = vmatpush1.msra.mxu0 %v3836
    %3859 = vmatprep.subr.mxu0 0.0
    %3860 = vmatpush1.msra.mxu0 %v3837
    %3861 = vmatprep.subr.mxu0 0.0
    %3862 = vmatpush1.msra.mxu0 %v3838
    %3863 = vmatprep.subr.mxu0 0.0
    %3864 = vmatpush1.msra.mxu0 %v3839
    %3865 = vmatprep.subr.mxu0 0.0
    %3866 = vmatpush1.msra.mxu0 0.0
    %3867 = vmatprep.subr.mxu0 0.0
    %3868 = vmatpush1.msra.mxu0 0.0
    %3869 = vmatprep.subr.mxu0 0.0
    %3870 = vmatpush1.msra.mxu0 0.0
    %3871 = vmatprep.subr.mxu0 0.0
    %3872 = vmatpush1.msra.mxu0 0.0
    %3873 = vmatprep.subr.mxu0 0.0
    %3874 = vmatpush1.msra.mxu0 0.0
    %3875 = vmatprep.subr.mxu0 0.0
    %3876 = vmatpush1.msra.mxu0 0.0
    %3877 = vmatprep.subr.mxu0 0.0
    %3878 = vmatpush1.msra.mxu0 0.0
    %3879 = vmatprep.subr.mxu0 0.0
    %3880 = vmatpush1.msra.mxu0 0.0
    %3881 = vmatprep.subr.mxu0 0.0
    %3882 = vmatpush1.msra.mxu0 0.0
    %3883 = vmatprep.subr.mxu0 0.0
    %3884 = vmatpush1.msra.mxu0 0.0
    %3885 = vmatprep.subr.mxu0 0.0
    %3886 = vmatpush1.msra.mxu0 0.0
    %3887 = vmatprep.subr.mxu0 0.0
    %3888 = vmatpush1.msra.mxu0 0.0
    %3889 = vmatprep.subr.mxu0 0.0
    %3890 = vmatpush1.msra.mxu0 0.0
    %3891 = vmatprep.subr.mxu0 0.0
    %3892 = vmatpush1.msra.mxu0 0.0
    %3893 = vmatprep.subr.mxu0 0.0
    %3894 = vmatpush1.msra.mxu0 0.0
    %3895 = vmatprep.subr.mxu0 0.0
    %3896 = vmatpush1.msra.mxu0 0.0
    %3897 = vmatprep.subr.mxu0 0.0
    %3898 = vmatpush1.msra.mxu0 0.0
    %3899 = vmatprep.subr.mxu0 0.0
    %3900 = vmatpush1.msra.mxu0 0.0
    %3901 = vmatprep.subr.mxu0 0.0
    %3902 = vmatpush1.msra.mxu0 0.0
    %3903 = vmatprep.subr.mxu0 0.0
    %3904 = vmatpush1.msra.mxu0 0.0
    %3905 = vmatprep.subr.mxu0 0.0
    %3906 = vmatpush1.msra.mxu0 0.0
    %3907 = vmatprep.subr.mxu0 0.0
    %3908 = vmatpush1.msra.mxu0 0.0
    %3909 = vmatprep.subr.mxu0 0.0
    %3910 = vmatpush1.msra.mxu0 0.0
    %3911 = vmatprep.subr.mxu0 0.0
    %3912 = vmatpush1.msra.mxu0 0.0
    %3913 = vmatprep.subr.mxu0 0.0
    %3914 = vmatpush1.msra.mxu0 0.0
    %3915 = vmatprep.subr.mxu0 0.0
    %3916 = vmatpush1.msra.mxu0 0.0
    %3917 = vmatprep.subr.mxu0 0.0
    %3918 = vmatpush1.msra.mxu0 0.0
    %3919 = vmatprep.subr.mxu0 0.0
    %3920 = vmatpush1.msra.mxu0 0.0
    %3921 = vmatprep.mubr.f32.mxu0 0.0
    %3922 = vmatmul.mubr.f32.gmra.mrb[0].mxu0 %v3849
    %v3923 = vpop.f32.mrb[0].mxu0
    %v3924 = vadd.f32 %v3846, %v3923
    %v3925 = vpop.f32.mrb[0].mxu0
    %3926 = vmatprep.mubr.f32.mxu0 0.0
    %3927 = vmatmul.mubr.f32.gmra.mrb[0].mxu0 %v3852
    %v3928 = vpop.f32.mrb[0].mxu0
    %v3929 = vadd.f32 %v3846, %v3928
    %v3930 = vpop.f32.mrb[0].mxu0
    %3931 = vmatprep.mubr.f32.mxu0 0.0
    %3932 = vmatmul.mubr.f32.gmra.mrb[0].mxu0 %v3855
    %v3933 = vpop.f32.mrb[0].mxu0
    %v3934 = vadd.f32 %v3846, %v3933
    %v3935 = vpop.f32.mrb[0].mxu0
    %3936 = vdwg.mxu0
    %s3937 = scalar_lea.vmem %s2, 128
    %v3938 = vld [vmem:[%s3937] sm:$0xff]
    %v3939 = vld [vmem:[%s3937 + $0x8] sm:$0xff]
    %v3940 = vld [vmem:[%s3937 + $0x10] sm:$0xff]
    %v3941 = vld [vmem:[%s3937 + $0x18] sm:$0xff]
    %s3942 = scalar_lea.vmem %s5, 4
    %v3943 = vld [vmem:[%s3942] sm:$0x1]
    %v3945 = vlaneseq
    %v3946 = vshrl.u32 %v3945, 7
    %v3947 = vsub.s32 0, %v3946
    %v3948 = vrot.slane %v3943, %v3947
    %3950 = vmatprep.subr.mxu0 0.0
    %3951 = vmatpush1.msra.mxu0 %v3938
    %3952 = vmatprep.subr.mxu0 0.0
    %3953 = vmatpush1.msra.mxu0 %v3939
    %3954 = vmatprep.subr.mxu0 0.0
    %3955 = vmatpush1.msra.mxu0 %v3940
    %3956 = vmatprep.subr.mxu0 0.0
    %3957 = vmatpush1.msra.mxu0 %v3941
    %3958 = vmatprep.subr.mxu0 0.0
    %3959 = vmatpush1.msra.mxu0 0.0
    %3960 = vmatprep.subr.mxu0 0.0
    %3961 = vmatpush1.msra.mxu0 0.0
    %3962 = vmatprep.subr.mxu0 0.0
    %3963 = vmatpush1.msra.mxu0 0.0
    %3964 = vmatprep.subr.mxu0 0.0
    %3965 = vmatpush1.msra.mxu0 0.0
    %3966 = vmatprep.subr.mxu0 0.0
    %3967 = vmatpush1.msra.mxu0 0.0
    %3968 = vmatprep.subr.mxu0 0.0
    %3969 = vmatpush1.msra.mxu0 0.0
    %3970 = vmatprep.subr.mxu0 0.0
    %3971 = vmatpush1.msra.mxu0 0.0
    %3972 = vmatprep.subr.mxu0 0.0
    %3973 = vmatpush1.msra.mxu0 0.0
    %3974 = vmatprep.subr.mxu0 0.0
    %3975 = vmatpush1.msra.mxu0 0.0
    %3976 = vmatprep.subr.mxu0 0.0
    %3977 = vmatpush1.msra.mxu0 0.0
    %3978 = vmatprep.subr.mxu0 0.0
    %3979 = vmatpush1.msra.mxu0 0.0
    %3980 = vmatprep.subr.mxu0 0.0
    %3981 = vmatpush1.msra.mxu0 0.0
    %3982 = vmatprep.subr.mxu0 0.0
    %3983 = vmatpush1.msra.mxu0 0.0
    %3984 = vmatprep.subr.mxu0 0.0
    %3985 = vmatpush1.msra.mxu0 0.0
    %3986 = vmatprep.subr.mxu0 0.0
    %3987 = vmatpush1.msra.mxu0 0.0
    %3988 = vmatprep.subr.mxu0 0.0
    %3989 = vmatpush1.msra.mxu0 0.0
    %3990 = vmatprep.subr.mxu0 0.0
    %3991 = vmatpush1.msra.mxu0 0.0
    %3992 = vmatprep.subr.mxu0 0.0
    %3993 = vmatpush1.msra.mxu0 0.0
    %3994 = vmatprep.subr.mxu0 0.0
    %3995 = vmatpush1.msra.mxu0 0.0
    %3996 = vmatprep.subr.mxu0 0.0
    %3997 = vmatpush1.msra.mxu0 0.0
    %3998 = vmatprep.subr.mxu0 0.0
    %3999 = vmatpush1.msra.mxu0 0.0
    %4000 = vmatprep.subr.mxu0 0.0
    %4001 = vmatpush1.msra.mxu0 0.0
    %4002 = vmatprep.subr.mxu0 0.0
    %4003 = vmatpush1.msra.mxu0 0.0
    %4004 = vmatprep.subr.mxu0 0.0
    %4005 = vmatpush1.msra.mxu0 0.0
    %4006 = vmatprep.subr.mxu0 0.0
    %4007 = vmatpush1.msra.mxu0 0.0
    %4008 = vmatprep.subr.mxu0 0.0
    %4009 = vmatpush1.msra.mxu0 0.0
    %4010 = vmatprep.subr.mxu0 0.0
    %4011 = vmatpush1.msra.mxu0 0.0
    %4012 = vmatprep.subr.mxu0 0.0
    %4013 = vmatpush1.msra.mxu0 0.0
    %4014 = vmatprep.mubr.f32.mxu0 0.0
    %4015 = vmatmul.mubr.f32.gmra.mrb[0].mxu0 %v3849
    %v4016 = vpop.f32.mrb[0].mxu0
    %v4017 = vadd.f32 %v3948, %v4016
    %v4018 = vpop.f32.mrb[0].mxu0
    %4019 = vmatprep.mubr.f32.mxu0 0.0
    %4020 = vmatmul.mubr.f32.gmra.mrb[0].mxu0 %v3852
    %v4021 = vpop.f32.mrb[0].mxu0
    %v4022 = vadd.f32 %v3948, %v4021
    %v4023 = vpop.f32.mrb[0].mxu0
    %4024 = vmatprep.mubr.f32.mxu0 0.0
    %4025 = vmatmul.mubr.f32.gmra.mrb[0].mxu0 %v3855
    %v4026 = vpop.f32.mrb[0].mxu0
    %v4027 = vadd.f32 %v3948, %v4026
    %v4028 = vpop.f32.mrb[0].mxu0
    %4029 = vdwg.mxu0
    %s4030 = scalar_lea.vmem %s3, 128
    %v4031 = vld [vmem:[%s4030] sm:$0xff]
    %v4032 = vld [vmem:[%s4030 + $0x8] sm:$0xff]
    %v4033 = vld [vmem:[%s4030 + $0x10] sm:$0xff]
    %v4034 = vld [vmem:[%s4030 + $0x18] sm:$0xff]
    %s4035 = scalar_lea.vmem %s6, 4
    %v4036 = vld [vmem:[%s4035] sm:$0x1]
    %v4038 = vlaneseq
    %v4039 = vshrl.u32 %v4038, 7
    %v4040 = vsub.s32 0, %v4039
    %v4041 = vrot.slane %v4036, %v4040
    %4043 = vmatprep.subr.mxu0 0.0
    %4044 = vmatpush1.msra.mxu0 %v4031
    %4045 = vmatprep.subr.mxu0 0.0
    %4046 = vmatpush1.msra.mxu0 %v4032
    %4047 = vmatprep.subr.mxu0 0.0
    %4048 = vmatpush1.msra.mxu0 %v4033
    %4049 = vmatprep.subr.mxu0 0.0
    %4050 = vmatpush1.msra.mxu0 %v4034
    %4051 = vmatprep.subr.mxu0 0.0
    %4052 = vmatpush1.msra.mxu0 0.0
    %4053 = vmatprep.subr.mxu0 0.0
    %4054 = vmatpush1.msra.mxu0 0.0
    %4055 = vmatprep.subr.mxu0 0.0
    %4056 = vmatpush1.msra.mxu0 0.0
    %4057 = vmatprep.subr.mxu0 0.0
    %4058 = vmatpush1.msra.mxu0 0.0
    %4059 = vmatprep.subr.mxu0 0.0
    %4060 = vmatpush1.msra.mxu0 0.0
    %4061 = vmatprep.subr.mxu0 0.0
    %4062 = vmatpush1.msra.mxu0 0.0
    %4063 = vmatprep.subr.mxu0 0.0
    %4064 = vmatpush1.msra.mxu0 0.0
    %4065 = vmatprep.subr.mxu0 0.0
    %4066 = vmatpush1.msra.mxu0 0.0
    %4067 = vmatprep.subr.mxu0 0.0
    %4068 = vmatpush1.msra.mxu0 0.0
    %4069 = vmatprep.subr.mxu0 0.0
    %4070 = vmatpush1.msra.mxu0 0.0
    %4071 = vmatprep.subr.mxu0 0.0
    %4072 = vmatpush1.msra.mxu0 0.0
    %4073 = vmatprep.subr.mxu0 0.0
    %4074 = vmatpush1.msra.mxu0 0.0
    %4075 = vmatprep.subr.mxu0 0.0
    %4076 = vmatpush1.msra.mxu0 0.0
    %4077 = vmatprep.subr.mxu0 0.0
    %4078 = vmatpush1.msra.mxu0 0.0
    %4079 = vmatprep.subr.mxu0 0.0
    %4080 = vmatpush1.msra.mxu0 0.0
    %4081 = vmatprep.subr.mxu0 0.0
    %4082 = vmatpush1.msra.mxu0 0.0
    %4083 = vmatprep.subr.mxu0 0.0
    %4084 = vmatpush1.msra.mxu0 0.0
    %4085 = vmatprep.subr.mxu0 0.0
    %4086 = vmatpush1.msra.mxu0 0.0
    %4087 = vmatprep.subr.mxu0 0.0
    %4088 = vmatpush1.msra.mxu0 0.0
    %4089 = vmatprep.subr.mxu0 0.0
    %4090 = vmatpush1.msra.mxu0 0.0
    %4091 = vmatprep.subr.mxu0 0.0
    %4092 = vmatpush1.msra.mxu0 0.0
    %4093 = vmatprep.subr.mxu0 0.0
    %4094 = vmatpush1.msra.mxu0 0.0
    %4095 = vmatprep.subr.mxu0 0.0
    %4096 = vmatpush1.msra.mxu0 0.0
    %4097 = vmatprep.subr.mxu0 0.0
    %4098 = vmatpush1.msra.mxu0 0.0
    %4099 = vmatprep.subr.mxu0 0.0
    %4100 = vmatpush1.msra.mxu0 0.0
    %4101 = vmatprep.subr.mxu0 0.0
    %4102 = vmatpush1.msra.mxu0 0.0
    %4103 = vmatprep.subr.mxu0 0.0
    %4104 = vmatpush1.msra.mxu0 0.0
    %4105 = vmatprep.subr.mxu0 0.0
    %4106 = vmatpush1.msra.mxu0 0.0
    %4107 = vmatprep.mubr.f32.mxu0 0.0
    %4108 = vmatmul.mubr.f32.gmra.mrb[0].mxu0 %v3849
    %v4109 = vpop.f32.mrb[0].mxu0
    %v4110 = vadd.f32 %v4041, %v4109
    %v4111 = vpop.f32.mrb[0].mxu0
    %4112 = vmatprep.mubr.f32.mxu0 0.0
    %4113 = vmatmul.mubr.f32.gmra.mrb[0].mxu0 %v3852
    %v4114 = vpop.f32.mrb[0].mxu0
    %v4115 = vadd.f32 %v4041, %v4114
    %v4116 = vpop.f32.mrb[0].mxu0
    %4117 = vmatprep.mubr.f32.mxu0 0.0
    %4118 = vmatmul.mubr.f32.gmra.mrb[0].mxu0 %v3855
    %v4119 = vpop.f32.mrb[0].mxu0
    %v4120 = vadd.f32 %v4041, %v4119
    %v4121 = vpop.f32.mrb[0].mxu0
    %4122 = vdwg.mxu0
    %v4124 = vsel %vm355, %v3924, 0
    %v4127 = vsel %vm355, %v4017, 0
    %4129 = vmatprep.subr.mxu0 0.0
    %4130 = vmatpush1.xpose.msra.mxu0 %v4127
    %4131 = vmatprep.subr.mxu0 0.0
    %4132 = vmatpush1.xpose.msra.mxu0 0.0
    %4133 = vmatprep.subr.mxu0 0.0
    %4134 = vmatpush1.xpose.msra.mxu0 0.0
    %4135 = vmatprep.subr.mxu0 0.0
    %4136 = vmatpush1.xpose.msra.mxu0 0.0
    %4137 = vmatprep.subr.mxu0 0.0
    %4138 = vmatpush1.xpose.msra.mxu0 0.0
    %4139 = vmatprep.subr.mxu0 0.0
    %4140 = vmatpush1.xpose.msra.mxu0 0.0
    %4141 = vmatprep.subr.mxu0 0.0
    %4142 = vmatpush1.xpose.msra.mxu0 0.0
    %4143 = vmatprep.subr.mxu0 0.0
    %4144 = vmatpush1.xpose.msra.mxu0 0.0
    %4145 = vmatprep.subr.mxu0 0.0
    %4146 = vmatpush1.xpose.msra.mxu0 0.0
    %4147 = vmatprep.subr.mxu0 0.0
    %4148 = vmatpush1.xpose.msra.mxu0 0.0
    %4149 = vmatprep.subr.mxu0 0.0
    %4150 = vmatpush1.xpose.msra.mxu0 0.0
    %4151 = vmatprep.subr.mxu0 0.0
    %4152 = vmatpush1.xpose.msra.mxu0 0.0
    %4153 = vmatprep.subr.mxu0 0.0
    %4154 = vmatpush1.xpose.msra.mxu0 0.0
    %4155 = vmatprep.subr.mxu0 0.0
    %4156 = vmatpush1.xpose.msra.mxu0 0.0
    %4157 = vmatprep.subr.mxu0 0.0
    %4158 = vmatpush1.xpose.msra.mxu0 0.0
    %4159 = vmatprep.subr.mxu0 0.0
    %4160 = vmatpush1.xpose.msra.mxu0 0.0
    %4161 = vmatprep.subr.mxu0 0.0
    %4162 = vmatpush1.xpose.msra.mxu0 0.0
    %4163 = vmatprep.subr.mxu0 0.0
    %4164 = vmatpush1.xpose.msra.mxu0 0.0
    %4165 = vmatprep.subr.mxu0 0.0
    %4166 = vmatpush1.xpose.msra.mxu0 0.0
    %4167 = vmatprep.subr.mxu0 0.0
    %4168 = vmatpush1.xpose.msra.mxu0 0.0
    %4169 = vmatprep.subr.mxu0 0.0
    %4170 = vmatpush1.xpose.msra.mxu0 0.0
    %4171 = vmatprep.subr.mxu0 0.0
    %4172 = vmatpush1.xpose.msra.mxu0 0.0
    %4173 = vmatprep.subr.mxu0 0.0
    %4174 = vmatpush1.xpose.msra.mxu0 0.0
    %4175 = vmatprep.subr.mxu0 0.0
    %4176 = vmatpush1.xpose.msra.mxu0 0.0
    %4177 = vmatprep.subr.mxu0 0.0
    %4178 = vmatpush1.xpose.msra.mxu0 0.0
    %4179 = vmatprep.subr.mxu0 0.0
    %4180 = vmatpush1.xpose.msra.mxu0 0.0
    %4181 = vmatprep.subr.mxu0 0.0
    %4182 = vmatpush1.xpose.msra.mxu0 0.0
    %4183 = vmatprep.subr.mxu0 0.0
    %4184 = vmatpush1.xpose.msra.mxu0 0.0
    %4185 = vmatprep.subr.mxu0 0.0
    %4186 = vmatpush1.xpose.msra.mxu0 0.0
    %4187 = vmatprep.subr.mxu0 0.0
    %4188 = vmatpush1.xpose.msra.mxu0 0.0
    %4189 = vmatprep.subr.mxu0 0.0
    %4190 = vmatpush1.xpose.msra.mxu0 0.0
    %4191 = vmatprep.subr.mxu0 0.0
    %4192 = vmatpush1.xpose.msra.mxu0 0.0
    %4193 = vmatprep.mubr.f32.mxu0 0.0
    %4194 = vmatmul.mubr.f32.gmra.mrb[0].mxu0 %v4124
    %v4195 = vpop.f32.mrb[0].mxu0
    %v4196 = vadd.f32 0.0, %v4195
    %v4197 = vpop.f32.mrb[0].mxu0
    %4198 = vdwg.mxu0
    %v4200 = vsel %vm355, %v3929, 0
    %v4203 = vsel %vm355, %v4022, 0
    %4205 = vmatprep.subr.mxu0 0.0
    %4206 = vmatpush1.xpose.msra.mxu0 %v4203
    %4207 = vmatprep.subr.mxu0 0.0
    %4208 = vmatpush1.xpose.msra.mxu0 0.0
    %4209 = vmatprep.subr.mxu0 0.0
    %4210 = vmatpush1.xpose.msra.mxu0 0.0
    %4211 = vmatprep.subr.mxu0 0.0
    %4212 = vmatpush1.xpose.msra.mxu0 0.0
    %4213 = vmatprep.subr.mxu0 0.0
    %4214 = vmatpush1.xpose.msra.mxu0 0.0
    %4215 = vmatprep.subr.mxu0 0.0
    %4216 = vmatpush1.xpose.msra.mxu0 0.0
    %4217 = vmatprep.subr.mxu0 0.0
    %4218 = vmatpush1.xpose.msra.mxu0 0.0
    %4219 = vmatprep.subr.mxu0 0.0
    %4220 = vmatpush1.xpose.msra.mxu0 0.0
    %4221 = vmatprep.subr.mxu0 0.0
    %4222 = vmatpush1.xpose.msra.mxu0 0.0
    %4223 = vmatprep.subr.mxu0 0.0
    %4224 = vmatpush1.xpose.msra.mxu0 0.0
    %4225 = vmatprep.subr.mxu0 0.0
    %4226 = vmatpush1.xpose.msra.mxu0 0.0
    %4227 = vmatprep.subr.mxu0 0.0
    %4228 = vmatpush1.xpose.msra.mxu0 0.0
    %4229 = vmatprep.subr.mxu0 0.0
    %4230 = vmatpush1.xpose.msra.mxu0 0.0
    %4231 = vmatprep.subr.mxu0 0.0
    %4232 = vmatpush1.xpose.msra.mxu0 0.0
    %4233 = vmatprep.subr.mxu0 0.0
    %4234 = vmatpush1.xpose.msra.mxu0 0.0
    %4235 = vmatprep.subr.mxu0 0.0
    %4236 = vmatpush1.xpose.msra.mxu0 0.0
    %4237 = vmatprep.subr.mxu0 0.0
    %4238 = vmatpush1.xpose.msra.mxu0 0.0
    %4239 = vmatprep.subr.mxu0 0.0
    %4240 = vmatpush1.xpose.msra.mxu0 0.0
    %4241 = vmatprep.subr.mxu0 0.0
    %4242 = vmatpush1.xpose.msra.mxu0 0.0
    %4243 = vmatprep.subr.mxu0 0.0
    %4244 = vmatpush1.xpose.msra.mxu0 0.0
    %4245 = vmatprep.subr.mxu0 0.0
    %4246 = vmatpush1.xpose.msra.mxu0 0.0
    %4247 = vmatprep.subr.mxu0 0.0
    %4248 = vmatpush1.xpose.msra.mxu0 0.0
    %4249 = vmatprep.subr.mxu0 0.0
    %4250 = vmatpush1.xpose.msra.mxu0 0.0
    %4251 = vmatprep.subr.mxu0 0.0
    %4252 = vmatpush1.xpose.msra.mxu0 0.0
    %4253 = vmatprep.subr.mxu0 0.0
    %4254 = vmatpush1.xpose.msra.mxu0 0.0
    %4255 = vmatprep.subr.mxu0 0.0
    %4256 = vmatpush1.xpose.msra.mxu0 0.0
    %4257 = vmatprep.subr.mxu0 0.0
    %4258 = vmatpush1.xpose.msra.mxu0 0.0
    %4259 = vmatprep.subr.mxu0 0.0
    %4260 = vmatpush1.xpose.msra.mxu0 0.0
    %4261 = vmatprep.subr.mxu0 0.0
    %4262 = vmatpush1.xpose.msra.mxu0 0.0
    %4263 = vmatprep.subr.mxu0 0.0
    %4264 = vmatpush1.xpose.msra.mxu0 0.0
    %4265 = vmatprep.subr.mxu0 0.0
    %4266 = vmatpush1.xpose.msra.mxu0 0.0
    %4267 = vmatprep.subr.mxu0 0.0
    %4268 = vmatpush1.xpose.msra.mxu0 0.0
    %4269 = vmatprep.mubr.f32.mxu0 0.0
    %4270 = vmatmul.mubr.f32.gmra.mrb[0].mxu0 %v4200
    %v4271 = vpop.f32.mrb[0].mxu0
    %v4272 = vadd.f32 0.0, %v4271
    %v4273 = vpop.f32.mrb[0].mxu0
    %4274 = vdwg.mxu0
    %v4276 = vsel %vm355, %v3934, 0
    %v4279 = vsel %vm355, %v4027, 0
    %4281 = vmatprep.subr.mxu0 0.0
    %4282 = vmatpush1.xpose.msra.mxu0 %v4279
    %4283 = vmatprep.subr.mxu0 0.0
    %4284 = vmatpush1.xpose.msra.mxu0 0.0
    %4285 = vmatprep.subr.mxu0 0.0
    %4286 = vmatpush1.xpose.msra.mxu0 0.0
    %4287 = vmatprep.subr.mxu0 0.0
    %4288 = vmatpush1.xpose.msra.mxu0 0.0
    %4289 = vmatprep.subr.mxu0 0.0
    %4290 = vmatpush1.xpose.msra.mxu0 0.0
    %4291 = vmatprep.subr.mxu0 0.0
    %4292 = vmatpush1.xpose.msra.mxu0 0.0
    %4293 = vmatprep.subr.mxu0 0.0
    %4294 = vmatpush1.xpose.msra.mxu0 0.0
    %4295 = vmatprep.subr.mxu0 0.0
    %4296 = vmatpush1.xpose.msra.mxu0 0.0
    %4297 = vmatprep.subr.mxu0 0.0
    %4298 = vmatpush1.xpose.msra.mxu0 0.0
    %4299 = vmatprep.subr.mxu0 0.0
    %4300 = vmatpush1.xpose.msra.mxu0 0.0
    %4301 = vmatprep.subr.mxu0 0.0
    %4302 = vmatpush1.xpose.msra.mxu0 0.0
    %4303 = vmatprep.subr.mxu0 0.0
    %4304 = vmatpush1.xpose.msra.mxu0 0.0
    %4305 = vmatprep.subr.mxu0 0.0
    %4306 = vmatpush1.xpose.msra.mxu0 0.0
    %4307 = vmatprep.subr.mxu0 0.0
    %4308 = vmatpush1.xpose.msra.mxu0 0.0
    %4309 = vmatprep.subr.mxu0 0.0
    %4310 = vmatpush1.xpose.msra.mxu0 0.0
    %4311 = vmatprep.subr.mxu0 0.0
    %4312 = vmatpush1.xpose.msra.mxu0 0.0
    %4313 = vmatprep.subr.mxu0 0.0
    %4314 = vmatpush1.xpose.msra.mxu0 0.0
    %4315 = vmatprep.subr.mxu0 0.0
    %4316 = vmatpush1.xpose.msra.mxu0 0.0
    %4317 = vmatprep.subr.mxu0 0.0
    %4318 = vmatpush1.xpose.msra.mxu0 0.0
    %4319 = vmatprep.subr.mxu0 0.0
    %4320 = vmatpush1.xpose.msra.mxu0 0.0
    %4321 = vmatprep.subr.mxu0 0.0
    %4322 = vmatpush1.xpose.msra.mxu0 0.0
    %4323 = vmatprep.subr.mxu0 0.0
    %4324 = vmatpush1.xpose.msra.mxu0 0.0
    %4325 = vmatprep.subr.mxu0 0.0
    %4326 = vmatpush1.xpose.msra.mxu0 0.0
    %4327 = vmatprep.subr.mxu0 0.0
    %4328 = vmatpush1.xpose.msra.mxu0 0.0
    %4329 = vmatprep.subr.mxu0 0.0
    %4330 = vmatpush1.xpose.msra.mxu0 0.0
    %4331 = vmatprep.subr.mxu0 0.0
    %4332 = vmatpush1.xpose.msra.mxu0 0.0
    %4333 = vmatprep.subr.mxu0 0.0
    %4334 = vmatpush1.xpose.msra.mxu0 0.0
    %4335 = vmatprep.subr.mxu0 0.0
    %4336 = vmatpush1.xpose.msra.mxu0 0.0
    %4337 = vmatprep.subr.mxu0 0.0
    %4338 = vmatpush1.xpose.msra.mxu0 0.0
    %4339 = vmatprep.subr.mxu0 0.0
    %4340 = vmatpush1.xpose.msra.mxu0 0.0
    %4341 = vmatprep.subr.mxu0 0.0
    %4342 = vmatpush1.xpose.msra.mxu0 0.0
    %4343 = vmatprep.subr.mxu0 0.0
    %4344 = vmatpush1.xpose.msra.mxu0 0.0
    %4345 = vmatprep.mubr.f32.mxu0 0.0
    %4346 = vmatmul.mubr.f32.gmra.mrb[0].mxu0 %v4276
    %v4347 = vpop.f32.mrb[0].mxu0
    %v4348 = vadd.f32 0.0, %v4347
    %v4349 = vpop.f32.mrb[0].mxu0
    %4350 = vdwg.mxu0
    %v4351 = vmul.f32 %v4196, 0.35355338
    %v4352 = vmul.f32 %v4272, 0.35355338
    %v4353 = vmul.f32 %v4348, 0.35355338
    %v4354 = vsel %vm355, %v4351, -inf
    %4355 = vmax.xlane.f32.xlu0 %v4354
    %v4356 = vpop.xlane.xlu0 %4355
    %v4357 = vsel %vm355, %v4352, -inf
    %4358 = vmax.xlane.f32.xlu0 %v4357
    %v4359 = vpop.xlane.xlu0 %4358
    %v4360 = vsel %vm355, %v4353, -inf
    %4361 = vmax.xlane.f32.xlu0 %v4360
    %v4362 = vpop.xlane.xlu0 %4361
    %v4363 = vsub.f32 %v4351, %v4356
    %v4364 = vsub.f32 %v4352, %v4359
    %v4365 = vsub.f32 %v4353, %v4362
    %v4366 = vmul.f32 %v4363, 1.442695
    %v4367 = vpow.pop %v4366
    %v4368 = vmul.f32 %v4364, 1.442695
    %v4369 = vpow.pop %v4368
    %v4370 = vmul.f32 %v4365, 1.442695
    %v4371 = vpow.pop %v4370
    %v4372 = vsel %vm355, %v4367, 0.0
    %4373 = vadd.xlane.f32.xlu0 %v4372
    %v4374 = vpop.xlane.xlu0 %4373
    %v4375 = vsel %vm355, %v4369, 0.0
    %4376 = vadd.xlane.f32.xlu0 %v4375
    %v4377 = vpop.xlane.xlu0 %4376
    %v4378 = vsel %vm355, %v4371, 0.0
    %4379 = vadd.xlane.f32.xlu0 %v4378
    %v4380 = vpop.xlane.xlu0 %4379
    %v4381 = vrcp.pop %v4374
    %v4382 = vmul.f32 %v4367, %v4381
    %v4383 = vrcp.pop %v4377
    %v4384 = vmul.f32 %v4369, %v4383
    %v4385 = vrcp.pop %v4380
    %v4386 = vmul.f32 %v4371, %v4385
    %v4388 = vsel %vm355, %v4382, 0
    %4390 = vmatprep.subr.mxu0 0.0
    %4391 = vmatpush1.msra.mxu0 %v4110
    %4392 = vmatprep.subr.mxu0 0.0
    %4393 = vmatpush1.msra.mxu0 0.0
    %4394 = vmatprep.subr.mxu0 0.0
    %4395 = vmatpush1.msra.mxu0 0.0
    %4396 = vmatprep.subr.mxu0 0.0
    %4397 = vmatpush1.msra.mxu0 0.0
    %4398 = vmatprep.subr.mxu0 0.0
    %4399 = vmatpush1.msra.mxu0 0.0
    %4400 = vmatprep.subr.mxu0 0.0
    %4401 = vmatpush1.msra.mxu0 0.0
    %4402 = vmatprep.subr.mxu0 0.0
    %4403 = vmatpush1.msra.mxu0 0.0
    %4404 = vmatprep.subr.mxu0 0.0
    %4405 = vmatpush1.msra.mxu0 0.0
    %4406 = vmatprep.subr.mxu0 0.0
    %4407 = vmatpush1.msra.mxu0 0.0
    %4408 = vmatprep.subr.mxu0 0.0
    %4409 = vmatpush1.msra.mxu0 0.0
    %4410 = vmatprep.subr.mxu0 0.0
    %4411 = vmatpush1.msra.mxu0 0.0
    %4412 = vmatprep.subr.mxu0 0.0
    %4413 = vmatpush1.msra.mxu0 0.0
    %4414 = vmatprep.subr.mxu0 0.0
    %4415 = vmatpush1.msra.mxu0 0.0
    %4416 = vmatprep.subr.mxu0 0.0
    %4417 = vmatpush1.msra.mxu0 0.0
    %4418 = vmatprep.subr.mxu0 0.0
    %4419 = vmatpush1.msra.mxu0 0.0
    %4420 = vmatprep.subr.mxu0 0.0
    %4421 = vmatpush1.msra.mxu0 0.0
    %4422 = vmatprep.subr.mxu0 0.0
    %4423 = vmatpush1.msra.mxu0 0.0
    %4424 = vmatprep.subr.mxu0 0.0
    %4425 = vmatpush1.msra.mxu0 0.0
    %4426 = vmatprep.subr.mxu0 0.0
    %4427 = vmatpush1.msra.mxu0 0.0
    %4428 = vmatprep.subr.mxu0 0.0
    %4429 = vmatpush1.msra.mxu0 0.0
    %4430 = vmatprep.subr.mxu0 0.0
    %4431 = vmatpush1.msra.mxu0 0.0
    %4432 = vmatprep.subr.mxu0 0.0
    %4433 = vmatpush1.msra.mxu0 0.0
    %4434 = vmatprep.subr.mxu0 0.0
    %4435 = vmatpush1.msra.mxu0 0.0
    %4436 = vmatprep.subr.mxu0 0.0
    %4437 = vmatpush1.msra.mxu0 0.0
    %4438 = vmatprep.subr.mxu0 0.0
    %4439 = vmatpush1.msra.mxu0 0.0
    %4440 = vmatprep.subr.mxu0 0.0
    %4441 = vmatpush1.msra.mxu0 0.0
    %4442 = vmatprep.subr.mxu0 0.0
    %4443 = vmatpush1.msra.mxu0 0.0
    %4444 = vmatprep.subr.mxu0 0.0
    %4445 = vmatpush1.msra.mxu0 0.0
    %4446 = vmatprep.subr.mxu0 0.0
    %4447 = vmatpush1.msra.mxu0 0.0
    %4448 = vmatprep.subr.mxu0 0.0
    %4449 = vmatpush1.msra.mxu0 0.0
    %4450 = vmatprep.subr.mxu0 0.0
    %4451 = vmatpush1.msra.mxu0 0.0
    %4452 = vmatprep.subr.mxu0 0.0
    %4453 = vmatpush1.msra.mxu0 0.0
    %4454 = vmatprep.mubr.f32.mxu0 0.0
    %4455 = vmatmul.mubr.f32.gmra.mrb[0].mxu0 %v4388
    %v4456 = vpop.f32.mrb[0].mxu0
    %v4457 = vadd.f32 0.0, %v4456
    %v4458 = vpop.f32.mrb[0].mxu0
    %4459 = vdwg.mxu0
    %v4461 = vsel %vm355, %v4384, 0
    %4463 = vmatprep.subr.mxu0 0.0
    %4464 = vmatpush1.msra.mxu0 %v4115
    %4465 = vmatprep.subr.mxu0 0.0
    %4466 = vmatpush1.msra.mxu0 0.0
    %4467 = vmatprep.subr.mxu0 0.0
    %4468 = vmatpush1.msra.mxu0 0.0
    %4469 = vmatprep.subr.mxu0 0.0
    %4470 = vmatpush1.msra.mxu0 0.0
    %4471 = vmatprep.subr.mxu0 0.0
    %4472 = vmatpush1.msra.mxu0 0.0
    %4473 = vmatprep.subr.mxu0 0.0
    %4474 = vmatpush1.msra.mxu0 0.0
    %4475 = vmatprep.subr.mxu0 0.0
    %4476 = vmatpush1.msra.mxu0 0.0
    %4477 = vmatprep.subr.mxu0 0.0
    %4478 = vmatpush1.msra.mxu0 0.0
    %4479 = vmatprep.subr.mxu0 0.0
    %4480 = vmatpush1.msra.mxu0 0.0
    %4481 = vmatprep.subr.mxu0 0.0
    %4482 = vmatpush1.msra.mxu0 0.0
    %4483 = vmatprep.subr.mxu0 0.0
    %4484 = vmatpush1.msra.mxu0 0.0
    %4485 = vmatprep.subr.mxu0 0.0
    %4486 = vmatpush1.msra.mxu0 0.0
    %4487 = vmatprep.subr.mxu0 0.0
    %4488 = vmatpush1.msra.mxu0 0.0
    %4489 = vmatprep.subr.mxu0 0.0
    %4490 = vmatpush1.msra.mxu0 0.0
    %4491 = vmatprep.subr.mxu0 0.0
    %4492 = vmatpush1.msra.mxu0 0.0
    %4493 = vmatprep.subr.mxu0 0.0
    %4494 = vmatpush1.msra.mxu0 0.0
    %4495 = vmatprep.subr.mxu0 0.0
    %4496 = vmatpush1.msra.mxu0 0.0
    %4497 = vmatprep.subr.mxu0 0.0
    %4498 = vmatpush1.msra.mxu0 0.0
    %4499 = vmatprep.subr.mxu0 0.0
    %4500 = vmatpush1.msra.mxu0 0.0
    %4501 = vmatprep.subr.mxu0 0.0
    %4502 = vmatpush1.msra.mxu0 0.0
    %4503 = vmatprep.subr.mxu0 0.0
    %4504 = vmatpush1.msra.mxu0 0.0
    %4505 = vmatprep.subr.mxu0 0.0
    %4506 = vmatpush1.msra.mxu0 0.0
    %4507 = vmatprep.subr.mxu0 0.0
    %4508 = vmatpush1.msra.mxu0 0.0
    %4509 = vmatprep.subr.mxu0 0.0
    %4510 = vmatpush1.msra.mxu0 0.0
    %4511 = vmatprep.subr.mxu0 0.0
    %4512 = vmatpush1.msra.mxu0 0.0
    %4513 = vmatprep.subr.mxu0 0.0
    %4514 = vmatpush1.msra.mxu0 0.0
    %4515 = vmatprep.subr.mxu0 0.0
    %4516 = vmatpush1.msra.mxu0 0.0
    %4517 = vmatprep.subr.mxu0 0.0
    %4518 = vmatpush1.msra.mxu0 0.0
    %4519 = vmatprep.subr.mxu0 0.0
    %4520 = vmatpush1.msra.mxu0 0.0
    %4521 = vmatprep.subr.mxu0 0.0
    %4522 = vmatpush1.msra.mxu0 0.0
    %4523 = vmatprep.subr.mxu0 0.0
    %4524 = vmatpush1.msra.mxu0 0.0
    %4525 = vmatprep.subr.mxu0 0.0
    %4526 = vmatpush1.msra.mxu0 0.0
    %4527 = vmatprep.mubr.f32.mxu0 0.0
    %4528 = vmatmul.mubr.f32.gmra.mrb[0].mxu0 %v4461
    %v4529 = vpop.f32.mrb[0].mxu0
    %v4530 = vadd.f32 0.0, %v4529
    %v4531 = vpop.f32.mrb[0].mxu0
    %4532 = vdwg.mxu0
    %v4534 = vsel %vm355, %v4386, 0
    %4536 = vmatprep.subr.mxu0 0.0
    %4537 = vmatpush1.msra.mxu0 %v4120
    %4538 = vmatprep.subr.mxu0 0.0
    %4539 = vmatpush1.msra.mxu0 0.0
    %4540 = vmatprep.subr.mxu0 0.0
    %4541 = vmatpush1.msra.mxu0 0.0
    %4542 = vmatprep.subr.mxu0 0.0
    %4543 = vmatpush1.msra.mxu0 0.0
    %4544 = vmatprep.subr.mxu0 0.0
    %4545 = vmatpush1.msra.mxu0 0.0
    %4546 = vmatprep.subr.mxu0 0.0
    %4547 = vmatpush1.msra.mxu0 0.0
    %4548 = vmatprep.subr.mxu0 0.0
    %4549 = vmatpush1.msra.mxu0 0.0
    %4550 = vmatprep.subr.mxu0 0.0
    %4551 = vmatpush1.msra.mxu0 0.0
    %4552 = vmatprep.subr.mxu0 0.0
    %4553 = vmatpush1.msra.mxu0 0.0
    %4554 = vmatprep.subr.mxu0 0.0
    %4555 = vmatpush1.msra.mxu0 0.0
    %4556 = vmatprep.subr.mxu0 0.0
    %4557 = vmatpush1.msra.mxu0 0.0
    %4558 = vmatprep.subr.mxu0 0.0
    %4559 = vmatpush1.msra.mxu0 0.0
    %4560 = vmatprep.subr.mxu0 0.0
    %4561 = vmatpush1.msra.mxu0 0.0
    %4562 = vmatprep.subr.mxu0 0.0
    %4563 = vmatpush1.msra.mxu0 0.0
    %4564 = vmatprep.subr.mxu0 0.0
    %4565 = vmatpush1.msra.mxu0 0.0
    %4566 = vmatprep.subr.mxu0 0.0
    %4567 = vmatpush1.msra.mxu0 0.0
    %4568 = vmatprep.subr.mxu0 0.0
    %4569 = vmatpush1.msra.mxu0 0.0
    %4570 = vmatprep.subr.mxu0 0.0
    %4571 = vmatpush1.msra.mxu0 0.0
    %4572 = vmatprep.subr.mxu0 0.0
    %4573 = vmatpush1.msra.mxu0 0.0
    %4574 = vmatprep.subr.mxu0 0.0
    %4575 = vmatpush1.msra.mxu0 0.0
    %4576 = vmatprep.subr.mxu0 0.0
    %4577 = vmatpush1.msra.mxu0 0.0
    %4578 = vmatprep.subr.mxu0 0.0
    %4579 = vmatpush1.msra.mxu0 0.0
    %4580 = vmatprep.subr.mxu0 0.0
    %4581 = vmatpush1.msra.mxu0 0.0
    %4582 = vmatprep.subr.mxu0 0.0
    %4583 = vmatpush1.msra.mxu0 0.0
    %4584 = vmatprep.subr.mxu0 0.0
    %4585 = vmatpush1.msra.mxu0 0.0
    %4586 = vmatprep.subr.mxu0 0.0
    %4587 = vmatpush1.msra.mxu0 0.0
    %4588 = vmatprep.subr.mxu0 0.0
    %4589 = vmatpush1.msra.mxu0 0.0
    %4590 = vmatprep.subr.mxu0 0.0
    %4591 = vmatpush1.msra.mxu0 0.0
    %4592 = vmatprep.subr.mxu0 0.0
    %4593 = vmatpush1.msra.mxu0 0.0
    %4594 = vmatprep.subr.mxu0 0.0
    %4595 = vmatpush1.msra.mxu0 0.0
    %4596 = vmatprep.subr.mxu0 0.0
    %4597 = vmatpush1.msra.mxu0 0.0
    %4598 = vmatprep.subr.mxu0 0.0
    %4599 = vmatpush1.msra.mxu0 0.0
    %4600 = vmatprep.mubr.f32.mxu0 0.0
    %4601 = vmatmul.mubr.f32.gmra.mrb[0].mxu0 %v4534
    %v4602 = vpop.f32.mrb[0].mxu0
    %v4603 = vadd.f32 0.0, %v4602
    %v4604 = vpop.f32.mrb[0].mxu0
    %4605 = vdwg.mxu0
    %s4606 = scalar_lea.vmem %s7, 32
    %v4607 = vld [vmem:[%s4606] sm:$0xff]
    %s4608 = scalar_lea.vmem %s1, 160
    %v4609 = vld [vmem:[%s4608] sm:$0xff]
    %v4610 = vld [vmem:[%s4608 + $0x8] sm:$0xff]
    %v4611 = vld [vmem:[%s4608 + $0x10] sm:$0xff]
    %v4612 = vld [vmem:[%s4608 + $0x18] sm:$0xff]
    %s4613 = scalar_lea.vmem %s4, 5
    %v4614 = vld [vmem:[%s4613] sm:$0x1]
    %v4616 = vlaneseq
    %v4617 = vshrl.u32 %v4616, 7
    %v4618 = vsub.s32 0, %v4617
    %v4619 = vrot.slane %v4614, %v4618
    %4621 = vmatprep.subr.mxu0 0.0
    %4622 = vmatpush1.msra.mxu0 %v4609
    %4623 = vmatprep.subr.mxu0 0.0
    %4624 = vmatpush1.msra.mxu0 %v4610
    %4625 = vmatprep.subr.mxu0 0.0
    %4626 = vmatpush1.msra.mxu0 %v4611
    %4627 = vmatprep.subr.mxu0 0.0
    %4628 = vmatpush1.msra.mxu0 %v4612
    %4629 = vmatprep.subr.mxu0 0.0
    %4630 = vmatpush1.msra.mxu0 0.0
    %4631 = vmatprep.subr.mxu0 0.0
    %4632 = vmatpush1.msra.mxu0 0.0
    %4633 = vmatprep.subr.mxu0 0.0
    %4634 = vmatpush1.msra.mxu0 0.0
    %4635 = vmatprep.subr.mxu0 0.0
    %4636 = vmatpush1.msra.mxu0 0.0
    %4637 = vmatprep.subr.mxu0 0.0
    %4638 = vmatpush1.msra.mxu0 0.0
    %4639 = vmatprep.subr.mxu0 0.0
    %4640 = vmatpush1.msra.mxu0 0.0
    %4641 = vmatprep.subr.mxu0 0.0
    %4642 = vmatpush1.msra.mxu0 0.0
    %4643 = vmatprep.subr.mxu0 0.0
    %4644 = vmatpush1.msra.mxu0 0.0
    %4645 = vmatprep.subr.mxu0 0.0
    %4646 = vmatpush1.msra.mxu0 0.0
    %4647 = vmatprep.subr.mxu0 0.0
    %4648 = vmatpush1.msra.mxu0 0.0
    %4649 = vmatprep.subr.mxu0 0.0
    %4650 = vmatpush1.msra.mxu0 0.0
    %4651 = vmatprep.subr.mxu0 0.0
    %4652 = vmatpush1.msra.mxu0 0.0
    %4653 = vmatprep.subr.mxu0 0.0
    %4654 = vmatpush1.msra.mxu0 0.0
    %4655 = vmatprep.subr.mxu0 0.0
    %4656 = vmatpush1.msra.mxu0 0.0
    %4657 = vmatprep.subr.mxu0 0.0
    %4658 = vmatpush1.msra.mxu0 0.0
    %4659 = vmatprep.subr.mxu0 0.0
    %4660 = vmatpush1.msra.mxu0 0.0
    %4661 = vmatprep.subr.mxu0 0.0
    %4662 = vmatpush1.msra.mxu0 0.0
    %4663 = vmatprep.subr.mxu0 0.0
    %4664 = vmatpush1.msra.mxu0 0.0
    %4665 = vmatprep.subr.mxu0 0.0
    %4666 = vmatpush1.msra.mxu0 0.0
    %4667 = vmatprep.subr.mxu0 0.0
    %4668 = vmatpush1.msra.mxu0 0.0
    %4669 = vmatprep.subr.mxu0 0.0
    %4670 = vmatpush1.msra.mxu0 0.0
    %4671 = vmatprep.subr.mxu0 0.0
    %4672 = vmatpush1.msra.mxu0 0.0
    %4673 = vmatprep.subr.mxu0 0.0
    %4674 = vmatpush1.msra.mxu0 0.0
    %4675 = vmatprep.subr.mxu0 0.0
    %4676 = vmatpush1.msra.mxu0 0.0
    %4677 = vmatprep.subr.mxu0 0.0
    %4678 = vmatpush1.msra.mxu0 0.0
    %4679 = vmatprep.subr.mxu0 0.0
    %4680 = vmatpush1.msra.mxu0 0.0
    %4681 = vmatprep.subr.mxu0 0.0
    %4682 = vmatpush1.msra.mxu0 0.0
    %4683 = vmatprep.subr.mxu0 0.0
    %4684 = vmatpush1.msra.mxu0 0.0
    %4685 = vmatprep.mubr.f32.mxu0 0.0
    %4686 = vmatmul.mubr.f32.gmra.mrb[0].mxu0 %v3849
    %v4687 = vpop.f32.mrb[0].mxu0
    %v4688 = vadd.f32 %v4619, %v4687
    %v4689 = vpop.f32.mrb[0].mxu0
    %4690 = vmatprep.mubr.f32.mxu0 0.0
    %4691 = vmatmul.mubr.f32.gmra.mrb[0].mxu0 %v3852
    %v4692 = vpop.f32.mrb[0].mxu0
    %v4693 = vadd.f32 %v4619, %v4692
    %v4694 = vpop.f32.mrb[0].mxu0
    %4695 = vmatprep.mubr.f32.mxu0 0.0
    %4696 = vmatmul.mubr.f32.gmra.mrb[0].mxu0 %v3855
    %v4697 = vpop.f32.mrb[0].mxu0
    %v4698 = vadd.f32 %v4619, %v4697
    %v4699 = vpop.f32.mrb[0].mxu0
    %4700 = vdwg.mxu0
    %s4701 = scalar_lea.vmem %s2, 160
    %v4702 = vld [vmem:[%s4701] sm:$0xff]
    %v4703 = vld [vmem:[%s4701 + $0x8] sm:$0xff]
    %v4704 = vld [vmem:[%s4701 + $0x10] sm:$0xff]
    %v4705 = vld [vmem:[%s4701 + $0x18] sm:$0xff]
    %s4706 = scalar_lea.vmem %s5, 5
    %v4707 = vld [vmem:[%s4706] sm:$0x1]
    %v4709 = vlaneseq
    %v4710 = vshrl.u32 %v4709, 7
    %v4711 = vsub.s32 0, %v4710
    %v4712 = vrot.slane %v4707, %v4711
    %4714 = vmatprep.subr.mxu0 0.0
    %4715 = vmatpush1.msra.mxu0 %v4702
    %4716 = vmatprep.subr.mxu0 0.0
    %4717 = vmatpush1.msra.mxu0 %v4703
    %4718 = vmatprep.subr.mxu0 0.0
    %4719 = vmatpush1.msra.mxu0 %v4704
    %4720 = vmatprep.subr.mxu0 0.0
    %4721 = vmatpush1.msra.mxu0 %v4705
    %4722 = vmatprep.subr.mxu0 0.0
    %4723 = vmatpush1.msra.mxu0 0.0
    %4724 = vmatprep.subr.mxu0 0.0
    %4725 = vmatpush1.msra.mxu0 0.0
    %4726 = vmatprep.subr.mxu0 0.0
    %4727 = vmatpush1.msra.mxu0 0.0
    %4728 = vmatprep.subr.mxu0 0.0
    %4729 = vmatpush1.msra.mxu0 0.0
    %4730 = vmatprep.subr.mxu0 0.0
    %4731 = vmatpush1.msra.mxu0 0.0
    %4732 = vmatprep.subr.mxu0 0.0
    %4733 = vmatpush1.msra.mxu0 0.0
    %4734 = vmatprep.subr.mxu0 0.0
    %4735 = vmatpush1.msra.mxu0 0.0
    %4736 = vmatprep.subr.mxu0 0.0
    %4737 = vmatpush1.msra.mxu0 0.0
    %4738 = vmatprep.subr.mxu0 0.0
    %4739 = vmatpush1.msra.mxu0 0.0
    %4740 = vmatprep.subr.mxu0 0.0
    %4741 = vmatpush1.msra.mxu0 0.0
    %4742 = vmatprep.subr.mxu0 0.0
    %4743 = vmatpush1.msra.mxu0 0.0
    %4744 = vmatprep.subr.mxu0 0.0
    %4745 = vmatpush1.msra.mxu0 0.0
    %4746 = vmatprep.subr.mxu0 0.0
    %4747 = vmatpush1.msra.mxu0 0.0
    %4748 = vmatprep.subr.mxu0 0.0
    %4749 = vmatpush1.msra.mxu0 0.0
    %4750 = vmatprep.subr.mxu0 0.0
    %4751 = vmatpush1.msra.mxu0 0.0
    %4752 = vmatprep.subr.mxu0 0.0
    %4753 = vmatpush1.msra.mxu0 0.0
    %4754 = vmatprep.subr.mxu0 0.0
    %4755 = vmatpush1.msra.mxu0 0.0
    %4756 = vmatprep.subr.mxu0 0.0
    %4757 = vmatpush1.msra.mxu0 0.0
    %4758 = vmatprep.subr.mxu0 0.0
    %4759 = vmatpush1.msra.mxu0 0.0
    %4760 = vmatprep.subr.mxu0 0.0
    %4761 = vmatpush1.msra.mxu0 0.0
    %4762 = vmatprep.subr.mxu0 0.0
    %4763 = vmatpush1.msra.mxu0 0.0
    %4764 = vmatprep.subr.mxu0 0.0
    %4765 = vmatpush1.msra.mxu0 0.0
    %4766 = vmatprep.subr.mxu0 0.0
    %4767 = vmatpush1.msra.mxu0 0.0
    %4768 = vmatprep.subr.mxu0 0.0
    %4769 = vmatpush1.msra.mxu0 0.0
    %4770 = vmatprep.subr.mxu0 0.0
    %4771 = vmatpush1.msra.mxu0 0.0
    %4772 = vmatprep.subr.mxu0 0.0
    %4773 = vmatpush1.msra.mxu0 0.0
    %4774 = vmatprep.subr.mxu0 0.0
    %4775 = vmatpush1.msra.mxu0 0.0
    %4776 = vmatprep.subr.mxu0 0.0
    %4777 = vmatpush1.msra.mxu0 0.0
    %4778 = vmatprep.mubr.f32.mxu0 0.0
    %4779 = vmatmul.mubr.f32.gmra.mrb[0].mxu0 %v3849
    %v4780 = vpop.f32.mrb[0].mxu0
    %v4781 = vadd.f32 %v4712, %v4780
    %v4782 = vpop.f32.mrb[0].mxu0
    %4783 = vmatprep.mubr.f32.mxu0 0.0
    %4784 = vmatmul.mubr.f32.gmra.mrb[0].mxu0 %v3852
    %v4785 = vpop.f32.mrb[0].mxu0
    %v4786 = vadd.f32 %v4712, %v4785
    %v4787 = vpop.f32.mrb[0].mxu0
    %4788 = vmatprep.mubr.f32.mxu0 0.0
    %4789 = vmatmul.mubr.f32.gmra.mrb[0].mxu0 %v3855
    %v4790 = vpop.f32.mrb[0].mxu0
    %v4791 = vadd.f32 %v4712, %v4790
    %v4792 = vpop.f32.mrb[0].mxu0
    %4793 = vdwg.mxu0
    %s4794 = scalar_lea.vmem %s3, 160
    %v4795 = vld [vmem:[%s4794] sm:$0xff]
    %v4796 = vld [vmem:[%s4794 + $0x8] sm:$0xff]
    %v4797 = vld [vmem:[%s4794 + $0x10] sm:$0xff]
    %v4798 = vld [vmem:[%s4794 + $0x18] sm:$0xff]
    %s4799 = scalar_lea.vmem %s6, 5
    %v4800 = vld [vmem:[%s4799] sm:$0x1]
    %v4802 = vlaneseq
    %v4803 = vshrl.u32 %v4802, 7
    %v4804 = vsub.s32 0, %v4803
    %v4805 = vrot.slane %v4800, %v4804
    %4807 = vmatprep.subr.mxu0 0.0
    %4808 = vmatpush1.msra.mxu0 %v4795
    %4809 = vmatprep.subr.mxu0 0.0
    %4810 = vmatpush1.msra.mxu0 %v4796
    %4811 = vmatprep.subr.mxu0 0.0
    %4812 = vmatpush1.msra.mxu0 %v4797
    %4813 = vmatprep.subr.mxu0 0.0
    %4814 = vmatpush1.msra.mxu0 %v4798
    %4815 = vmatprep.subr.mxu0 0.0
    %4816 = vmatpush1.msra.mxu0 0.0
    %4817 = vmatprep.subr.mxu0 0.0
    %4818 = vmatpush1.msra.mxu0 0.0
    %4819 = vmatprep.subr.mxu0 0.0
    %4820 = vmatpush1.msra.mxu0 0.0
    %4821 = vmatprep.subr.mxu0 0.0
    %4822 = vmatpush1.msra.mxu0 0.0
    %4823 = vmatprep.subr.mxu0 0.0
    %4824 = vmatpush1.msra.mxu0 0.0
    %4825 = vmatprep.subr.mxu0 0.0
    %4826 = vmatpush1.msra.mxu0 0.0
    %4827 = vmatprep.subr.mxu0 0.0
    %4828 = vmatpush1.msra.mxu0 0.0
    %4829 = vmatprep.subr.mxu0 0.0
    %4830 = vmatpush1.msra.mxu0 0.0
    %4831 = vmatprep.subr.mxu0 0.0
    %4832 = vmatpush1.msra.mxu0 0.0
    %4833 = vmatprep.subr.mxu0 0.0
    %4834 = vmatpush1.msra.mxu0 0.0
    %4835 = vmatprep.subr.mxu0 0.0
    %4836 = vmatpush1.msra.mxu0 0.0
    %4837 = vmatprep.subr.mxu0 0.0
    %4838 = vmatpush1.msra.mxu0 0.0
    %4839 = vmatprep.subr.mxu0 0.0
    %4840 = vmatpush1.msra.mxu0 0.0
    %4841 = vmatprep.subr.mxu0 0.0
    %4842 = vmatpush1.msra.mxu0 0.0
    %4843 = vmatprep.subr.mxu0 0.0
    %4844 = vmatpush1.msra.mxu0 0.0
    %4845 = vmatprep.subr.mxu0 0.0
    %4846 = vmatpush1.msra.mxu0 0.0
    %4847 = vmatprep.subr.mxu0 0.0
    %4848 = vmatpush1.msra.mxu0 0.0
    %4849 = vmatprep.subr.mxu0 0.0
    %4850 = vmatpush1.msra.mxu0 0.0
    %4851 = vmatprep.subr.mxu0 0.0
    %4852 = vmatpush1.msra.mxu0 0.0
    %4853 = vmatprep.subr.mxu0 0.0
    %4854 = vmatpush1.msra.mxu0 0.0
    %4855 = vmatprep.subr.mxu0 0.0
    %4856 = vmatpush1.msra.mxu0 0.0
    %4857 = vmatprep.subr.mxu0 0.0
    %4858 = vmatpush1.msra.mxu0 0.0
    %4859 = vmatprep.subr.mxu0 0.0
    %4860 = vmatpush1.msra.mxu0 0.0
    %4861 = vmatprep.subr.mxu0 0.0
    %4862 = vmatpush1.msra.mxu0 0.0
    %4863 = vmatprep.subr.mxu0 0.0
    %4864 = vmatpush1.msra.mxu0 0.0
    %4865 = vmatprep.subr.mxu0 0.0
    %4866 = vmatpush1.msra.mxu0 0.0
    %4867 = vmatprep.subr.mxu0 0.0
    %4868 = vmatpush1.msra.mxu0 0.0
    %4869 = vmatprep.subr.mxu0 0.0
    %4870 = vmatpush1.msra.mxu0 0.0
    %4871 = vmatprep.mubr.f32.mxu0 0.0
    %4872 = vmatmul.mubr.f32.gmra.mrb[0].mxu0 %v3849
    %v4873 = vpop.f32.mrb[0].mxu0
    %v4874 = vadd.f32 %v4805, %v4873
    %v4875 = vpop.f32.mrb[0].mxu0
    %4876 = vmatprep.mubr.f32.mxu0 0.0
    %4877 = vmatmul.mubr.f32.gmra.mrb[0].mxu0 %v3852
    %v4878 = vpop.f32.mrb[0].mxu0
    %v4879 = vadd.f32 %v4805, %v4878
    %v4880 = vpop.f32.mrb[0].mxu0
    %4881 = vmatprep.mubr.f32.mxu0 0.0
    %4882 = vmatmul.mubr.f32.gmra.mrb[0].mxu0 %v3855
    %v4883 = vpop.f32.mrb[0].mxu0
    %v4884 = vadd.f32 %v4805, %v4883
    %v4885 = vpop.f32.mrb[0].mxu0
    %4886 = vdwg.mxu0
    %v4888 = vsel %vm355, %v4688, 0
    %v4891 = vsel %vm355, %v4781, 0
    %4893 = vmatprep.subr.mxu0 0.0
    %4894 = vmatpush1.xpose.msra.mxu0 %v4891
    %4895 = vmatprep.subr.mxu0 0.0
    %4896 = vmatpush1.xpose.msra.mxu0 0.0
    %4897 = vmatprep.subr.mxu0 0.0
    %4898 = vmatpush1.xpose.msra.mxu0 0.0
    %4899 = vmatprep.subr.mxu0 0.0
    %4900 = vmatpush1.xpose.msra.mxu0 0.0
    %4901 = vmatprep.subr.mxu0 0.0
    %4902 = vmatpush1.xpose.msra.mxu0 0.0
    %4903 = vmatprep.subr.mxu0 0.0
    %4904 = vmatpush1.xpose.msra.mxu0 0.0
    %4905 = vmatprep.subr.mxu0 0.0
    %4906 = vmatpush1.xpose.msra.mxu0 0.0
    %4907 = vmatprep.subr.mxu0 0.0
    %4908 = vmatpush1.xpose.msra.mxu0 0.0
    %4909 = vmatprep.subr.mxu0 0.0
    %4910 = vmatpush1.xpose.msra.mxu0 0.0
    %4911 = vmatprep.subr.mxu0 0.0
    %4912 = vmatpush1.xpose.msra.mxu0 0.0
    %4913 = vmatprep.subr.mxu0 0.0
    %4914 = vmatpush1.xpose.msra.mxu0 0.0
    %4915 = vmatprep.subr.mxu0 0.0
    %4916 = vmatpush1.xpose.msra.mxu0 0.0
    %4917 = vmatprep.subr.mxu0 0.0
    %4918 = vmatpush1.xpose.msra.mxu0 0.0
    %4919 = vmatprep.subr.mxu0 0.0
    %4920 = vmatpush1.xpose.msra.mxu0 0.0
    %4921 = vmatprep.subr.mxu0 0.0
    %4922 = vmatpush1.xpose.msra.mxu0 0.0
    %4923 = vmatprep.subr.mxu0 0.0
    %4924 = vmatpush1.xpose.msra.mxu0 0.0
    %4925 = vmatprep.subr.mxu0 0.0
    %4926 = vmatpush1.xpose.msra.mxu0 0.0
    %4927 = vmatprep.subr.mxu0 0.0
    %4928 = vmatpush1.xpose.msra.mxu0 0.0
    %4929 = vmatprep.subr.mxu0 0.0
    %4930 = vmatpush1.xpose.msra.mxu0 0.0
    %4931 = vmatprep.subr.mxu0 0.0
    %4932 = vmatpush1.xpose.msra.mxu0 0.0
    %4933 = vmatprep.subr.mxu0 0.0
    %4934 = vmatpush1.xpose.msra.mxu0 0.0
    %4935 = vmatprep.subr.mxu0 0.0
    %4936 = vmatpush1.xpose.msra.mxu0 0.0
    %4937 = vmatprep.subr.mxu0 0.0
    %4938 = vmatpush1.xpose.msra.mxu0 0.0
    %4939 = vmatprep.subr.mxu0 0.0
    %4940 = vmatpush1.xpose.msra.mxu0 0.0
    %4941 = vmatprep.subr.mxu0 0.0
    %4942 = vmatpush1.xpose.msra.mxu0 0.0
    %4943 = vmatprep.subr.mxu0 0.0
    %4944 = vmatpush1.xpose.msra.mxu0 0.0
    %4945 = vmatprep.subr.mxu0 0.0
    %4946 = vmatpush1.xpose.msra.mxu0 0.0
    %4947 = vmatprep.subr.mxu0 0.0
    %4948 = vmatpush1.xpose.msra.mxu0 0.0
    %4949 = vmatprep.subr.mxu0 0.0
    %4950 = vmatpush1.xpose.msra.mxu0 0.0
    %4951 = vmatprep.subr.mxu0 0.0
    %4952 = vmatpush1.xpose.msra.mxu0 0.0
    %4953 = vmatprep.subr.mxu0 0.0
    %4954 = vmatpush1.xpose.msra.mxu0 0.0
    %4955 = vmatprep.subr.mxu0 0.0
    %4956 = vmatpush1.xpose.msra.mxu0 0.0
    %4957 = vmatprep.mubr.f32.mxu0 0.0
    %4958 = vmatmul.mubr.f32.gmra.mrb[0].mxu0 %v4888
    %v4959 = vpop.f32.mrb[0].mxu0
    %v4960 = vadd.f32 0.0, %v4959
    %v4961 = vpop.f32.mrb[0].mxu0
    %4962 = vdwg.mxu0
    %v4964 = vsel %vm355, %v4693, 0
    %v4967 = vsel %vm355, %v4786, 0
    %4969 = vmatprep.subr.mxu0 0.0
    %4970 = vmatpush1.xpose.msra.mxu0 %v4967
    %4971 = vmatprep.subr.mxu0 0.0
    %4972 = vmatpush1.xpose.msra.mxu0 0.0
    %4973 = vmatprep.subr.mxu0 0.0
    %4974 = vmatpush1.xpose.msra.mxu0 0.0
    %4975 = vmatprep.subr.mxu0 0.0
    %4976 = vmatpush1.xpose.msra.mxu0 0.0
    %4977 = vmatprep.subr.mxu0 0.0
    %4978 = vmatpush1.xpose.msra.mxu0 0.0
    %4979 = vmatprep.subr.mxu0 0.0
    %4980 = vmatpush1.xpose.msra.mxu0 0.0
    %4981 = vmatprep.subr.mxu0 0.0
    %4982 = vmatpush1.xpose.msra.mxu0 0.0
    %4983 = vmatprep.subr.mxu0 0.0
    %4984 = vmatpush1.xpose.msra.mxu0 0.0
    %4985 = vmatprep.subr.mxu0 0.0
    %4986 = vmatpush1.xpose.msra.mxu0 0.0
    %4987 = vmatprep.subr.mxu0 0.0
    %4988 = vmatpush1.xpose.msra.mxu0 0.0
    %4989 = vmatprep.subr.mxu0 0.0
    %4990 = vmatpush1.xpose.msra.mxu0 0.0
    %4991 = vmatprep.subr.mxu0 0.0
    %4992 = vmatpush1.xpose.msra.mxu0 0.0
    %4993 = vmatprep.subr.mxu0 0.0
    %4994 = vmatpush1.xpose.msra.mxu0 0.0
    %4995 = vmatprep.subr.mxu0 0.0
    %4996 = vmatpush1.xpose.msra.mxu0 0.0
    %4997 = vmatprep.subr.mxu0 0.0
    %4998 = vmatpush1.xpose.msra.mxu0 0.0
    %4999 = vmatprep.subr.mxu0 0.0
    %5000 = vmatpush1.xpose.msra.mxu0 0.0
    %5001 = vmatprep.subr.mxu0 0.0
    %5002 = vmatpush1.xpose.msra.mxu0 0.0
    %5003 = vmatprep.subr.mxu0 0.0
    %5004 = vmatpush1.xpose.msra.mxu0 0.0
    %5005 = vmatprep.subr.mxu0 0.0
    %5006 = vmatpush1.xpose.msra.mxu0 0.0
    %5007 = vmatprep.subr.mxu0 0.0
    %5008 = vmatpush1.xpose.msra.mxu0 0.0
    %5009 = vmatprep.subr.mxu0 0.0
    %5010 = vmatpush1.xpose.msra.mxu0 0.0
    %5011 = vmatprep.subr.mxu0 0.0
    %5012 = vmatpush1.xpose.msra.mxu0 0.0
    %5013 = vmatprep.subr.mxu0 0.0
    %5014 = vmatpush1.xpose.msra.mxu0 0.0
    %5015 = vmatprep.subr.mxu0 0.0
    %5016 = vmatpush1.xpose.msra.mxu0 0.0
    %5017 = vmatprep.subr.mxu0 0.0
    %5018 = vmatpush1.xpose.msra.mxu0 0.0
    %5019 = vmatprep.subr.mxu0 0.0
    %5020 = vmatpush1.xpose.msra.mxu0 0.0
    %5021 = vmatprep.subr.mxu0 0.0
    %5022 = vmatpush1.xpose.msra.mxu0 0.0
    %5023 = vmatprep.subr.mxu0 0.0
    %5024 = vmatpush1.xpose.msra.mxu0 0.0
    %5025 = vmatprep.subr.mxu0 0.0
    %5026 = vmatpush1.xpose.msra.mxu0 0.0
    %5027 = vmatprep.subr.mxu0 0.0
    %5028 = vmatpush1.xpose.msra.mxu0 0.0
    %5029 = vmatprep.subr.mxu0 0.0
    %5030 = vmatpush1.xpose.msra.mxu0 0.0
    %5031 = vmatprep.subr.mxu0 0.0
    %5032 = vmatpush1.xpose.msra.mxu0 0.0
    %5033 = vmatprep.mubr.f32.mxu0 0.0
    %5034 = vmatmul.mubr.f32.gmra.mrb[0].mxu0 %v4964
    %v5035 = vpop.f32.mrb[0].mxu0
    %v5036 = vadd.f32 0.0, %v5035
    %v5037 = vpop.f32.mrb[0].mxu0
    %5038 = vdwg.mxu0
    %v5040 = vsel %vm355, %v4698, 0
    %v5043 = vsel %vm355, %v4791, 0
    %5045 = vmatprep.subr.mxu0 0.0
    %5046 = vmatpush1.xpose.msra.mxu0 %v5043
    %5047 = vmatprep.subr.mxu0 0.0
    %5048 = vmatpush1.xpose.msra.mxu0 0.0
    %5049 = vmatprep.subr.mxu0 0.0
    %5050 = vmatpush1.xpose.msra.mxu0 0.0
    %5051 = vmatprep.subr.mxu0 0.0
    %5052 = vmatpush1.xpose.msra.mxu0 0.0
    %5053 = vmatprep.subr.mxu0 0.0
    %5054 = vmatpush1.xpose.msra.mxu0 0.0
    %5055 = vmatprep.subr.mxu0 0.0
    %5056 = vmatpush1.xpose.msra.mxu0 0.0
    %5057 = vmatprep.subr.mxu0 0.0
    %5058 = vmatpush1.xpose.msra.mxu0 0.0
    %5059 = vmatprep.subr.mxu0 0.0
    %5060 = vmatpush1.xpose.msra.mxu0 0.0
    %5061 = vmatprep.subr.mxu0 0.0
    %5062 = vmatpush1.xpose.msra.mxu0 0.0
    %5063 = vmatprep.subr.mxu0 0.0
    %5064 = vmatpush1.xpose.msra.mxu0 0.0
    %5065 = vmatprep.subr.mxu0 0.0
    %5066 = vmatpush1.xpose.msra.mxu0 0.0
    %5067 = vmatprep.subr.mxu0 0.0
    %5068 = vmatpush1.xpose.msra.mxu0 0.0
    %5069 = vmatprep.subr.mxu0 0.0
    %5070 = vmatpush1.xpose.msra.mxu0 0.0
    %5071 = vmatprep.subr.mxu0 0.0
    %5072 = vmatpush1.xpose.msra.mxu0 0.0
    %5073 = vmatprep.subr.mxu0 0.0
    %5074 = vmatpush1.xpose.msra.mxu0 0.0
    %5075 = vmatprep.subr.mxu0 0.0
    %5076 = vmatpush1.xpose.msra.mxu0 0.0
    %5077 = vmatprep.subr.mxu0 0.0
    %5078 = vmatpush1.xpose.msra.mxu0 0.0
    %5079 = vmatprep.subr.mxu0 0.0
    %5080 = vmatpush1.xpose.msra.mxu0 0.0
    %5081 = vmatprep.subr.mxu0 0.0
    %5082 = vmatpush1.xpose.msra.mxu0 0.0
    %5083 = vmatprep.subr.mxu0 0.0
    %5084 = vmatpush1.xpose.msra.mxu0 0.0
    %5085 = vmatprep.subr.mxu0 0.0
    %5086 = vmatpush1.xpose.msra.mxu0 0.0
    %5087 = vmatprep.subr.mxu0 0.0
    %5088 = vmatpush1.xpose.msra.mxu0 0.0
    %5089 = vmatprep.subr.mxu0 0.0
    %5090 = vmatpush1.xpose.msra.mxu0 0.0
    %5091 = vmatprep.subr.mxu0 0.0
    %5092 = vmatpush1.xpose.msra.mxu0 0.0
    %5093 = vmatprep.subr.mxu0 0.0
    %5094 = vmatpush1.xpose.msra.mxu0 0.0
    %5095 = vmatprep.subr.mxu0 0.0
    %5096 = vmatpush1.xpose.msra.mxu0 0.0
    %5097 = vmatprep.subr.mxu0 0.0
    %5098 = vmatpush1.xpose.msra.mxu0 0.0
    %5099 = vmatprep.subr.mxu0 0.0
    %5100 = vmatpush1.xpose.msra.mxu0 0.0
    %5101 = vmatprep.subr.mxu0 0.0
    %5102 = vmatpush1.xpose.msra.mxu0 0.0
    %5103 = vmatprep.subr.mxu0 0.0
    %5104 = vmatpush1.xpose.msra.mxu0 0.0
    %5105 = vmatprep.subr.mxu0 0.0
    %5106 = vmatpush1.xpose.msra.mxu0 0.0
    %5107 = vmatprep.subr.mxu0 0.0
    %5108 = vmatpush1.xpose.msra.mxu0 0.0
    %5109 = vmatprep.mubr.f32.mxu0 0.0
    %5110 = vmatmul.mubr.f32.gmra.mrb[0].mxu0 %v5040
    %v5111 = vpop.f32.mrb[0].mxu0
    %v5112 = vadd.f32 0.0, %v5111
    %v5113 = vpop.f32.mrb[0].mxu0
    %5114 = vdwg.mxu0
    %v5115 = vmul.f32 %v4960, 0.35355338
    %v5116 = vmul.f32 %v5036, 0.35355338
    %v5117 = vmul.f32 %v5112, 0.35355338
    %v5118 = vsel %vm355, %v5115, -inf
    %5119 = vmax.xlane.f32.xlu0 %v5118
    %v5120 = vpop.xlane.xlu0 %5119
    %v5121 = vsel %vm355, %v5116, -inf
    %5122 = vmax.xlane.f32.xlu0 %v5121
    %v5123 = vpop.xlane.xlu0 %5122
    %v5124 = vsel %vm355, %v5117, -inf
    %5125 = vmax.xlane.f32.xlu0 %v5124
    %v5126 = vpop.xlane.xlu0 %5125
    %v5127 = vsub.f32 %v5115, %v5120
    %v5128 = vsub.f32 %v5116, %v5123
    %v5129 = vsub.f32 %v5117, %v5126
    %v5130 = vmul.f32 %v5127, 1.442695
    %v5131 = vpow.pop %v5130
    %v5132 = vmul.f32 %v5128, 1.442695
    %v5133 = vpow.pop %v5132
    %v5134 = vmul.f32 %v5129, 1.442695
    %v5135 = vpow.pop %v5134
    %v5136 = vsel %vm355, %v5131, 0.0
    %5137 = vadd.xlane.f32.xlu0 %v5136
    %v5138 = vpop.xlane.xlu0 %5137
    %v5139 = vsel %vm355, %v5133, 0.0
    %5140 = vadd.xlane.f32.xlu0 %v5139
    %v5141 = vpop.xlane.xlu0 %5140
    %v5142 = vsel %vm355, %v5135, 0.0
    %5143 = vadd.xlane.f32.xlu0 %v5142
    %v5144 = vpop.xlane.xlu0 %5143
    %v5145 = vrcp.pop %v5138
    %v5146 = vmul.f32 %v5131, %v5145
    %v5147 = vrcp.pop %v5141
    %v5148 = vmul.f32 %v5133, %v5147
    %v5149 = vrcp.pop %v5144
    %v5150 = vmul.f32 %v5135, %v5149
    %v5152 = vsel %vm355, %v5146, 0
    %5154 = vmatprep.subr.mxu0 0.0
    %5155 = vmatpush1.msra.mxu0 %v4874
    %5156 = vmatprep.subr.mxu0 0.0
    %5157 = vmatpush1.msra.mxu0 0.0
    %5158 = vmatprep.subr.mxu0 0.0
    %5159 = vmatpush1.msra.mxu0 0.0
    %5160 = vmatprep.subr.mxu0 0.0
    %5161 = vmatpush1.msra.mxu0 0.0
    %5162 = vmatprep.subr.mxu0 0.0
    %5163 = vmatpush1.msra.mxu0 0.0
    %5164 = vmatprep.subr.mxu0 0.0
    %5165 = vmatpush1.msra.mxu0 0.0
    %5166 = vmatprep.subr.mxu0 0.0
    %5167 = vmatpush1.msra.mxu0 0.0
    %5168 = vmatprep.subr.mxu0 0.0
    %5169 = vmatpush1.msra.mxu0 0.0
    %5170 = vmatprep.subr.mxu0 0.0
    %5171 = vmatpush1.msra.mxu0 0.0
    %5172 = vmatprep.subr.mxu0 0.0
    %5173 = vmatpush1.msra.mxu0 0.0
    %5174 = vmatprep.subr.mxu0 0.0
    %5175 = vmatpush1.msra.mxu0 0.0
    %5176 = vmatprep.subr.mxu0 0.0
    %5177 = vmatpush1.msra.mxu0 0.0
    %5178 = vmatprep.subr.mxu0 0.0
    %5179 = vmatpush1.msra.mxu0 0.0
    %5180 = vmatprep.subr.mxu0 0.0
    %5181 = vmatpush1.msra.mxu0 0.0
    %5182 = vmatprep.subr.mxu0 0.0
    %5183 = vmatpush1.msra.mxu0 0.0
    %5184 = vmatprep.subr.mxu0 0.0
    %5185 = vmatpush1.msra.mxu0 0.0
    %5186 = vmatprep.subr.mxu0 0.0
    %5187 = vmatpush1.msra.mxu0 0.0
    %5188 = vmatprep.subr.mxu0 0.0
    %5189 = vmatpush1.msra.mxu0 0.0
    %5190 = vmatprep.subr.mxu0 0.0
    %5191 = vmatpush1.msra.mxu0 0.0
    %5192 = vmatprep.subr.mxu0 0.0
    %5193 = vmatpush1.msra.mxu0 0.0
    %5194 = vmatprep.subr.mxu0 0.0
    %5195 = vmatpush1.msra.mxu0 0.0
    %5196 = vmatprep.subr.mxu0 0.0
    %5197 = vmatpush1.msra.mxu0 0.0
    %5198 = vmatprep.subr.mxu0 0.0
    %5199 = vmatpush1.msra.mxu0 0.0
    %5200 = vmatprep.subr.mxu0 0.0
    %5201 = vmatpush1.msra.mxu0 0.0
    %5202 = vmatprep.subr.mxu0 0.0
    %5203 = vmatpush1.msra.mxu0 0.0
    %5204 = vmatprep.subr.mxu0 0.0
    %5205 = vmatpush1.msra.mxu0 0.0
    %5206 = vmatprep.subr.mxu0 0.0
    %5207 = vmatpush1.msra.mxu0 0.0
    %5208 = vmatprep.subr.mxu0 0.0
    %5209 = vmatpush1.msra.mxu0 0.0
    %5210 = vmatprep.subr.mxu0 0.0
    %5211 = vmatpush1.msra.mxu0 0.0
    %5212 = vmatprep.subr.mxu0 0.0
    %5213 = vmatpush1.msra.mxu0 0.0
    %5214 = vmatprep.subr.mxu0 0.0
    %5215 = vmatpush1.msra.mxu0 0.0
    %5216 = vmatprep.subr.mxu0 0.0
    %5217 = vmatpush1.msra.mxu0 0.0
    %5218 = vmatprep.mubr.f32.mxu0 0.0
    %5219 = vmatmul.mubr.f32.gmra.mrb[0].mxu0 %v5152
    %v5220 = vpop.f32.mrb[0].mxu0
    %v5221 = vadd.f32 0.0, %v5220
    %v5222 = vpop.f32.mrb[0].mxu0
    %5223 = vdwg.mxu0
    %v5225 = vsel %vm355, %v5148, 0
    %5227 = vmatprep.subr.mxu0 0.0
    %5228 = vmatpush1.msra.mxu0 %v4879
    %5229 = vmatprep.subr.mxu0 0.0
    %5230 = vmatpush1.msra.mxu0 0.0
    %5231 = vmatprep.subr.mxu0 0.0
    %5232 = vmatpush1.msra.mxu0 0.0
    %5233 = vmatprep.subr.mxu0 0.0
    %5234 = vmatpush1.msra.mxu0 0.0
    %5235 = vmatprep.subr.mxu0 0.0
    %5236 = vmatpush1.msra.mxu0 0.0
    %5237 = vmatprep.subr.mxu0 0.0
    %5238 = vmatpush1.msra.mxu0 0.0
    %5239 = vmatprep.subr.mxu0 0.0
    %5240 = vmatpush1.msra.mxu0 0.0
    %5241 = vmatprep.subr.mxu0 0.0
    %5242 = vmatpush1.msra.mxu0 0.0
    %5243 = vmatprep.subr.mxu0 0.0
    %5244 = vmatpush1.msra.mxu0 0.0
    %5245 = vmatprep.subr.mxu0 0.0
    %5246 = vmatpush1.msra.mxu0 0.0
    %5247 = vmatprep.subr.mxu0 0.0
    %5248 = vmatpush1.msra.mxu0 0.0
    %5249 = vmatprep.subr.mxu0 0.0
    %5250 = vmatpush1.msra.mxu0 0.0
    %5251 = vmatprep.subr.mxu0 0.0
    %5252 = vmatpush1.msra.mxu0 0.0
    %5253 = vmatprep.subr.mxu0 0.0
    %5254 = vmatpush1.msra.mxu0 0.0
    %5255 = vmatprep.subr.mxu0 0.0
    %5256 = vmatpush1.msra.mxu0 0.0
    %5257 = vmatprep.subr.mxu0 0.0
    %5258 = vmatpush1.msra.mxu0 0.0
    %5259 = vmatprep.subr.mxu0 0.0
    %5260 = vmatpush1.msra.mxu0 0.0
    %5261 = vmatprep.subr.mxu0 0.0
    %5262 = vmatpush1.msra.mxu0 0.0
    %5263 = vmatprep.subr.mxu0 0.0
    %5264 = vmatpush1.msra.mxu0 0.0
    %5265 = vmatprep.subr.mxu0 0.0
    %5266 = vmatpush1.msra.mxu0 0.0
    %5267 = vmatprep.subr.mxu0 0.0
    %5268 = vmatpush1.msra.mxu0 0.0
    %5269 = vmatprep.subr.mxu0 0.0
    %5270 = vmatpush1.msra.mxu0 0.0
    %5271 = vmatprep.subr.mxu0 0.0
    %5272 = vmatpush1.msra.mxu0 0.0
    %5273 = vmatprep.subr.mxu0 0.0
    %5274 = vmatpush1.msra.mxu0 0.0
    %5275 = vmatprep.subr.mxu0 0.0
    %5276 = vmatpush1.msra.mxu0 0.0
    %5277 = vmatprep.subr.mxu0 0.0
    %5278 = vmatpush1.msra.mxu0 0.0
    %5279 = vmatprep.subr.mxu0 0.0
    %5280 = vmatpush1.msra.mxu0 0.0
    %5281 = vmatprep.subr.mxu0 0.0
    %5282 = vmatpush1.msra.mxu0 0.0
    %5283 = vmatprep.subr.mxu0 0.0
    %5284 = vmatpush1.msra.mxu0 0.0
    %5285 = vmatprep.subr.mxu0 0.0
    %5286 = vmatpush1.msra.mxu0 0.0
    %5287 = vmatprep.subr.mxu0 0.0
    %5288 = vmatpush1.msra.mxu0 0.0
    %5289 = vmatprep.subr.mxu0 0.0
    %5290 = vmatpush1.msra.mxu0 0.0
    %5291 = vmatprep.mubr.f32.mxu0 0.0
    %5292 = vmatmul.mubr.f32.gmra.mrb[0].mxu0 %v5225
    %v5293 = vpop.f32.mrb[0].mxu0
    %v5294 = vadd.f32 0.0, %v5293
    %v5295 = vpop.f32.mrb[0].mxu0
    %5296 = vdwg.mxu0
    %v5298 = vsel %vm355, %v5150, 0
    %5300 = vmatprep.subr.mxu0 0.0
    %5301 = vmatpush1.msra.mxu0 %v4884
    %5302 = vmatprep.subr.mxu0 0.0
    %5303 = vmatpush1.msra.mxu0 0.0
    %5304 = vmatprep.subr.mxu0 0.0
    %5305 = vmatpush1.msra.mxu0 0.0
    %5306 = vmatprep.subr.mxu0 0.0
    %5307 = vmatpush1.msra.mxu0 0.0
    %5308 = vmatprep.subr.mxu0 0.0
    %5309 = vmatpush1.msra.mxu0 0.0
    %5310 = vmatprep.subr.mxu0 0.0
    %5311 = vmatpush1.msra.mxu0 0.0
    %5312 = vmatprep.subr.mxu0 0.0
    %5313 = vmatpush1.msra.mxu0 0.0
    %5314 = vmatprep.subr.mxu0 0.0
    %5315 = vmatpush1.msra.mxu0 0.0
    %5316 = vmatprep.subr.mxu0 0.0
    %5317 = vmatpush1.msra.mxu0 0.0
    %5318 = vmatprep.subr.mxu0 0.0
    %5319 = vmatpush1.msra.mxu0 0.0
    %5320 = vmatprep.subr.mxu0 0.0
    %5321 = vmatpush1.msra.mxu0 0.0
    %5322 = vmatprep.subr.mxu0 0.0
    %5323 = vmatpush1.msra.mxu0 0.0
    %5324 = vmatprep.subr.mxu0 0.0
    %5325 = vmatpush1.msra.mxu0 0.0
    %5326 = vmatprep.subr.mxu0 0.0
    %5327 = vmatpush1.msra.mxu0 0.0
    %5328 = vmatprep.subr.mxu0 0.0
    %5329 = vmatpush1.msra.mxu0 0.0
    %5330 = vmatprep.subr.mxu0 0.0
    %5331 = vmatpush1.msra.mxu0 0.0
    %5332 = vmatprep.subr.mxu0 0.0
    %5333 = vmatpush1.msra.mxu0 0.0
    %5334 = vmatprep.subr.mxu0 0.0
    %5335 = vmatpush1.msra.mxu0 0.0
    %5336 = vmatprep.subr.mxu0 0.0
    %5337 = vmatpush1.msra.mxu0 0.0
    %5338 = vmatprep.subr.mxu0 0.0
    %5339 = vmatpush1.msra.mxu0 0.0
    %5340 = vmatprep.subr.mxu0 0.0
    %5341 = vmatpush1.msra.mxu0 0.0
    %5342 = vmatprep.subr.mxu0 0.0
    %5343 = vmatpush1.msra.mxu0 0.0
    %5344 = vmatprep.subr.mxu0 0.0
    %5345 = vmatpush1.msra.mxu0 0.0
    %5346 = vmatprep.subr.mxu0 0.0
    %5347 = vmatpush1.msra.mxu0 0.0
    %5348 = vmatprep.subr.mxu0 0.0
    %5349 = vmatpush1.msra.mxu0 0.0
    %5350 = vmatprep.subr.mxu0 0.0
    %5351 = vmatpush1.msra.mxu0 0.0
    %5352 = vmatprep.subr.mxu0 0.0
    %5353 = vmatpush1.msra.mxu0 0.0
    %5354 = vmatprep.subr.mxu0 0.0
    %5355 = vmatpush1.msra.mxu0 0.0
    %5356 = vmatprep.subr.mxu0 0.0
    %5357 = vmatpush1.msra.mxu0 0.0
    %5358 = vmatprep.subr.mxu0 0.0
    %5359 = vmatpush1.msra.mxu0 0.0
    %5360 = vmatprep.subr.mxu0 0.0
    %5361 = vmatpush1.msra.mxu0 0.0
    %5362 = vmatprep.subr.mxu0 0.0
    %5363 = vmatpush1.msra.mxu0 0.0
    %5364 = vmatprep.mubr.f32.mxu0 0.0
    %5365 = vmatmul.mubr.f32.gmra.mrb[0].mxu0 %v5298
    %v5366 = vpop.f32.mrb[0].mxu0
    %v5367 = vadd.f32 0.0, %v5366
    %v5368 = vpop.f32.mrb[0].mxu0
    %5369 = vdwg.mxu0
    %s5370 = scalar_lea.vmem %s7, 40
    %v5371 = vld [vmem:[%s5370] sm:$0xff]
    %v5373 = vsel %vm355, %v5221, 0
    %v5376 = vsel %vm355, %v5294, 0
    %v5379 = vsel %vm355, %v5367, 0
    %5381 = vmatprep.subr.mxu0 0.0
    %5382 = vmatpush1.msra.mxu0 %v5371
    %5383 = vmatprep.subr.mxu0 0.0
    %5384 = vmatpush1.msra.mxu0 0.0
    %5385 = vmatprep.subr.mxu0 0.0
    %5386 = vmatpush1.msra.mxu0 0.0
    %5387 = vmatprep.subr.mxu0 0.0
    %5388 = vmatpush1.msra.mxu0 0.0
    %5389 = vmatprep.subr.mxu0 0.0
    %5390 = vmatpush1.msra.mxu0 0.0
    %5391 = vmatprep.subr.mxu0 0.0
    %5392 = vmatpush1.msra.mxu0 0.0
    %5393 = vmatprep.subr.mxu0 0.0
    %5394 = vmatpush1.msra.mxu0 0.0
    %5395 = vmatprep.subr.mxu0 0.0
    %5396 = vmatpush1.msra.mxu0 0.0
    %5397 = vmatprep.subr.mxu0 0.0
    %5398 = vmatpush1.msra.mxu0 0.0
    %5399 = vmatprep.subr.mxu0 0.0
    %5400 = vmatpush1.msra.mxu0 0.0
    %5401 = vmatprep.subr.mxu0 0.0
    %5402 = vmatpush1.msra.mxu0 0.0
    %5403 = vmatprep.subr.mxu0 0.0
    %5404 = vmatpush1.msra.mxu0 0.0
    %5405 = vmatprep.subr.mxu0 0.0
    %5406 = vmatpush1.msra.mxu0 0.0
    %5407 = vmatprep.subr.mxu0 0.0
    %5408 = vmatpush1.msra.mxu0 0.0
    %5409 = vmatprep.subr.mxu0 0.0
    %5410 = vmatpush1.msra.mxu0 0.0
    %5411 = vmatprep.subr.mxu0 0.0
    %5412 = vmatpush1.msra.mxu0 0.0
    %5413 = vmatprep.subr.mxu0 0.0
    %5414 = vmatpush1.msra.mxu0 0.0
    %5415 = vmatprep.subr.mxu0 0.0
    %5416 = vmatpush1.msra.mxu0 0.0
    %5417 = vmatprep.subr.mxu0 0.0
    %5418 = vmatpush1.msra.mxu0 0.0
    %5419 = vmatprep.subr.mxu0 0.0
    %5420 = vmatpush1.msra.mxu0 0.0
    %5421 = vmatprep.subr.mxu0 0.0
    %5422 = vmatpush1.msra.mxu0 0.0
    %5423 = vmatprep.subr.mxu0 0.0
    %5424 = vmatpush1.msra.mxu0 0.0
    %5425 = vmatprep.subr.mxu0 0.0
    %5426 = vmatpush1.msra.mxu0 0.0
    %5427 = vmatprep.subr.mxu0 0.0
    %5428 = vmatpush1.msra.mxu0 0.0
    %5429 = vmatprep.subr.mxu0 0.0
    %5430 = vmatpush1.msra.mxu0 0.0
    %5431 = vmatprep.subr.mxu0 0.0
    %5432 = vmatpush1.msra.mxu0 0.0
    %5433 = vmatprep.subr.mxu0 0.0
    %5434 = vmatpush1.msra.mxu0 0.0
    %5435 = vmatprep.subr.mxu0 0.0
    %5436 = vmatpush1.msra.mxu0 0.0
    %5437 = vmatprep.subr.mxu0 0.0
    %5438 = vmatpush1.msra.mxu0 0.0
    %5439 = vmatprep.subr.mxu0 0.0
    %5440 = vmatpush1.msra.mxu0 0.0
    %5441 = vmatprep.subr.mxu0 0.0
    %5442 = vmatpush1.msra.mxu0 0.0
    %5443 = vmatprep.subr.mxu0 0.0
    %5444 = vmatpush1.msra.mxu0 0.0
    %5445 = vmatprep.mubr.f32.mxu0 0.0
    %5446 = vmatmul.mubr.f32.gmra.mrb[0].mxu0 %v5373
    %v5447 = vpop.f32.mrb[0].mxu0
    %v5448 = vadd.f32 0.0, %v5447
    %v5449 = vpop.f32.mrb[0].mxu0
    %5450 = vmatprep.mubr.f32.mxu0 0.0
    %5451 = vmatmul.mubr.f32.gmra.mrb[0].mxu0 %v5376
    %v5452 = vpop.f32.mrb[0].mxu0
    %v5453 = vadd.f32 0.0, %v5452
    %v5454 = vpop.f32.mrb[0].mxu0
    %5455 = vmatprep.mubr.f32.mxu0 0.0
    %5456 = vmatmul.mubr.f32.gmra.mrb[0].mxu0 %v5379
    %v5457 = vpop.f32.mrb[0].mxu0
    %v5458 = vadd.f32 0.0, %v5457
    %v5459 = vpop.f32.mrb[0].mxu0
    %5460 = vdwg.mxu0
    %v5462 = vsel %vm355, %v4457, 0
    %v5465 = vsel %vm355, %v4530, 0
    %v5468 = vsel %vm355, %v4603, 0
    %5470 = vmatprep.subr.mxu0 0.0
    %5471 = vmatpush1.msra.mxu0 %v4607
    %5472 = vmatprep.subr.mxu0 0.0
    %5473 = vmatpush1.msra.mxu0 0.0
    %5474 = vmatprep.subr.mxu0 0.0
    %5475 = vmatpush1.msra.mxu0 0.0
    %5476 = vmatprep.subr.mxu0 0.0
    %5477 = vmatpush1.msra.mxu0 0.0
    %5478 = vmatprep.subr.mxu0 0.0
    %5479 = vmatpush1.msra.mxu0 0.0
    %5480 = vmatprep.subr.mxu0 0.0
    %5481 = vmatpush1.msra.mxu0 0.0
    %5482 = vmatprep.subr.mxu0 0.0
    %5483 = vmatpush1.msra.mxu0 0.0
    %5484 = vmatprep.subr.mxu0 0.0
    %5485 = vmatpush1.msra.mxu0 0.0
    %5486 = vmatprep.subr.mxu0 0.0
    %5487 = vmatpush1.msra.mxu0 0.0
    %5488 = vmatprep.subr.mxu0 0.0
    %5489 = vmatpush1.msra.mxu0 0.0
    %5490 = vmatprep.subr.mxu0 0.0
    %5491 = vmatpush1.msra.mxu0 0.0
    %5492 = vmatprep.subr.mxu0 0.0
    %5493 = vmatpush1.msra.mxu0 0.0
    %5494 = vmatprep.subr.mxu0 0.0
    %5495 = vmatpush1.msra.mxu0 0.0
    %5496 = vmatprep.subr.mxu0 0.0
    %5497 = vmatpush1.msra.mxu0 0.0
    %5498 = vmatprep.subr.mxu0 0.0
    %5499 = vmatpush1.msra.mxu0 0.0
    %5500 = vmatprep.subr.mxu0 0.0
    %5501 = vmatpush1.msra.mxu0 0.0
    %5502 = vmatprep.subr.mxu0 0.0
    %5503 = vmatpush1.msra.mxu0 0.0
    %5504 = vmatprep.subr.mxu0 0.0
    %5505 = vmatpush1.msra.mxu0 0.0
    %5506 = vmatprep.subr.mxu0 0.0
    %5507 = vmatpush1.msra.mxu0 0.0
    %5508 = vmatprep.subr.mxu0 0.0
    %5509 = vmatpush1.msra.mxu0 0.0
    %5510 = vmatprep.subr.mxu0 0.0
    %5511 = vmatpush1.msra.mxu0 0.0
    %5512 = vmatprep.subr.mxu0 0.0
    %5513 = vmatpush1.msra.mxu0 0.0
    %5514 = vmatprep.subr.mxu0 0.0
    %5515 = vmatpush1.msra.mxu0 0.0
    %5516 = vmatprep.subr.mxu0 0.0
    %5517 = vmatpush1.msra.mxu0 0.0
    %5518 = vmatprep.subr.mxu0 0.0
    %5519 = vmatpush1.msra.mxu0 0.0
    %5520 = vmatprep.subr.mxu0 0.0
    %5521 = vmatpush1.msra.mxu0 0.0
    %5522 = vmatprep.subr.mxu0 0.0
    %5523 = vmatpush1.msra.mxu0 0.0
    %5524 = vmatprep.subr.mxu0 0.0
    %5525 = vmatpush1.msra.mxu0 0.0
    %5526 = vmatprep.subr.mxu0 0.0
    %5527 = vmatpush1.msra.mxu0 0.0
    %5528 = vmatprep.subr.mxu0 0.0
    %5529 = vmatpush1.msra.mxu0 0.0
    %5530 = vmatprep.subr.mxu0 0.0
    %5531 = vmatpush1.msra.mxu0 0.0
    %5532 = vmatprep.subr.mxu0 0.0
    %5533 = vmatpush1.msra.mxu0 0.0
    %5534 = vmatprep.mubr.f32.mxu0 0.0
    %5535 = vmatmul.mubr.f32.gmra.mrb[0].mxu0 %v5462
    %v5536 = vpop.f32.mrb[0].mxu0
    %v5537 = vadd.f32 %v5448, %v5536
    %v5538 = vpop.f32.mrb[0].mxu0
    %5539 = vmatprep.mubr.f32.mxu0 0.0
    %5540 = vmatmul.mubr.f32.gmra.mrb[0].mxu0 %v5465
    %v5541 = vpop.f32.mrb[0].mxu0
    %v5542 = vadd.f32 %v5453, %v5541
    %v5543 = vpop.f32.mrb[0].mxu0
    %5544 = vmatprep.mubr.f32.mxu0 0.0
    %5545 = vmatmul.mubr.f32.gmra.mrb[0].mxu0 %v5468
    %v5546 = vpop.f32.mrb[0].mxu0
    %v5547 = vadd.f32 %v5458, %v5546
    %v5548 = vpop.f32.mrb[0].mxu0
    %5549 = vdwg.mxu0
    %s5550 = scalar_lea.vmem %s1, 192
    %v5551 = vld [vmem:[%s5550] sm:$0xff]
    %v5552 = vld [vmem:[%s5550 + $0x8] sm:$0xff]
    %v5553 = vld [vmem:[%s5550 + $0x10] sm:$0xff]
    %v5554 = vld [vmem:[%s5550 + $0x18] sm:$0xff]
    %s5555 = scalar_lea.vmem %s4, 6
    %v5556 = vld [vmem:[%s5555] sm:$0x1]
    %v5558 = vlaneseq
    %v5559 = vshrl.u32 %v5558, 7
    %v5560 = vsub.s32 0, %v5559
    %v5561 = vrot.slane %v5556, %v5560
    %5563 = vmatprep.subr.mxu0 0.0
    %5564 = vmatpush1.msra.mxu0 %v5551
    %5565 = vmatprep.subr.mxu0 0.0
    %5566 = vmatpush1.msra.mxu0 %v5552
    %5567 = vmatprep.subr.mxu0 0.0
    %5568 = vmatpush1.msra.mxu0 %v5553
    %5569 = vmatprep.subr.mxu0 0.0
    %5570 = vmatpush1.msra.mxu0 %v5554
    %5571 = vmatprep.subr.mxu0 0.0
    %5572 = vmatpush1.msra.mxu0 0.0
    %5573 = vmatprep.subr.mxu0 0.0
    %5574 = vmatpush1.msra.mxu0 0.0
    %5575 = vmatprep.subr.mxu0 0.0
    %5576 = vmatpush1.msra.mxu0 0.0
    %5577 = vmatprep.subr.mxu0 0.0
    %5578 = vmatpush1.msra.mxu0 0.0
    %5579 = vmatprep.subr.mxu0 0.0
    %5580 = vmatpush1.msra.mxu0 0.0
    %5581 = vmatprep.subr.mxu0 0.0
    %5582 = vmatpush1.msra.mxu0 0.0
    %5583 = vmatprep.subr.mxu0 0.0
    %5584 = vmatpush1.msra.mxu0 0.0
    %5585 = vmatprep.subr.mxu0 0.0
    %5586 = vmatpush1.msra.mxu0 0.0
    %5587 = vmatprep.subr.mxu0 0.0
    %5588 = vmatpush1.msra.mxu0 0.0
    %5589 = vmatprep.subr.mxu0 0.0
    %5590 = vmatpush1.msra.mxu0 0.0
    %5591 = vmatprep.subr.mxu0 0.0
    %5592 = vmatpush1.msra.mxu0 0.0
    %5593 = vmatprep.subr.mxu0 0.0
    %5594 = vmatpush1.msra.mxu0 0.0
    %5595 = vmatprep.subr.mxu0 0.0
    %5596 = vmatpush1.msra.mxu0 0.0
    %5597 = vmatprep.subr.mxu0 0.0
    %5598 = vmatpush1.msra.mxu0 0.0
    %5599 = vmatprep.subr.mxu0 0.0
    %5600 = vmatpush1.msra.mxu0 0.0
    %5601 = vmatprep.subr.mxu0 0.0
    %5602 = vmatpush1.msra.mxu0 0.0
    %5603 = vmatprep.subr.mxu0 0.0
    %5604 = vmatpush1.msra.mxu0 0.0
    %5605 = vmatprep.subr.mxu0 0.0
    %5606 = vmatpush1.msra.mxu0 0.0
    %5607 = vmatprep.subr.mxu0 0.0
    %5608 = vmatpush1.msra.mxu0 0.0
    %5609 = vmatprep.subr.mxu0 0.0
    %5610 = vmatpush1.msra.mxu0 0.0
    %5611 = vmatprep.subr.mxu0 0.0
    %5612 = vmatpush1.msra.mxu0 0.0
    %5613 = vmatprep.subr.mxu0 0.0
    %5614 = vmatpush1.msra.mxu0 0.0
    %5615 = vmatprep.subr.mxu0 0.0
    %5616 = vmatpush1.msra.mxu0 0.0
    %5617 = vmatprep.subr.mxu0 0.0
    %5618 = vmatpush1.msra.mxu0 0.0
    %5619 = vmatprep.subr.mxu0 0.0
    %5620 = vmatpush1.msra.mxu0 0.0
    %5621 = vmatprep.subr.mxu0 0.0
    %5622 = vmatpush1.msra.mxu0 0.0
    %5623 = vmatprep.subr.mxu0 0.0
    %5624 = vmatpush1.msra.mxu0 0.0
    %5625 = vmatprep.subr.mxu0 0.0
    %5626 = vmatpush1.msra.mxu0 0.0
    %5627 = vmatprep.mubr.f32.mxu0 0.0
    %5628 = vmatmul.mubr.f32.gmra.mrb[0].mxu0 %v3849
    %v5629 = vpop.f32.mrb[0].mxu0
    %v5630 = vadd.f32 %v5561, %v5629
    %v5631 = vpop.f32.mrb[0].mxu0
    %5632 = vmatprep.mubr.f32.mxu0 0.0
    %5633 = vmatmul.mubr.f32.gmra.mrb[0].mxu0 %v3852
    %v5634 = vpop.f32.mrb[0].mxu0
    %v5635 = vadd.f32 %v5561, %v5634
    %v5636 = vpop.f32.mrb[0].mxu0
    %5637 = vmatprep.mubr.f32.mxu0 0.0
    %5638 = vmatmul.mubr.f32.gmra.mrb[0].mxu0 %v3855
    %v5639 = vpop.f32.mrb[0].mxu0
    %v5640 = vadd.f32 %v5561, %v5639
    %v5641 = vpop.f32.mrb[0].mxu0
    %5642 = vdwg.mxu0
    %s5643 = scalar_lea.vmem %s2, 192
    %v5644 = vld [vmem:[%s5643] sm:$0xff]
    %v5645 = vld [vmem:[%s5643 + $0x8] sm:$0xff]
    %v5646 = vld [vmem:[%s5643 + $0x10] sm:$0xff]
    %v5647 = vld [vmem:[%s5643 + $0x18] sm:$0xff]
    %s5648 = scalar_lea.vmem %s5, 6
    %v5649 = vld [vmem:[%s5648] sm:$0x1]
    %v5651 = vlaneseq
    %v5652 = vshrl.u32 %v5651, 7
    %v5653 = vsub.s32 0, %v5652
    %v5654 = vrot.slane %v5649, %v5653
    %5656 = vmatprep.subr.mxu0 0.0
    %5657 = vmatpush1.msra.mxu0 %v5644
    %5658 = vmatprep.subr.mxu0 0.0
    %5659 = vmatpush1.msra.mxu0 %v5645
    %5660 = vmatprep.subr.mxu0 0.0
    %5661 = vmatpush1.msra.mxu0 %v5646
    %5662 = vmatprep.subr.mxu0 0.0
    %5663 = vmatpush1.msra.mxu0 %v5647
    %5664 = vmatprep.subr.mxu0 0.0
    %5665 = vmatpush1.msra.mxu0 0.0
    %5666 = vmatprep.subr.mxu0 0.0
    %5667 = vmatpush1.msra.mxu0 0.0
    %5668 = vmatprep.subr.mxu0 0.0
    %5669 = vmatpush1.msra.mxu0 0.0
    %5670 = vmatprep.subr.mxu0 0.0
    %5671 = vmatpush1.msra.mxu0 0.0
    %5672 = vmatprep.subr.mxu0 0.0
    %5673 = vmatpush1.msra.mxu0 0.0
    %5674 = vmatprep.subr.mxu0 0.0
    %5675 = vmatpush1.msra.mxu0 0.0
    %5676 = vmatprep.subr.mxu0 0.0
    %5677 = vmatpush1.msra.mxu0 0.0
    %5678 = vmatprep.subr.mxu0 0.0
    %5679 = vmatpush1.msra.mxu0 0.0
    %5680 = vmatprep.subr.mxu0 0.0
    %5681 = vmatpush1.msra.mxu0 0.0
    %5682 = vmatprep.subr.mxu0 0.0
    %5683 = vmatpush1.msra.mxu0 0.0
    %5684 = vmatprep.subr.mxu0 0.0
    %5685 = vmatpush1.msra.mxu0 0.0
    %5686 = vmatprep.subr.mxu0 0.0
    %5687 = vmatpush1.msra.mxu0 0.0
    %5688 = vmatprep.subr.mxu0 0.0
    %5689 = vmatpush1.msra.mxu0 0.0
    %5690 = vmatprep.subr.mxu0 0.0
    %5691 = vmatpush1.msra.mxu0 0.0
    %5692 = vmatprep.subr.mxu0 0.0
    %5693 = vmatpush1.msra.mxu0 0.0
    %5694 = vmatprep.subr.mxu0 0.0
    %5695 = vmatpush1.msra.mxu0 0.0
    %5696 = vmatprep.subr.mxu0 0.0
    %5697 = vmatpush1.msra.mxu0 0.0
    %5698 = vmatprep.subr.mxu0 0.0
    %5699 = vmatpush1.msra.mxu0 0.0
    %5700 = vmatprep.subr.mxu0 0.0
    %5701 = vmatpush1.msra.mxu0 0.0
    %5702 = vmatprep.subr.mxu0 0.0
    %5703 = vmatpush1.msra.mxu0 0.0
    %5704 = vmatprep.subr.mxu0 0.0
    %5705 = vmatpush1.msra.mxu0 0.0
    %5706 = vmatprep.subr.mxu0 0.0
    %5707 = vmatpush1.msra.mxu0 0.0
    %5708 = vmatprep.subr.mxu0 0.0
    %5709 = vmatpush1.msra.mxu0 0.0
    %5710 = vmatprep.subr.mxu0 0.0
    %5711 = vmatpush1.msra.mxu0 0.0
    %5712 = vmatprep.subr.mxu0 0.0
    %5713 = vmatpush1.msra.mxu0 0.0
    %5714 = vmatprep.subr.mxu0 0.0
    %5715 = vmatpush1.msra.mxu0 0.0
    %5716 = vmatprep.subr.mxu0 0.0
    %5717 = vmatpush1.msra.mxu0 0.0
    %5718 = vmatprep.subr.mxu0 0.0
    %5719 = vmatpush1.msra.mxu0 0.0
    %5720 = vmatprep.mubr.f32.mxu0 0.0
    %5721 = vmatmul.mubr.f32.gmra.mrb[0].mxu0 %v3849
    %v5722 = vpop.f32.mrb[0].mxu0
    %v5723 = vadd.f32 %v5654, %v5722
    %v5724 = vpop.f32.mrb[0].mxu0
    %5725 = vmatprep.mubr.f32.mxu0 0.0
    %5726 = vmatmul.mubr.f32.gmra.mrb[0].mxu0 %v3852
    %v5727 = vpop.f32.mrb[0].mxu0
    %v5728 = vadd.f32 %v5654, %v5727
    %v5729 = vpop.f32.mrb[0].mxu0
    %5730 = vmatprep.mubr.f32.mxu0 0.0
    %5731 = vmatmul.mubr.f32.gmra.mrb[0].mxu0 %v3855
    %v5732 = vpop.f32.mrb[0].mxu0
    %v5733 = vadd.f32 %v5654, %v5732
    %v5734 = vpop.f32.mrb[0].mxu0
    %5735 = vdwg.mxu0
    %s5736 = scalar_lea.vmem %s3, 192
    %v5737 = vld [vmem:[%s5736] sm:$0xff]
    %v5738 = vld [vmem:[%s5736 + $0x8] sm:$0xff]
    %v5739 = vld [vmem:[%s5736 + $0x10] sm:$0xff]
    %v5740 = vld [vmem:[%s5736 + $0x18] sm:$0xff]
    %s5741 = scalar_lea.vmem %s6, 6
    %v5742 = vld [vmem:[%s5741] sm:$0x1]
    %v5744 = vlaneseq
    %v5745 = vshrl.u32 %v5744, 7
    %v5746 = vsub.s32 0, %v5745
    %v5747 = vrot.slane %v5742, %v5746
    %5749 = vmatprep.subr.mxu0 0.0
    %5750 = vmatpush1.msra.mxu0 %v5737
    %5751 = vmatprep.subr.mxu0 0.0
    %5752 = vmatpush1.msra.mxu0 %v5738
    %5753 = vmatprep.subr.mxu0 0.0
    %5754 = vmatpush1.msra.mxu0 %v5739
    %5755 = vmatprep.subr.mxu0 0.0
    %5756 = vmatpush1.msra.mxu0 %v5740
    %5757 = vmatprep.subr.mxu0 0.0
    %5758 = vmatpush1.msra.mxu0 0.0
    %5759 = vmatprep.subr.mxu0 0.0
    %5760 = vmatpush1.msra.mxu0 0.0
    %5761 = vmatprep.subr.mxu0 0.0
    %5762 = vmatpush1.msra.mxu0 0.0
    %5763 = vmatprep.subr.mxu0 0.0
    %5764 = vmatpush1.msra.mxu0 0.0
    %5765 = vmatprep.subr.mxu0 0.0
    %5766 = vmatpush1.msra.mxu0 0.0
    %5767 = vmatprep.subr.mxu0 0.0
    %5768 = vmatpush1.msra.mxu0 0.0
    %5769 = vmatprep.subr.mxu0 0.0
    %5770 = vmatpush1.msra.mxu0 0.0
    %5771 = vmatprep.subr.mxu0 0.0
    %5772 = vmatpush1.msra.mxu0 0.0
    %5773 = vmatprep.subr.mxu0 0.0
    %5774 = vmatpush1.msra.mxu0 0.0
    %5775 = vmatprep.subr.mxu0 0.0
    %5776 = vmatpush1.msra.mxu0 0.0
    %5777 = vmatprep.subr.mxu0 0.0
    %5778 = vmatpush1.msra.mxu0 0.0
    %5779 = vmatprep.subr.mxu0 0.0
    %5780 = vmatpush1.msra.mxu0 0.0
    %5781 = vmatprep.subr.mxu0 0.0
    %5782 = vmatpush1.msra.mxu0 0.0
    %5783 = vmatprep.subr.mxu0 0.0
    %5784 = vmatpush1.msra.mxu0 0.0
    %5785 = vmatprep.subr.mxu0 0.0
    %5786 = vmatpush1.msra.mxu0 0.0
    %5787 = vmatprep.subr.mxu0 0.0
    %5788 = vmatpush1.msra.mxu0 0.0
    %5789 = vmatprep.subr.mxu0 0.0
    %5790 = vmatpush1.msra.mxu0 0.0
    %5791 = vmatprep.subr.mxu0 0.0
    %5792 = vmatpush1.msra.mxu0 0.0
    %5793 = vmatprep.subr.mxu0 0.0
    %5794 = vmatpush1.msra.mxu0 0.0
    %5795 = vmatprep.subr.mxu0 0.0
    %5796 = vmatpush1.msra.mxu0 0.0
    %5797 = vmatprep.subr.mxu0 0.0
    %5798 = vmatpush1.msra.mxu0 0.0
    %5799 = vmatprep.subr.mxu0 0.0
    %5800 = vmatpush1.msra.mxu0 0.0
    %5801 = vmatprep.subr.mxu0 0.0
    %5802 = vmatpush1.msra.mxu0 0.0
    %5803 = vmatprep.subr.mxu0 0.0
    %5804 = vmatpush1.msra.mxu0 0.0
    %5805 = vmatprep.subr.mxu0 0.0
    %5806 = vmatpush1.msra.mxu0 0.0
    %5807 = vmatprep.subr.mxu0 0.0
    %5808 = vmatpush1.msra.mxu0 0.0
    %5809 = vmatprep.subr.mxu0 0.0
    %5810 = vmatpush1.msra.mxu0 0.0
    %5811 = vmatprep.subr.mxu0 0.0
    %5812 = vmatpush1.msra.mxu0 0.0
    %5813 = vmatprep.mubr.f32.mxu0 0.0
    %5814 = vmatmul.mubr.f32.gmra.mrb[0].mxu0 %v3849
    %v5815 = vpop.f32.mrb[0].mxu0
    %v5816 = vadd.f32 %v5747, %v5815
    %v5817 = vpop.f32.mrb[0].mxu0
    %5818 = vmatprep.mubr.f32.mxu0 0.0
    %5819 = vmatmul.mubr.f32.gmra.mrb[0].mxu0 %v3852
    %v5820 = vpop.f32.mrb[0].mxu0
    %v5821 = vadd.f32 %v5747, %v5820
    %v5822 = vpop.f32.mrb[0].mxu0
    %5823 = vmatprep.mubr.f32.mxu0 0.0
    %5824 = vmatmul.mubr.f32.gmra.mrb[0].mxu0 %v3855
    %v5825 = vpop.f32.mrb[0].mxu0
    %v5826 = vadd.f32 %v5747, %v5825
    %v5827 = vpop.f32.mrb[0].mxu0
    %5828 = vdwg.mxu0
    %v5830 = vsel %vm355, %v5630, 0
    %v5833 = vsel %vm355, %v5723, 0
    %5835 = vmatprep.subr.mxu0 0.0
    %5836 = vmatpush1.xpose.msra.mxu0 %v5833
    %5837 = vmatprep.subr.mxu0 0.0
    %5838 = vmatpush1.xpose.msra.mxu0 0.0
    %5839 = vmatprep.subr.mxu0 0.0
    %5840 = vmatpush1.xpose.msra.mxu0 0.0
    %5841 = vmatprep.subr.mxu0 0.0
    %5842 = vmatpush1.xpose.msra.mxu0 0.0
    %5843 = vmatprep.subr.mxu0 0.0
    %5844 = vmatpush1.xpose.msra.mxu0 0.0
    %5845 = vmatprep.subr.mxu0 0.0
    %5846 = vmatpush1.xpose.msra.mxu0 0.0
    %5847 = vmatprep.subr.mxu0 0.0
    %5848 = vmatpush1.xpose.msra.mxu0 0.0
    %5849 = vmatprep.subr.mxu0 0.0
    %5850 = vmatpush1.xpose.msra.mxu0 0.0
    %5851 = vmatprep.subr.mxu0 0.0
    %5852 = vmatpush1.xpose.msra.mxu0 0.0
    %5853 = vmatprep.subr.mxu0 0.0
    %5854 = vmatpush1.xpose.msra.mxu0 0.0
    %5855 = vmatprep.subr.mxu0 0.0
    %5856 = vmatpush1.xpose.msra.mxu0 0.0
    %5857 = vmatprep.subr.mxu0 0.0
    %5858 = vmatpush1.xpose.msra.mxu0 0.0
    %5859 = vmatprep.subr.mxu0 0.0
    %5860 = vmatpush1.xpose.msra.mxu0 0.0
    %5861 = vmatprep.subr.mxu0 0.0
    %5862 = vmatpush1.xpose.msra.mxu0 0.0
    %5863 = vmatprep.subr.mxu0 0.0
    %5864 = vmatpush1.xpose.msra.mxu0 0.0
    %5865 = vmatprep.subr.mxu0 0.0
    %5866 = vmatpush1.xpose.msra.mxu0 0.0
    %5867 = vmatprep.subr.mxu0 0.0
    %5868 = vmatpush1.xpose.msra.mxu0 0.0
    %5869 = vmatprep.subr.mxu0 0.0
    %5870 = vmatpush1.xpose.msra.mxu0 0.0
    %5871 = vmatprep.subr.mxu0 0.0
    %5872 = vmatpush1.xpose.msra.mxu0 0.0
    %5873 = vmatprep.subr.mxu0 0.0
    %5874 = vmatpush1.xpose.msra.mxu0 0.0
    %5875 = vmatprep.subr.mxu0 0.0
    %5876 = vmatpush1.xpose.msra.mxu0 0.0
    %5877 = vmatprep.subr.mxu0 0.0
    %5878 = vmatpush1.xpose.msra.mxu0 0.0
    %5879 = vmatprep.subr.mxu0 0.0
    %5880 = vmatpush1.xpose.msra.mxu0 0.0
    %5881 = vmatprep.subr.mxu0 0.0
    %5882 = vmatpush1.xpose.msra.mxu0 0.0
    %5883 = vmatprep.subr.mxu0 0.0
    %5884 = vmatpush1.xpose.msra.mxu0 0.0
    %5885 = vmatprep.subr.mxu0 0.0
    %5886 = vmatpush1.xpose.msra.mxu0 0.0
    %5887 = vmatprep.subr.mxu0 0.0
    %5888 = vmatpush1.xpose.msra.mxu0 0.0
    %5889 = vmatprep.subr.mxu0 0.0
    %5890 = vmatpush1.xpose.msra.mxu0 0.0
    %5891 = vmatprep.subr.mxu0 0.0
    %5892 = vmatpush1.xpose.msra.mxu0 0.0
    %5893 = vmatprep.subr.mxu0 0.0
    %5894 = vmatpush1.xpose.msra.mxu0 0.0
    %5895 = vmatprep.subr.mxu0 0.0
    %5896 = vmatpush1.xpose.msra.mxu0 0.0
    %5897 = vmatprep.subr.mxu0 0.0
    %5898 = vmatpush1.xpose.msra.mxu0 0.0
    %5899 = vmatprep.mubr.f32.mxu0 0.0
    %5900 = vmatmul.mubr.f32.gmra.mrb[0].mxu0 %v5830
    %v5901 = vpop.f32.mrb[0].mxu0
    %v5902 = vadd.f32 0.0, %v5901
    %v5903 = vpop.f32.mrb[0].mxu0
    %5904 = vdwg.mxu0
    %v5906 = vsel %vm355, %v5635, 0
    %v5909 = vsel %vm355, %v5728, 0
    %5911 = vmatprep.subr.mxu0 0.0
    %5912 = vmatpush1.xpose.msra.mxu0 %v5909
    %5913 = vmatprep.subr.mxu0 0.0
    %5914 = vmatpush1.xpose.msra.mxu0 0.0
    %5915 = vmatprep.subr.mxu0 0.0
    %5916 = vmatpush1.xpose.msra.mxu0 0.0
    %5917 = vmatprep.subr.mxu0 0.0
    %5918 = vmatpush1.xpose.msra.mxu0 0.0
    %5919 = vmatprep.subr.mxu0 0.0
    %5920 = vmatpush1.xpose.msra.mxu0 0.0
    %5921 = vmatprep.subr.mxu0 0.0
    %5922 = vmatpush1.xpose.msra.mxu0 0.0
    %5923 = vmatprep.subr.mxu0 0.0
    %5924 = vmatpush1.xpose.msra.mxu0 0.0
    %5925 = vmatprep.subr.mxu0 0.0
    %5926 = vmatpush1.xpose.msra.mxu0 0.0
    %5927 = vmatprep.subr.mxu0 0.0
    %5928 = vmatpush1.xpose.msra.mxu0 0.0
    %5929 = vmatprep.subr.mxu0 0.0
    %5930 = vmatpush1.xpose.msra.mxu0 0.0
    %5931 = vmatprep.subr.mxu0 0.0
    %5932 = vmatpush1.xpose.msra.mxu0 0.0
    %5933 = vmatprep.subr.mxu0 0.0
    %5934 = vmatpush1.xpose.msra.mxu0 0.0
    %5935 = vmatprep.subr.mxu0 0.0
    %5936 = vmatpush1.xpose.msra.mxu0 0.0
    %5937 = vmatprep.subr.mxu0 0.0
    %5938 = vmatpush1.xpose.msra.mxu0 0.0
    %5939 = vmatprep.subr.mxu0 0.0
    %5940 = vmatpush1.xpose.msra.mxu0 0.0
    %5941 = vmatprep.subr.mxu0 0.0
    %5942 = vmatpush1.xpose.msra.mxu0 0.0
    %5943 = vmatprep.subr.mxu0 0.0
    %5944 = vmatpush1.xpose.msra.mxu0 0.0
    %5945 = vmatprep.subr.mxu0 0.0
    %5946 = vmatpush1.xpose.msra.mxu0 0.0
    %5947 = vmatprep.subr.mxu0 0.0
    %5948 = vmatpush1.xpose.msra.mxu0 0.0
    %5949 = vmatprep.subr.mxu0 0.0
    %5950 = vmatpush1.xpose.msra.mxu0 0.0
    %5951 = vmatprep.subr.mxu0 0.0
    %5952 = vmatpush1.xpose.msra.mxu0 0.0
    %5953 = vmatprep.subr.mxu0 0.0
    %5954 = vmatpush1.xpose.msra.mxu0 0.0
    %5955 = vmatprep.subr.mxu0 0.0
    %5956 = vmatpush1.xpose.msra.mxu0 0.0
    %5957 = vmatprep.subr.mxu0 0.0
    %5958 = vmatpush1.xpose.msra.mxu0 0.0
    %5959 = vmatprep.subr.mxu0 0.0
    %5960 = vmatpush1.xpose.msra.mxu0 0.0
    %5961 = vmatprep.subr.mxu0 0.0
    %5962 = vmatpush1.xpose.msra.mxu0 0.0
    %5963 = vmatprep.subr.mxu0 0.0
    %5964 = vmatpush1.xpose.msra.mxu0 0.0
    %5965 = vmatprep.subr.mxu0 0.0
    %5966 = vmatpush1.xpose.msra.mxu0 0.0
    %5967 = vmatprep.subr.mxu0 0.0
    %5968 = vmatpush1.xpose.msra.mxu0 0.0
    %5969 = vmatprep.subr.mxu0 0.0
    %5970 = vmatpush1.xpose.msra.mxu0 0.0
    %5971 = vmatprep.subr.mxu0 0.0
    %5972 = vmatpush1.xpose.msra.mxu0 0.0
    %5973 = vmatprep.subr.mxu0 0.0
    %5974 = vmatpush1.xpose.msra.mxu0 0.0
    %5975 = vmatprep.mubr.f32.mxu0 0.0
    %5976 = vmatmul.mubr.f32.gmra.mrb[0].mxu0 %v5906
    %v5977 = vpop.f32.mrb[0].mxu0
    %v5978 = vadd.f32 0.0, %v5977
    %v5979 = vpop.f32.mrb[0].mxu0
    %5980 = vdwg.mxu0
    %v5982 = vsel %vm355, %v5640, 0
    %v5985 = vsel %vm355, %v5733, 0
    %5987 = vmatprep.subr.mxu0 0.0
    %5988 = vmatpush1.xpose.msra.mxu0 %v5985
    %5989 = vmatprep.subr.mxu0 0.0
    %5990 = vmatpush1.xpose.msra.mxu0 0.0
    %5991 = vmatprep.subr.mxu0 0.0
    %5992 = vmatpush1.xpose.msra.mxu0 0.0
    %5993 = vmatprep.subr.mxu0 0.0
    %5994 = vmatpush1.xpose.msra.mxu0 0.0
    %5995 = vmatprep.subr.mxu0 0.0
    %5996 = vmatpush1.xpose.msra.mxu0 0.0
    %5997 = vmatprep.subr.mxu0 0.0
    %5998 = vmatpush1.xpose.msra.mxu0 0.0
    %5999 = vmatprep.subr.mxu0 0.0
    %6000 = vmatpush1.xpose.msra.mxu0 0.0
    %6001 = vmatprep.subr.mxu0 0.0
    %6002 = vmatpush1.xpose.msra.mxu0 0.0
    %6003 = vmatprep.subr.mxu0 0.0
    %6004 = vmatpush1.xpose.msra.mxu0 0.0
    %6005 = vmatprep.subr.mxu0 0.0
    %6006 = vmatpush1.xpose.msra.mxu0 0.0
    %6007 = vmatprep.subr.mxu0 0.0
    %6008 = vmatpush1.xpose.msra.mxu0 0.0
    %6009 = vmatprep.subr.mxu0 0.0
    %6010 = vmatpush1.xpose.msra.mxu0 0.0
    %6011 = vmatprep.subr.mxu0 0.0
    %6012 = vmatpush1.xpose.msra.mxu0 0.0
    %6013 = vmatprep.subr.mxu0 0.0
    %6014 = vmatpush1.xpose.msra.mxu0 0.0
    %6015 = vmatprep.subr.mxu0 0.0
    %6016 = vmatpush1.xpose.msra.mxu0 0.0
    %6017 = vmatprep.subr.mxu0 0.0
    %6018 = vmatpush1.xpose.msra.mxu0 0.0
    %6019 = vmatprep.subr.mxu0 0.0
    %6020 = vmatpush1.xpose.msra.mxu0 0.0
    %6021 = vmatprep.subr.mxu0 0.0
    %6022 = vmatpush1.xpose.msra.mxu0 0.0
    %6023 = vmatprep.subr.mxu0 0.0
    %6024 = vmatpush1.xpose.msra.mxu0 0.0
    %6025 = vmatprep.subr.mxu0 0.0
    %6026 = vmatpush1.xpose.msra.mxu0 0.0
    %6027 = vmatprep.subr.mxu0 0.0
    %6028 = vmatpush1.xpose.msra.mxu0 0.0
    %6029 = vmatprep.subr.mxu0 0.0
    %6030 = vmatpush1.xpose.msra.mxu0 0.0
    %6031 = vmatprep.subr.mxu0 0.0
    %6032 = vmatpush1.xpose.msra.mxu0 0.0
    %6033 = vmatprep.subr.mxu0 0.0
    %6034 = vmatpush1.xpose.msra.mxu0 0.0
    %6035 = vmatprep.subr.mxu0 0.0
    %6036 = vmatpush1.xpose.msra.mxu0 0.0
    %6037 = vmatprep.subr.mxu0 0.0
    %6038 = vmatpush1.xpose.msra.mxu0 0.0
    %6039 = vmatprep.subr.mxu0 0.0
    %6040 = vmatpush1.xpose.msra.mxu0 0.0
    %6041 = vmatprep.subr.mxu0 0.0
    %6042 = vmatpush1.xpose.msra.mxu0 0.0
    %6043 = vmatprep.subr.mxu0 0.0
    %6044 = vmatpush1.xpose.msra.mxu0 0.0
    %6045 = vmatprep.subr.mxu0 0.0
    %6046 = vmatpush1.xpose.msra.mxu0 0.0
    %6047 = vmatprep.subr.mxu0 0.0
    %6048 = vmatpush1.xpose.msra.mxu0 0.0
    %6049 = vmatprep.subr.mxu0 0.0
    %6050 = vmatpush1.xpose.msra.mxu0 0.0
    %6051 = vmatprep.mubr.f32.mxu0 0.0
    %6052 = vmatmul.mubr.f32.gmra.mrb[0].mxu0 %v5982
    %v6053 = vpop.f32.mrb[0].mxu0
    %v6054 = vadd.f32 0.0, %v6053
    %v6055 = vpop.f32.mrb[0].mxu0
    %6056 = vdwg.mxu0
    %v6057 = vmul.f32 %v5902, 0.35355338
    %v6058 = vmul.f32 %v5978, 0.35355338
    %v6059 = vmul.f32 %v6054, 0.35355338
    %v6060 = vsel %vm355, %v6057, -inf
    %6061 = vmax.xlane.f32.xlu0 %v6060
    %v6062 = vpop.xlane.xlu0 %6061
    %v6063 = vsel %vm355, %v6058, -inf
    %6064 = vmax.xlane.f32.xlu0 %v6063
    %v6065 = vpop.xlane.xlu0 %6064
    %v6066 = vsel %vm355, %v6059, -inf
    %6067 = vmax.xlane.f32.xlu0 %v6066
    %v6068 = vpop.xlane.xlu0 %6067
    %v6069 = vsub.f32 %v6057, %v6062
    %v6070 = vsub.f32 %v6058, %v6065
    %v6071 = vsub.f32 %v6059, %v6068
    %v6072 = vmul.f32 %v6069, 1.442695
    %v6073 = vpow.pop %v6072
    %v6074 = vmul.f32 %v6070, 1.442695
    %v6075 = vpow.pop %v6074
    %v6076 = vmul.f32 %v6071, 1.442695
    %v6077 = vpow.pop %v6076
    %v6078 = vsel %vm355, %v6073, 0.0
    %6079 = vadd.xlane.f32.xlu0 %v6078
    %v6080 = vpop.xlane.xlu0 %6079
    %v6081 = vsel %vm355, %v6075, 0.0
    %6082 = vadd.xlane.f32.xlu0 %v6081
    %v6083 = vpop.xlane.xlu0 %6082
    %v6084 = vsel %vm355, %v6077, 0.0
    %6085 = vadd.xlane.f32.xlu0 %v6084
    %v6086 = vpop.xlane.xlu0 %6085
    %v6087 = vrcp.pop %v6080
    %v6088 = vmul.f32 %v6073, %v6087
    %v6089 = vrcp.pop %v6083
    %v6090 = vmul.f32 %v6075, %v6089
    %v6091 = vrcp.pop %v6086
    %v6092 = vmul.f32 %v6077, %v6091
    %v6094 = vsel %vm355, %v6088, 0
    %6096 = vmatprep.subr.mxu0 0.0
    %6097 = vmatpush1.msra.mxu0 %v5816
    %6098 = vmatprep.subr.mxu0 0.0
    %6099 = vmatpush1.msra.mxu0 0.0
    %6100 = vmatprep.subr.mxu0 0.0
    %6101 = vmatpush1.msra.mxu0 0.0
    %6102 = vmatprep.subr.mxu0 0.0
    %6103 = vmatpush1.msra.mxu0 0.0
    %6104 = vmatprep.subr.mxu0 0.0
    %6105 = vmatpush1.msra.mxu0 0.0
    %6106 = vmatprep.subr.mxu0 0.0
    %6107 = vmatpush1.msra.mxu0 0.0
    %6108 = vmatprep.subr.mxu0 0.0
    %6109 = vmatpush1.msra.mxu0 0.0
    %6110 = vmatprep.subr.mxu0 0.0
    %6111 = vmatpush1.msra.mxu0 0.0
    %6112 = vmatprep.subr.mxu0 0.0
    %6113 = vmatpush1.msra.mxu0 0.0
    %6114 = vmatprep.subr.mxu0 0.0
    %6115 = vmatpush1.msra.mxu0 0.0
    %6116 = vmatprep.subr.mxu0 0.0
    %6117 = vmatpush1.msra.mxu0 0.0
    %6118 = vmatprep.subr.mxu0 0.0
    %6119 = vmatpush1.msra.mxu0 0.0
    %6120 = vmatprep.subr.mxu0 0.0
    %6121 = vmatpush1.msra.mxu0 0.0
    %6122 = vmatprep.subr.mxu0 0.0
    %6123 = vmatpush1.msra.mxu0 0.0
    %6124 = vmatprep.subr.mxu0 0.0
    %6125 = vmatpush1.msra.mxu0 0.0
    %6126 = vmatprep.subr.mxu0 0.0
    %6127 = vmatpush1.msra.mxu0 0.0
    %6128 = vmatprep.subr.mxu0 0.0
    %6129 = vmatpush1.msra.mxu0 0.0
    %6130 = vmatprep.subr.mxu0 0.0
    %6131 = vmatpush1.msra.mxu0 0.0
    %6132 = vmatprep.subr.mxu0 0.0
    %6133 = vmatpush1.msra.mxu0 0.0
    %6134 = vmatprep.subr.mxu0 0.0
    %6135 = vmatpush1.msra.mxu0 0.0
    %6136 = vmatprep.subr.mxu0 0.0
    %6137 = vmatpush1.msra.mxu0 0.0
    %6138 = vmatprep.subr.mxu0 0.0
    %6139 = vmatpush1.msra.mxu0 0.0
    %6140 = vmatprep.subr.mxu0 0.0
    %6141 = vmatpush1.msra.mxu0 0.0
    %6142 = vmatprep.subr.mxu0 0.0
    %6143 = vmatpush1.msra.mxu0 0.0
    %6144 = vmatprep.subr.mxu0 0.0
    %6145 = vmatpush1.msra.mxu0 0.0
    %6146 = vmatprep.subr.mxu0 0.0
    %6147 = vmatpush1.msra.mxu0 0.0
    %6148 = vmatprep.subr.mxu0 0.0
    %6149 = vmatpush1.msra.mxu0 0.0
    %6150 = vmatprep.subr.mxu0 0.0
    %6151 = vmatpush1.msra.mxu0 0.0
    %6152 = vmatprep.subr.mxu0 0.0
    %6153 = vmatpush1.msra.mxu0 0.0
    %6154 = vmatprep.subr.mxu0 0.0
    %6155 = vmatpush1.msra.mxu0 0.0
    %6156 = vmatprep.subr.mxu0 0.0
    %6157 = vmatpush1.msra.mxu0 0.0
    %6158 = vmatprep.subr.mxu0 0.0
    %6159 = vmatpush1.msra.mxu0 0.0
    %6160 = vmatprep.mubr.f32.mxu0 0.0
    %6161 = vmatmul.mubr.f32.gmra.mrb[0].mxu0 %v6094
    %v6162 = vpop.f32.mrb[0].mxu0
    %v6163 = vadd.f32 0.0, %v6162
    %v6164 = vpop.f32.mrb[0].mxu0
    %6165 = vdwg.mxu0
    %v6167 = vsel %vm355, %v6090, 0
    %6169 = vmatprep.subr.mxu0 0.0
    %6170 = vmatpush1.msra.mxu0 %v5821
    %6171 = vmatprep.subr.mxu0 0.0
    %6172 = vmatpush1.msra.mxu0 0.0
    %6173 = vmatprep.subr.mxu0 0.0
    %6174 = vmatpush1.msra.mxu0 0.0
    %6175 = vmatprep.subr.mxu0 0.0
    %6176 = vmatpush1.msra.mxu0 0.0
    %6177 = vmatprep.subr.mxu0 0.0
    %6178 = vmatpush1.msra.mxu0 0.0
    %6179 = vmatprep.subr.mxu0 0.0
    %6180 = vmatpush1.msra.mxu0 0.0
    %6181 = vmatprep.subr.mxu0 0.0
    %6182 = vmatpush1.msra.mxu0 0.0
    %6183 = vmatprep.subr.mxu0 0.0
    %6184 = vmatpush1.msra.mxu0 0.0
    %6185 = vmatprep.subr.mxu0 0.0
    %6186 = vmatpush1.msra.mxu0 0.0
    %6187 = vmatprep.subr.mxu0 0.0
    %6188 = vmatpush1.msra.mxu0 0.0
    %6189 = vmatprep.subr.mxu0 0.0
    %6190 = vmatpush1.msra.mxu0 0.0
    %6191 = vmatprep.subr.mxu0 0.0
    %6192 = vmatpush1.msra.mxu0 0.0
    %6193 = vmatprep.subr.mxu0 0.0
    %6194 = vmatpush1.msra.mxu0 0.0
    %6195 = vmatprep.subr.mxu0 0.0
    %6196 = vmatpush1.msra.mxu0 0.0
    %6197 = vmatprep.subr.mxu0 0.0
    %6198 = vmatpush1.msra.mxu0 0.0
    %6199 = vmatprep.subr.mxu0 0.0
    %6200 = vmatpush1.msra.mxu0 0.0
    %6201 = vmatprep.subr.mxu0 0.0
    %6202 = vmatpush1.msra.mxu0 0.0
    %6203 = vmatprep.subr.mxu0 0.0
    %6204 = vmatpush1.msra.mxu0 0.0
    %6205 = vmatprep.subr.mxu0 0.0
    %6206 = vmatpush1.msra.mxu0 0.0
    %6207 = vmatprep.subr.mxu0 0.0
    %6208 = vmatpush1.msra.mxu0 0.0
    %6209 = vmatprep.subr.mxu0 0.0
    %6210 = vmatpush1.msra.mxu0 0.0
    %6211 = vmatprep.subr.mxu0 0.0
    %6212 = vmatpush1.msra.mxu0 0.0
    %6213 = vmatprep.subr.mxu0 0.0
    %6214 = vmatpush1.msra.mxu0 0.0
    %6215 = vmatprep.subr.mxu0 0.0
    %6216 = vmatpush1.msra.mxu0 0.0
    %6217 = vmatprep.subr.mxu0 0.0
    %6218 = vmatpush1.msra.mxu0 0.0
    %6219 = vmatprep.subr.mxu0 0.0
    %6220 = vmatpush1.msra.mxu0 0.0
    %6221 = vmatprep.subr.mxu0 0.0
    %6222 = vmatpush1.msra.mxu0 0.0
    %6223 = vmatprep.subr.mxu0 0.0
    %6224 = vmatpush1.msra.mxu0 0.0
    %6225 = vmatprep.subr.mxu0 0.0
    %6226 = vmatpush1.msra.mxu0 0.0
    %6227 = vmatprep.subr.mxu0 0.0
    %6228 = vmatpush1.msra.mxu0 0.0
    %6229 = vmatprep.subr.mxu0 0.0
    %6230 = vmatpush1.msra.mxu0 0.0
    %6231 = vmatprep.subr.mxu0 0.0
    %6232 = vmatpush1.msra.mxu0 0.0
    %6233 = vmatprep.mubr.f32.mxu0 0.0
    %6234 = vmatmul.mubr.f32.gmra.mrb[0].mxu0 %v6167
    %v6235 = vpop.f32.mrb[0].mxu0
    %v6236 = vadd.f32 0.0, %v6235
    %v6237 = vpop.f32.mrb[0].mxu0
    %6238 = vdwg.mxu0
    %v6240 = vsel %vm355, %v6092, 0
    %6242 = vmatprep.subr.mxu0 0.0
    %6243 = vmatpush1.msra.mxu0 %v5826
    %6244 = vmatprep.subr.mxu0 0.0
    %6245 = vmatpush1.msra.mxu0 0.0
    %6246 = vmatprep.subr.mxu0 0.0
    %6247 = vmatpush1.msra.mxu0 0.0
    %6248 = vmatprep.subr.mxu0 0.0
    %6249 = vmatpush1.msra.mxu0 0.0
    %6250 = vmatprep.subr.mxu0 0.0
    %6251 = vmatpush1.msra.mxu0 0.0
    %6252 = vmatprep.subr.mxu0 0.0
    %6253 = vmatpush1.msra.mxu0 0.0
    %6254 = vmatprep.subr.mxu0 0.0
    %6255 = vmatpush1.msra.mxu0 0.0
    %6256 = vmatprep.subr.mxu0 0.0
    %6257 = vmatpush1.msra.mxu0 0.0
    %6258 = vmatprep.subr.mxu0 0.0
    %6259 = vmatpush1.msra.mxu0 0.0
    %6260 = vmatprep.subr.mxu0 0.0
    %6261 = vmatpush1.msra.mxu0 0.0
    %6262 = vmatprep.subr.mxu0 0.0
    %6263 = vmatpush1.msra.mxu0 0.0
    %6264 = vmatprep.subr.mxu0 0.0
    %6265 = vmatpush1.msra.mxu0 0.0
    %6266 = vmatprep.subr.mxu0 0.0
    %6267 = vmatpush1.msra.mxu0 0.0
    %6268 = vmatprep.subr.mxu0 0.0
    %6269 = vmatpush1.msra.mxu0 0.0
    %6270 = vmatprep.subr.mxu0 0.0
    %6271 = vmatpush1.msra.mxu0 0.0
    %6272 = vmatprep.subr.mxu0 0.0
    %6273 = vmatpush1.msra.mxu0 0.0
    %6274 = vmatprep.subr.mxu0 0.0
    %6275 = vmatpush1.msra.mxu0 0.0
    %6276 = vmatprep.subr.mxu0 0.0
    %6277 = vmatpush1.msra.mxu0 0.0
    %6278 = vmatprep.subr.mxu0 0.0
    %6279 = vmatpush1.msra.mxu0 0.0
    %6280 = vmatprep.subr.mxu0 0.0
    %6281 = vmatpush1.msra.mxu0 0.0
    %6282 = vmatprep.subr.mxu0 0.0
    %6283 = vmatpush1.msra.mxu0 0.0
    %6284 = vmatprep.subr.mxu0 0.0
    %6285 = vmatpush1.msra.mxu0 0.0
    %6286 = vmatprep.subr.mxu0 0.0
    %6287 = vmatpush1.msra.mxu0 0.0
    %6288 = vmatprep.subr.mxu0 0.0
    %6289 = vmatpush1.msra.mxu0 0.0
    %6290 = vmatprep.subr.mxu0 0.0
    %6291 = vmatpush1.msra.mxu0 0.0
    %6292 = vmatprep.subr.mxu0 0.0
    %6293 = vmatpush1.msra.mxu0 0.0
    %6294 = vmatprep.subr.mxu0 0.0
    %6295 = vmatpush1.msra.mxu0 0.0
    %6296 = vmatprep.subr.mxu0 0.0
    %6297 = vmatpush1.msra.mxu0 0.0
    %6298 = vmatprep.subr.mxu0 0.0
    %6299 = vmatpush1.msra.mxu0 0.0
    %6300 = vmatprep.subr.mxu0 0.0
    %6301 = vmatpush1.msra.mxu0 0.0
    %6302 = vmatprep.subr.mxu0 0.0
    %6303 = vmatpush1.msra.mxu0 0.0
    %6304 = vmatprep.subr.mxu0 0.0
    %6305 = vmatpush1.msra.mxu0 0.0
    %6306 = vmatprep.mubr.f32.mxu0 0.0
    %6307 = vmatmul.mubr.f32.gmra.mrb[0].mxu0 %v6240
    %v6308 = vpop.f32.mrb[0].mxu0
    %v6309 = vadd.f32 0.0, %v6308
    %v6310 = vpop.f32.mrb[0].mxu0
    %6311 = vdwg.mxu0
    %s6312 = scalar_lea.vmem %s7, 48
    %v6313 = vld [vmem:[%s6312] sm:$0xff]
    %v6315 = vsel %vm355, %v6163, 0
    %v6318 = vsel %vm355, %v6236, 0
    %v6321 = vsel %vm355, %v6309, 0
    %6323 = vmatprep.subr.mxu0 0.0
    %6324 = vmatpush1.msra.mxu0 %v6313
    %6325 = vmatprep.subr.mxu0 0.0
    %6326 = vmatpush1.msra.mxu0 0.0
    %6327 = vmatprep.subr.mxu0 0.0
    %6328 = vmatpush1.msra.mxu0 0.0
    %6329 = vmatprep.subr.mxu0 0.0
    %6330 = vmatpush1.msra.mxu0 0.0
    %6331 = vmatprep.subr.mxu0 0.0
    %6332 = vmatpush1.msra.mxu0 0.0
    %6333 = vmatprep.subr.mxu0 0.0
    %6334 = vmatpush1.msra.mxu0 0.0
    %6335 = vmatprep.subr.mxu0 0.0
    %6336 = vmatpush1.msra.mxu0 0.0
    %6337 = vmatprep.subr.mxu0 0.0
    %6338 = vmatpush1.msra.mxu0 0.0
    %6339 = vmatprep.subr.mxu0 0.0
    %6340 = vmatpush1.msra.mxu0 0.0
    %6341 = vmatprep.subr.mxu0 0.0
    %6342 = vmatpush1.msra.mxu0 0.0
    %6343 = vmatprep.subr.mxu0 0.0
    %6344 = vmatpush1.msra.mxu0 0.0
    %6345 = vmatprep.subr.mxu0 0.0
    %6346 = vmatpush1.msra.mxu0 0.0
    %6347 = vmatprep.subr.mxu0 0.0
    %6348 = vmatpush1.msra.mxu0 0.0
    %6349 = vmatprep.subr.mxu0 0.0
    %6350 = vmatpush1.msra.mxu0 0.0
    %6351 = vmatprep.subr.mxu0 0.0
    %6352 = vmatpush1.msra.mxu0 0.0
    %6353 = vmatprep.subr.mxu0 0.0
    %6354 = vmatpush1.msra.mxu0 0.0
    %6355 = vmatprep.subr.mxu0 0.0
    %6356 = vmatpush1.msra.mxu0 0.0
    %6357 = vmatprep.subr.mxu0 0.0
    %6358 = vmatpush1.msra.mxu0 0.0
    %6359 = vmatprep.subr.mxu0 0.0
    %6360 = vmatpush1.msra.mxu0 0.0
    %6361 = vmatprep.subr.mxu0 0.0
    %6362 = vmatpush1.msra.mxu0 0.0
    %6363 = vmatprep.subr.mxu0 0.0
    %6364 = vmatpush1.msra.mxu0 0.0
    %6365 = vmatprep.subr.mxu0 0.0
    %6366 = vmatpush1.msra.mxu0 0.0
    %6367 = vmatprep.subr.mxu0 0.0
    %6368 = vmatpush1.msra.mxu0 0.0
    %6369 = vmatprep.subr.mxu0 0.0
    %6370 = vmatpush1.msra.mxu0 0.0
    %6371 = vmatprep.subr.mxu0 0.0
    %6372 = vmatpush1.msra.mxu0 0.0
    %6373 = vmatprep.subr.mxu0 0.0
    %6374 = vmatpush1.msra.mxu0 0.0
    %6375 = vmatprep.subr.mxu0 0.0
    %6376 = vmatpush1.msra.mxu0 0.0
    %6377 = vmatprep.subr.mxu0 0.0
    %6378 = vmatpush1.msra.mxu0 0.0
    %6379 = vmatprep.subr.mxu0 0.0
    %6380 = vmatpush1.msra.mxu0 0.0
    %6381 = vmatprep.subr.mxu0 0.0
    %6382 = vmatpush1.msra.mxu0 0.0
    %6383 = vmatprep.subr.mxu0 0.0
    %6384 = vmatpush1.msra.mxu0 0.0
    %6385 = vmatprep.subr.mxu0 0.0
    %6386 = vmatpush1.msra.mxu0 0.0
    %6387 = vmatprep.mubr.f32.mxu0 0.0
    %6388 = vmatmul.mubr.f32.gmra.mrb[0].mxu0 %v6315
    %v6389 = vpop.f32.mrb[0].mxu0
    %v6390 = vadd.f32 0.0, %v6389
    %v6391 = vpop.f32.mrb[0].mxu0
    %6392 = vmatprep.mubr.f32.mxu0 0.0
    %6393 = vmatmul.mubr.f32.gmra.mrb[0].mxu0 %v6318
    %v6394 = vpop.f32.mrb[0].mxu0
    %v6395 = vadd.f32 0.0, %v6394
    %v6396 = vpop.f32.mrb[0].mxu0
    %6397 = vmatprep.mubr.f32.mxu0 0.0
    %6398 = vmatmul.mubr.f32.gmra.mrb[0].mxu0 %v6321
    %v6399 = vpop.f32.mrb[0].mxu0
    %v6400 = vadd.f32 0.0, %v6399
    %v6401 = vpop.f32.mrb[0].mxu0
    %6402 = vdwg.mxu0
    %v6403 = vadd.f32 %v5537, %v6390
    %v6404 = vadd.f32 %v5542, %v6395
    %v6405 = vadd.f32 %v5547, %v6400
    %s6406 = scalar_lea.vmem %s1, 224
    %v6407 = vld [vmem:[%s6406] sm:$0xff]
    %v6408 = vld [vmem:[%s6406 + $0x8] sm:$0xff]
    %v6409 = vld [vmem:[%s6406 + $0x10] sm:$0xff]
    %v6410 = vld [vmem:[%s6406 + $0x18] sm:$0xff]
    %s6411 = scalar_lea.vmem %s4, 7
    %v6412 = vld [vmem:[%s6411] sm:$0x1]
    %v6414 = vlaneseq
    %v6415 = vshrl.u32 %v6414, 7
    %v6416 = vsub.s32 0, %v6415
    %v6417 = vrot.slane %v6412, %v6416
    %6419 = vmatprep.subr.mxu0 0.0
    %6420 = vmatpush1.msra.mxu0 %v6407
    %6421 = vmatprep.subr.mxu0 0.0
    %6422 = vmatpush1.msra.mxu0 %v6408
    %6423 = vmatprep.subr.mxu0 0.0
    %6424 = vmatpush1.msra.mxu0 %v6409
    %6425 = vmatprep.subr.mxu0 0.0
    %6426 = vmatpush1.msra.mxu0 %v6410
    %6427 = vmatprep.subr.mxu0 0.0
    %6428 = vmatpush1.msra.mxu0 0.0
    %6429 = vmatprep.subr.mxu0 0.0
    %6430 = vmatpush1.msra.mxu0 0.0
    %6431 = vmatprep.subr.mxu0 0.0
    %6432 = vmatpush1.msra.mxu0 0.0
    %6433 = vmatprep.subr.mxu0 0.0
    %6434 = vmatpush1.msra.mxu0 0.0
    %6435 = vmatprep.subr.mxu0 0.0
    %6436 = vmatpush1.msra.mxu0 0.0
    %6437 = vmatprep.subr.mxu0 0.0
    %6438 = vmatpush1.msra.mxu0 0.0
    %6439 = vmatprep.subr.mxu0 0.0
    %6440 = vmatpush1.msra.mxu0 0.0
    %6441 = vmatprep.subr.mxu0 0.0
    %6442 = vmatpush1.msra.mxu0 0.0
    %6443 = vmatprep.subr.mxu0 0.0
    %6444 = vmatpush1.msra.mxu0 0.0
    %6445 = vmatprep.subr.mxu0 0.0
    %6446 = vmatpush1.msra.mxu0 0.0
    %6447 = vmatprep.subr.mxu0 0.0
    %6448 = vmatpush1.msra.mxu0 0.0
    %6449 = vmatprep.subr.mxu0 0.0
    %6450 = vmatpush1.msra.mxu0 0.0
    %6451 = vmatprep.subr.mxu0 0.0
    %6452 = vmatpush1.msra.mxu0 0.0
    %6453 = vmatprep.subr.mxu0 0.0
    %6454 = vmatpush1.msra.mxu0 0.0
    %6455 = vmatprep.subr.mxu0 0.0
    %6456 = vmatpush1.msra.mxu0 0.0
    %6457 = vmatprep.subr.mxu0 0.0
    %6458 = vmatpush1.msra.mxu0 0.0
    %6459 = vmatprep.subr.mxu0 0.0
    %6460 = vmatpush1.msra.mxu0 0.0
    %6461 = vmatprep.subr.mxu0 0.0
    %6462 = vmatpush1.msra.mxu0 0.0
    %6463 = vmatprep.subr.mxu0 0.0
    %6464 = vmatpush1.msra.mxu0 0.0
    %6465 = vmatprep.subr.mxu0 0.0
    %6466 = vmatpush1.msra.mxu0 0.0
    %6467 = vmatprep.subr.mxu0 0.0
    %6468 = vmatpush1.msra.mxu0 0.0
    %6469 = vmatprep.subr.mxu0 0.0
    %6470 = vmatpush1.msra.mxu0 0.0
    %6471 = vmatprep.subr.mxu0 0.0
    %6472 = vmatpush1.msra.mxu0 0.0
    %6473 = vmatprep.subr.mxu0 0.0
    %6474 = vmatpush1.msra.mxu0 0.0
    %6475 = vmatprep.subr.mxu0 0.0
    %6476 = vmatpush1.msra.mxu0 0.0
    %6477 = vmatprep.subr.mxu0 0.0
    %6478 = vmatpush1.msra.mxu0 0.0
    %6479 = vmatprep.subr.mxu0 0.0
    %6480 = vmatpush1.msra.mxu0 0.0
    %6481 = vmatprep.subr.mxu0 0.0
    %6482 = vmatpush1.msra.mxu0 0.0
    %6483 = vmatprep.mubr.f32.mxu0 0.0
    %6484 = vmatmul.mubr.f32.gmra.mrb[0].mxu0 %v3849
    %v6485 = vpop.f32.mrb[0].mxu0
    %v6486 = vadd.f32 %v6417, %v6485
    %v6487 = vpop.f32.mrb[0].mxu0
    %6488 = vmatprep.mubr.f32.mxu0 0.0
    %6489 = vmatmul.mubr.f32.gmra.mrb[0].mxu0 %v3852
    %v6490 = vpop.f32.mrb[0].mxu0
    %v6491 = vadd.f32 %v6417, %v6490
    %v6492 = vpop.f32.mrb[0].mxu0
    %6493 = vmatprep.mubr.f32.mxu0 0.0
    %6494 = vmatmul.mubr.f32.gmra.mrb[0].mxu0 %v3855
    %v6495 = vpop.f32.mrb[0].mxu0
    %v6496 = vadd.f32 %v6417, %v6495
    %v6497 = vpop.f32.mrb[0].mxu0
    %6498 = vdwg.mxu0
    %s6499 = scalar_lea.vmem %s2, 224
    %v6500 = vld [vmem:[%s6499] sm:$0xff]
    %v6501 = vld [vmem:[%s6499 + $0x8] sm:$0xff]
    %v6502 = vld [vmem:[%s6499 + $0x10] sm:$0xff]
    %v6503 = vld [vmem:[%s6499 + $0x18] sm:$0xff]
    %s6504 = scalar_lea.vmem %s5, 7
    %v6505 = vld [vmem:[%s6504] sm:$0x1]
    %v6507 = vlaneseq
    %v6508 = vshrl.u32 %v6507, 7
    %v6509 = vsub.s32 0, %v6508
    %v6510 = vrot.slane %v6505, %v6509
    %6512 = vmatprep.subr.mxu0 0.0
    %6513 = vmatpush1.msra.mxu0 %v6500
    %6514 = vmatprep.subr.mxu0 0.0
    %6515 = vmatpush1.msra.mxu0 %v6501
    %6516 = vmatprep.subr.mxu0 0.0
    %6517 = vmatpush1.msra.mxu0 %v6502
    %6518 = vmatprep.subr.mxu0 0.0
    %6519 = vmatpush1.msra.mxu0 %v6503
    %6520 = vmatprep.subr.mxu0 0.0
    %6521 = vmatpush1.msra.mxu0 0.0
    %6522 = vmatprep.subr.mxu0 0.0
    %6523 = vmatpush1.msra.mxu0 0.0
    %6524 = vmatprep.subr.mxu0 0.0
    %6525 = vmatpush1.msra.mxu0 0.0
    %6526 = vmatprep.subr.mxu0 0.0
    %6527 = vmatpush1.msra.mxu0 0.0
    %6528 = vmatprep.subr.mxu0 0.0
    %6529 = vmatpush1.msra.mxu0 0.0
    %6530 = vmatprep.subr.mxu0 0.0
    %6531 = vmatpush1.msra.mxu0 0.0
    %6532 = vmatprep.subr.mxu0 0.0
    %6533 = vmatpush1.msra.mxu0 0.0
    %6534 = vmatprep.subr.mxu0 0.0
    %6535 = vmatpush1.msra.mxu0 0.0
    %6536 = vmatprep.subr.mxu0 0.0
    %6537 = vmatpush1.msra.mxu0 0.0
    %6538 = vmatprep.subr.mxu0 0.0
    %6539 = vmatpush1.msra.mxu0 0.0
    %6540 = vmatprep.subr.mxu0 0.0
    %6541 = vmatpush1.msra.mxu0 0.0
    %6542 = vmatprep.subr.mxu0 0.0
    %6543 = vmatpush1.msra.mxu0 0.0
    %6544 = vmatprep.subr.mxu0 0.0
    %6545 = vmatpush1.msra.mxu0 0.0
    %6546 = vmatprep.subr.mxu0 0.0
    %6547 = vmatpush1.msra.mxu0 0.0
    %6548 = vmatprep.subr.mxu0 0.0
    %6549 = vmatpush1.msra.mxu0 0.0
    %6550 = vmatprep.subr.mxu0 0.0
    %6551 = vmatpush1.msra.mxu0 0.0
    %6552 = vmatprep.subr.mxu0 0.0
    %6553 = vmatpush1.msra.mxu0 0.0
    %6554 = vmatprep.subr.mxu0 0.0
    %6555 = vmatpush1.msra.mxu0 0.0
    %6556 = vmatprep.subr.mxu0 0.0
    %6557 = vmatpush1.msra.mxu0 0.0
    %6558 = vmatprep.subr.mxu0 0.0
    %6559 = vmatpush1.msra.mxu0 0.0
    %6560 = vmatprep.subr.mxu0 0.0
    %6561 = vmatpush1.msra.mxu0 0.0
    %6562 = vmatprep.subr.mxu0 0.0
    %6563 = vmatpush1.msra.mxu0 0.0
    %6564 = vmatprep.subr.mxu0 0.0
    %6565 = vmatpush1.msra.mxu0 0.0
    %6566 = vmatprep.subr.mxu0 0.0
    %6567 = vmatpush1.msra.mxu0 0.0
    %6568 = vmatprep.subr.mxu0 0.0
    %6569 = vmatpush1.msra.mxu0 0.0
    %6570 = vmatprep.subr.mxu0 0.0
    %6571 = vmatpush1.msra.mxu0 0.0
    %6572 = vmatprep.subr.mxu0 0.0
    %6573 = vmatpush1.msra.mxu0 0.0
    %6574 = vmatprep.subr.mxu0 0.0
    %6575 = vmatpush1.msra.mxu0 0.0
    %6576 = vmatprep.mubr.f32.mxu0 0.0
    %6577 = vmatmul.mubr.f32.gmra.mrb[0].mxu0 %v3849
    %v6578 = vpop.f32.mrb[0].mxu0
    %v6579 = vadd.f32 %v6510, %v6578
    %v6580 = vpop.f32.mrb[0].mxu0
    %6581 = vmatprep.mubr.f32.mxu0 0.0
    %6582 = vmatmul.mubr.f32.gmra.mrb[0].mxu0 %v3852
    %v6583 = vpop.f32.mrb[0].mxu0
    %v6584 = vadd.f32 %v6510, %v6583
    %v6585 = vpop.f32.mrb[0].mxu0
    %6586 = vmatprep.mubr.f32.mxu0 0.0
    %6587 = vmatmul.mubr.f32.gmra.mrb[0].mxu0 %v3855
    %v6588 = vpop.f32.mrb[0].mxu0
    %v6589 = vadd.f32 %v6510, %v6588
    %v6590 = vpop.f32.mrb[0].mxu0
    %6591 = vdwg.mxu0
    %s6592 = scalar_lea.vmem %s3, 224
    %v6593 = vld [vmem:[%s6592] sm:$0xff]
    %v6594 = vld [vmem:[%s6592 + $0x8] sm:$0xff]
    %v6595 = vld [vmem:[%s6592 + $0x10] sm:$0xff]
    %v6596 = vld [vmem:[%s6592 + $0x18] sm:$0xff]
    %s6597 = scalar_lea.vmem %s6, 7
    %v6598 = vld [vmem:[%s6597] sm:$0x1]
    %v6600 = vlaneseq
    %v6601 = vshrl.u32 %v6600, 7
    %v6602 = vsub.s32 0, %v6601
    %v6603 = vrot.slane %v6598, %v6602
    %6605 = vmatprep.subr.mxu0 0.0
    %6606 = vmatpush1.msra.mxu0 %v6593
    %6607 = vmatprep.subr.mxu0 0.0
    %6608 = vmatpush1.msra.mxu0 %v6594
    %6609 = vmatprep.subr.mxu0 0.0
    %6610 = vmatpush1.msra.mxu0 %v6595
    %6611 = vmatprep.subr.mxu0 0.0
    %6612 = vmatpush1.msra.mxu0 %v6596
    %6613 = vmatprep.subr.mxu0 0.0
    %6614 = vmatpush1.msra.mxu0 0.0
    %6615 = vmatprep.subr.mxu0 0.0
    %6616 = vmatpush1.msra.mxu0 0.0
    %6617 = vmatprep.subr.mxu0 0.0
    %6618 = vmatpush1.msra.mxu0 0.0
    %6619 = vmatprep.subr.mxu0 0.0
    %6620 = vmatpush1.msra.mxu0 0.0
    %6621 = vmatprep.subr.mxu0 0.0
    %6622 = vmatpush1.msra.mxu0 0.0
    %6623 = vmatprep.subr.mxu0 0.0
    %6624 = vmatpush1.msra.mxu0 0.0
    %6625 = vmatprep.subr.mxu0 0.0
    %6626 = vmatpush1.msra.mxu0 0.0
    %6627 = vmatprep.subr.mxu0 0.0
    %6628 = vmatpush1.msra.mxu0 0.0
    %6629 = vmatprep.subr.mxu0 0.0
    %6630 = vmatpush1.msra.mxu0 0.0
    %6631 = vmatprep.subr.mxu0 0.0
    %6632 = vmatpush1.msra.mxu0 0.0
    %6633 = vmatprep.subr.mxu0 0.0
    %6634 = vmatpush1.msra.mxu0 0.0
    %6635 = vmatprep.subr.mxu0 0.0
    %6636 = vmatpush1.msra.mxu0 0.0
    %6637 = vmatprep.subr.mxu0 0.0
    %6638 = vmatpush1.msra.mxu0 0.0
    %6639 = vmatprep.subr.mxu0 0.0
    %6640 = vmatpush1.msra.mxu0 0.0
    %6641 = vmatprep.subr.mxu0 0.0
    %6642 = vmatpush1.msra.mxu0 0.0
    %6643 = vmatprep.subr.mxu0 0.0
    %6644 = vmatpush1.msra.mxu0 0.0
    %6645 = vmatprep.subr.mxu0 0.0
    %6646 = vmatpush1.msra.mxu0 0.0
    %6647 = vmatprep.subr.mxu0 0.0
    %6648 = vmatpush1.msra.mxu0 0.0
    %6649 = vmatprep.subr.mxu0 0.0
    %6650 = vmatpush1.msra.mxu0 0.0
    %6651 = vmatprep.subr.mxu0 0.0
    %6652 = vmatpush1.msra.mxu0 0.0
    %6653 = vmatprep.subr.mxu0 0.0
    %6654 = vmatpush1.msra.mxu0 0.0
    %6655 = vmatprep.subr.mxu0 0.0
    %6656 = vmatpush1.msra.mxu0 0.0
    %6657 = vmatprep.subr.mxu0 0.0
    %6658 = vmatpush1.msra.mxu0 0.0
    %6659 = vmatprep.subr.mxu0 0.0
    %6660 = vmatpush1.msra.mxu0 0.0
    %6661 = vmatprep.subr.mxu0 0.0
    %6662 = vmatpush1.msra.mxu0 0.0
    %6663 = vmatprep.subr.mxu0 0.0
    %6664 = vmatpush1.msra.mxu0 0.0
    %6665 = vmatprep.subr.mxu0 0.0
    %6666 = vmatpush1.msra.mxu0 0.0
    %6667 = vmatprep.subr.mxu0 0.0
    %6668 = vmatpush1.msra.mxu0 0.0
    %6669 = vmatprep.mubr.f32.mxu0 0.0
    %6670 = vmatmul.mubr.f32.gmra.mrb[0].mxu0 %v3849
    %v6671 = vpop.f32.mrb[0].mxu0
    %v6672 = vadd.f32 %v6603, %v6671
    %v6673 = vpop.f32.mrb[0].mxu0
    %6674 = vmatprep.mubr.f32.mxu0 0.0
    %6675 = vmatmul.mubr.f32.gmra.mrb[0].mxu0 %v3852
    %v6676 = vpop.f32.mrb[0].mxu0
    %v6677 = vadd.f32 %v6603, %v6676
    %v6678 = vpop.f32.mrb[0].mxu0
    %6679 = vmatprep.mubr.f32.mxu0 0.0
    %6680 = vmatmul.mubr.f32.gmra.mrb[0].mxu0 %v3855
    %v6681 = vpop.f32.mrb[0].mxu0
    %v6682 = vadd.f32 %v6603, %v6681
    %v6683 = vpop.f32.mrb[0].mxu0
    %6684 = vdwg.mxu0
    %v6686 = vsel %vm355, %v6486, 0
    %v6689 = vsel %vm355, %v6579, 0
    %6691 = vmatprep.subr.mxu0 0.0
    %6692 = vmatpush1.xpose.msra.mxu0 %v6689
    %6693 = vmatprep.subr.mxu0 0.0
    %6694 = vmatpush1.xpose.msra.mxu0 0.0
    %6695 = vmatprep.subr.mxu0 0.0
    %6696 = vmatpush1.xpose.msra.mxu0 0.0
    %6697 = vmatprep.subr.mxu0 0.0
    %6698 = vmatpush1.xpose.msra.mxu0 0.0
    %6699 = vmatprep.subr.mxu0 0.0
    %6700 = vmatpush1.xpose.msra.mxu0 0.0
    %6701 = vmatprep.subr.mxu0 0.0
    %6702 = vmatpush1.xpose.msra.mxu0 0.0
    %6703 = vmatprep.subr.mxu0 0.0
    %6704 = vmatpush1.xpose.msra.mxu0 0.0
    %6705 = vmatprep.subr.mxu0 0.0
    %6706 = vmatpush1.xpose.msra.mxu0 0.0
    %6707 = vmatprep.subr.mxu0 0.0
    %6708 = vmatpush1.xpose.msra.mxu0 0.0
    %6709 = vmatprep.subr.mxu0 0.0
    %6710 = vmatpush1.xpose.msra.mxu0 0.0
    %6711 = vmatprep.subr.mxu0 0.0
    %6712 = vmatpush1.xpose.msra.mxu0 0.0
    %6713 = vmatprep.subr.mxu0 0.0
    %6714 = vmatpush1.xpose.msra.mxu0 0.0
    %6715 = vmatprep.subr.mxu0 0.0
    %6716 = vmatpush1.xpose.msra.mxu0 0.0
    %6717 = vmatprep.subr.mxu0 0.0
    %6718 = vmatpush1.xpose.msra.mxu0 0.0
    %6719 = vmatprep.subr.mxu0 0.0
    %6720 = vmatpush1.xpose.msra.mxu0 0.0
    %6721 = vmatprep.subr.mxu0 0.0
    %6722 = vmatpush1.xpose.msra.mxu0 0.0
    %6723 = vmatprep.subr.mxu0 0.0
    %6724 = vmatpush1.xpose.msra.mxu0 0.0
    %6725 = vmatprep.subr.mxu0 0.0
    %6726 = vmatpush1.xpose.msra.mxu0 0.0
    %6727 = vmatprep.subr.mxu0 0.0
    %6728 = vmatpush1.xpose.msra.mxu0 0.0
    %6729 = vmatprep.subr.mxu0 0.0
    %6730 = vmatpush1.xpose.msra.mxu0 0.0
    %6731 = vmatprep.subr.mxu0 0.0
    %6732 = vmatpush1.xpose.msra.mxu0 0.0
    %6733 = vmatprep.subr.mxu0 0.0
    %6734 = vmatpush1.xpose.msra.mxu0 0.0
    %6735 = vmatprep.subr.mxu0 0.0
    %6736 = vmatpush1.xpose.msra.mxu0 0.0
    %6737 = vmatprep.subr.mxu0 0.0
    %6738 = vmatpush1.xpose.msra.mxu0 0.0
    %6739 = vmatprep.subr.mxu0 0.0
    %6740 = vmatpush1.xpose.msra.mxu0 0.0
    %6741 = vmatprep.subr.mxu0 0.0
    %6742 = vmatpush1.xpose.msra.mxu0 0.0
    %6743 = vmatprep.subr.mxu0 0.0
    %6744 = vmatpush1.xpose.msra.mxu0 0.0
    %6745 = vmatprep.subr.mxu0 0.0
    %6746 = vmatpush1.xpose.msra.mxu0 0.0
    %6747 = vmatprep.subr.mxu0 0.0
    %6748 = vmatpush1.xpose.msra.mxu0 0.0
    %6749 = vmatprep.subr.mxu0 0.0
    %6750 = vmatpush1.xpose.msra.mxu0 0.0
    %6751 = vmatprep.subr.mxu0 0.0
    %6752 = vmatpush1.xpose.msra.mxu0 0.0
    %6753 = vmatprep.subr.mxu0 0.0
    %6754 = vmatpush1.xpose.msra.mxu0 0.0
    %6755 = vmatprep.mubr.f32.mxu0 0.0
    %6756 = vmatmul.mubr.f32.gmra.mrb[0].mxu0 %v6686
    %v6757 = vpop.f32.mrb[0].mxu0
    %v6758 = vadd.f32 0.0, %v6757
    %v6759 = vpop.f32.mrb[0].mxu0
    %6760 = vdwg.mxu0
    %v6762 = vsel %vm355, %v6491, 0
    %v6765 = vsel %vm355, %v6584, 0
    %6767 = vmatprep.subr.mxu0 0.0
    %6768 = vmatpush1.xpose.msra.mxu0 %v6765
    %6769 = vmatprep.subr.mxu0 0.0
    %6770 = vmatpush1.xpose.msra.mxu0 0.0
    %6771 = vmatprep.subr.mxu0 0.0
    %6772 = vmatpush1.xpose.msra.mxu0 0.0
    %6773 = vmatprep.subr.mxu0 0.0
    %6774 = vmatpush1.xpose.msra.mxu0 0.0
    %6775 = vmatprep.subr.mxu0 0.0
    %6776 = vmatpush1.xpose.msra.mxu0 0.0
    %6777 = vmatprep.subr.mxu0 0.0
    %6778 = vmatpush1.xpose.msra.mxu0 0.0
    %6779 = vmatprep.subr.mxu0 0.0
    %6780 = vmatpush1.xpose.msra.mxu0 0.0
    %6781 = vmatprep.subr.mxu0 0.0
    %6782 = vmatpush1.xpose.msra.mxu0 0.0
    %6783 = vmatprep.subr.mxu0 0.0
    %6784 = vmatpush1.xpose.msra.mxu0 0.0
    %6785 = vmatprep.subr.mxu0 0.0
    %6786 = vmatpush1.xpose.msra.mxu0 0.0
    %6787 = vmatprep.subr.mxu0 0.0
    %6788 = vmatpush1.xpose.msra.mxu0 0.0
    %6789 = vmatprep.subr.mxu0 0.0
    %6790 = vmatpush1.xpose.msra.mxu0 0.0
    %6791 = vmatprep.subr.mxu0 0.0
    %6792 = vmatpush1.xpose.msra.mxu0 0.0
    %6793 = vmatprep.subr.mxu0 0.0
    %6794 = vmatpush1.xpose.msra.mxu0 0.0
    %6795 = vmatprep.subr.mxu0 0.0
    %6796 = vmatpush1.xpose.msra.mxu0 0.0
    %6797 = vmatprep.subr.mxu0 0.0
    %6798 = vmatpush1.xpose.msra.mxu0 0.0
    %6799 = vmatprep.subr.mxu0 0.0
    %6800 = vmatpush1.xpose.msra.mxu0 0.0
    %6801 = vmatprep.subr.mxu0 0.0
    %6802 = vmatpush1.xpose.msra.mxu0 0.0
    %6803 = vmatprep.subr.mxu0 0.0
    %6804 = vmatpush1.xpose.msra.mxu0 0.0
    %6805 = vmatprep.subr.mxu0 0.0
    %6806 = vmatpush1.xpose.msra.mxu0 0.0
    %6807 = vmatprep.subr.mxu0 0.0
    %6808 = vmatpush1.xpose.msra.mxu0 0.0
    %6809 = vmatprep.subr.mxu0 0.0
    %6810 = vmatpush1.xpose.msra.mxu0 0.0
    %6811 = vmatprep.subr.mxu0 0.0
    %6812 = vmatpush1.xpose.msra.mxu0 0.0
    %6813 = vmatprep.subr.mxu0 0.0
    %6814 = vmatpush1.xpose.msra.mxu0 0.0
    %6815 = vmatprep.subr.mxu0 0.0
    %6816 = vmatpush1.xpose.msra.mxu0 0.0
    %6817 = vmatprep.subr.mxu0 0.0
    %6818 = vmatpush1.xpose.msra.mxu0 0.0
    %6819 = vmatprep.subr.mxu0 0.0
    %6820 = vmatpush1.xpose.msra.mxu0 0.0
    %6821 = vmatprep.subr.mxu0 0.0
    %6822 = vmatpush1.xpose.msra.mxu0 0.0
    %6823 = vmatprep.subr.mxu0 0.0
    %6824 = vmatpush1.xpose.msra.mxu0 0.0
    %6825 = vmatprep.subr.mxu0 0.0
    %6826 = vmatpush1.xpose.msra.mxu0 0.0
    %6827 = vmatprep.subr.mxu0 0.0
    %6828 = vmatpush1.xpose.msra.mxu0 0.0
    %6829 = vmatprep.subr.mxu0 0.0
    %6830 = vmatpush1.xpose.msra.mxu0 0.0
    %6831 = vmatprep.mubr.f32.mxu0 0.0
    %6832 = vmatmul.mubr.f32.gmra.mrb[0].mxu0 %v6762
    %v6833 = vpop.f32.mrb[0].mxu0
    %v6834 = vadd.f32 0.0, %v6833
    %v6835 = vpop.f32.mrb[0].mxu0
    %6836 = vdwg.mxu0
    %v6838 = vsel %vm355, %v6496, 0
    %v6841 = vsel %vm355, %v6589, 0
    %6843 = vmatprep.subr.mxu0 0.0
    %6844 = vmatpush1.xpose.msra.mxu0 %v6841
    %6845 = vmatprep.subr.mxu0 0.0
    %6846 = vmatpush1.xpose.msra.mxu0 0.0
    %6847 = vmatprep.subr.mxu0 0.0
    %6848 = vmatpush1.xpose.msra.mxu0 0.0
    %6849 = vmatprep.subr.mxu0 0.0
    %6850 = vmatpush1.xpose.msra.mxu0 0.0
    %6851 = vmatprep.subr.mxu0 0.0
    %6852 = vmatpush1.xpose.msra.mxu0 0.0
    %6853 = vmatprep.subr.mxu0 0.0
    %6854 = vmatpush1.xpose.msra.mxu0 0.0
    %6855 = vmatprep.subr.mxu0 0.0
    %6856 = vmatpush1.xpose.msra.mxu0 0.0
    %6857 = vmatprep.subr.mxu0 0.0
    %6858 = vmatpush1.xpose.msra.mxu0 0.0
    %6859 = vmatprep.subr.mxu0 0.0
    %6860 = vmatpush1.xpose.msra.mxu0 0.0
    %6861 = vmatprep.subr.mxu0 0.0
    %6862 = vmatpush1.xpose.msra.mxu0 0.0
    %6863 = vmatprep.subr.mxu0 0.0
    %6864 = vmatpush1.xpose.msra.mxu0 0.0
    %6865 = vmatprep.subr.mxu0 0.0
    %6866 = vmatpush1.xpose.msra.mxu0 0.0
    %6867 = vmatprep.subr.mxu0 0.0
    %6868 = vmatpush1.xpose.msra.mxu0 0.0
    %6869 = vmatprep.subr.mxu0 0.0
    %6870 = vmatpush1.xpose.msra.mxu0 0.0
    %6871 = vmatprep.subr.mxu0 0.0
    %6872 = vmatpush1.xpose.msra.mxu0 0.0
    %6873 = vmatprep.subr.mxu0 0.0
    %6874 = vmatpush1.xpose.msra.mxu0 0.0
    %6875 = vmatprep.subr.mxu0 0.0
    %6876 = vmatpush1.xpose.msra.mxu0 0.0
    %6877 = vmatprep.subr.mxu0 0.0
    %6878 = vmatpush1.xpose.msra.mxu0 0.0
    %6879 = vmatprep.subr.mxu0 0.0
    %6880 = vmatpush1.xpose.msra.mxu0 0.0
    %6881 = vmatprep.subr.mxu0 0.0
    %6882 = vmatpush1.xpose.msra.mxu0 0.0
    %6883 = vmatprep.subr.mxu0 0.0
    %6884 = vmatpush1.xpose.msra.mxu0 0.0
    %6885 = vmatprep.subr.mxu0 0.0
    %6886 = vmatpush1.xpose.msra.mxu0 0.0
    %6887 = vmatprep.subr.mxu0 0.0
    %6888 = vmatpush1.xpose.msra.mxu0 0.0
    %6889 = vmatprep.subr.mxu0 0.0
    %6890 = vmatpush1.xpose.msra.mxu0 0.0
    %6891 = vmatprep.subr.mxu0 0.0
    %6892 = vmatpush1.xpose.msra.mxu0 0.0
    %6893 = vmatprep.subr.mxu0 0.0
    %6894 = vmatpush1.xpose.msra.mxu0 0.0
    %6895 = vmatprep.subr.mxu0 0.0
    %6896 = vmatpush1.xpose.msra.mxu0 0.0
    %6897 = vmatprep.subr.mxu0 0.0
    %6898 = vmatpush1.xpose.msra.mxu0 0.0
    %6899 = vmatprep.subr.mxu0 0.0
    %6900 = vmatpush1.xpose.msra.mxu0 0.0
    %6901 = vmatprep.subr.mxu0 0.0
    %6902 = vmatpush1.xpose.msra.mxu0 0.0
    %6903 = vmatprep.subr.mxu0 0.0
    %6904 = vmatpush1.xpose.msra.mxu0 0.0
    %6905 = vmatprep.subr.mxu0 0.0
    %6906 = vmatpush1.xpose.msra.mxu0 0.0
    %6907 = vmatprep.mubr.f32.mxu0 0.0
    %6908 = vmatmul.mubr.f32.gmra.mrb[0].mxu0 %v6838
    %v6909 = vpop.f32.mrb[0].mxu0
    %v6910 = vadd.f32 0.0, %v6909
    %v6911 = vpop.f32.mrb[0].mxu0
    %6912 = vdwg.mxu0
    %v6913 = vmul.f32 %v6758, 0.35355338
    %v6914 = vmul.f32 %v6834, 0.35355338
    %v6915 = vmul.f32 %v6910, 0.35355338
    %v6916 = vsel %vm355, %v6913, -inf
    %6917 = vmax.xlane.f32.xlu0 %v6916
    %v6918 = vpop.xlane.xlu0 %6917
    %v6919 = vsel %vm355, %v6914, -inf
    %6920 = vmax.xlane.f32.xlu0 %v6919
    %v6921 = vpop.xlane.xlu0 %6920
    %v6922 = vsel %vm355, %v6915, -inf
    %6923 = vmax.xlane.f32.xlu0 %v6922
    %v6924 = vpop.xlane.xlu0 %6923
    %v6925 = vsub.f32 %v6913, %v6918
    %v6926 = vsub.f32 %v6914, %v6921
    %v6927 = vsub.f32 %v6915, %v6924
    %v6928 = vmul.f32 %v6925, 1.442695
    %v6929 = vpow.pop %v6928
    %v6930 = vmul.f32 %v6926, 1.442695
    %v6931 = vpow.pop %v6930
    %v6932 = vmul.f32 %v6927, 1.442695
    %v6933 = vpow.pop %v6932
    %v6934 = vsel %vm355, %v6929, 0.0
    %6935 = vadd.xlane.f32.xlu0 %v6934
    %v6936 = vpop.xlane.xlu0 %6935
    %v6937 = vsel %vm355, %v6931, 0.0
    %6938 = vadd.xlane.f32.xlu0 %v6937
    %v6939 = vpop.xlane.xlu0 %6938
    %v6940 = vsel %vm355, %v6933, 0.0
    %6941 = vadd.xlane.f32.xlu0 %v6940
    %v6942 = vpop.xlane.xlu0 %6941
    %v6943 = vrcp.pop %v6936
    %v6944 = vmul.f32 %v6929, %v6943
    %v6945 = vrcp.pop %v6939
    %v6946 = vmul.f32 %v6931, %v6945
    %v6947 = vrcp.pop %v6942
    %v6948 = vmul.f32 %v6933, %v6947
    %v6950 = vsel %vm355, %v6944, 0
    %6952 = vmatprep.subr.mxu0 0.0
    %6953 = vmatpush1.msra.mxu0 %v6672
    %6954 = vmatprep.subr.mxu0 0.0
    %6955 = vmatpush1.msra.mxu0 0.0
    %6956 = vmatprep.subr.mxu0 0.0
    %6957 = vmatpush1.msra.mxu0 0.0
    %6958 = vmatprep.subr.mxu0 0.0
    %6959 = vmatpush1.msra.mxu0 0.0
    %6960 = vmatprep.subr.mxu0 0.0
    %6961 = vmatpush1.msra.mxu0 0.0
    %6962 = vmatprep.subr.mxu0 0.0
    %6963 = vmatpush1.msra.mxu0 0.0
    %6964 = vmatprep.subr.mxu0 0.0
    %6965 = vmatpush1.msra.mxu0 0.0
    %6966 = vmatprep.subr.mxu0 0.0
    %6967 = vmatpush1.msra.mxu0 0.0
    %6968 = vmatprep.subr.mxu0 0.0
    %6969 = vmatpush1.msra.mxu0 0.0
    %6970 = vmatprep.subr.mxu0 0.0
    %6971 = vmatpush1.msra.mxu0 0.0
    %6972 = vmatprep.subr.mxu0 0.0
    %6973 = vmatpush1.msra.mxu0 0.0
    %6974 = vmatprep.subr.mxu0 0.0
    %6975 = vmatpush1.msra.mxu0 0.0
    %6976 = vmatprep.subr.mxu0 0.0
    %6977 = vmatpush1.msra.mxu0 0.0
    %6978 = vmatprep.subr.mxu0 0.0
    %6979 = vmatpush1.msra.mxu0 0.0
    %6980 = vmatprep.subr.mxu0 0.0
    %6981 = vmatpush1.msra.mxu0 0.0
    %6982 = vmatprep.subr.mxu0 0.0
    %6983 = vmatpush1.msra.mxu0 0.0
    %6984 = vmatprep.subr.mxu0 0.0
    %6985 = vmatpush1.msra.mxu0 0.0
    %6986 = vmatprep.subr.mxu0 0.0
    %6987 = vmatpush1.msra.mxu0 0.0
    %6988 = vmatprep.subr.mxu0 0.0
    %6989 = vmatpush1.msra.mxu0 0.0
    %6990 = vmatprep.subr.mxu0 0.0
    %6991 = vmatpush1.msra.mxu0 0.0
    %6992 = vmatprep.subr.mxu0 0.0
    %6993 = vmatpush1.msra.mxu0 0.0
    %6994 = vmatprep.subr.mxu0 0.0
    %6995 = vmatpush1.msra.mxu0 0.0
    %6996 = vmatprep.subr.mxu0 0.0
    %6997 = vmatpush1.msra.mxu0 0.0
    %6998 = vmatprep.subr.mxu0 0.0
    %6999 = vmatpush1.msra.mxu0 0.0
    %7000 = vmatprep.subr.mxu0 0.0
    %7001 = vmatpush1.msra.mxu0 0.0
    %7002 = vmatprep.subr.mxu0 0.0
    %7003 = vmatpush1.msra.mxu0 0.0
    %7004 = vmatprep.subr.mxu0 0.0
    %7005 = vmatpush1.msra.mxu0 0.0
    %7006 = vmatprep.subr.mxu0 0.0
    %7007 = vmatpush1.msra.mxu0 0.0
    %7008 = vmatprep.subr.mxu0 0.0
    %7009 = vmatpush1.msra.mxu0 0.0
    %7010 = vmatprep.subr.mxu0 0.0
    %7011 = vmatpush1.msra.mxu0 0.0
    %7012 = vmatprep.subr.mxu0 0.0
    %7013 = vmatpush1.msra.mxu0 0.0
    %7014 = vmatprep.subr.mxu0 0.0
    %7015 = vmatpush1.msra.mxu0 0.0
    %7016 = vmatprep.mubr.f32.mxu0 0.0
    %7017 = vmatmul.mubr.f32.gmra.mrb[0].mxu0 %v6950
    %v7018 = vpop.f32.mrb[0].mxu0
    %v7019 = vadd.f32 0.0, %v7018
    %v7020 = vpop.f32.mrb[0].mxu0
    %7021 = vdwg.mxu0
    %v7023 = vsel %vm355, %v6946, 0
    %7025 = vmatprep.subr.mxu0 0.0
    %7026 = vmatpush1.msra.mxu0 %v6677
    %7027 = vmatprep.subr.mxu0 0.0
    %7028 = vmatpush1.msra.mxu0 0.0
    %7029 = vmatprep.subr.mxu0 0.0
    %7030 = vmatpush1.msra.mxu0 0.0
    %7031 = vmatprep.subr.mxu0 0.0
    %7032 = vmatpush1.msra.mxu0 0.0
    %7033 = vmatprep.subr.mxu0 0.0
    %7034 = vmatpush1.msra.mxu0 0.0
    %7035 = vmatprep.subr.mxu0 0.0
    %7036 = vmatpush1.msra.mxu0 0.0
    %7037 = vmatprep.subr.mxu0 0.0
    %7038 = vmatpush1.msra.mxu0 0.0
    %7039 = vmatprep.subr.mxu0 0.0
    %7040 = vmatpush1.msra.mxu0 0.0
    %7041 = vmatprep.subr.mxu0 0.0
    %7042 = vmatpush1.msra.mxu0 0.0
    %7043 = vmatprep.subr.mxu0 0.0
    %7044 = vmatpush1.msra.mxu0 0.0
    %7045 = vmatprep.subr.mxu0 0.0
    %7046 = vmatpush1.msra.mxu0 0.0
    %7047 = vmatprep.subr.mxu0 0.0
    %7048 = vmatpush1.msra.mxu0 0.0
    %7049 = vmatprep.subr.mxu0 0.0
    %7050 = vmatpush1.msra.mxu0 0.0
    %7051 = vmatprep.subr.mxu0 0.0
    %7052 = vmatpush1.msra.mxu0 0.0
    %7053 = vmatprep.subr.mxu0 0.0
    %7054 = vmatpush1.msra.mxu0 0.0
    %7055 = vmatprep.subr.mxu0 0.0
    %7056 = vmatpush1.msra.mxu0 0.0
    %7057 = vmatprep.subr.mxu0 0.0
    %7058 = vmatpush1.msra.mxu0 0.0
    %7059 = vmatprep.subr.mxu0 0.0
    %7060 = vmatpush1.msra.mxu0 0.0
    %7061 = vmatprep.subr.mxu0 0.0
    %7062 = vmatpush1.msra.mxu0 0.0
    %7063 = vmatprep.subr.mxu0 0.0
    %7064 = vmatpush1.msra.mxu0 0.0
    %7065 = vmatprep.subr.mxu0 0.0
    %7066 = vmatpush1.msra.mxu0 0.0
    %7067 = vmatprep.subr.mxu0 0.0
    %7068 = vmatpush1.msra.mxu0 0.0
    %7069 = vmatprep.subr.mxu0 0.0
    %7070 = vmatpush1.msra.mxu0 0.0
    %7071 = vmatprep.subr.mxu0 0.0
    %7072 = vmatpush1.msra.mxu0 0.0
    %7073 = vmatprep.subr.mxu0 0.0
    %7074 = vmatpush1.msra.mxu0 0.0
    %7075 = vmatprep.subr.mxu0 0.0
    %7076 = vmatpush1.msra.mxu0 0.0
    %7077 = vmatprep.subr.mxu0 0.0
    %7078 = vmatpush1.msra.mxu0 0.0
    %7079 = vmatprep.subr.mxu0 0.0
    %7080 = vmatpush1.msra.mxu0 0.0
    %7081 = vmatprep.subr.mxu0 0.0
    %7082 = vmatpush1.msra.mxu0 0.0
    %7083 = vmatprep.subr.mxu0 0.0
    %7084 = vmatpush1.msra.mxu0 0.0
    %7085 = vmatprep.subr.mxu0 0.0
    %7086 = vmatpush1.msra.mxu0 0.0
    %7087 = vmatprep.subr.mxu0 0.0
    %7088 = vmatpush1.msra.mxu0 0.0
    %7089 = vmatprep.mubr.f32.mxu0 0.0
    %7090 = vmatmul.mubr.f32.gmra.mrb[0].mxu0 %v7023
    %v7091 = vpop.f32.mrb[0].mxu0
    %v7092 = vadd.f32 0.0, %v7091
    %v7093 = vpop.f32.mrb[0].mxu0
    %7094 = vdwg.mxu0
    %v7096 = vsel %vm355, %v6948, 0
    %7098 = vmatprep.subr.mxu0 0.0
    %7099 = vmatpush1.msra.mxu0 %v6682
    %7100 = vmatprep.subr.mxu0 0.0
    %7101 = vmatpush1.msra.mxu0 0.0
    %7102 = vmatprep.subr.mxu0 0.0
    %7103 = vmatpush1.msra.mxu0 0.0
    %7104 = vmatprep.subr.mxu0 0.0
    %7105 = vmatpush1.msra.mxu0 0.0
    %7106 = vmatprep.subr.mxu0 0.0
    %7107 = vmatpush1.msra.mxu0 0.0
    %7108 = vmatprep.subr.mxu0 0.0
    %7109 = vmatpush1.msra.mxu0 0.0
    %7110 = vmatprep.subr.mxu0 0.0
    %7111 = vmatpush1.msra.mxu0 0.0
    %7112 = vmatprep.subr.mxu0 0.0
    %7113 = vmatpush1.msra.mxu0 0.0
    %7114 = vmatprep.subr.mxu0 0.0
    %7115 = vmatpush1.msra.mxu0 0.0
    %7116 = vmatprep.subr.mxu0 0.0
    %7117 = vmatpush1.msra.mxu0 0.0
    %7118 = vmatprep.subr.mxu0 0.0
    %7119 = vmatpush1.msra.mxu0 0.0
    %7120 = vmatprep.subr.mxu0 0.0
    %7121 = vmatpush1.msra.mxu0 0.0
    %7122 = vmatprep.subr.mxu0 0.0
    %7123 = vmatpush1.msra.mxu0 0.0
    %7124 = vmatprep.subr.mxu0 0.0
    %7125 = vmatpush1.msra.mxu0 0.0
    %7126 = vmatprep.subr.mxu0 0.0
    %7127 = vmatpush1.msra.mxu0 0.0
    %7128 = vmatprep.subr.mxu0 0.0
    %7129 = vmatpush1.msra.mxu0 0.0
    %7130 = vmatprep.subr.mxu0 0.0
    %7131 = vmatpush1.msra.mxu0 0.0
    %7132 = vmatprep.subr.mxu0 0.0
    %7133 = vmatpush1.msra.mxu0 0.0
    %7134 = vmatprep.subr.mxu0 0.0
    %7135 = vmatpush1.msra.mxu0 0.0
    %7136 = vmatprep.subr.mxu0 0.0
    %7137 = vmatpush1.msra.mxu0 0.0
    %7138 = vmatprep.subr.mxu0 0.0
    %7139 = vmatpush1.msra.mxu0 0.0
    %7140 = vmatprep.subr.mxu0 0.0
    %7141 = vmatpush1.msra.mxu0 0.0
    %7142 = vmatprep.subr.mxu0 0.0
    %7143 = vmatpush1.msra.mxu0 0.0
    %7144 = vmatprep.subr.mxu0 0.0
    %7145 = vmatpush1.msra.mxu0 0.0
    %7146 = vmatprep.subr.mxu0 0.0
    %7147 = vmatpush1.msra.mxu0 0.0
    %7148 = vmatprep.subr.mxu0 0.0
    %7149 = vmatpush1.msra.mxu0 0.0
    %7150 = vmatprep.subr.mxu0 0.0
    %7151 = vmatpush1.msra.mxu0 0.0
    %7152 = vmatprep.subr.mxu0 0.0
    %7153 = vmatpush1.msra.mxu0 0.0
    %7154 = vmatprep.subr.mxu0 0.0
    %7155 = vmatpush1.msra.mxu0 0.0
    %7156 = vmatprep.subr.mxu0 0.0
    %7157 = vmatpush1.msra.mxu0 0.0
    %7158 = vmatprep.subr.mxu0 0.0
    %7159 = vmatpush1.msra.mxu0 0.0
    %7160 = vmatprep.subr.mxu0 0.0
    %7161 = vmatpush1.msra.mxu0 0.0
    %7162 = vmatprep.mubr.f32.mxu0 0.0
    %7163 = vmatmul.mubr.f32.gmra.mrb[0].mxu0 %v7096
    %v7164 = vpop.f32.mrb[0].mxu0
    %v7165 = vadd.f32 0.0, %v7164
    %v7166 = vpop.f32.mrb[0].mxu0
    %7167 = vdwg.mxu0
    %s7168 = scalar_lea.vmem %s7, 56
    %v7169 = vld [vmem:[%s7168] sm:$0xff]
    %v7171 = vsel %vm355, %v7019, 0
    %v7174 = vsel %vm355, %v7092, 0
    %v7177 = vsel %vm355, %v7165, 0
    %7179 = vmatprep.subr.mxu0 0.0
    %7180 = vmatpush1.msra.mxu0 %v7169
    %7181 = vmatprep.subr.mxu0 0.0
    %7182 = vmatpush1.msra.mxu0 0.0
    %7183 = vmatprep.subr.mxu0 0.0
    %7184 = vmatpush1.msra.mxu0 0.0
    %7185 = vmatprep.subr.mxu0 0.0
    %7186 = vmatpush1.msra.mxu0 0.0
    %7187 = vmatprep.subr.mxu0 0.0
    %7188 = vmatpush1.msra.mxu0 0.0
    %7189 = vmatprep.subr.mxu0 0.0
    %7190 = vmatpush1.msra.mxu0 0.0
    %7191 = vmatprep.subr.mxu0 0.0
    %7192 = vmatpush1.msra.mxu0 0.0
    %7193 = vmatprep.subr.mxu0 0.0
    %7194 = vmatpush1.msra.mxu0 0.0
    %7195 = vmatprep.subr.mxu0 0.0
    %7196 = vmatpush1.msra.mxu0 0.0
    %7197 = vmatprep.subr.mxu0 0.0
    %7198 = vmatpush1.msra.mxu0 0.0
    %7199 = vmatprep.subr.mxu0 0.0
    %7200 = vmatpush1.msra.mxu0 0.0
    %7201 = vmatprep.subr.mxu0 0.0
    %7202 = vmatpush1.msra.mxu0 0.0
    %7203 = vmatprep.subr.mxu0 0.0
    %7204 = vmatpush1.msra.mxu0 0.0
    %7205 = vmatprep.subr.mxu0 0.0
    %7206 = vmatpush1.msra.mxu0 0.0
    %7207 = vmatprep.subr.mxu0 0.0
    %7208 = vmatpush1.msra.mxu0 0.0
    %7209 = vmatprep.subr.mxu0 0.0
    %7210 = vmatpush1.msra.mxu0 0.0
    %7211 = vmatprep.subr.mxu0 0.0
    %7212 = vmatpush1.msra.mxu0 0.0
    %7213 = vmatprep.subr.mxu0 0.0
    %7214 = vmatpush1.msra.mxu0 0.0
    %7215 = vmatprep.subr.mxu0 0.0
    %7216 = vmatpush1.msra.mxu0 0.0
    %7217 = vmatprep.subr.mxu0 0.0
    %7218 = vmatpush1.msra.mxu0 0.0
    %7219 = vmatprep.subr.mxu0 0.0
    %7220 = vmatpush1.msra.mxu0 0.0
    %7221 = vmatprep.subr.mxu0 0.0
    %7222 = vmatpush1.msra.mxu0 0.0
    %7223 = vmatprep.subr.mxu0 0.0
    %7224 = vmatpush1.msra.mxu0 0.0
    %7225 = vmatprep.subr.mxu0 0.0
    %7226 = vmatpush1.msra.mxu0 0.0
    %7227 = vmatprep.subr.mxu0 0.0
    %7228 = vmatpush1.msra.mxu0 0.0
    %7229 = vmatprep.subr.mxu0 0.0
    %7230 = vmatpush1.msra.mxu0 0.0
    %7231 = vmatprep.subr.mxu0 0.0
    %7232 = vmatpush1.msra.mxu0 0.0
    %7233 = vmatprep.subr.mxu0 0.0
    %7234 = vmatpush1.msra.mxu0 0.0
    %7235 = vmatprep.subr.mxu0 0.0
    %7236 = vmatpush1.msra.mxu0 0.0
    %7237 = vmatprep.subr.mxu0 0.0
    %7238 = vmatpush1.msra.mxu0 0.0
    %7239 = vmatprep.subr.mxu0 0.0
    %7240 = vmatpush1.msra.mxu0 0.0
    %7241 = vmatprep.subr.mxu0 0.0
    %7242 = vmatpush1.msra.mxu0 0.0
    %7243 = vmatprep.mubr.f32.mxu0 0.0
    %7244 = vmatmul.mubr.f32.gmra.mrb[0].mxu0 %v7171
    %v7245 = vpop.f32.mrb[0].mxu0
    %v7246 = vadd.f32 0.0, %v7245
    %v7247 = vpop.f32.mrb[0].mxu0
    %7248 = vmatprep.mubr.f32.mxu0 0.0
    %7249 = vmatmul.mubr.f32.gmra.mrb[0].mxu0 %v7174
    %v7250 = vpop.f32.mrb[0].mxu0
    %v7251 = vadd.f32 0.0, %v7250
    %v7252 = vpop.f32.mrb[0].mxu0
    %7253 = vmatprep.mubr.f32.mxu0 0.0
    %7254 = vmatmul.mubr.f32.gmra.mrb[0].mxu0 %v7177
    %v7255 = vpop.f32.mrb[0].mxu0
    %v7256 = vadd.f32 0.0, %v7255
    %v7257 = vpop.f32.mrb[0].mxu0
    %7258 = vdwg.mxu0
    %v7259 = vadd.f32 %v6403, %v7246
    %v7260 = vadd.f32 %v6404, %v7251
    %v7261 = vadd.f32 %v6405, %v7256
    %s7262 = scalar_lea.vmem %s8, 1
    %v7263 = vld [vmem:[%s7262] sm:$0x1]
    %v7265 = vlaneseq
    %v7266 = vshrl.u32 %v7265, 7
    %v7267 = vsub.s32 0, %v7266
    %v7268 = vrot.slane %v7263, %v7267
    %v7270 = vadd.f32 %v7259, %v7268
    %v7271 = vadd.f32 %v7260, %v7268
    %v7272 = vadd.f32 %v7261, %v7268
    %v7273 = vadd.f32 %v3832, %v7270
    %v7274 = vadd.f32 %v3833, %v7271
    %v7275 = vadd.f32 %v3834, %v7272
    %v7276 = vsel %vm83, %v7273, 0.0
    %7277 = vadd.xlane.f32.xlu0 %v7276
    %v7278 = vpop.xlane.xlu0 %7277
    %v7279 = vsel %vm83, %v7274, 0.0
    %7280 = vadd.xlane.f32.xlu0 %v7279
    %v7281 = vpop.xlane.xlu0 %7280
    %v7282 = vsel %vm83, %v7275, 0.0
    %7283 = vadd.xlane.f32.xlu0 %v7282
    %v7284 = vpop.xlane.xlu0 %7283
    %v7285 = vmul.f32 %v7278, %v3516
    %v7286 = vmul.f32 %v7281, %v3516
    %v7287 = vmul.f32 %v7284, %v3516
    %v7288 = vsub.f32 %v7273, %v7285
    %v7289 = vsub.f32 %v7274, %v7286
    %v7290 = vsub.f32 %v7275, %v7287
    %v7291 = vmul.f32 %v7288, %v7288
    %v7292 = vmul.f32 %v7289, %v7289
    %v7293 = vmul.f32 %v7290, %v7290
    %v7294 = vsel %vm83, %v7291, 0.0
    %7295 = vadd.xlane.f32.xlu0 %v7294
    %v7296 = vpop.xlane.xlu0 %7295
    %v7297 = vsel %vm83, %v7292, 0.0
    %7298 = vadd.xlane.f32.xlu0 %v7297
    %v7299 = vpop.xlane.xlu0 %7298
    %v7300 = vsel %vm83, %v7293, 0.0
    %7301 = vadd.xlane.f32.xlu0 %v7300
    %v7302 = vpop.xlane.xlu0 %7301
    %v7303 = vmul.f32 %v7296, %v3516
    %v7304 = vmul.f32 %v7299, %v3516
    %v7305 = vmul.f32 %v7302, %v3516
    %v7306 = vadd.f32 %v7303, 1e-05
    %v7307 = vadd.f32 %v7304, 1e-05
    %v7308 = vadd.f32 %v7305, 1e-05
    %v7309 = vrsqrt.pop %v7306
    %v7310 = vrsqrt.pop %v7307
    %v7311 = vrsqrt.pop %v7308
    %v7312 = vmul.f32 %v7288, %v7309
    %v7313 = vmul.f32 %v7289, %v7310
    %v7314 = vmul.f32 %v7290, %v7311
    %s7315 = scalar_lea.vmem %s9, 1
    %v7316 = vld [vmem:[%s7315] sm:$0x1]
    %v7318 = vlaneseq
    %v7319 = vshrl.u32 %v7318, 7
    %v7320 = vsub.s32 0, %v7319
    %v7321 = vrot.slane %v7316, %v7320
    %v7323 = vmul.f32 %v7312, %v7321
    %v7324 = vmul.f32 %v7313, %v7321
    %v7325 = vmul.f32 %v7314, %v7321
    %s7326 = scalar_lea.vmem %s10, 1
    %v7327 = vld [vmem:[%s7326] sm:$0x1]
    %v7329 = vlaneseq
    %v7330 = vshrl.u32 %v7329, 7
    %v7331 = vsub.s32 0, %v7330
    %v7332 = vrot.slane %v7327, %v7331
    %v7334 = vadd.f32 %v7323, %v7332
    %v7335 = vadd.f32 %v7324, %v7332
    %v7336 = vadd.f32 %v7325, %v7332
    %s7337 = scalar_lea.vmem %s11, 32
    %v7338 = vld [vmem:[%s7337] sm:$0xff]
    %v7339 = vld [vmem:[%s7337 + $0x8] sm:$0xff]
    %v7340 = vld [vmem:[%s7337 + $0x10] sm:$0xff]
    %v7341 = vld [vmem:[%s7337 + $0x18] sm:$0xff]
    %s7342 = scalar_lea.vmem %s12, 1
    %v7343 = vld [vmem:[%s7342] sm:$0x1]
    %v7345 = vlaneseq
    %v7346 = vshrl.u32 %v7345, 7
    %v7347 = vsub.s32 0, %v7346
    %v7348 = vrot.slane %v7343, %v7347
    %v7351 = vsel %vm83, %v7334, 0
    %v7354 = vsel %vm83, %v7335, 0
    %v7357 = vsel %vm83, %v7336, 0
    %7359 = vmatprep.subr.mxu0 0.0
    %7360 = vmatpush1.msra.mxu0 %v7338
    %7361 = vmatprep.subr.mxu0 0.0
    %7362 = vmatpush1.msra.mxu0 %v7339
    %7363 = vmatprep.subr.mxu0 0.0
    %7364 = vmatpush1.msra.mxu0 %v7340
    %7365 = vmatprep.subr.mxu0 0.0
    %7366 = vmatpush1.msra.mxu0 %v7341
    %7367 = vmatprep.subr.mxu0 0.0
    %7368 = vmatpush1.msra.mxu0 0.0
    %7369 = vmatprep.subr.mxu0 0.0
    %7370 = vmatpush1.msra.mxu0 0.0
    %7371 = vmatprep.subr.mxu0 0.0
    %7372 = vmatpush1.msra.mxu0 0.0
    %7373 = vmatprep.subr.mxu0 0.0
    %7374 = vmatpush1.msra.mxu0 0.0
    %7375 = vmatprep.subr.mxu0 0.0
    %7376 = vmatpush1.msra.mxu0 0.0
    %7377 = vmatprep.subr.mxu0 0.0
    %7378 = vmatpush1.msra.mxu0 0.0
    %7379 = vmatprep.subr.mxu0 0.0
    %7380 = vmatpush1.msra.mxu0 0.0
    %7381 = vmatprep.subr.mxu0 0.0
    %7382 = vmatpush1.msra.mxu0 0.0
    %7383 = vmatprep.subr.mxu0 0.0
    %7384 = vmatpush1.msra.mxu0 0.0
    %7385 = vmatprep.subr.mxu0 0.0
    %7386 = vmatpush1.msra.mxu0 0.0
    %7387 = vmatprep.subr.mxu0 0.0
    %7388 = vmatpush1.msra.mxu0 0.0
    %7389 = vmatprep.subr.mxu0 0.0
    %7390 = vmatpush1.msra.mxu0 0.0
    %7391 = vmatprep.subr.mxu0 0.0
    %7392 = vmatpush1.msra.mxu0 0.0
    %7393 = vmatprep.subr.mxu0 0.0
    %7394 = vmatpush1.msra.mxu0 0.0
    %7395 = vmatprep.subr.mxu0 0.0
    %7396 = vmatpush1.msra.mxu0 0.0
    %7397 = vmatprep.subr.mxu0 0.0
    %7398 = vmatpush1.msra.mxu0 0.0
    %7399 = vmatprep.subr.mxu0 0.0
    %7400 = vmatpush1.msra.mxu0 0.0
    %7401 = vmatprep.subr.mxu0 0.0
    %7402 = vmatpush1.msra.mxu0 0.0
    %7403 = vmatprep.subr.mxu0 0.0
    %7404 = vmatpush1.msra.mxu0 0.0
    %7405 = vmatprep.subr.mxu0 0.0
    %7406 = vmatpush1.msra.mxu0 0.0
    %7407 = vmatprep.subr.mxu0 0.0
    %7408 = vmatpush1.msra.mxu0 0.0
    %7409 = vmatprep.subr.mxu0 0.0
    %7410 = vmatpush1.msra.mxu0 0.0
    %7411 = vmatprep.subr.mxu0 0.0
    %7412 = vmatpush1.msra.mxu0 0.0
    %7413 = vmatprep.subr.mxu0 0.0
    %7414 = vmatpush1.msra.mxu0 0.0
    %7415 = vmatprep.subr.mxu0 0.0
    %7416 = vmatpush1.msra.mxu0 0.0
    %7417 = vmatprep.subr.mxu0 0.0
    %7418 = vmatpush1.msra.mxu0 0.0
    %7419 = vmatprep.subr.mxu0 0.0
    %7420 = vmatpush1.msra.mxu0 0.0
    %7421 = vmatprep.subr.mxu0 0.0
    %7422 = vmatpush1.msra.mxu0 0.0
    %7423 = vmatprep.mubr.f32.mxu0 0.0
    %7424 = vmatmul.mubr.f32.gmra.mrb[0].mxu0 %v7351
    %v7425 = vpop.f32.mrb[0].mxu0
    %v7426 = vadd.f32 %v7348, %v7425
    %v7427 = vpop.f32.mrb[0].mxu0
    %7428 = vmatprep.mubr.f32.mxu0 0.0
    %7429 = vmatmul.mubr.f32.gmra.mrb[0].mxu0 %v7354
    %v7430 = vpop.f32.mrb[0].mxu0
    %v7431 = vadd.f32 %v7348, %v7430
    %v7432 = vpop.f32.mrb[0].mxu0
    %7433 = vmatprep.mubr.f32.mxu0 0.0
    %7434 = vmatmul.mubr.f32.gmra.mrb[0].mxu0 %v7357
    %v7435 = vpop.f32.mrb[0].mxu0
    %v7436 = vadd.f32 %v7348, %v7435
    %v7437 = vpop.f32.mrb[0].mxu0
    %7438 = vdwg.mxu0
    %v7439 = vmax.f32 %v7426, 0.0
    %v7440 = vmax.f32 %v7431, 0.0
    %v7441 = vmax.f32 %v7436, 0.0
    %s7442 = scalar_lea.vmem %s13, 128
    %v7443 = vld [vmem:[%s7442] sm:$0xff]
    %v7444 = vld [vmem:[%s7442 + $0x8] sm:$0xff]
    %v7445 = vld [vmem:[%s7442 + $0x10] sm:$0xff]
    %v7446 = vld [vmem:[%s7442 + $0x18] sm:$0xff]
    %v7447 = vld [vmem:[%s7442 + $0x20] sm:$0xff]
    %v7448 = vld [vmem:[%s7442 + $0x28] sm:$0xff]
    %v7449 = vld [vmem:[%s7442 + $0x30] sm:$0xff]
    %v7450 = vld [vmem:[%s7442 + $0x38] sm:$0xff]
    %v7451 = vld [vmem:[%s7442 + $0x40] sm:$0xff]
    %v7452 = vld [vmem:[%s7442 + $0x48] sm:$0xff]
    %v7453 = vld [vmem:[%s7442 + $0x50] sm:$0xff]
    %v7454 = vld [vmem:[%s7442 + $0x58] sm:$0xff]
    %v7455 = vld [vmem:[%s7442 + $0x60] sm:$0xff]
    %v7456 = vld [vmem:[%s7442 + $0x68] sm:$0xff]
    %v7457 = vld [vmem:[%s7442 + $0x70] sm:$0xff]
    %v7458 = vld [vmem:[%s7442 + $0x78] sm:$0xff]
    %s7459 = scalar_lea.vmem %s14, 1
    %v7460 = vld [vmem:[%s7459] sm:$0x1]
    %v7462 = vlaneseq
    %v7463 = vshrl.u32 %v7462, 7
    %v7464 = vsub.s32 0, %v7463
    %v7465 = vrot.slane %v7460, %v7464
    %7467 = vmatprep.subr.mxu0 0.0
    %7468 = vmatpush1.msra.mxu0 %v7443
    %7469 = vmatprep.subr.mxu0 0.0
    %7470 = vmatpush1.msra.mxu0 %v7444
    %7471 = vmatprep.subr.mxu0 0.0
    %7472 = vmatpush1.msra.mxu0 %v7445
    %7473 = vmatprep.subr.mxu0 0.0
    %7474 = vmatpush1.msra.mxu0 %v7446
    %7475 = vmatprep.subr.mxu0 0.0
    %7476 = vmatpush1.msra.mxu0 %v7447
    %7477 = vmatprep.subr.mxu0 0.0
    %7478 = vmatpush1.msra.mxu0 %v7448
    %7479 = vmatprep.subr.mxu0 0.0
    %7480 = vmatpush1.msra.mxu0 %v7449
    %7481 = vmatprep.subr.mxu0 0.0
    %7482 = vmatpush1.msra.mxu0 %v7450
    %7483 = vmatprep.subr.mxu0 0.0
    %7484 = vmatpush1.msra.mxu0 %v7451
    %7485 = vmatprep.subr.mxu0 0.0
    %7486 = vmatpush1.msra.mxu0 %v7452
    %7487 = vmatprep.subr.mxu0 0.0
    %7488 = vmatpush1.msra.mxu0 %v7453
    %7489 = vmatprep.subr.mxu0 0.0
    %7490 = vmatpush1.msra.mxu0 %v7454
    %7491 = vmatprep.subr.mxu0 0.0
    %7492 = vmatpush1.msra.mxu0 %v7455
    %7493 = vmatprep.subr.mxu0 0.0
    %7494 = vmatpush1.msra.mxu0 %v7456
    %7495 = vmatprep.subr.mxu0 0.0
    %7496 = vmatpush1.msra.mxu0 %v7457
    %7497 = vmatprep.subr.mxu0 0.0
    %7498 = vmatpush1.msra.mxu0 %v7458
    %7499 = vmatprep.subr.mxu0 0.0
    %7500 = vmatpush1.msra.mxu0 0.0
    %7501 = vmatprep.subr.mxu0 0.0
    %7502 = vmatpush1.msra.mxu0 0.0
    %7503 = vmatprep.subr.mxu0 0.0
    %7504 = vmatpush1.msra.mxu0 0.0
    %7505 = vmatprep.subr.mxu0 0.0
    %7506 = vmatpush1.msra.mxu0 0.0
    %7507 = vmatprep.subr.mxu0 0.0
    %7508 = vmatpush1.msra.mxu0 0.0
    %7509 = vmatprep.subr.mxu0 0.0
    %7510 = vmatpush1.msra.mxu0 0.0
    %7511 = vmatprep.subr.mxu0 0.0
    %7512 = vmatpush1.msra.mxu0 0.0
    %7513 = vmatprep.subr.mxu0 0.0
    %7514 = vmatpush1.msra.mxu0 0.0
    %7515 = vmatprep.subr.mxu0 0.0
    %7516 = vmatpush1.msra.mxu0 0.0
    %7517 = vmatprep.subr.mxu0 0.0
    %7518 = vmatpush1.msra.mxu0 0.0
    %7519 = vmatprep.subr.mxu0 0.0
    %7520 = vmatpush1.msra.mxu0 0.0
    %7521 = vmatprep.subr.mxu0 0.0
    %7522 = vmatpush1.msra.mxu0 0.0
    %7523 = vmatprep.subr.mxu0 0.0
    %7524 = vmatpush1.msra.mxu0 0.0
    %7525 = vmatprep.subr.mxu0 0.0
    %7526 = vmatpush1.msra.mxu0 0.0
    %7527 = vmatprep.subr.mxu0 0.0
    %7528 = vmatpush1.msra.mxu0 0.0
    %7529 = vmatprep.subr.mxu0 0.0
    %7530 = vmatpush1.msra.mxu0 0.0
    %7531 = vmatprep.mubr.f32.mxu0 0.0
    %7532 = vmatmul.mubr.f32.gmra.mrb[0].mxu0 %v7439
    %v7533 = vpop.f32.mrb[0].mxu0
    %v7534 = vadd.f32 %v7465, %v7533
    %v7535 = vpop.f32.mrb[0].mxu0
    %7536 = vmatprep.mubr.f32.mxu0 0.0
    %7537 = vmatmul.mubr.f32.gmra.mrb[0].mxu0 %v7440
    %v7538 = vpop.f32.mrb[0].mxu0
    %v7539 = vadd.f32 %v7465, %v7538
    %v7540 = vpop.f32.mrb[0].mxu0
    %7541 = vmatprep.mubr.f32.mxu0 0.0
    %7542 = vmatmul.mubr.f32.gmra.mrb[0].mxu0 %v7441
    %v7543 = vpop.f32.mrb[0].mxu0
    %v7544 = vadd.f32 %v7465, %v7543
    %v7545 = vpop.f32.mrb[0].mxu0
    %7546 = vdwg.mxu0
    %v7547 = vadd.f32 %v7334, %v7534
    %v7548 = vadd.f32 %v7335, %v7539
    %v7549 = vadd.f32 %v7336, %v7544
    %v7550 = vsel %vm83, %v7547, 0.0
    %7551 = vadd.xlane.f32.xlu0 %v7550
    %v7552 = vpop.xlane.xlu0 %7551
    %v7553 = vsel %vm83, %v7548, 0.0
    %7554 = vadd.xlane.f32.xlu0 %v7553
    %v7555 = vpop.xlane.xlu0 %7554
    %v7556 = vsel %vm83, %v7549, 0.0
    %7557 = vadd.xlane.f32.xlu0 %v7556
    %v7558 = vpop.xlane.xlu0 %7557
    %v7559 = vmul.f32 %v7552, %v3516
    %v7560 = vmul.f32 %v7555, %v3516
    %v7561 = vmul.f32 %v7558, %v3516
    %v7562 = vsub.f32 %v7547, %v7559
    %v7563 = vsub.f32 %v7548, %v7560
    %v7564 = vsub.f32 %v7549, %v7561
    %v7565 = vmul.f32 %v7562, %v7562
    %v7566 = vmul.f32 %v7563, %v7563
    %v7567 = vmul.f32 %v7564, %v7564
    %v7568 = vsel %vm83, %v7565, 0.0
    %7569 = vadd.xlane.f32.xlu0 %v7568
    %v7570 = vpop.xlane.xlu0 %7569
    %v7571 = vsel %vm83, %v7566, 0.0
    %7572 = vadd.xlane.f32.xlu0 %v7571
    %v7573 = vpop.xlane.xlu0 %7572
    %v7574 = vsel %vm83, %v7567, 0.0
    %7575 = vadd.xlane.f32.xlu0 %v7574
    %v7576 = vpop.xlane.xlu0 %7575
    %v7577 = vmul.f32 %v7570, %v3516
    %v7578 = vmul.f32 %v7573, %v3516
    %v7579 = vmul.f32 %v7576, %v3516
    %v7580 = vadd.f32 %v7577, 1e-05
    %v7581 = vadd.f32 %v7578, 1e-05
    %v7582 = vadd.f32 %v7579, 1e-05
    %v7583 = vrsqrt.pop %v7580
    %v7584 = vrsqrt.pop %v7581
    %v7585 = vrsqrt.pop %v7582
    %v7586 = vmul.f32 %v7562, %v7583
    %v7587 = vmul.f32 %v7563, %v7584
    %v7588 = vmul.f32 %v7564, %v7585
    %s7589 = scalar_lea.vmem %s15, 1
    %v7590 = vld [vmem:[%s7589] sm:$0x1]
    %v7592 = vlaneseq
    %v7593 = vshrl.u32 %v7592, 7
    %v7594 = vsub.s32 0, %v7593
    %v7595 = vrot.slane %v7590, %v7594
    %v7597 = vmul.f32 %v7586, %v7595
    %v7598 = vmul.f32 %v7587, %v7595
    %v7599 = vmul.f32 %v7588, %v7595
    %s7600 = scalar_lea.vmem %s16, 1
    %v7601 = vld [vmem:[%s7600] sm:$0x1]
    %v7603 = vlaneseq
    %v7604 = vshrl.u32 %v7603, 7
    %v7605 = vsub.s32 0, %v7604
    %v7606 = vrot.slane %v7601, %v7605
    %v7608 = vadd.f32 %v7597, %v7606
    %v7609 = vadd.f32 %v7598, %v7606
    %v7610 = vadd.f32 %v7599, %v7606
    %v7611 = vlaneseq
    %v7612 = vshrl.u32 %v7611, 7
    %vm7613 = vcmp.lt.s32.totalorder %v7612, 7
    %v7614 = vsel %vm7613, %v7608, 0.0
    %v7615 = vsel %vm7613, %v7609, 0.0
    %v7616 = vsel %vm7613, %v7610, 0.0
    %v7617 = vsel %vm83, %v7614, 0.0
    %v7618 = vrot.slane %v7617, 4
    %v7619 = vadd.f32 %v7617, %v7618
    %v7620 = vrot.slane %v7619, 2
    %v7621 = vadd.f32 %v7619, %v7620
    %v7622 = vrot.slane %v7621, 1
    %v7623 = vadd.f32 %v7621, %v7622
    %v7624 = vsel %vm83, %v7615, 0.0
    %v7625 = vrot.slane %v7624, 4
    %v7626 = vadd.f32 %v7624, %v7625
    %v7627 = vrot.slane %v7626, 2
    %v7628 = vadd.f32 %v7626, %v7627
    %v7629 = vrot.slane %v7628, 1
    %v7630 = vadd.f32 %v7628, %v7629
    %v7631 = vsel %vm83, %v7616, 0.0
    %v7632 = vrot.slane %v7631, 4
    %v7633 = vadd.f32 %v7631, %v7632
    %v7634 = vrot.slane %v7633, 2
    %v7635 = vadd.f32 %v7633, %v7634
    %v7636 = vrot.slane %v7635, 1
    %v7637 = vadd.f32 %v7635, %v7636
    %v7638 = vld [vmem:[%s17] sm:$0xff]
    %v7639 = vld [vmem:[%s17 + $0x8] sm:$0xff]
    %v7640 = vld [vmem:[%s17 + $0x10] sm:$0xff]
    %v7641 = vld [vmem:[%s17 + $0x18] sm:$0xff]
    %v7642 = vld [vmem:[%s18] sm:$0x1]
    %v7643 = vmul.f32 %v7642, 7.0
    %v7645 = vlaneseq
    %v7646 = vshrl.u32 %v7645, 7
    %v7647 = vsub.s32 0, %v7646
    %v7648 = vrot.slane %v7643, %v7647
    %vm7653 = vcmask 1041409
    %v7654 = vsel %vm7653, %v7630, %v7623
    %vm7655 = vcmask 1042434
    %v7656 = vsel %vm7655, %v7637, %v7654
    %v7657 = vsel %vm83, %v7656, 0
    %7659 = vmatprep.subr.mxu0 0.0
    %7660 = vmatpush1.msra.mxu0 %v7638
    %7661 = vmatprep.subr.mxu0 0.0
    %7662 = vmatpush1.msra.mxu0 %v7639
    %7663 = vmatprep.subr.mxu0 0.0
    %7664 = vmatpush1.msra.mxu0 %v7640
    %7665 = vmatprep.subr.mxu0 0.0
    %7666 = vmatpush1.msra.mxu0 %v7641
    %7667 = vmatprep.subr.mxu0 0.0
    %7668 = vmatpush1.msra.mxu0 0.0
    %7669 = vmatprep.subr.mxu0 0.0
    %7670 = vmatpush1.msra.mxu0 0.0
    %7671 = vmatprep.subr.mxu0 0.0
    %7672 = vmatpush1.msra.mxu0 0.0
    %7673 = vmatprep.subr.mxu0 0.0
    %7674 = vmatpush1.msra.mxu0 0.0
    %7675 = vmatprep.subr.mxu0 0.0
    %7676 = vmatpush1.msra.mxu0 0.0
    %7677 = vmatprep.subr.mxu0 0.0
    %7678 = vmatpush1.msra.mxu0 0.0
    %7679 = vmatprep.subr.mxu0 0.0
    %7680 = vmatpush1.msra.mxu0 0.0
    %7681 = vmatprep.subr.mxu0 0.0
    %7682 = vmatpush1.msra.mxu0 0.0
    %7683 = vmatprep.subr.mxu0 0.0
    %7684 = vmatpush1.msra.mxu0 0.0
    %7685 = vmatprep.subr.mxu0 0.0
    %7686 = vmatpush1.msra.mxu0 0.0
    %7687 = vmatprep.subr.mxu0 0.0
    %7688 = vmatpush1.msra.mxu0 0.0
    %7689 = vmatprep.subr.mxu0 0.0
    %7690 = vmatpush1.msra.mxu0 0.0
    %7691 = vmatprep.subr.mxu0 0.0
    %7692 = vmatpush1.msra.mxu0 0.0
    %7693 = vmatprep.subr.mxu0 0.0
    %7694 = vmatpush1.msra.mxu0 0.0
    %7695 = vmatprep.subr.mxu0 0.0
    %7696 = vmatpush1.msra.mxu0 0.0
    %7697 = vmatprep.subr.mxu0 0.0
    %7698 = vmatpush1.msra.mxu0 0.0
    %7699 = vmatprep.subr.mxu0 0.0
    %7700 = vmatpush1.msra.mxu0 0.0
    %7701 = vmatprep.subr.mxu0 0.0
    %7702 = vmatpush1.msra.mxu0 0.0
    %7703 = vmatprep.subr.mxu0 0.0
    %7704 = vmatpush1.msra.mxu0 0.0
    %7705 = vmatprep.subr.mxu0 0.0
    %7706 = vmatpush1.msra.mxu0 0.0
    %7707 = vmatprep.subr.mxu0 0.0
    %7708 = vmatpush1.msra.mxu0 0.0
    %7709 = vmatprep.subr.mxu0 0.0
    %7710 = vmatpush1.msra.mxu0 0.0
    %7711 = vmatprep.subr.mxu0 0.0
    %7712 = vmatpush1.msra.mxu0 0.0
    %7713 = vmatprep.subr.mxu0 0.0
    %7714 = vmatpush1.msra.mxu0 0.0
    %7715 = vmatprep.subr.mxu0 0.0
    %7716 = vmatpush1.msra.mxu0 0.0
    %7717 = vmatprep.subr.mxu0 0.0
    %7718 = vmatpush1.msra.mxu0 0.0
    %7719 = vmatprep.subr.mxu0 0.0
    %7720 = vmatpush1.msra.mxu0 0.0
    %7721 = vmatprep.subr.mxu0 0.0
    %7722 = vmatpush1.msra.mxu0 0.0
    %7723 = vmatprep.mubr.f32.mxu0 0.0
    %7724 = vmatmul.mubr.f32.gmra.mrb[0].mxu0 %v7657
    %v7725 = vpop.f32.mrb[0].mxu0
    %v7726 = vadd.f32 %v7648, %v7725
    %v7727 = vpop.f32.mrb[0].mxu0
    %7728 = vdwg.mxu0
    %v7729 = vld [vmem:[%s19] sm:$0xff]
    %v7730 = vld [vmem:[%s19 + $0x8] sm:$0xff]
    %v7731 = vld [vmem:[%s19 + $0x10] sm:$0xff]
    %v7732 = vld [vmem:[%s19 + $0x18] sm:$0xff]
    %v7733 = vld [vmem:[%s20] sm:$0x1]
    %v7735 = vlaneseq
    %v7736 = vshrl.u32 %v7735, 7
    %v7737 = vsub.s32 0, %v7736
    %v7738 = vrot.slane %v7733, %v7737
    %v7741 = vsel %vm83, %v7726, 0
    %7743 = vmatprep.subr.mxu0 0.0
    %7744 = vmatpush1.msra.mxu0 %v7729
    %7745 = vmatprep.subr.mxu0 0.0
    %7746 = vmatpush1.msra.mxu0 %v7730
    %7747 = vmatprep.subr.mxu0 0.0
    %7748 = vmatpush1.msra.mxu0 %v7731
    %7749 = vmatprep.subr.mxu0 0.0
    %7750 = vmatpush1.msra.mxu0 %v7732
    %7751 = vmatprep.subr.mxu0 0.0
    %7752 = vmatpush1.msra.mxu0 0.0
    %7753 = vmatprep.subr.mxu0 0.0
    %7754 = vmatpush1.msra.mxu0 0.0
    %7755 = vmatprep.subr.mxu0 0.0
    %7756 = vmatpush1.msra.mxu0 0.0
    %7757 = vmatprep.subr.mxu0 0.0
    %7758 = vmatpush1.msra.mxu0 0.0
    %7759 = vmatprep.subr.mxu0 0.0
    %7760 = vmatpush1.msra.mxu0 0.0
    %7761 = vmatprep.subr.mxu0 0.0
    %7762 = vmatpush1.msra.mxu0 0.0
    %7763 = vmatprep.subr.mxu0 0.0
    %7764 = vmatpush1.msra.mxu0 0.0
    %7765 = vmatprep.subr.mxu0 0.0
    %7766 = vmatpush1.msra.mxu0 0.0
    %7767 = vmatprep.subr.mxu0 0.0
    %7768 = vmatpush1.msra.mxu0 0.0
    %7769 = vmatprep.subr.mxu0 0.0
    %7770 = vmatpush1.msra.mxu0 0.0
    %7771 = vmatprep.subr.mxu0 0.0
    %7772 = vmatpush1.msra.mxu0 0.0
    %7773 = vmatprep.subr.mxu0 0.0
    %7774 = vmatpush1.msra.mxu0 0.0
    %7775 = vmatprep.subr.mxu0 0.0
    %7776 = vmatpush1.msra.mxu0 0.0
    %7777 = vmatprep.subr.mxu0 0.0
    %7778 = vmatpush1.msra.mxu0 0.0
    %7779 = vmatprep.subr.mxu0 0.0
    %7780 = vmatpush1.msra.mxu0 0.0
    %7781 = vmatprep.subr.mxu0 0.0
    %7782 = vmatpush1.msra.mxu0 0.0
    %7783 = vmatprep.subr.mxu0 0.0
    %7784 = vmatpush1.msra.mxu0 0.0
    %7785 = vmatprep.subr.mxu0 0.0
    %7786 = vmatpush1.msra.mxu0 0.0
    %7787 = vmatprep.subr.mxu0 0.0
    %7788 = vmatpush1.msra.mxu0 0.0
    %7789 = vmatprep.subr.mxu0 0.0
    %7790 = vmatpush1.msra.mxu0 0.0
    %7791 = vmatprep.subr.mxu0 0.0
    %7792 = vmatpush1.msra.mxu0 0.0
    %7793 = vmatprep.subr.mxu0 0.0
    %7794 = vmatpush1.msra.mxu0 0.0
    %7795 = vmatprep.subr.mxu0 0.0
    %7796 = vmatpush1.msra.mxu0 0.0
    %7797 = vmatprep.subr.mxu0 0.0
    %7798 = vmatpush1.msra.mxu0 0.0
    %7799 = vmatprep.subr.mxu0 0.0
    %7800 = vmatpush1.msra.mxu0 0.0
    %7801 = vmatprep.subr.mxu0 0.0
    %7802 = vmatpush1.msra.mxu0 0.0
    %7803 = vmatprep.subr.mxu0 0.0
    %7804 = vmatpush1.msra.mxu0 0.0
    %7805 = vmatprep.subr.mxu0 0.0
    %7806 = vmatpush1.msra.mxu0 0.0
    %7807 = vmatprep.mubr.f32.mxu0 0.0
    %7808 = vmatmul.mubr.f32.gmra.mrb[0].mxu0 %v7741
    %v7809 = vpop.f32.mrb[0].mxu0
    %v7810 = vadd.f32 %v7738, %v7809
    %v7811 = vpop.f32.mrb[0].mxu0
    %7812 = vdwg.mxu0
    %vm7813 = vcmask 256000
    %7814 = vst.msk [vmem:[#allocation2] sm:$0x7] %vm7813, %v7810
    // Predicated region
    $region86: #{tpu_custom_call.1} parent=1 // pred_check
      _
    $region87: #{tpu_custom_call.1} parent=1 // pred_check_branch
      %7816 = sbr.rel (0) target = $region89
    $region88: #{tpu_custom_call.1} parent=1 // pred_region
      %s7818 = ssub.s32 64, 64
      %7819 = vsyncadd [#allocation3], %s7818
      %s7821 = sshll.u32 [#allocation2], 4
      %s7822 = int_to_ptr.vmem [resolvable:$true] %s7821
      %7824 = dma.vmem_to_hbm [thread:$0]  %s7822, 64, %s21, [#allocation3]
    $region89: #{tpu_custom_call.1} parent=1 // pred_fallthru
      _
    // Predicated region
    $region90: #{tpu_custom_call.1} parent=1 // pred_check
      _
    $region91: #{tpu_custom_call.1} parent=1 // pred_check_branch
      %7826 = sbr.rel (0) target = $region93
    $region92: #{tpu_custom_call.1} parent=1 // pred_region
      %7827 = dma.done [#allocation3], 64
    $region93: #{tpu_custom_call.1} parent=1 // pred_fallthru
      _
    %7828 = vsyncpa [#allocation3], 1

</llo_original>
